<compile_context>
chip_gen: v6e
topology: v6e:2x2x1
jax: 0.10.0
libtpu: 0.0.40
codegen_flags: <defaults>
</compile_context>

<pallas_src>
import functools

import jax
import jax.numpy as jnp
from jax.experimental import pallas as pl
from jax.experimental.pallas import tpu as pltpu

_EPS = 1e-5     # BatchNorm2d default eps
_SLOPE = 0.01   # leaky_relu default negative_slope


def _leaky(v):
    return jnp.where(v >= 0, v, _SLOPE * v)


def _colsum(v):
    # per-channel sum of a (rows, C) value -> (1, C)
    return jnp.sum(v, axis=0, keepdims=True)


# --------------------------- fused Deconv kernel ---------------------------- #

def _make_deconv_kernel(stride, activation, n, h, w, cin, cout, w1p):
    """Builds the fused Deconv-block kernel (single launch, all VMEM resident)."""
    h1, w1 = h + 1, w + 1                 # deconv1 output spatial size (valid part)
    r0 = n * h * w                        # input pixels (rows of the 1st tap matmul)
    r1p = n * h1 * w1p                    # padded deconv1 canvas pixels (rows of the 2nd)
    cnt1 = float(n * h1 * w1)             # BN1 population (valid deconv1 pixels)
    cnt2 = float(stride * stride * n * h * w)   # BN2 population (output pixels)

    def kernel(*refs):
        if stride == 1:
            (x_ref, m_ref, w1_ref, b1_ref, w2_ref, b2_ref,
             g1_ref, be1_ref, g2_ref, be2_ref, o_ref, h1_scr) = refs
        else:
            (x_ref, m_ref, w1_ref, b1_ref, w2_ref, b2_ref, wu_ref, bu_ref,
             g1_ref, be1_ref, g2_ref, be2_ref, o_ref, h1_scr) = refs

        # ------ deconv1 (2x2, stride 1): per-tap matmuls + VMEM overlap-add ------
        # rows = flattened (n, i, j); lanes = channels.  (w is a multiple of 8 so the
        # reshape is tile-trivial.)
        xf = x_ref[...].reshape(r0, cin)
        h1_scr[...] = jnp.zeros_like(h1_scr)
        for kh in range(2):
            for kw in range(2):
                k = 2 * kh + kw
                tap = jnp.dot(xf, w1_ref[k], preferred_element_type=jnp.float32)
                h1_scr[:, kh:kh + h, kw:kw + w, :] += tap.reshape(n, h, w, cout)

        # ------ BatchNorm1 (training-mode batch stats, two-pass) + leaky_relu ----
        mask = m_ref[...]                              # (r1p, 1): 1.0 on valid pixels
        a = h1_scr[...].reshape(r1p, cout) + b1_ref[...]
        mean1 = _colsum(a * mask) / cnt1
        d1 = a - mean1
        d1m = d1 * mask
        var1 = _colsum(d1m * d1m) / cnt1
        a = d1 * (g1_ref[...] * jax.lax.rsqrt(var1 + _EPS)) + be1_ref[...]
        a = _leaky(a)

        # ------ deconv2 (2x2, stride `stride`, padding 1): per-tap matmuls -------
        tap2 = [jnp.dot(a, w2_ref[k], preferred_element_type=jnp.float32)
                .reshape(n, h1, w1p, cout) for k in range(4)]
        b2 = b2_ref[...]

        if stride == 1:
            # padding=1 crop turns the overlap-add into a pure gather of tap slices:
            #   y[r, c] = sum_{kh,kw} tap_{kh,kw}[r + 1 - kh, c + 1 - kw]
            y4 = (tap2[0][:, 1:h + 1, 1:w + 1, :] + tap2[1][:, 1:h + 1, 0:w, :]
                  + tap2[2][:, 0:h, 1:w + 1, :] + tap2[3][:, 0:h, 0:w, :])
            yf = y4.reshape(r0, cout) + b2 + xf        # identity residual (Cin == Cout)
            mean2 = _colsum(yf) / cnt2
            d2 = yf - mean2
            var2 = _colsum(d2 * d2) / cnt2
            y = d2 * (g2_ref[...] * jax.lax.rsqrt(var2 + _EPS)) + be2_ref[...]
            if activation:
                y = _leaky(y)
            o_ref[...] = y.reshape(n, h, w, cout)
        else:
            # stride 2: taps land on disjoint output pixels, so keep a (p, q)-blocked
            # layout: out[2a+p, 2b+q] = block[p, q][a, b].  After the padding=1 crop
            # block (p, q) is fed by deconv2 tap (1-p, 1-q) shifted by (p, q); the
            # learned stride-2 upsample residual is naturally blocked the same way.
            bu = bu_ref[...]
            blks = []
            for p in range(2):
                for q in range(2):
                    k2 = 2 * (1 - p) + (1 - q)
                    ku = 2 * p + q
                    tu = jnp.dot(xf, wu_ref[ku], preferred_element_type=jnp.float32)
                    blk = (tap2[k2][:, p:p + h, q:q + w, :].reshape(r0, cout)
                           + b2 + tu + bu)
                    blks.append(blk)
            mean2 = (_colsum(blks[0]) + _colsum(blks[1])
                     + _colsum(blks[2]) + _colsum(blks[3])) / cnt2
            var2 = (_colsum((blks[0] - mean2) * (blks[0] - mean2))
                    + _colsum((blks[1] - mean2) * (blks[1] - mean2))
                    + _colsum((blks[2] - mean2) * (blks[2] - mean2))
                    + _colsum((blks[3] - mean2) * (blks[3] - mean2))) / cnt2
            sc2 = g2_ref[...] * jax.lax.rsqrt(var2 + _EPS)
            sh2 = be2_ref[...]
            for k in range(4):
                y = (blks[k] - mean2) * sc2 + sh2
                if activation:
                    y = _leaky(y)
                o_ref[k] = y.reshape(n, h, w, cout)

    return kernel


# ------------------------------- wrappers ----------------------------------- #

def _tap_weights(wt):
    # PyTorch ConvTranspose2d weight [Cin, Cout, kh, kw] -> [4, Cin, Cout], k = 2*kh + kw
    cin, cout = wt.shape[0], wt.shape[1]
    return jnp.transpose(wt, (2, 3, 0, 1)).reshape(4, cin, cout).astype(jnp.float32)


def _row(v):
    return v.astype(jnp.float32).reshape(1, -1)


def deconv_forward(x_nchw, params, stride=1, activation=True):
    """Forward pass of the PyTorch `Deconv` block.  I/O is NCHW; one fused Pallas call."""
    if stride not in (1, 2):
        raise NotImplementedError("Deconv uses stride in {1, 2}")

    x = jnp.transpose(x_nchw, (0, 2, 3, 1)).astype(jnp.float32)   # NHWC, channels on lanes
    n, h, w, cin = x.shape
    cout = params["gamma1"].shape[0]
    h1, w1 = h + 1, w + 1
    w1p = ((w1 + 7) // 8) * 8            # pad deconv1 canvas width to a sublane multiple
    r1p = n * h1 * w1p

    # validity mask (1.0 on real deconv1 pixels, 0.0 on width padding) for exact BN1 stats
    mask1 = ((jnp.arange(r1p, dtype=jnp.int32) % w1p) < w1).astype(jnp.float32)[:, None]

    args = [x, mask1,
            _tap_weights(params["w1"]), _row(params["b1"]),
            _tap_weights(params["w2"]), _row(params["b2"])]
    if stride > 1:
        args += [_tap_weights(params["w_up"]), _row(params["b_up"])]
    args += [_row(params["gamma1"]), _row(params["beta1"]),
             _row(params["gamma2"]), _row(params["beta2"])]

    if stride == 1:
        out_shape = jax.ShapeDtypeStruct((n, h, w, cout), jnp.float32)
    else:
        out_shape = jax.ShapeDtypeStruct((4, n, h, w, cout), jnp.float32)

    kernel = _make_deconv_kernel(stride, activation, n, h, w, cin, cout, w1p)
    out = pl.pallas_call(
        kernel,
        out_shape=out_shape,
        scratch_shapes=[pltpu.VMEM((n, h1, w1p, cout), jnp.float32)],
    )(*args)

    if stride == 1:
        return jnp.transpose(out, (0, 3, 1, 2))                   # NHWC -> NCHW
    # Fold the stride-2 (p, q)-block reassembly into the (mandatory) NCHW transpose:
    #   out[2p+q, n, a, b, c] -> y[n, c, 2a+p, 2b+q]
    y = out.reshape(2, 2, n, h, w, cout)
    return jnp.transpose(y, (2, 5, 3, 0, 4, 1)).reshape(n, cout, 2 * h, 2 * w)


# ----------------------- pure-JAX reference (for checking) ------------------ #

def _ref_conv_transpose2x2(x, wt, b, stride, padding):
    n, h, w, _ = x.shape
    cout = wt.shape[1]
    t = jnp.einsum('nijc,cokl->nijklo', x, wt)      # (n, h, w, 2, 2, cout)
    if stride == 1:
        y = jnp.zeros((n, h + 1, w + 1, cout), jnp.float32)
        for kh in range(2):
            for kw in range(2):
                y = y.at[:, kh:kh + h, kw:kw + w, :].add(t[:, :, :, kh, kw, :])
    else:
        y = jnp.transpose(t, (0, 1, 3, 2, 4, 5)).reshape(n, 2 * h, 2 * w, cout)
    if padding:
        y = y[:, padding:y.shape[1] - padding, padding:y.shape[2] - padding, :]
    return y + b


def _ref_bn_leaky(x, gamma, beta, leaky):
    mean = jnp.mean(x, axis=(0, 1, 2), keepdims=True)
    var = jnp.mean((x - mean) ** 2, axis=(0, 1, 2), keepdims=True)
    y = (x - mean) * (gamma * jax.lax.rsqrt(var + _EPS)) + beta
    return jnp.where(y >= 0, y, _SLOPE * y) if leaky else y


def deconv_reference(x_nchw, params, stride=1, activation=True):
    x = jnp.transpose(x_nchw, (0, 2, 3, 1)).astype(jnp.float32)
    if stride > 1:
        res = _ref_conv_transpose2x2(x, params["w_up"], params["b_up"], 2, 0)
    else:
        res = x
    hdn = _ref_conv_transpose2x2(x, params["w1"], params["b1"], 1, 0)
    hdn = _ref_bn_leaky(hdn, params["gamma1"], params["beta1"], True)
    hdn = _ref_conv_transpose2x2(hdn, params["w2"], params["b2"], stride, 1)
    hdn = hdn + res
    hdn = _ref_bn_leaky(hdn, params["gamma2"], params["beta2"], activation)
    return jnp.transpose(hdn, (0, 3, 1, 2))


# ------------------------------ parameters ---------------------------------- #

def _uinit(k, shape, fan):
    bound = 1.0 / jnp.sqrt(jnp.float32(fan))
    return jax.random.uniform(k, shape, jnp.float32, -bound, bound)


def init_deconv_params(key, in_channels, out_channels, stride=1):
    ks = jax.random.split(key, 6)
    p = {
        # ConvTranspose2d weights use PyTorch layout [Cin, Cout, kH, kW]
        "w1": _uinit(ks[0], (in_channels, out_channels, 2, 2), in_channels * 4),
        "b1": _uinit(ks[1], (out_channels,), in_channels * 4),
        "w2": _uinit(ks[2], (out_channels, out_channels, 2, 2), out_channels * 4),
        "b2": _uinit(ks[3], (out_channels,), out_channels * 4),
        "gamma1": jnp.ones((out_channels,), jnp.float32),
        "beta1": jnp.zeros((out_channels,), jnp.float32),
        "gamma2": jnp.ones((out_channels,), jnp.float32),
        "beta2": jnp.zeros((out_channels,), jnp.float32),
    }
    if stride > 1:
        p["w_up"] = _uinit(ks[4], (in_channels, out_channels, 2, 2), in_channels * 4)
        p["b_up"] = _uinit(ks[5], (out_channels,), in_channels * 4)
    return p


# --------------------------------- main -------------------------------------- #

if __name__ == "__main__":
    key = jax.random.PRNGKey(0)
    kx, kp1, kp2 = jax.random.split(key, 3)

    x = jax.random.normal(kx, (2, 4, 16, 16), jnp.float32)   # NCHW

    # stride=1 block (identity residual, Cin == Cout)
    params1 = init_deconv_params(kp1, 4, 4, stride=1)
    fwd1 = jax.jit(functools.partial(deconv_forward, stride=1, activation=True))
    y1 = jax.block_until_ready(fwd1(x, params1))
    assert y1.shape == (2, 4, 16, 16), y1.shape

    # stride=2 block (learned ConvTranspose2d upsample residual, no final activation)
    params2 = init_deconv_params(kp2, 4, 8, stride=2)
    fwd2 = jax.jit(functools.partial(deconv_forward, stride=2, activation=False))
    y2 = jax.block_until_ready(fwd2(x, params2))
    assert y2.shape == (2, 8, 32, 32), y2.shape

    assert bool(jnp.all(jnp.isfinite(y1))) and bool(jnp.all(jnp.isfinite(y2)))

    # numerical check against a pure-JAX reference of the same PyTorch forward
    r1 = deconv_reference(x, params1, stride=1, activation=True)
    r2 = deconv_reference(x, params2, stride=2, activation=False)
    assert bool(jnp.allclose(y1, r1, rtol=5e-2, atol=5e-2)), float(jnp.max(jnp.abs(y1 - r1)))
    assert bool(jnp.allclose(y2, r2, rtol=5e-2, atol=5e-2)), float(jnp.max(jnp.abs(y2 - r2)))

    print("KERNEL_OK")
</pallas_src>

<mosaic_0001>
module attributes {stable_mosaic.version = 11 : i64} {
  func.func @kernel(%arg0: memref<2x16x16x4xf32, #tpu.memory_space<vmem>>, %arg1: memref<816x1xf32, #tpu.memory_space<vmem>>, %arg2: memref<4x4x4xf32, #tpu.memory_space<vmem>>, %arg3: memref<1x4xf32, #tpu.memory_space<vmem>>, %arg4: memref<4x4x4xf32, #tpu.memory_space<vmem>>, %arg5: memref<1x4xf32, #tpu.memory_space<vmem>>, %arg6: memref<1x4xf32, #tpu.memory_space<vmem>>, %arg7: memref<1x4xf32, #tpu.memory_space<vmem>>, %arg8: memref<1x4xf32, #tpu.memory_space<vmem>>, %arg9: memref<1x4xf32, #tpu.memory_space<vmem>>, %arg10: memref<2x16x16x4xf32, #tpu.memory_space<vmem>>, %arg11: memref<2x17x24x4xf32, #tpu.memory_space<vmem>>) attributes {dimension_semantics = [], scalar_prefetch = 0 : i64, scratch_operands = 1 : i64, tpu.core_type = #tpu.core_type<tc>} {
    %c0 = arith.constant 0 : index
    %c0_0 = arith.constant 0 : index
    %c0_1 = arith.constant 0 : index
    %c0_2 = arith.constant 0 : index
    %0 = vector.load %arg0[%c0, %c0_0, %c0_1, %c0_2] : memref<2x16x16x4xf32, #tpu.memory_space<vmem>>, vector<2x16x16x4xf32>
    %1 = vector.shape_cast %0 : vector<2x16x16x4xf32> to vector<512x4xf32>
    %cst = arith.constant 0.000000e+00 : f32
    %2 = vector.broadcast %cst : f32 to vector<2x17x24x4xf32>
    %c0_3 = arith.constant 0 : index
    %c0_4 = arith.constant 0 : index
    %c0_5 = arith.constant 0 : index
    %c0_6 = arith.constant 0 : index
    %3 = vector.load %arg11[%c0_3, %c0_4, %c0_5, %c0_6] : memref<2x17x24x4xf32, #tpu.memory_space<vmem>>, vector<2x17x24x4xf32>
    tpu.vector_store %arg11[%c0_3, %c0_4, %c0_5, %c0_6], %2 {strides = array<i32>} : memref<2x17x24x4xf32, #tpu.memory_space<vmem>>, vector<2x17x24x4xf32>,
    %c0_7 = arith.constant 0 : index
    %c0_8 = arith.constant 0 : index
    %c0_9 = arith.constant 0 : index
    %4 = vector.load %arg2[%c0_7, %c0_8, %c0_9] : memref<4x4x4xf32, #tpu.memory_space<vmem>>, vector<1x4x4xf32>
    %5 = vector.shape_cast %4 : vector<1x4x4xf32> to vector<4x4xf32>
    %cst_10 = arith.constant dense<0.000000e+00> : vector<512x4xf32>
    %6 = tpu.matmul %1, %5, %cst_10 {dimension_numbers = #tpu.dot_dimension_numbers<[1], [0], [0], [1], [0, 0, 1, 1], [], []>} : vector<512x4xf32>, vector<4x4xf32>, vector<512x4xf32> -> vector<512x4xf32>
    %c0_11 = arith.constant 0 : index
    %c0_12 = arith.constant 0 : index
    %c0_13 = arith.constant 0 : index
    %c0_14 = arith.constant 0 : index
    %7 = vector.load %arg11[%c0_11, %c0_12, %c0_13, %c0_14] : memref<2x17x24x4xf32, #tpu.memory_space<vmem>>, vector<2x16x16x4xf32>
    %8 = vector.shape_cast %6 : vector<512x4xf32> to vector<2x16x16x4xf32>
    %9 = arith.addf %7, %8 : vector<2x16x16x4xf32>
    %c0_15 = arith.constant 0 : index
    %c0_16 = arith.constant 0 : index
    %c0_17 = arith.constant 0 : index
    %c0_18 = arith.constant 0 : index
    %10 = vector.load %arg11[%c0_15, %c0_16, %c0_17, %c0_18] : memref<2x17x24x4xf32, #tpu.memory_space<vmem>>, vector<2x16x16x4xf32>
    tpu.vector_store %arg11[%c0_15, %c0_16, %c0_17, %c0_18], %9 {strides = array<i32>} : memref<2x17x24x4xf32, #tpu.memory_space<vmem>>, vector<2x16x16x4xf32>,
    %c1 = arith.constant 1 : index
    %c0_19 = arith.constant 0 : index
    %c0_20 = arith.constant 0 : index
    %11 = vector.load %arg2[%c1, %c0_19, %c0_20] : memref<4x4x4xf32, #tpu.memory_space<vmem>>, vector<1x4x4xf32>
    %12 = vector.shape_cast %11 : vector<1x4x4xf32> to vector<4x4xf32>
    %cst_21 = arith.constant dense<0.000000e+00> : vector<512x4xf32>
    %13 = tpu.matmul %1, %12, %cst_21 {dimension_numbers = #tpu.dot_dimension_numbers<[1], [0], [0], [1], [0, 0, 1, 1], [], []>} : vector<512x4xf32>, vector<4x4xf32>, vector<512x4xf32> -> vector<512x4xf32>
    %c0_22 = arith.constant 0 : index
    %c0_23 = arith.constant 0 : index
    %c1_24 = arith.constant 1 : index
    %c0_25 = arith.constant 0 : index
    %14 = vector.load %arg11[%c0_22, %c0_23, %c1_24, %c0_25] : memref<2x17x24x4xf32, #tpu.memory_space<vmem>>, vector<2x16x16x4xf32>
    %15 = vector.shape_cast %13 : vector<512x4xf32> to vector<2x16x16x4xf32>
    %16 = arith.addf %14, %15 : vector<2x16x16x4xf32>
    %c0_26 = arith.constant 0 : index
    %c0_27 = arith.constant 0 : index
    %c1_28 = arith.constant 1 : index
    %c0_29 = arith.constant 0 : index
    %17 = vector.load %arg11[%c0_26, %c0_27, %c1_28, %c0_29] : memref<2x17x24x4xf32, #tpu.memory_space<vmem>>, vector<2x16x16x4xf32>
    tpu.vector_store %arg11[%c0_26, %c0_27, %c1_28, %c0_29], %16 {strides = array<i32>} : memref<2x17x24x4xf32, #tpu.memory_space<vmem>>, vector<2x16x16x4xf32>,
    %c2 = arith.constant 2 : index
    %c0_30 = arith.constant 0 : index
    %c0_31 = arith.constant 0 : index
    %18 = vector.load %arg2[%c2, %c0_30, %c0_31] : memref<4x4x4xf32, #tpu.memory_space<vmem>>, vector<1x4x4xf32>
    %19 = vector.shape_cast %18 : vector<1x4x4xf32> to vector<4x4xf32>
    %cst_32 = arith.constant dense<0.000000e+00> : vector<512x4xf32>
    %20 = tpu.matmul %1, %19, %cst_32 {dimension_numbers = #tpu.dot_dimension_numbers<[1], [0], [0], [1], [0, 0, 1, 1], [], []>} : vector<512x4xf32>, vector<4x4xf32>, vector<512x4xf32> -> vector<512x4xf32>
    %c0_33 = arith.constant 0 : index
    %c1_34 = arith.constant 1 : index
    %c0_35 = arith.constant 0 : index
    %c0_36 = arith.constant 0 : index
    %21 = vector.load %arg11[%c0_33, %c1_34, %c0_35, %c0_36] : memref<2x17x24x4xf32, #tpu.memory_space<vmem>>, vector<2x16x16x4xf32>
    %22 = vector.shape_cast %20 : vector<512x4xf32> to vector<2x16x16x4xf32>
    %23 = arith.addf %21, %22 : vector<2x16x16x4xf32>
    %c0_37 = arith.constant 0 : index
    %c1_38 = arith.constant 1 : index
    %c0_39 = arith.constant 0 : index
    %c0_40 = arith.constant 0 : index
    %24 = vector.load %arg11[%c0_37, %c1_38, %c0_39, %c0_40] : memref<2x17x24x4xf32, #tpu.memory_space<vmem>>, vector<2x16x16x4xf32>
    tpu.vector_store %arg11[%c0_37, %c1_38, %c0_39, %c0_40], %23 {strides = array<i32>} : memref<2x17x24x4xf32, #tpu.memory_space<vmem>>, vector<2x16x16x4xf32>,
    %c3 = arith.constant 3 : index
    %c0_41 = arith.constant 0 : index
    %c0_42 = arith.constant 0 : index
    %25 = vector.load %arg2[%c3, %c0_41, %c0_42] : memref<4x4x4xf32, #tpu.memory_space<vmem>>, vector<1x4x4xf32>
    %26 = vector.shape_cast %25 : vector<1x4x4xf32> to vector<4x4xf32>
    %cst_43 = arith.constant dense<0.000000e+00> : vector<512x4xf32>
    %27 = tpu.matmul %1, %26, %cst_43 {dimension_numbers = #tpu.dot_dimension_numbers<[1], [0], [0], [1], [0, 0, 1, 1], [], []>} : vector<512x4xf32>, vector<4x4xf32>, vector<512x4xf32> -> vector<512x4xf32>
    %c0_44 = arith.constant 0 : index
    %c1_45 = arith.constant 1 : index
    %c1_46 = arith.constant 1 : index
    %c0_47 = arith.constant 0 : index
    %28 = vector.load %arg11[%c0_44, %c1_45, %c1_46, %c0_47] : memref<2x17x24x4xf32, #tpu.memory_space<vmem>>, vector<2x16x16x4xf32>
    %29 = vector.shape_cast %27 : vector<512x4xf32> to vector<2x16x16x4xf32>
    %30 = arith.addf %28, %29 : vector<2x16x16x4xf32>
    %c0_48 = arith.constant 0 : index
    %c1_49 = arith.constant 1 : index
    %c1_50 = arith.constant 1 : index
    %c0_51 = arith.constant 0 : index
    %31 = vector.load %arg11[%c0_48, %c1_49, %c1_50, %c0_51] : memref<2x17x24x4xf32, #tpu.memory_space<vmem>>, vector<2x16x16x4xf32>
    tpu.vector_store %arg11[%c0_48, %c1_49, %c1_50, %c0_51], %30 {strides = array<i32>} : memref<2x17x24x4xf32, #tpu.memory_space<vmem>>, vector<2x16x16x4xf32>,
    %c0_52 = arith.constant 0 : index
    %c0_53 = arith.constant 0 : index
    %32 = vector.load %arg1[%c0_52, %c0_53] : memref<816x1xf32, #tpu.memory_space<vmem>>, vector<816x1xf32>
    %c0_54 = arith.constant 0 : index
    %c0_55 = arith.constant 0 : index
    %c0_56 = arith.constant 0 : index
    %c0_57 = arith.constant 0 : index
    %33 = vector.load %arg11[%c0_54, %c0_55, %c0_56, %c0_57] : memref<2x17x24x4xf32, #tpu.memory_space<vmem>>, vector<2x17x24x4xf32>
    %34 = vector.shape_cast %33 : vector<2x17x24x4xf32> to vector<816x4xf32>
    %c0_58 = arith.constant 0 : index
    %c0_59 = arith.constant 0 : index
    %35 = vector.load %arg3[%c0_58, %c0_59] : memref<1x4xf32, #tpu.memory_space<vmem>>, vector<1x4xf32>
    %36 = vector.broadcast %35 : vector<1x4xf32> to vector<816x4xf32>
    %37 = arith.addf %34, %36 : vector<816x4xf32>
    %38 = vector.broadcast %32 : vector<816x1xf32> to vector<816x4xf32>
    %39 = arith.mulf %37, %38 : vector<816x4xf32>
    %cst_60 = arith.constant dense<0.000000e+00> : vector<4xf32>
    %40 = vector.multi_reduction <add>, %39, %cst_60 [0] : vector<816x4xf32> to vector<4xf32>
    %41 = vector.shape_cast %40 : vector<4xf32> to vector<1x4xf32>
    %cst_61 = arith.constant 5.780000e+02 : f32
    %42 = vector.broadcast %cst_61 : f32 to vector<1x4xf32>
    %43 = arith.divf %41, %42 : vector<1x4xf32>
    %44 = vector.broadcast %43 : vector<1x4xf32> to vector<816x4xf32>
    %45 = arith.subf %37, %44 : vector<816x4xf32>
    %46 = vector.broadcast %32 : vector<816x1xf32> to vector<816x4xf32>
    %47 = arith.mulf %45, %46 : vector<816x4xf32>
    %48 = arith.mulf %47, %47 : vector<816x4xf32>
    %cst_62 = arith.constant dense<0.000000e+00> : vector<4xf32>
    %49 = vector.multi_reduction <add>, %48, %cst_62 [0] : vector<816x4xf32> to vector<4xf32>
    %50 = vector.shape_cast %49 : vector<4xf32> to vector<1x4xf32>
    %cst_63 = arith.constant 5.780000e+02 : f32
    %51 = vector.broadcast %cst_63 : f32 to vector<1x4xf32>
    %52 = arith.divf %50, %51 : vector<1x4xf32>
    %c0_64 = arith.constant 0 : index
    %c0_65 = arith.constant 0 : index
    %53 = vector.load %arg6[%c0_64, %c0_65] : memref<1x4xf32, #tpu.memory_space<vmem>>, vector<1x4xf32>
    %cst_66 = arith.constant 9.99999974E-6 : f32
    %54 = vector.broadcast %cst_66 : f32 to vector<1x4xf32>
    %55 = arith.addf %52, %54 : vector<1x4xf32>
    %56 = math.rsqrt %55 : vector<1x4xf32>
    %57 = arith.mulf %53, %56 : vector<1x4xf32>
    %58 = vector.broadcast %57 : vector<1x4xf32> to vector<816x4xf32>
    %59 = arith.mulf %45, %58 : vector<816x4xf32>
    %c0_67 = arith.constant 0 : index
    %c0_68 = arith.constant 0 : index
    %60 = vector.load %arg7[%c0_67, %c0_68] : memref<1x4xf32, #tpu.memory_space<vmem>>, vector<1x4xf32>
    %61 = vector.broadcast %60 : vector<1x4xf32> to vector<816x4xf32>
    %62 = arith.addf %59, %61 : vector<816x4xf32>
    %cst_69 = arith.constant 0.000000e+00 : f32
    %63 = vector.broadcast %cst_69 : f32 to vector<816x4xf32>
    %64 = arith.cmpf oge, %62, %63 : vector<816x4xf32>
    %cst_70 = arith.constant 0.00999999977 : f32
    %65 = vector.broadcast %cst_70 : f32 to vector<816x4xf32>
    %66 = arith.mulf %65, %62 : vector<816x4xf32>
    %67 = arith.select %64, %62, %66 : vector<816x4xi1>, vector<816x4xf32>
    %c0_71 = arith.constant 0 : index
    %c0_72 = arith.constant 0 : index
    %c0_73 = arith.constant 0 : index
    %68 = vector.load %arg4[%c0_71, %c0_72, %c0_73] : memref<4x4x4xf32, #tpu.memory_space<vmem>>, vector<1x4x4xf32>
    %69 = vector.shape_cast %68 : vector<1x4x4xf32> to vector<4x4xf32>
    %cst_74 = arith.constant dense<0.000000e+00> : vector<816x4xf32>
    %70 = tpu.matmul %67, %69, %cst_74 {dimension_numbers = #tpu.dot_dimension_numbers<[1], [0], [0], [1], [0, 0, 1, 1], [], []>} : vector<816x4xf32>, vector<4x4xf32>, vector<816x4xf32> -> vector<816x4xf32>
    %71 = vector.shape_cast %70 : vector<816x4xf32> to vector<2x17x24x4xf32>
    %c1_75 = arith.constant 1 : index
    %c0_76 = arith.constant 0 : index
    %c0_77 = arith.constant 0 : index
    %72 = vector.load %arg4[%c1_75, %c0_76, %c0_77] : memref<4x4x4xf32, #tpu.memory_space<vmem>>, vector<1x4x4xf32>
    %73 = vector.shape_cast %72 : vector<1x4x4xf32> to vector<4x4xf32>
    %cst_78 = arith.constant dense<0.000000e+00> : vector<816x4xf32>
    %74 = tpu.matmul %67, %73, %cst_78 {dimension_numbers = #tpu.dot_dimension_numbers<[1], [0], [0], [1], [0, 0, 1, 1], [], []>} : vector<816x4xf32>, vector<4x4xf32>, vector<816x4xf32> -> vector<816x4xf32>
    %75 = vector.shape_cast %74 : vector<816x4xf32> to vector<2x17x24x4xf32>
    %c2_79 = arith.constant 2 : index
    %c0_80 = arith.constant 0 : index
    %c0_81 = arith.constant 0 : index
    %76 = vector.load %arg4[%c2_79, %c0_80, %c0_81] : memref<4x4x4xf32, #tpu.memory_space<vmem>>, vector<1x4x4xf32>
    %77 = vector.shape_cast %76 : vector<1x4x4xf32> to vector<4x4xf32>
    %cst_82 = arith.constant dense<0.000000e+00> : vector<816x4xf32>
    %78 = tpu.matmul %67, %77, %cst_82 {dimension_numbers = #tpu.dot_dimension_numbers<[1], [0], [0], [1], [0, 0, 1, 1], [], []>} : vector<816x4xf32>, vector<4x4xf32>, vector<816x4xf32> -> vector<816x4xf32>
    %79 = vector.shape_cast %78 : vector<816x4xf32> to vector<2x17x24x4xf32>
    %c3_83 = arith.constant 3 : index
    %c0_84 = arith.constant 0 : index
    %c0_85 = arith.constant 0 : index
    %80 = vector.load %arg4[%c3_83, %c0_84, %c0_85] : memref<4x4x4xf32, #tpu.memory_space<vmem>>, vector<1x4x4xf32>
    %81 = vector.shape_cast %80 : vector<1x4x4xf32> to vector<4x4xf32>
    %cst_86 = arith.constant dense<0.000000e+00> : vector<816x4xf32>
    %82 = tpu.matmul %67, %81, %cst_86 {dimension_numbers = #tpu.dot_dimension_numbers<[1], [0], [0], [1], [0, 0, 1, 1], [], []>} : vector<816x4xf32>, vector<4x4xf32>, vector<816x4xf32> -> vector<816x4xf32>
    %83 = vector.shape_cast %82 : vector<816x4xf32> to vector<2x17x24x4xf32>
    %c0_87 = arith.constant 0 : index
    %c0_88 = arith.constant 0 : index
    %84 = vector.load %arg5[%c0_87, %c0_88] : memref<1x4xf32, #tpu.memory_space<vmem>>, vector<1x4xf32>
    %85 = vector.extract_strided_slice %71 {offsets = [0, 1, 1, 0], sizes = [2, 16, 16, 4], strides = [1, 1, 1, 1]} : vector<2x17x24x4xf32> to vector<2x16x16x4xf32>
    %86 = vector.extract_strided_slice %75 {offsets = [0, 1, 0, 0], sizes = [2, 16, 16, 4], strides = [1, 1, 1, 1]} : vector<2x17x24x4xf32> to vector<2x16x16x4xf32>
    %87 = arith.addf %85, %86 : vector<2x16x16x4xf32>
    %88 = vector.extract_strided_slice %79 {offsets = [0, 0, 1, 0], sizes = [2, 16, 16, 4], strides = [1, 1, 1, 1]} : vector<2x17x24x4xf32> to vector<2x16x16x4xf32>
    %89 = arith.addf %87, %88 : vector<2x16x16x4xf32>
    %90 = vector.extract_strided_slice %83 {offsets = [0, 0, 0, 0], sizes = [2, 16, 16, 4], strides = [1, 1, 1, 1]} : vector<2x17x24x4xf32> to vector<2x16x16x4xf32>
    %91 = arith.addf %89, %90 : vector<2x16x16x4xf32>
    %92 = vector.shape_cast %91 : vector<2x16x16x4xf32> to vector<512x4xf32>
    %93 = vector.broadcast %84 : vector<1x4xf32> to vector<512x4xf32>
    %94 = arith.addf %92, %93 : vector<512x4xf32>
    %95 = arith.addf %94, %1 : vector<512x4xf32>
    %cst_89 = arith.constant dense<0.000000e+00> : vector<4xf32>
    %96 = vector.multi_reduction <add>, %95, %cst_89 [0] : vector<512x4xf32> to vector<4xf32>
    %97 = vector.shape_cast %96 : vector<4xf32> to vector<1x4xf32>
    %cst_90 = arith.constant 5.120000e+02 : f32
    %98 = vector.broadcast %cst_90 : f32 to vector<1x4xf32>
    %99 = arith.divf %97, %98 : vector<1x4xf32>
    %100 = vector.broadcast %99 : vector<1x4xf32> to vector<512x4xf32>
    %101 = arith.subf %95, %100 : vector<512x4xf32>
    %102 = arith.mulf %101, %101 : vector<512x4xf32>
    %cst_91 = arith.constant dense<0.000000e+00> : vector<4xf32>
    %103 = vector.multi_reduction <add>, %102, %cst_91 [0] : vector<512x4xf32> to vector<4xf32>
    %104 = vector.shape_cast %103 : vector<4xf32> to vector<1x4xf32>
    %cst_92 = arith.constant 5.120000e+02 : f32
    %105 = vector.broadcast %cst_92 : f32 to vector<1x4xf32>
    %106 = arith.divf %104, %105 : vector<1x4xf32>
    %c0_93 = arith.constant 0 : index
    %c0_94 = arith.constant 0 : index
    %107 = vector.load %arg8[%c0_93, %c0_94] : memref<1x4xf32, #tpu.memory_space<vmem>>, vector<1x4xf32>
    %cst_95 = arith.constant 9.99999974E-6 : f32
    %108 = vector.broadcast %cst_95 : f32 to vector<1x4xf32>
    %109 = arith.addf %106, %108 : vector<1x4xf32>
    %110 = math.rsqrt %109 : vector<1x4xf32>
    %111 = arith.mulf %107, %110 : vector<1x4xf32>
    %112 = vector.broadcast %111 : vector<1x4xf32> to vector<512x4xf32>
    %113 = arith.mulf %101, %112 : vector<512x4xf32>
    %c0_96 = arith.constant 0 : index
    %c0_97 = arith.constant 0 : index
    %114 = vector.load %arg9[%c0_96, %c0_97] : memref<1x4xf32, #tpu.memory_space<vmem>>, vector<1x4xf32>
    %115 = vector.broadcast %114 : vector<1x4xf32> to vector<512x4xf32>
    %116 = arith.addf %113, %115 : vector<512x4xf32>
    %cst_98 = arith.constant 0.000000e+00 : f32
    %117 = vector.broadcast %cst_98 : f32 to vector<512x4xf32>
    %118 = arith.cmpf oge, %116, %117 : vector<512x4xf32>
    %cst_99 = arith.constant 0.00999999977 : f32
    %119 = vector.broadcast %cst_99 : f32 to vector<512x4xf32>
    %120 = arith.mulf %119, %116 : vector<512x4xf32>
    %121 = arith.select %118, %116, %120 : vector<512x4xi1>, vector<512x4xf32>
    %122 = vector.shape_cast %121 : vector<512x4xf32> to vector<2x16x16x4xf32>
    %c0_100 = arith.constant 0 : index
    %c0_101 = arith.constant 0 : index
    %c0_102 = arith.constant 0 : index
    %c0_103 = arith.constant 0 : index
    %123 = vector.load %arg10[%c0_100, %c0_101, %c0_102, %c0_103] : memref<2x16x16x4xf32, #tpu.memory_space<vmem>>, vector<2x16x16x4xf32>
    tpu.vector_store %arg10[%c0_100, %c0_101, %c0_102, %c0_103], %122 {strides = array<i32>} : memref<2x16x16x4xf32, #tpu.memory_space<vmem>>, vector<2x16x16x4xf32>,
    return
  }
}

</mosaic_0001>

<llo_original>
// kernel: deconv_forward.1
$region0: #{deconv_forward.1}
  #allocation0 [shape = 'u32[]', space=smem, size = 0x4, offset = 0x4, fixed_abs, tag = 'smem constant byte address 0x4 - core index']
  #allocation1 [shape = 'u32[144,128]{1,0:T(1,128)}', space=vmem, size = 0x12000, scoped, tag = 'internal scratch']
  #allocation2 [shape = 'f32[2,17,24,4]{3,2,1,0:T(8,128)}', space=vmem, size = 0x66000, scoped, tag = 'scratch operand']
  %s0 = inlined_call_operand.vmem [shape: f32[2,16,16,4], index: 0, kind: input, shape index: {}]
  %s1 = inlined_call_operand.vmem [shape: f32[816,1], index: 1, kind: input, shape index: {}]
  %s2 = inlined_call_operand.vmem [shape: f32[4,4,4], index: 2, kind: input, shape index: {}]
  %s3 = inlined_call_operand.vmem [shape: f32[1,4], index: 3, kind: input, shape index: {}]
  %s4 = inlined_call_operand.vmem [shape: f32[4,4,4], index: 4, kind: input, shape index: {}]
  %s5 = inlined_call_operand.vmem [shape: f32[1,4], index: 5, kind: input, shape index: {}]
  %s6 = inlined_call_operand.vmem [shape: f32[1,4], index: 6, kind: input, shape index: {}]
  %s7 = inlined_call_operand.vmem [shape: f32[1,4], index: 7, kind: input, shape index: {}]
  %s8 = inlined_call_operand.vmem [shape: f32[1,4], index: 8, kind: input, shape index: {}]
  %s9 = inlined_call_operand.vmem [shape: f32[1,4], index: 9, kind: input, shape index: {}]
  %s10 = inlined_call_operand.vmem [shape: f32[2,16,16,4], index: 10, kind: output, shape index: {}]
  %s11 = sld [smem:[#allocation0]]
  $region50: #{deconv_forward.1} parent=0
    _
  %s13 = ssub.s32 1, %s11
  %s14 = scalar_select 0, %s13, %s11
  // Predicated region
  $region2: #{deconv_forward.1} parent=0 // pred_check
    _
  $region3: #{deconv_forward.1} parent=0 // pred_check_branch
    %16 = sbr.rel (0) target = $region5
  $region4: #{deconv_forward.1} parent=0 // pred_region
    _
  $region5: #{deconv_forward.1} parent=0 // pred_fallthru
    _
  // Predicated region
  $region6: #{deconv_forward.1} parent=0 // pred_check
    _
  $region7: #{deconv_forward.1} parent=0 // pred_check_branch
    %18 = sbr.rel (0) target = $region9
  $region8: #{deconv_forward.1} parent=0 // pred_region
    _
  $region9: #{deconv_forward.1} parent=0 // pred_fallthru
    _
  // Predicated region
  $region10: #{deconv_forward.1} parent=0 // pred_check
    _
  $region11: #{deconv_forward.1} parent=0 // pred_check_branch
    %20 = sbr.rel (0) target = $region13
  $region12: #{deconv_forward.1} parent=0 // pred_region
    _
  $region13: #{deconv_forward.1} parent=0 // pred_fallthru
    _
  // Predicated region
  $region14: #{deconv_forward.1} parent=0 // pred_check
    _
  $region15: #{deconv_forward.1} parent=0 // pred_check_branch
    %22 = sbr.rel (0) target = $region17
  $region16: #{deconv_forward.1} parent=0 // pred_region
    _
  $region17: #{deconv_forward.1} parent=0 // pred_fallthru
    _
  // Predicated region
  $region18: #{deconv_forward.1} parent=0 // pred_check
    _
  $region19: #{deconv_forward.1} parent=0 // pred_check_branch
    %24 = sbr.rel (0) target = $region21
  $region20: #{deconv_forward.1} parent=0 // pred_region
    _
  $region21: #{deconv_forward.1} parent=0 // pred_fallthru
    _
  // Predicated region
  $region22: #{deconv_forward.1} parent=0 // pred_check
    _
  $region23: #{deconv_forward.1} parent=0 // pred_check_branch
    %26 = sbr.rel (0) target = $region25
  $region24: #{deconv_forward.1} parent=0 // pred_region
    _
  $region25: #{deconv_forward.1} parent=0 // pred_fallthru
    _
  // Predicated region
  $region26: #{deconv_forward.1} parent=0 // pred_check
    _
  $region27: #{deconv_forward.1} parent=0 // pred_check_branch
    %28 = sbr.rel (0) target = $region29
  $region28: #{deconv_forward.1} parent=0 // pred_region
    _
  $region29: #{deconv_forward.1} parent=0 // pred_fallthru
    _
  // Predicated region
  $region30: #{deconv_forward.1} parent=0 // pred_check
    _
  $region31: #{deconv_forward.1} parent=0 // pred_check_branch
    %30 = sbr.rel (0) target = $region33
  $region32: #{deconv_forward.1} parent=0 // pred_region
    _
  $region33: #{deconv_forward.1} parent=0 // pred_fallthru
    _
  // Predicated region
  $region34: #{deconv_forward.1} parent=0 // pred_check
    _
  $region35: #{deconv_forward.1} parent=0 // pred_check_branch
    %32 = sbr.rel (0) target = $region37
  $region36: #{deconv_forward.1} parent=0 // pred_region
    _
  $region37: #{deconv_forward.1} parent=0 // pred_fallthru
    _
  // Predicated region
  $region38: #{deconv_forward.1} parent=0 // pred_check
    _
  $region39: #{deconv_forward.1} parent=0 // pred_check_branch
    %34 = sbr.rel (0) target = $region41
  $region40: #{deconv_forward.1} parent=0 // pred_region
    _
  $region41: #{deconv_forward.1} parent=0 // pred_fallthru
    _
  %v35 = vld [vmem:[%s0] sm:$0xff]
  %v36 = vld [vmem:[%s0 + $0x8] sm:$0xff]
  %v37 = vld [vmem:[%s0 + $0x10] sm:$0xff]
  %v38 = vld [vmem:[%s0 + $0x18] sm:$0xff]
  %v39 = vld [vmem:[%s0 + $0x20] sm:$0xff]
  %v40 = vld [vmem:[%s0 + $0x28] sm:$0xff]
  %v41 = vld [vmem:[%s0 + $0x30] sm:$0xff]
  %v42 = vld [vmem:[%s0 + $0x38] sm:$0xff]
  %v43 = vld [vmem:[%s0 + $0x40] sm:$0xff]
  %v44 = vld [vmem:[%s0 + $0x48] sm:$0xff]
  %v45 = vld [vmem:[%s0 + $0x50] sm:$0xff]
  %v46 = vld [vmem:[%s0 + $0x58] sm:$0xff]
  %v47 = vld [vmem:[%s0 + $0x60] sm:$0xff]
  %v48 = vld [vmem:[%s0 + $0x68] sm:$0xff]
  %v49 = vld [vmem:[%s0 + $0x70] sm:$0xff]
  %v50 = vld [vmem:[%s0 + $0x78] sm:$0xff]
  %v51 = vld [vmem:[%s0 + $0x80] sm:$0xff]
  %v52 = vld [vmem:[%s0 + $0x88] sm:$0xff]
  %v53 = vld [vmem:[%s0 + $0x90] sm:$0xff]
  %v54 = vld [vmem:[%s0 + $0x98] sm:$0xff]
  %v55 = vld [vmem:[%s0 + $0xa0] sm:$0xff]
  %v56 = vld [vmem:[%s0 + $0xa8] sm:$0xff]
  %v57 = vld [vmem:[%s0 + $0xb0] sm:$0xff]
  %v58 = vld [vmem:[%s0 + $0xb8] sm:$0xff]
  %v59 = vld [vmem:[%s0 + $0xc0] sm:$0xff]
  %v60 = vld [vmem:[%s0 + $0xc8] sm:$0xff]
  %v61 = vld [vmem:[%s0 + $0xd0] sm:$0xff]
  %v62 = vld [vmem:[%s0 + $0xd8] sm:$0xff]
  %v63 = vld [vmem:[%s0 + $0xe0] sm:$0xff]
  %v64 = vld [vmem:[%s0 + $0xe8] sm:$0xff]
  %v65 = vld [vmem:[%s0 + $0xf0] sm:$0xff]
  %v66 = vld [vmem:[%s0 + $0xf8] sm:$0xff]
  %v67 = vld [vmem:[%s0 + $0x100] sm:$0xff]
  %v68 = vld [vmem:[%s0 + $0x108] sm:$0xff]
  %v69 = vld [vmem:[%s0 + $0x110] sm:$0xff]
  %v70 = vld [vmem:[%s0 + $0x118] sm:$0xff]
  %v71 = vld [vmem:[%s0 + $0x120] sm:$0xff]
  %v72 = vld [vmem:[%s0 + $0x128] sm:$0xff]
  %v73 = vld [vmem:[%s0 + $0x130] sm:$0xff]
  %v74 = vld [vmem:[%s0 + $0x138] sm:$0xff]
  %v75 = vld [vmem:[%s0 + $0x140] sm:$0xff]
  %v76 = vld [vmem:[%s0 + $0x148] sm:$0xff]
  %v77 = vld [vmem:[%s0 + $0x150] sm:$0xff]
  %v78 = vld [vmem:[%s0 + $0x158] sm:$0xff]
  %v79 = vld [vmem:[%s0 + $0x160] sm:$0xff]
  %v80 = vld [vmem:[%s0 + $0x168] sm:$0xff]
  %v81 = vld [vmem:[%s0 + $0x170] sm:$0xff]
  %v82 = vld [vmem:[%s0 + $0x178] sm:$0xff]
  %v83 = vld [vmem:[%s0 + $0x180] sm:$0xff]
  %v84 = vld [vmem:[%s0 + $0x188] sm:$0xff]
  %v85 = vld [vmem:[%s0 + $0x190] sm:$0xff]
  %v86 = vld [vmem:[%s0 + $0x198] sm:$0xff]
  %v87 = vld [vmem:[%s0 + $0x1a0] sm:$0xff]
  %v88 = vld [vmem:[%s0 + $0x1a8] sm:$0xff]
  %v89 = vld [vmem:[%s0 + $0x1b0] sm:$0xff]
  %v90 = vld [vmem:[%s0 + $0x1b8] sm:$0xff]
  %v91 = vld [vmem:[%s0 + $0x1c0] sm:$0xff]
  %v92 = vld [vmem:[%s0 + $0x1c8] sm:$0xff]
  %v93 = vld [vmem:[%s0 + $0x1d0] sm:$0xff]
  %v94 = vld [vmem:[%s0 + $0x1d8] sm:$0xff]
  %v95 = vld [vmem:[%s0 + $0x1e0] sm:$0xff]
  %v96 = vld [vmem:[%s0 + $0x1e8] sm:$0xff]
  %v97 = vld [vmem:[%s0 + $0x1f0] sm:$0xff]
  %v98 = vld [vmem:[%s0 + $0x1f8] sm:$0xff]
  %vm99 = vcmask 31744
  %100 = vst.msk [vmem:[#allocation2] sm:$0xff] %vm99, 0.0
  %101 = vst.msk [vmem:[#allocation2 + $0x8] sm:$0xff] %vm99, 0.0
  %102 = vst.msk [vmem:[#allocation2 + $0x10] sm:$0xff] %vm99, 0.0
  %103 = vst.msk [vmem:[#allocation2 + $0x18] sm:$0xff] %vm99, 0.0
  %104 = vst.msk [vmem:[#allocation2 + $0x20] sm:$0xff] %vm99, 0.0
  %105 = vst.msk [vmem:[#allocation2 + $0x28] sm:$0xff] %vm99, 0.0
  %106 = vst.msk [vmem:[#allocation2 + $0x30] sm:$0xff] %vm99, 0.0
  %107 = vst.msk [vmem:[#allocation2 + $0x38] sm:$0xff] %vm99, 0.0
  %108 = vst.msk [vmem:[#allocation2 + $0x40] sm:$0xff] %vm99, 0.0
  %109 = vst.msk [vmem:[#allocation2 + $0x48] sm:$0xff] %vm99, 0.0
  %110 = vst.msk [vmem:[#allocation2 + $0x50] sm:$0xff] %vm99, 0.0
  %111 = vst.msk [vmem:[#allocation2 + $0x58] sm:$0xff] %vm99, 0.0
  %112 = vst.msk [vmem:[#allocation2 + $0x60] sm:$0xff] %vm99, 0.0
  %113 = vst.msk [vmem:[#allocation2 + $0x68] sm:$0xff] %vm99, 0.0
  %114 = vst.msk [vmem:[#allocation2 + $0x70] sm:$0xff] %vm99, 0.0
  %115 = vst.msk [vmem:[#allocation2 + $0x78] sm:$0xff] %vm99, 0.0
  %116 = vst.msk [vmem:[#allocation2 + $0x80] sm:$0xff] %vm99, 0.0
  %117 = vst.msk [vmem:[#allocation2 + $0x88] sm:$0xff] %vm99, 0.0
  %118 = vst.msk [vmem:[#allocation2 + $0x90] sm:$0xff] %vm99, 0.0
  %119 = vst.msk [vmem:[#allocation2 + $0x98] sm:$0xff] %vm99, 0.0
  %120 = vst.msk [vmem:[#allocation2 + $0xa0] sm:$0xff] %vm99, 0.0
  %121 = vst.msk [vmem:[#allocation2 + $0xa8] sm:$0xff] %vm99, 0.0
  %122 = vst.msk [vmem:[#allocation2 + $0xb0] sm:$0xff] %vm99, 0.0
  %123 = vst.msk [vmem:[#allocation2 + $0xb8] sm:$0xff] %vm99, 0.0
  %124 = vst.msk [vmem:[#allocation2 + $0xc0] sm:$0xff] %vm99, 0.0
  %125 = vst.msk [vmem:[#allocation2 + $0xc8] sm:$0xff] %vm99, 0.0
  %126 = vst.msk [vmem:[#allocation2 + $0xd0] sm:$0xff] %vm99, 0.0
  %127 = vst.msk [vmem:[#allocation2 + $0xd8] sm:$0xff] %vm99, 0.0
  %128 = vst.msk [vmem:[#allocation2 + $0xe0] sm:$0xff] %vm99, 0.0
  %129 = vst.msk [vmem:[#allocation2 + $0xe8] sm:$0xff] %vm99, 0.0
  %130 = vst.msk [vmem:[#allocation2 + $0xf0] sm:$0xff] %vm99, 0.0
  %131 = vst.msk [vmem:[#allocation2 + $0xf8] sm:$0xff] %vm99, 0.0
  %132 = vst.msk [vmem:[#allocation2 + $0x100] sm:$0xff] %vm99, 0.0
  %133 = vst.msk [vmem:[#allocation2 + $0x108] sm:$0xff] %vm99, 0.0
  %134 = vst.msk [vmem:[#allocation2 + $0x110] sm:$0xff] %vm99, 0.0
  %135 = vst.msk [vmem:[#allocation2 + $0x118] sm:$0xff] %vm99, 0.0
  %136 = vst.msk [vmem:[#allocation2 + $0x120] sm:$0xff] %vm99, 0.0
  %137 = vst.msk [vmem:[#allocation2 + $0x128] sm:$0xff] %vm99, 0.0
  %138 = vst.msk [vmem:[#allocation2 + $0x130] sm:$0xff] %vm99, 0.0
  %139 = vst.msk [vmem:[#allocation2 + $0x138] sm:$0xff] %vm99, 0.0
  %140 = vst.msk [vmem:[#allocation2 + $0x140] sm:$0xff] %vm99, 0.0
  %141 = vst.msk [vmem:[#allocation2 + $0x148] sm:$0xff] %vm99, 0.0
  %142 = vst.msk [vmem:[#allocation2 + $0x150] sm:$0xff] %vm99, 0.0
  %143 = vst.msk [vmem:[#allocation2 + $0x158] sm:$0xff] %vm99, 0.0
  %144 = vst.msk [vmem:[#allocation2 + $0x160] sm:$0xff] %vm99, 0.0
  %145 = vst.msk [vmem:[#allocation2 + $0x168] sm:$0xff] %vm99, 0.0
  %146 = vst.msk [vmem:[#allocation2 + $0x170] sm:$0xff] %vm99, 0.0
  %147 = vst.msk [vmem:[#allocation2 + $0x178] sm:$0xff] %vm99, 0.0
  %148 = vst.msk [vmem:[#allocation2 + $0x180] sm:$0xff] %vm99, 0.0
  %149 = vst.msk [vmem:[#allocation2 + $0x188] sm:$0xff] %vm99, 0.0
  %150 = vst.msk [vmem:[#allocation2 + $0x190] sm:$0xff] %vm99, 0.0
  %151 = vst.msk [vmem:[#allocation2 + $0x198] sm:$0xff] %vm99, 0.0
  %152 = vst.msk [vmem:[#allocation2 + $0x1a0] sm:$0xff] %vm99, 0.0
  %153 = vst.msk [vmem:[#allocation2 + $0x1a8] sm:$0xff] %vm99, 0.0
  %154 = vst.msk [vmem:[#allocation2 + $0x1b0] sm:$0xff] %vm99, 0.0
  %155 = vst.msk [vmem:[#allocation2 + $0x1b8] sm:$0xff] %vm99, 0.0
  %156 = vst.msk [vmem:[#allocation2 + $0x1c0] sm:$0xff] %vm99, 0.0
  %157 = vst.msk [vmem:[#allocation2 + $0x1c8] sm:$0xff] %vm99, 0.0
  %158 = vst.msk [vmem:[#allocation2 + $0x1d0] sm:$0xff] %vm99, 0.0
  %159 = vst.msk [vmem:[#allocation2 + $0x1d8] sm:$0xff] %vm99, 0.0
  %160 = vst.msk [vmem:[#allocation2 + $0x1e0] sm:$0xff] %vm99, 0.0
  %161 = vst.msk [vmem:[#allocation2 + $0x1e8] sm:$0xff] %vm99, 0.0
  %162 = vst.msk [vmem:[#allocation2 + $0x1f0] sm:$0xff] %vm99, 0.0
  %163 = vst.msk [vmem:[#allocation2 + $0x1f8] sm:$0xff] %vm99, 0.0
  %164 = vst.msk [vmem:[#allocation2 + $0x200] sm:$0xff] %vm99, 0.0
  %165 = vst.msk [vmem:[#allocation2 + $0x208] sm:$0xff] %vm99, 0.0
  %166 = vst.msk [vmem:[#allocation2 + $0x210] sm:$0xff] %vm99, 0.0
  %167 = vst.msk [vmem:[#allocation2 + $0x218] sm:$0xff] %vm99, 0.0
  %168 = vst.msk [vmem:[#allocation2 + $0x220] sm:$0xff] %vm99, 0.0
  %169 = vst.msk [vmem:[#allocation2 + $0x228] sm:$0xff] %vm99, 0.0
  %170 = vst.msk [vmem:[#allocation2 + $0x230] sm:$0xff] %vm99, 0.0
  %171 = vst.msk [vmem:[#allocation2 + $0x238] sm:$0xff] %vm99, 0.0
  %172 = vst.msk [vmem:[#allocation2 + $0x240] sm:$0xff] %vm99, 0.0
  %173 = vst.msk [vmem:[#allocation2 + $0x248] sm:$0xff] %vm99, 0.0
  %174 = vst.msk [vmem:[#allocation2 + $0x250] sm:$0xff] %vm99, 0.0
  %175 = vst.msk [vmem:[#allocation2 + $0x258] sm:$0xff] %vm99, 0.0
  %176 = vst.msk [vmem:[#allocation2 + $0x260] sm:$0xff] %vm99, 0.0
  %177 = vst.msk [vmem:[#allocation2 + $0x268] sm:$0xff] %vm99, 0.0
  %178 = vst.msk [vmem:[#allocation2 + $0x270] sm:$0xff] %vm99, 0.0
  %179 = vst.msk [vmem:[#allocation2 + $0x278] sm:$0xff] %vm99, 0.0
  %180 = vst.msk [vmem:[#allocation2 + $0x280] sm:$0xff] %vm99, 0.0
  %181 = vst.msk [vmem:[#allocation2 + $0x288] sm:$0xff] %vm99, 0.0
  %182 = vst.msk [vmem:[#allocation2 + $0x290] sm:$0xff] %vm99, 0.0
  %183 = vst.msk [vmem:[#allocation2 + $0x298] sm:$0xff] %vm99, 0.0
  %184 = vst.msk [vmem:[#allocation2 + $0x2a0] sm:$0xff] %vm99, 0.0
  %185 = vst.msk [vmem:[#allocation2 + $0x2a8] sm:$0xff] %vm99, 0.0
  %186 = vst.msk [vmem:[#allocation2 + $0x2b0] sm:$0xff] %vm99, 0.0
  %187 = vst.msk [vmem:[#allocation2 + $0x2b8] sm:$0xff] %vm99, 0.0
  %188 = vst.msk [vmem:[#allocation2 + $0x2c0] sm:$0xff] %vm99, 0.0
  %189 = vst.msk [vmem:[#allocation2 + $0x2c8] sm:$0xff] %vm99, 0.0
  %190 = vst.msk [vmem:[#allocation2 + $0x2d0] sm:$0xff] %vm99, 0.0
  %191 = vst.msk [vmem:[#allocation2 + $0x2d8] sm:$0xff] %vm99, 0.0
  %192 = vst.msk [vmem:[#allocation2 + $0x2e0] sm:$0xff] %vm99, 0.0
  %193 = vst.msk [vmem:[#allocation2 + $0x2e8] sm:$0xff] %vm99, 0.0
  %194 = vst.msk [vmem:[#allocation2 + $0x2f0] sm:$0xff] %vm99, 0.0
  %195 = vst.msk [vmem:[#allocation2 + $0x2f8] sm:$0xff] %vm99, 0.0
  %196 = vst.msk [vmem:[#allocation2 + $0x300] sm:$0xff] %vm99, 0.0
  %197 = vst.msk [vmem:[#allocation2 + $0x308] sm:$0xff] %vm99, 0.0
  %198 = vst.msk [vmem:[#allocation2 + $0x310] sm:$0xff] %vm99, 0.0
  %199 = vst.msk [vmem:[#allocation2 + $0x318] sm:$0xff] %vm99, 0.0
  %200 = vst.msk [vmem:[#allocation2 + $0x320] sm:$0xff] %vm99, 0.0
  %201 = vst.msk [vmem:[#allocation2 + $0x328] sm:$0xff] %vm99, 0.0
  %v202 = vld [vmem:[%s2] sm:$0xf]
  %v204 = vsel %vm99, %v35, 0
  %v207 = vsel %vm99, %v36, 0
  %v210 = vsel %vm99, %v37, 0
  %v213 = vsel %vm99, %v38, 0
  %v216 = vsel %vm99, %v39, 0
  %v219 = vsel %vm99, %v40, 0
  %v222 = vsel %vm99, %v41, 0
  %v225 = vsel %vm99, %v42, 0
  %v228 = vsel %vm99, %v43, 0
  %v231 = vsel %vm99, %v44, 0
  %v234 = vsel %vm99, %v45, 0
  %v237 = vsel %vm99, %v46, 0
  %v240 = vsel %vm99, %v47, 0
  %v243 = vsel %vm99, %v48, 0
  %v246 = vsel %vm99, %v49, 0
  %v249 = vsel %vm99, %v50, 0
  %v252 = vsel %vm99, %v51, 0
  %v255 = vsel %vm99, %v52, 0
  %v258 = vsel %vm99, %v53, 0
  %v261 = vsel %vm99, %v54, 0
  %v264 = vsel %vm99, %v55, 0
  %v267 = vsel %vm99, %v56, 0
  %v270 = vsel %vm99, %v57, 0
  %v273 = vsel %vm99, %v58, 0
  %v276 = vsel %vm99, %v59, 0
  %v279 = vsel %vm99, %v60, 0
  %v282 = vsel %vm99, %v61, 0
  %v285 = vsel %vm99, %v62, 0
  %v288 = vsel %vm99, %v63, 0
  %v291 = vsel %vm99, %v64, 0
  %v294 = vsel %vm99, %v65, 0
  %v297 = vsel %vm99, %v66, 0
  %v300 = vsel %vm99, %v67, 0
  %v303 = vsel %vm99, %v68, 0
  %v306 = vsel %vm99, %v69, 0
  %v309 = vsel %vm99, %v70, 0
  %v312 = vsel %vm99, %v71, 0
  %v315 = vsel %vm99, %v72, 0
  %v318 = vsel %vm99, %v73, 0
  %v321 = vsel %vm99, %v74, 0
  %v324 = vsel %vm99, %v75, 0
  %v327 = vsel %vm99, %v76, 0
  %v330 = vsel %vm99, %v77, 0
  %v333 = vsel %vm99, %v78, 0
  %v336 = vsel %vm99, %v79, 0
  %v339 = vsel %vm99, %v80, 0
  %v342 = vsel %vm99, %v81, 0
  %v345 = vsel %vm99, %v82, 0
  %v348 = vsel %vm99, %v83, 0
  %v351 = vsel %vm99, %v84, 0
  %v354 = vsel %vm99, %v85, 0
  %v357 = vsel %vm99, %v86, 0
  %v360 = vsel %vm99, %v87, 0
  %v363 = vsel %vm99, %v88, 0
  %v366 = vsel %vm99, %v89, 0
  %v369 = vsel %vm99, %v90, 0
  %v372 = vsel %vm99, %v91, 0
  %v375 = vsel %vm99, %v92, 0
  %v378 = vsel %vm99, %v93, 0
  %v381 = vsel %vm99, %v94, 0
  %v384 = vsel %vm99, %v95, 0
  %v387 = vsel %vm99, %v96, 0
  %v390 = vsel %vm99, %v97, 0
  %v393 = vsel %vm99, %v98, 0
  %vm395 = vcmask 1043456
  %v397 = vsel %vm395, %v202, 0
  %399 = vmatprep.subr.mxu0 0.0
  %400 = vmatpush1.msra.mxu0 0.0
  %401 = vmatprep.subr.mxu0 0.0
  %402 = vmatpush1.msra.mxu0 0.0
  %403 = vmatprep.subr.mxu0 0.0
  %404 = vmatpush1.msra.mxu0 0.0
  %405 = vmatprep.subr.mxu0 0.0
  %406 = vmatpush1.msra.mxu0 0.0
  %407 = vmatprep.subr.mxu0 0.0
  %408 = vmatpush1.msra.mxu0 0.0
  %409 = vmatprep.subr.mxu0 0.0
  %410 = vmatpush1.msra.mxu0 0.0
  %411 = vmatprep.subr.mxu0 0.0
  %412 = vmatpush1.msra.mxu0 0.0
  %413 = vmatprep.subr.mxu0 0.0
  %414 = vmatpush1.msra.mxu0 0.0
  %415 = vmatprep.subr.mxu0 0.0
  %416 = vmatpush1.msra.mxu0 0.0
  %417 = vmatprep.subr.mxu0 0.0
  %418 = vmatpush1.msra.mxu0 0.0
  %419 = vmatprep.subr.mxu0 0.0
  %420 = vmatpush1.msra.mxu0 0.0
  %421 = vmatprep.subr.mxu0 0.0
  %422 = vmatpush1.msra.mxu0 0.0
  %423 = vmatprep.subr.mxu0 0.0
  %424 = vmatpush1.msra.mxu0 0.0
  %425 = vmatprep.subr.mxu0 0.0
  %426 = vmatpush1.msra.mxu0 0.0
  %427 = vmatprep.subr.mxu0 0.0
  %428 = vmatpush1.msra.mxu0 0.0
  %429 = vmatprep.subr.mxu0 0.0
  %430 = vmatpush1.msra.mxu0 %v397
  %431 = vmatprep.subr.mxu0 0.0
  %432 = vmatpush2.msra.mxu0 0.0
  %433 = vmatprep.subr.mxu0 0.0
  %434 = vmatpush2.msra.mxu0 0.0
  %435 = vmatprep.subr.mxu0 0.0
  %436 = vmatpush2.msra.mxu0 0.0
  %437 = vmatprep.subr.mxu0 0.0
  %438 = vmatpush2.msra.mxu0 0.0
  %439 = vmatprep.subr.mxu0 0.0
  %440 = vmatpush2.msra.mxu0 0.0
  %441 = vmatprep.subr.mxu0 0.0
  %442 = vmatpush2.msra.mxu0 0.0
  %443 = vmatprep.subr.mxu0 0.0
  %444 = vmatpush2.msra.mxu0 0.0
  %445 = vmatprep.subr.mxu0 0.0
  %446 = vmatpush2.msra.mxu0 0.0
  %447 = vmatprep.subr.mxu0 0.0
  %448 = vmatpush2.msra.mxu0 0.0
  %449 = vmatprep.subr.mxu0 0.0
  %450 = vmatpush2.msra.mxu0 0.0
  %451 = vmatprep.subr.mxu0 0.0
  %452 = vmatpush2.msra.mxu0 0.0
  %453 = vmatprep.subr.mxu0 0.0
  %454 = vmatpush2.msra.mxu0 0.0
  %455 = vmatprep.subr.mxu0 0.0
  %456 = vmatpush2.msra.mxu0 0.0
  %457 = vmatprep.subr.mxu0 0.0
  %458 = vmatpush2.msra.mxu0 0.0
  %459 = vmatprep.subr.mxu0 0.0
  %460 = vmatpush2.msra.mxu0 0.0
  %461 = vmatprep.subr.mxu0 0.0
  %462 = vmatpush2.msra.mxu0 0.0
  %463 = vmatprep.mubr.f32.mxu0 0.0
  %464 = vmatmul.mubr.f32.gmra.mxu0 %v204
  %v465 = vpop.f32.mrf.mxu0
  %v466 = vadd.f32 0.0, %v465
  %v467 = vpop.f32.mrf.mxu0
  %468 = vmatprep.mubr.f32.mxu0 0.0
  %469 = vmatmul.mubr.f32.gmra.mxu0 %v207
  %v470 = vpop.f32.mrf.mxu0
  %v471 = vadd.f32 0.0, %v470
  %v472 = vpop.f32.mrf.mxu0
  %473 = vmatprep.mubr.f32.mxu0 0.0
  %474 = vmatmul.mubr.f32.gmra.mxu0 %v210
  %v475 = vpop.f32.mrf.mxu0
  %v476 = vadd.f32 0.0, %v475
  %v477 = vpop.f32.mrf.mxu0
  %478 = vmatprep.mubr.f32.mxu0 0.0
  %479 = vmatmul.mubr.f32.gmra.mxu0 %v213
  %v480 = vpop.f32.mrf.mxu0
  %v481 = vadd.f32 0.0, %v480
  %v482 = vpop.f32.mrf.mxu0
  %483 = vmatprep.mubr.f32.mxu0 0.0
  %484 = vmatmul.mubr.f32.gmra.mxu0 %v216
  %v485 = vpop.f32.mrf.mxu0
  %v486 = vadd.f32 0.0, %v485
  %v487 = vpop.f32.mrf.mxu0
  %488 = vmatprep.mubr.f32.mxu0 0.0
  %489 = vmatmul.mubr.f32.gmra.mxu0 %v219
  %v490 = vpop.f32.mrf.mxu0
  %v491 = vadd.f32 0.0, %v490
  %v492 = vpop.f32.mrf.mxu0
  %493 = vmatprep.mubr.f32.mxu0 0.0
  %494 = vmatmul.mubr.f32.gmra.mxu0 %v222
  %v495 = vpop.f32.mrf.mxu0
  %v496 = vadd.f32 0.0, %v495
  %v497 = vpop.f32.mrf.mxu0
  %498 = vmatprep.mubr.f32.mxu0 0.0
  %499 = vmatmul.mubr.f32.gmra.mxu0 %v225
  %v500 = vpop.f32.mrf.mxu0
  %v501 = vadd.f32 0.0, %v500
  %v502 = vpop.f32.mrf.mxu0
  %503 = vmatprep.mubr.f32.mxu0 0.0
  %504 = vmatmul.mubr.f32.gmra.mxu0 %v228
  %v505 = vpop.f32.mrf.mxu0
  %v506 = vadd.f32 0.0, %v505
  %v507 = vpop.f32.mrf.mxu0
  %508 = vmatprep.mubr.f32.mxu0 0.0
  %509 = vmatmul.mubr.f32.gmra.mxu0 %v231
  %v510 = vpop.f32.mrf.mxu0
  %v511 = vadd.f32 0.0, %v510
  %v512 = vpop.f32.mrf.mxu0
  %513 = vmatprep.mubr.f32.mxu0 0.0
  %514 = vmatmul.mubr.f32.gmra.mxu0 %v234
  %v515 = vpop.f32.mrf.mxu0
  %v516 = vadd.f32 0.0, %v515
  %v517 = vpop.f32.mrf.mxu0
  %518 = vmatprep.mubr.f32.mxu0 0.0
  %519 = vmatmul.mubr.f32.gmra.mxu0 %v237
  %v520 = vpop.f32.mrf.mxu0
  %v521 = vadd.f32 0.0, %v520
  %v522 = vpop.f32.mrf.mxu0
  %523 = vmatprep.mubr.f32.mxu0 0.0
  %524 = vmatmul.mubr.f32.gmra.mxu0 %v240
  %v525 = vpop.f32.mrf.mxu0
  %v526 = vadd.f32 0.0, %v525
  %v527 = vpop.f32.mrf.mxu0
  %528 = vmatprep.mubr.f32.mxu0 0.0
  %529 = vmatmul.mubr.f32.gmra.mxu0 %v243
  %v530 = vpop.f32.mrf.mxu0
  %v531 = vadd.f32 0.0, %v530
  %v532 = vpop.f32.mrf.mxu0
  %533 = vmatprep.mubr.f32.mxu0 0.0
  %534 = vmatmul.mubr.f32.gmra.mxu0 %v246
  %v535 = vpop.f32.mrf.mxu0
  %v536 = vadd.f32 0.0, %v535
  %v537 = vpop.f32.mrf.mxu0
  %538 = vmatprep.mubr.f32.mxu0 0.0
  %539 = vmatmul.mubr.f32.gmra.mxu0 %v249
  %v540 = vpop.f32.mrf.mxu0
  %v541 = vadd.f32 0.0, %v540
  %v542 = vpop.f32.mrf.mxu0
  %543 = vmatprep.mubr.f32.mxu0 0.0
  %544 = vmatmul.mubr.f32.gmra.mxu0 %v252
  %v545 = vpop.f32.mrf.mxu0
  %v546 = vadd.f32 0.0, %v545
  %v547 = vpop.f32.mrf.mxu0
  %548 = vmatprep.mubr.f32.mxu0 0.0
  %549 = vmatmul.mubr.f32.gmra.mxu0 %v255
  %v550 = vpop.f32.mrf.mxu0
  %v551 = vadd.f32 0.0, %v550
  %v552 = vpop.f32.mrf.mxu0
  %553 = vmatprep.mubr.f32.mxu0 0.0
  %554 = vmatmul.mubr.f32.gmra.mxu0 %v258
  %v555 = vpop.f32.mrf.mxu0
  %v556 = vadd.f32 0.0, %v555
  %v557 = vpop.f32.mrf.mxu0
  %558 = vmatprep.mubr.f32.mxu0 0.0
  %559 = vmatmul.mubr.f32.gmra.mxu0 %v261
  %v560 = vpop.f32.mrf.mxu0
  %v561 = vadd.f32 0.0, %v560
  %v562 = vpop.f32.mrf.mxu0
  %563 = vmatprep.mubr.f32.mxu0 0.0
  %564 = vmatmul.mubr.f32.gmra.mxu0 %v264
  %v565 = vpop.f32.mrf.mxu0
  %v566 = vadd.f32 0.0, %v565
  %v567 = vpop.f32.mrf.mxu0
  %568 = vmatprep.mubr.f32.mxu0 0.0
  %569 = vmatmul.mubr.f32.gmra.mxu0 %v267
  %v570 = vpop.f32.mrf.mxu0
  %v571 = vadd.f32 0.0, %v570
  %v572 = vpop.f32.mrf.mxu0
  %573 = vmatprep.mubr.f32.mxu0 0.0
  %574 = vmatmul.mubr.f32.gmra.mxu0 %v270
  %v575 = vpop.f32.mrf.mxu0
  %v576 = vadd.f32 0.0, %v575
  %v577 = vpop.f32.mrf.mxu0
  %578 = vmatprep.mubr.f32.mxu0 0.0
  %579 = vmatmul.mubr.f32.gmra.mxu0 %v273
  %v580 = vpop.f32.mrf.mxu0
  %v581 = vadd.f32 0.0, %v580
  %v582 = vpop.f32.mrf.mxu0
  %583 = vmatprep.mubr.f32.mxu0 0.0
  %584 = vmatmul.mubr.f32.gmra.mxu0 %v276
  %v585 = vpop.f32.mrf.mxu0
  %v586 = vadd.f32 0.0, %v585
  %v587 = vpop.f32.mrf.mxu0
  %588 = vmatprep.mubr.f32.mxu0 0.0
  %589 = vmatmul.mubr.f32.gmra.mxu0 %v279
  %v590 = vpop.f32.mrf.mxu0
  %v591 = vadd.f32 0.0, %v590
  %v592 = vpop.f32.mrf.mxu0
  %593 = vmatprep.mubr.f32.mxu0 0.0
  %594 = vmatmul.mubr.f32.gmra.mxu0 %v282
  %v595 = vpop.f32.mrf.mxu0
  %v596 = vadd.f32 0.0, %v595
  %v597 = vpop.f32.mrf.mxu0
  %598 = vmatprep.mubr.f32.mxu0 0.0
  %599 = vmatmul.mubr.f32.gmra.mxu0 %v285
  %v600 = vpop.f32.mrf.mxu0
  %v601 = vadd.f32 0.0, %v600
  %v602 = vpop.f32.mrf.mxu0
  %603 = vmatprep.mubr.f32.mxu0 0.0
  %604 = vmatmul.mubr.f32.gmra.mxu0 %v288
  %v605 = vpop.f32.mrf.mxu0
  %v606 = vadd.f32 0.0, %v605
  %v607 = vpop.f32.mrf.mxu0
  %608 = vmatprep.mubr.f32.mxu0 0.0
  %609 = vmatmul.mubr.f32.gmra.mxu0 %v291
  %v610 = vpop.f32.mrf.mxu0
  %v611 = vadd.f32 0.0, %v610
  %v612 = vpop.f32.mrf.mxu0
  %613 = vmatprep.mubr.f32.mxu0 0.0
  %614 = vmatmul.mubr.f32.gmra.mxu0 %v294
  %v615 = vpop.f32.mrf.mxu0
  %v616 = vadd.f32 0.0, %v615
  %v617 = vpop.f32.mrf.mxu0
  %618 = vmatprep.mubr.f32.mxu0 0.0
  %619 = vmatmul.mubr.f32.gmra.mxu0 %v297
  %v620 = vpop.f32.mrf.mxu0
  %v621 = vadd.f32 0.0, %v620
  %v622 = vpop.f32.mrf.mxu0
  %623 = vmatprep.mubr.f32.mxu0 0.0
  %624 = vmatmul.mubr.f32.gmra.mxu0 %v300
  %v625 = vpop.f32.mrf.mxu0
  %v626 = vadd.f32 0.0, %v625
  %v627 = vpop.f32.mrf.mxu0
  %628 = vmatprep.mubr.f32.mxu0 0.0
  %629 = vmatmul.mubr.f32.gmra.mxu0 %v303
  %v630 = vpop.f32.mrf.mxu0
  %v631 = vadd.f32 0.0, %v630
  %v632 = vpop.f32.mrf.mxu0
  %633 = vmatprep.mubr.f32.mxu0 0.0
  %634 = vmatmul.mubr.f32.gmra.mxu0 %v306
  %v635 = vpop.f32.mrf.mxu0
  %v636 = vadd.f32 0.0, %v635
  %v637 = vpop.f32.mrf.mxu0
  %638 = vmatprep.mubr.f32.mxu0 0.0
  %639 = vmatmul.mubr.f32.gmra.mxu0 %v309
  %v640 = vpop.f32.mrf.mxu0
  %v641 = vadd.f32 0.0, %v640
  %v642 = vpop.f32.mrf.mxu0
  %643 = vmatprep.mubr.f32.mxu0 0.0
  %644 = vmatmul.mubr.f32.gmra.mxu0 %v312
  %v645 = vpop.f32.mrf.mxu0
  %v646 = vadd.f32 0.0, %v645
  %v647 = vpop.f32.mrf.mxu0
  %648 = vmatprep.mubr.f32.mxu0 0.0
  %649 = vmatmul.mubr.f32.gmra.mxu0 %v315
  %v650 = vpop.f32.mrf.mxu0
  %v651 = vadd.f32 0.0, %v650
  %v652 = vpop.f32.mrf.mxu0
  %653 = vmatprep.mubr.f32.mxu0 0.0
  %654 = vmatmul.mubr.f32.gmra.mxu0 %v318
  %v655 = vpop.f32.mrf.mxu0
  %v656 = vadd.f32 0.0, %v655
  %v657 = vpop.f32.mrf.mxu0
  %658 = vmatprep.mubr.f32.mxu0 0.0
  %659 = vmatmul.mubr.f32.gmra.mxu0 %v321
  %v660 = vpop.f32.mrf.mxu0
  %v661 = vadd.f32 0.0, %v660
  %v662 = vpop.f32.mrf.mxu0
  %663 = vmatprep.mubr.f32.mxu0 0.0
  %664 = vmatmul.mubr.f32.gmra.mxu0 %v324
  %v665 = vpop.f32.mrf.mxu0
  %v666 = vadd.f32 0.0, %v665
  %v667 = vpop.f32.mrf.mxu0
  %668 = vmatprep.mubr.f32.mxu0 0.0
  %669 = vmatmul.mubr.f32.gmra.mxu0 %v327
  %v670 = vpop.f32.mrf.mxu0
  %v671 = vadd.f32 0.0, %v670
  %v672 = vpop.f32.mrf.mxu0
  %673 = vmatprep.mubr.f32.mxu0 0.0
  %674 = vmatmul.mubr.f32.gmra.mxu0 %v330
  %v675 = vpop.f32.mrf.mxu0
  %v676 = vadd.f32 0.0, %v675
  %v677 = vpop.f32.mrf.mxu0
  %678 = vmatprep.mubr.f32.mxu0 0.0
  %679 = vmatmul.mubr.f32.gmra.mxu0 %v333
  %v680 = vpop.f32.mrf.mxu0
  %v681 = vadd.f32 0.0, %v680
  %v682 = vpop.f32.mrf.mxu0
  %683 = vmatprep.mubr.f32.mxu0 0.0
  %684 = vmatmul.mubr.f32.gmra.mxu0 %v336
  %v685 = vpop.f32.mrf.mxu0
  %v686 = vadd.f32 0.0, %v685
  %v687 = vpop.f32.mrf.mxu0
  %688 = vmatprep.mubr.f32.mxu0 0.0
  %689 = vmatmul.mubr.f32.gmra.mxu0 %v339
  %v690 = vpop.f32.mrf.mxu0
  %v691 = vadd.f32 0.0, %v690
  %v692 = vpop.f32.mrf.mxu0
  %693 = vmatprep.mubr.f32.mxu0 0.0
  %694 = vmatmul.mubr.f32.gmra.mxu0 %v342
  %v695 = vpop.f32.mrf.mxu0
  %v696 = vadd.f32 0.0, %v695
  %v697 = vpop.f32.mrf.mxu0
  %698 = vmatprep.mubr.f32.mxu0 0.0
  %699 = vmatmul.mubr.f32.gmra.mxu0 %v345
  %v700 = vpop.f32.mrf.mxu0
  %v701 = vadd.f32 0.0, %v700
  %v702 = vpop.f32.mrf.mxu0
  %703 = vmatprep.mubr.f32.mxu0 0.0
  %704 = vmatmul.mubr.f32.gmra.mxu0 %v348
  %v705 = vpop.f32.mrf.mxu0
  %v706 = vadd.f32 0.0, %v705
  %v707 = vpop.f32.mrf.mxu0
  %708 = vmatprep.mubr.f32.mxu0 0.0
  %709 = vmatmul.mubr.f32.gmra.mxu0 %v351
  %v710 = vpop.f32.mrf.mxu0
  %v711 = vadd.f32 0.0, %v710
  %v712 = vpop.f32.mrf.mxu0
  %713 = vmatprep.mubr.f32.mxu0 0.0
  %714 = vmatmul.mubr.f32.gmra.mxu0 %v354
  %v715 = vpop.f32.mrf.mxu0
  %v716 = vadd.f32 0.0, %v715
  %v717 = vpop.f32.mrf.mxu0
  %718 = vmatprep.mubr.f32.mxu0 0.0
  %719 = vmatmul.mubr.f32.gmra.mxu0 %v357
  %v720 = vpop.f32.mrf.mxu0
  %v721 = vadd.f32 0.0, %v720
  %v722 = vpop.f32.mrf.mxu0
  %723 = vmatprep.mubr.f32.mxu0 0.0
  %724 = vmatmul.mubr.f32.gmra.mxu0 %v360
  %v725 = vpop.f32.mrf.mxu0
  %v726 = vadd.f32 0.0, %v725
  %v727 = vpop.f32.mrf.mxu0
  %728 = vmatprep.mubr.f32.mxu0 0.0
  %729 = vmatmul.mubr.f32.gmra.mxu0 %v363
  %v730 = vpop.f32.mrf.mxu0
  %v731 = vadd.f32 0.0, %v730
  %v732 = vpop.f32.mrf.mxu0
  %733 = vmatprep.mubr.f32.mxu0 0.0
  %734 = vmatmul.mubr.f32.gmra.mxu0 %v366
  %v735 = vpop.f32.mrf.mxu0
  %v736 = vadd.f32 0.0, %v735
  %v737 = vpop.f32.mrf.mxu0
  %738 = vmatprep.mubr.f32.mxu0 0.0
  %739 = vmatmul.mubr.f32.gmra.mxu0 %v369
  %v740 = vpop.f32.mrf.mxu0
  %v741 = vadd.f32 0.0, %v740
  %v742 = vpop.f32.mrf.mxu0
  %743 = vmatprep.mubr.f32.mxu0 0.0
  %744 = vmatmul.mubr.f32.gmra.mxu0 %v372
  %v745 = vpop.f32.mrf.mxu0
  %v746 = vadd.f32 0.0, %v745
  %v747 = vpop.f32.mrf.mxu0
  %748 = vmatprep.mubr.f32.mxu0 0.0
  %749 = vmatmul.mubr.f32.gmra.mxu0 %v375
  %v750 = vpop.f32.mrf.mxu0
  %v751 = vadd.f32 0.0, %v750
  %v752 = vpop.f32.mrf.mxu0
  %753 = vmatprep.mubr.f32.mxu0 0.0
  %754 = vmatmul.mubr.f32.gmra.mxu0 %v378
  %v755 = vpop.f32.mrf.mxu0
  %v756 = vadd.f32 0.0, %v755
  %v757 = vpop.f32.mrf.mxu0
  %758 = vmatprep.mubr.f32.mxu0 0.0
  %759 = vmatmul.mubr.f32.gmra.mxu0 %v381
  %v760 = vpop.f32.mrf.mxu0
  %v761 = vadd.f32 0.0, %v760
  %v762 = vpop.f32.mrf.mxu0
  %763 = vmatprep.mubr.f32.mxu0 0.0
  %764 = vmatmul.mubr.f32.gmra.mxu0 %v384
  %v765 = vpop.f32.mrf.mxu0
  %v766 = vadd.f32 0.0, %v765
  %v767 = vpop.f32.mrf.mxu0
  %768 = vmatprep.mubr.f32.mxu0 0.0
  %769 = vmatmul.mubr.f32.gmra.mxu0 %v387
  %v770 = vpop.f32.mrf.mxu0
  %v771 = vadd.f32 0.0, %v770
  %v772 = vpop.f32.mrf.mxu0
  %773 = vmatprep.mubr.f32.mxu0 0.0
  %774 = vmatmul.mubr.f32.gmra.mxu0 %v390
  %v775 = vpop.f32.mrf.mxu0
  %v776 = vadd.f32 0.0, %v775
  %v777 = vpop.f32.mrf.mxu0
  %778 = vmatprep.mubr.f32.mxu0 0.0
  %779 = vmatmul.mubr.f32.gmra.mxu0 %v393
  %v780 = vpop.f32.mrf.mxu0
  %v781 = vadd.f32 0.0, %v780
  %v782 = vpop.f32.mrf.mxu0
  %783 = vdwg.mxu0
  %v784 = vld [vmem:[#allocation2] sm:$0xff]
  %v785 = vld [vmem:[#allocation2 + $0x8] sm:$0xff]
  %v786 = vld [vmem:[#allocation2 + $0x18] sm:$0xff]
  %v787 = vld [vmem:[#allocation2 + $0x20] sm:$0xff]
  %v788 = vld [vmem:[#allocation2 + $0x30] sm:$0xff]
  %v789 = vld [vmem:[#allocation2 + $0x38] sm:$0xff]
  %v790 = vld [vmem:[#allocation2 + $0x48] sm:$0xff]
  %v791 = vld [vmem:[#allocation2 + $0x50] sm:$0xff]
  %v792 = vld [vmem:[#allocation2 + $0x60] sm:$0xff]
  %v793 = vld [vmem:[#allocation2 + $0x68] sm:$0xff]
  %v794 = vld [vmem:[#allocation2 + $0x78] sm:$0xff]
  %v795 = vld [vmem:[#allocation2 + $0x80] sm:$0xff]
  %v796 = vld [vmem:[#allocation2 + $0x90] sm:$0xff]
  %v797 = vld [vmem:[#allocation2 + $0x98] sm:$0xff]
  %v798 = vld [vmem:[#allocation2 + $0xa8] sm:$0xff]
  %v799 = vld [vmem:[#allocation2 + $0xb0] sm:$0xff]
  %v800 = vld [vmem:[#allocation2 + $0xc0] sm:$0xff]
  %v801 = vld [vmem:[#allocation2 + $0xc8] sm:$0xff]
  %v802 = vld [vmem:[#allocation2 + $0xd8] sm:$0xff]
  %v803 = vld [vmem:[#allocation2 + $0xe0] sm:$0xff]
  %v804 = vld [vmem:[#allocation2 + $0xf0] sm:$0xff]
  %v805 = vld [vmem:[#allocation2 + $0xf8] sm:$0xff]
  %v806 = vld [vmem:[#allocation2 + $0x108] sm:$0xff]
  %v807 = vld [vmem:[#allocation2 + $0x110] sm:$0xff]
  %v808 = vld [vmem:[#allocation2 + $0x120] sm:$0xff]
  %v809 = vld [vmem:[#allocation2 + $0x128] sm:$0xff]
  %v810 = vld [vmem:[#allocation2 + $0x138] sm:$0xff]
  %v811 = vld [vmem:[#allocation2 + $0x140] sm:$0xff]
  %v812 = vld [vmem:[#allocation2 + $0x150] sm:$0xff]
  %v813 = vld [vmem:[#allocation2 + $0x158] sm:$0xff]
  %v814 = vld [vmem:[#allocation2 + $0x168] sm:$0xff]
  %v815 = vld [vmem:[#allocation2 + $0x170] sm:$0xff]
  %v816 = vld [vmem:[#allocation2 + $0x198] sm:$0xff]
  %v817 = vld [vmem:[#allocation2 + $0x1a0] sm:$0xff]
  %v818 = vld [vmem:[#allocation2 + $0x1b0] sm:$0xff]
  %v819 = vld [vmem:[#allocation2 + $0x1b8] sm:$0xff]
  %v820 = vld [vmem:[#allocation2 + $0x1c8] sm:$0xff]
  %v821 = vld [vmem:[#allocation2 + $0x1d0] sm:$0xff]
  %v822 = vld [vmem:[#allocation2 + $0x1e0] sm:$0xff]
  %v823 = vld [vmem:[#allocation2 + $0x1e8] sm:$0xff]
  %v824 = vld [vmem:[#allocation2 + $0x1f8] sm:$0xff]
  %v825 = vld [vmem:[#allocation2 + $0x200] sm:$0xff]
  %v826 = vld [vmem:[#allocation2 + $0x210] sm:$0xff]
  %v827 = vld [vmem:[#allocation2 + $0x218] sm:$0xff]
  %v828 = vld [vmem:[#allocation2 + $0x228] sm:$0xff]
  %v829 = vld [vmem:[#allocation2 + $0x230] sm:$0xff]
  %v830 = vld [vmem:[#allocation2 + $0x240] sm:$0xff]
  %v831 = vld [vmem:[#allocation2 + $0x248] sm:$0xff]
  %v832 = vld [vmem:[#allocation2 + $0x258] sm:$0xff]
  %v833 = vld [vmem:[#allocation2 + $0x260] sm:$0xff]
  %v834 = vld [vmem:[#allocation2 + $0x270] sm:$0xff]
  %v835 = vld [vmem:[#allocation2 + $0x278] sm:$0xff]
  %v836 = vld [vmem:[#allocation2 + $0x288] sm:$0xff]
  %v837 = vld [vmem:[#allocation2 + $0x290] sm:$0xff]
  %v838 = vld [vmem:[#allocation2 + $0x2a0] sm:$0xff]
  %v839 = vld [vmem:[#allocation2 + $0x2a8] sm:$0xff]
  %v840 = vld [vmem:[#allocation2 + $0x2b8] sm:$0xff]
  %v841 = vld [vmem:[#allocation2 + $0x2c0] sm:$0xff]
  %v842 = vld [vmem:[#allocation2 + $0x2d0] sm:$0xff]
  %v843 = vld [vmem:[#allocation2 + $0x2d8] sm:$0xff]
  %v844 = vld [vmem:[#allocation2 + $0x2e8] sm:$0xff]
  %v845 = vld [vmem:[#allocation2 + $0x2f0] sm:$0xff]
  %v846 = vld [vmem:[#allocation2 + $0x300] sm:$0xff]
  %v847 = vld [vmem:[#allocation2 + $0x308] sm:$0xff]
  %v848 = vadd.f32 %v784, %v466
  %v849 = vadd.f32 %v785, %v471
  %v850 = vadd.f32 %v786, %v476
  %v851 = vadd.f32 %v787, %v481
  %v852 = vadd.f32 %v788, %v486
  %v853 = vadd.f32 %v789, %v491
  %v854 = vadd.f32 %v790, %v496
  %v855 = vadd.f32 %v791, %v501
  %v856 = vadd.f32 %v792, %v506
  %v857 = vadd.f32 %v793, %v511
  %v858 = vadd.f32 %v794, %v516
  %v859 = vadd.f32 %v795, %v521
  %v860 = vadd.f32 %v796, %v526
  %v861 = vadd.f32 %v797, %v531
  %v862 = vadd.f32 %v798, %v536
  %v863 = vadd.f32 %v799, %v541
  %v864 = vadd.f32 %v800, %v546
  %v865 = vadd.f32 %v801, %v551
  %v866 = vadd.f32 %v802, %v556
  %v867 = vadd.f32 %v803, %v561
  %v868 = vadd.f32 %v804, %v566
  %v869 = vadd.f32 %v805, %v571
  %v870 = vadd.f32 %v806, %v576
  %v871 = vadd.f32 %v807, %v581
  %v872 = vadd.f32 %v808, %v586
  %v873 = vadd.f32 %v809, %v591
  %v874 = vadd.f32 %v810, %v596
  %v875 = vadd.f32 %v811, %v601
  %v876 = vadd.f32 %v812, %v606
  %v877 = vadd.f32 %v813, %v611
  %v878 = vadd.f32 %v814, %v616
  %v879 = vadd.f32 %v815, %v621
  %v880 = vadd.f32 %v816, %v626
  %v881 = vadd.f32 %v817, %v631
  %v882 = vadd.f32 %v818, %v636
  %v883 = vadd.f32 %v819, %v641
  %v884 = vadd.f32 %v820, %v646
  %v885 = vadd.f32 %v821, %v651
  %v886 = vadd.f32 %v822, %v656
  %v887 = vadd.f32 %v823, %v661
  %v888 = vadd.f32 %v824, %v666
  %v889 = vadd.f32 %v825, %v671
  %v890 = vadd.f32 %v826, %v676
  %v891 = vadd.f32 %v827, %v681
  %v892 = vadd.f32 %v828, %v686
  %v893 = vadd.f32 %v829, %v691
  %v894 = vadd.f32 %v830, %v696
  %v895 = vadd.f32 %v831, %v701
  %v896 = vadd.f32 %v832, %v706
  %v897 = vadd.f32 %v833, %v711
  %v898 = vadd.f32 %v834, %v716
  %v899 = vadd.f32 %v835, %v721
  %v900 = vadd.f32 %v836, %v726
  %v901 = vadd.f32 %v837, %v731
  %v902 = vadd.f32 %v838, %v736
  %v903 = vadd.f32 %v839, %v741
  %v904 = vadd.f32 %v840, %v746
  %v905 = vadd.f32 %v841, %v751
  %v906 = vadd.f32 %v842, %v756
  %v907 = vadd.f32 %v843, %v761
  %v908 = vadd.f32 %v844, %v766
  %v909 = vadd.f32 %v845, %v771
  %v910 = vadd.f32 %v846, %v776
  %v911 = vadd.f32 %v847, %v781
  %912 = vst.msk [vmem:[#allocation2] sm:$0xff] %vm99, %v848
  %913 = vst.msk [vmem:[#allocation2 + $0x8] sm:$0xff] %vm99, %v849
  %914 = vst.msk [vmem:[#allocation2 + $0x18] sm:$0xff] %vm99, %v850
  %915 = vst.msk [vmem:[#allocation2 + $0x20] sm:$0xff] %vm99, %v851
  %916 = vst.msk [vmem:[#allocation2 + $0x30] sm:$0xff] %vm99, %v852
  %917 = vst.msk [vmem:[#allocation2 + $0x38] sm:$0xff] %vm99, %v853
  %918 = vst.msk [vmem:[#allocation2 + $0x48] sm:$0xff] %vm99, %v854
  %919 = vst.msk [vmem:[#allocation2 + $0x50] sm:$0xff] %vm99, %v855
  %920 = vst.msk [vmem:[#allocation2 + $0x60] sm:$0xff] %vm99, %v856
  %921 = vst.msk [vmem:[#allocation2 + $0x68] sm:$0xff] %vm99, %v857
  %922 = vst.msk [vmem:[#allocation2 + $0x78] sm:$0xff] %vm99, %v858
  %923 = vst.msk [vmem:[#allocation2 + $0x80] sm:$0xff] %vm99, %v859
  %924 = vst.msk [vmem:[#allocation2 + $0x90] sm:$0xff] %vm99, %v860
  %925 = vst.msk [vmem:[#allocation2 + $0x98] sm:$0xff] %vm99, %v861
  %926 = vst.msk [vmem:[#allocation2 + $0xa8] sm:$0xff] %vm99, %v862
  %927 = vst.msk [vmem:[#allocation2 + $0xb0] sm:$0xff] %vm99, %v863
  %928 = vst.msk [vmem:[#allocation2 + $0xc0] sm:$0xff] %vm99, %v864
  %929 = vst.msk [vmem:[#allocation2 + $0xc8] sm:$0xff] %vm99, %v865
  %930 = vst.msk [vmem:[#allocation2 + $0xd8] sm:$0xff] %vm99, %v866
  %931 = vst.msk [vmem:[#allocation2 + $0xe0] sm:$0xff] %vm99, %v867
  %932 = vst.msk [vmem:[#allocation2 + $0xf0] sm:$0xff] %vm99, %v868
  %933 = vst.msk [vmem:[#allocation2 + $0xf8] sm:$0xff] %vm99, %v869
  %934 = vst.msk [vmem:[#allocation2 + $0x108] sm:$0xff] %vm99, %v870
  %935 = vst.msk [vmem:[#allocation2 + $0x110] sm:$0xff] %vm99, %v871
  %936 = vst.msk [vmem:[#allocation2 + $0x120] sm:$0xff] %vm99, %v872
  %937 = vst.msk [vmem:[#allocation2 + $0x128] sm:$0xff] %vm99, %v873
  %938 = vst.msk [vmem:[#allocation2 + $0x138] sm:$0xff] %vm99, %v874
  %939 = vst.msk [vmem:[#allocation2 + $0x140] sm:$0xff] %vm99, %v875
  %940 = vst.msk [vmem:[#allocation2 + $0x150] sm:$0xff] %vm99, %v876
  %941 = vst.msk [vmem:[#allocation2 + $0x158] sm:$0xff] %vm99, %v877
  %942 = vst.msk [vmem:[#allocation2 + $0x168] sm:$0xff] %vm99, %v878
  %943 = vst.msk [vmem:[#allocation2 + $0x170] sm:$0xff] %vm99, %v879
  %944 = vst.msk [vmem:[#allocation2 + $0x198] sm:$0xff] %vm99, %v880
  %945 = vst.msk [vmem:[#allocation2 + $0x1a0] sm:$0xff] %vm99, %v881
  %946 = vst.msk [vmem:[#allocation2 + $0x1b0] sm:$0xff] %vm99, %v882
  %947 = vst.msk [vmem:[#allocation2 + $0x1b8] sm:$0xff] %vm99, %v883
  %948 = vst.msk [vmem:[#allocation2 + $0x1c8] sm:$0xff] %vm99, %v884
  %949 = vst.msk [vmem:[#allocation2 + $0x1d0] sm:$0xff] %vm99, %v885
  %950 = vst.msk [vmem:[#allocation2 + $0x1e0] sm:$0xff] %vm99, %v886
  %951 = vst.msk [vmem:[#allocation2 + $0x1e8] sm:$0xff] %vm99, %v887
  %952 = vst.msk [vmem:[#allocation2 + $0x1f8] sm:$0xff] %vm99, %v888
  %953 = vst.msk [vmem:[#allocation2 + $0x200] sm:$0xff] %vm99, %v889
  %954 = vst.msk [vmem:[#allocation2 + $0x210] sm:$0xff] %vm99, %v890
  %955 = vst.msk [vmem:[#allocation2 + $0x218] sm:$0xff] %vm99, %v891
  %956 = vst.msk [vmem:[#allocation2 + $0x228] sm:$0xff] %vm99, %v892
  %957 = vst.msk [vmem:[#allocation2 + $0x230] sm:$0xff] %vm99, %v893
  %958 = vst.msk [vmem:[#allocation2 + $0x240] sm:$0xff] %vm99, %v894
  %959 = vst.msk [vmem:[#allocation2 + $0x248] sm:$0xff] %vm99, %v895
  %960 = vst.msk [vmem:[#allocation2 + $0x258] sm:$0xff] %vm99, %v896
  %961 = vst.msk [vmem:[#allocation2 + $0x260] sm:$0xff] %vm99, %v897
  %962 = vst.msk [vmem:[#allocation2 + $0x270] sm:$0xff] %vm99, %v898
  %963 = vst.msk [vmem:[#allocation2 + $0x278] sm:$0xff] %vm99, %v899
  %964 = vst.msk [vmem:[#allocation2 + $0x288] sm:$0xff] %vm99, %v900
  %965 = vst.msk [vmem:[#allocation2 + $0x290] sm:$0xff] %vm99, %v901
  %966 = vst.msk [vmem:[#allocation2 + $0x2a0] sm:$0xff] %vm99, %v902
  %967 = vst.msk [vmem:[#allocation2 + $0x2a8] sm:$0xff] %vm99, %v903
  %968 = vst.msk [vmem:[#allocation2 + $0x2b8] sm:$0xff] %vm99, %v904
  %969 = vst.msk [vmem:[#allocation2 + $0x2c0] sm:$0xff] %vm99, %v905
  %970 = vst.msk [vmem:[#allocation2 + $0x2d0] sm:$0xff] %vm99, %v906
  %971 = vst.msk [vmem:[#allocation2 + $0x2d8] sm:$0xff] %vm99, %v907
  %972 = vst.msk [vmem:[#allocation2 + $0x2e8] sm:$0xff] %vm99, %v908
  %973 = vst.msk [vmem:[#allocation2 + $0x2f0] sm:$0xff] %vm99, %v909
  %974 = vst.msk [vmem:[#allocation2 + $0x300] sm:$0xff] %vm99, %v910
  %975 = vst.msk [vmem:[#allocation2 + $0x308] sm:$0xff] %vm99, %v911
  %s976 = scalar_lea.vmem %s2, 4
  %v977 = vld [vmem:[%s976] sm:$0xf]
  %v979 = vsel %vm395, %v977, 0
  %981 = vmatprep.subr.mxu0 0.0
  %982 = vmatpush1.msra.mxu0 0.0
  %983 = vmatprep.subr.mxu0 0.0
  %984 = vmatpush1.msra.mxu0 0.0
  %985 = vmatprep.subr.mxu0 0.0
  %986 = vmatpush1.msra.mxu0 0.0
  %987 = vmatprep.subr.mxu0 0.0
  %988 = vmatpush1.msra.mxu0 0.0
  %989 = vmatprep.subr.mxu0 0.0
  %990 = vmatpush1.msra.mxu0 0.0
  %991 = vmatprep.subr.mxu0 0.0
  %992 = vmatpush1.msra.mxu0 0.0
  %993 = vmatprep.subr.mxu0 0.0
  %994 = vmatpush1.msra.mxu0 0.0
  %995 = vmatprep.subr.mxu0 0.0
  %996 = vmatpush1.msra.mxu0 0.0
  %997 = vmatprep.subr.mxu0 0.0
  %998 = vmatpush1.msra.mxu0 0.0
  %999 = vmatprep.subr.mxu0 0.0
  %1000 = vmatpush1.msra.mxu0 0.0
  %1001 = vmatprep.subr.mxu0 0.0
  %1002 = vmatpush1.msra.mxu0 0.0
  %1003 = vmatprep.subr.mxu0 0.0
  %1004 = vmatpush1.msra.mxu0 0.0
  %1005 = vmatprep.subr.mxu0 0.0
  %1006 = vmatpush1.msra.mxu0 0.0
  %1007 = vmatprep.subr.mxu0 0.0
  %1008 = vmatpush1.msra.mxu0 0.0
  %1009 = vmatprep.subr.mxu0 0.0
  %1010 = vmatpush1.msra.mxu0 0.0
  %1011 = vmatprep.subr.mxu0 0.0
  %1012 = vmatpush1.msra.mxu0 %v979
  %1013 = vmatprep.subr.mxu0 0.0
  %1014 = vmatpush2.msra.mxu0 0.0
  %1015 = vmatprep.subr.mxu0 0.0
  %1016 = vmatpush2.msra.mxu0 0.0
  %1017 = vmatprep.subr.mxu0 0.0
  %1018 = vmatpush2.msra.mxu0 0.0
  %1019 = vmatprep.subr.mxu0 0.0
  %1020 = vmatpush2.msra.mxu0 0.0
  %1021 = vmatprep.subr.mxu0 0.0
  %1022 = vmatpush2.msra.mxu0 0.0
  %1023 = vmatprep.subr.mxu0 0.0
  %1024 = vmatpush2.msra.mxu0 0.0
  %1025 = vmatprep.subr.mxu0 0.0
  %1026 = vmatpush2.msra.mxu0 0.0
  %1027 = vmatprep.subr.mxu0 0.0
  %1028 = vmatpush2.msra.mxu0 0.0
  %1029 = vmatprep.subr.mxu0 0.0
  %1030 = vmatpush2.msra.mxu0 0.0
  %1031 = vmatprep.subr.mxu0 0.0
  %1032 = vmatpush2.msra.mxu0 0.0
  %1033 = vmatprep.subr.mxu0 0.0
  %1034 = vmatpush2.msra.mxu0 0.0
  %1035 = vmatprep.subr.mxu0 0.0
  %1036 = vmatpush2.msra.mxu0 0.0
  %1037 = vmatprep.subr.mxu0 0.0
  %1038 = vmatpush2.msra.mxu0 0.0
  %1039 = vmatprep.subr.mxu0 0.0
  %1040 = vmatpush2.msra.mxu0 0.0
  %1041 = vmatprep.subr.mxu0 0.0
  %1042 = vmatpush2.msra.mxu0 0.0
  %1043 = vmatprep.subr.mxu0 0.0
  %1044 = vmatpush2.msra.mxu0 0.0
  %1045 = vmatprep.mubr.f32.mxu0 0.0
  %1046 = vmatmul.mubr.f32.gmra.mxu0 %v204
  %v1047 = vpop.f32.mrf.mxu0
  %v1048 = vadd.f32 0.0, %v1047
  %v1049 = vpop.f32.mrf.mxu0
  %1050 = vmatprep.mubr.f32.mxu0 0.0
  %1051 = vmatmul.mubr.f32.gmra.mxu0 %v207
  %v1052 = vpop.f32.mrf.mxu0
  %v1053 = vadd.f32 0.0, %v1052
  %v1054 = vpop.f32.mrf.mxu0
  %1055 = vmatprep.mubr.f32.mxu0 0.0
  %1056 = vmatmul.mubr.f32.gmra.mxu0 %v210
  %v1057 = vpop.f32.mrf.mxu0
  %v1058 = vadd.f32 0.0, %v1057
  %v1059 = vpop.f32.mrf.mxu0
  %1060 = vmatprep.mubr.f32.mxu0 0.0
  %1061 = vmatmul.mubr.f32.gmra.mxu0 %v213
  %v1062 = vpop.f32.mrf.mxu0
  %v1063 = vadd.f32 0.0, %v1062
  %v1064 = vpop.f32.mrf.mxu0
  %1065 = vmatprep.mubr.f32.mxu0 0.0
  %1066 = vmatmul.mubr.f32.gmra.mxu0 %v216
  %v1067 = vpop.f32.mrf.mxu0
  %v1068 = vadd.f32 0.0, %v1067
  %v1069 = vpop.f32.mrf.mxu0
  %1070 = vmatprep.mubr.f32.mxu0 0.0
  %1071 = vmatmul.mubr.f32.gmra.mxu0 %v219
  %v1072 = vpop.f32.mrf.mxu0
  %v1073 = vadd.f32 0.0, %v1072
  %v1074 = vpop.f32.mrf.mxu0
  %1075 = vmatprep.mubr.f32.mxu0 0.0
  %1076 = vmatmul.mubr.f32.gmra.mxu0 %v222
  %v1077 = vpop.f32.mrf.mxu0
  %v1078 = vadd.f32 0.0, %v1077
  %v1079 = vpop.f32.mrf.mxu0
  %1080 = vmatprep.mubr.f32.mxu0 0.0
  %1081 = vmatmul.mubr.f32.gmra.mxu0 %v225
  %v1082 = vpop.f32.mrf.mxu0
  %v1083 = vadd.f32 0.0, %v1082
  %v1084 = vpop.f32.mrf.mxu0
  %1085 = vmatprep.mubr.f32.mxu0 0.0
  %1086 = vmatmul.mubr.f32.gmra.mxu0 %v228
  %v1087 = vpop.f32.mrf.mxu0
  %v1088 = vadd.f32 0.0, %v1087
  %v1089 = vpop.f32.mrf.mxu0
  %1090 = vmatprep.mubr.f32.mxu0 0.0
  %1091 = vmatmul.mubr.f32.gmra.mxu0 %v231
  %v1092 = vpop.f32.mrf.mxu0
  %v1093 = vadd.f32 0.0, %v1092
  %v1094 = vpop.f32.mrf.mxu0
  %1095 = vmatprep.mubr.f32.mxu0 0.0
  %1096 = vmatmul.mubr.f32.gmra.mxu0 %v234
  %v1097 = vpop.f32.mrf.mxu0
  %v1098 = vadd.f32 0.0, %v1097
  %v1099 = vpop.f32.mrf.mxu0
  %1100 = vmatprep.mubr.f32.mxu0 0.0
  %1101 = vmatmul.mubr.f32.gmra.mxu0 %v237
  %v1102 = vpop.f32.mrf.mxu0
  %v1103 = vadd.f32 0.0, %v1102
  %v1104 = vpop.f32.mrf.mxu0
  %1105 = vmatprep.mubr.f32.mxu0 0.0
  %1106 = vmatmul.mubr.f32.gmra.mxu0 %v240
  %v1107 = vpop.f32.mrf.mxu0
  %v1108 = vadd.f32 0.0, %v1107
  %v1109 = vpop.f32.mrf.mxu0
  %1110 = vmatprep.mubr.f32.mxu0 0.0
  %1111 = vmatmul.mubr.f32.gmra.mxu0 %v243
  %v1112 = vpop.f32.mrf.mxu0
  %v1113 = vadd.f32 0.0, %v1112
  %v1114 = vpop.f32.mrf.mxu0
  %1115 = vmatprep.mubr.f32.mxu0 0.0
  %1116 = vmatmul.mubr.f32.gmra.mxu0 %v246
  %v1117 = vpop.f32.mrf.mxu0
  %v1118 = vadd.f32 0.0, %v1117
  %v1119 = vpop.f32.mrf.mxu0
  %1120 = vmatprep.mubr.f32.mxu0 0.0
  %1121 = vmatmul.mubr.f32.gmra.mxu0 %v249
  %v1122 = vpop.f32.mrf.mxu0
  %v1123 = vadd.f32 0.0, %v1122
  %v1124 = vpop.f32.mrf.mxu0
  %1125 = vmatprep.mubr.f32.mxu0 0.0
  %1126 = vmatmul.mubr.f32.gmra.mxu0 %v252
  %v1127 = vpop.f32.mrf.mxu0
  %v1128 = vadd.f32 0.0, %v1127
  %v1129 = vpop.f32.mrf.mxu0
  %1130 = vmatprep.mubr.f32.mxu0 0.0
  %1131 = vmatmul.mubr.f32.gmra.mxu0 %v255
  %v1132 = vpop.f32.mrf.mxu0
  %v1133 = vadd.f32 0.0, %v1132
  %v1134 = vpop.f32.mrf.mxu0
  %1135 = vmatprep.mubr.f32.mxu0 0.0
  %1136 = vmatmul.mubr.f32.gmra.mxu0 %v258
  %v1137 = vpop.f32.mrf.mxu0
  %v1138 = vadd.f32 0.0, %v1137
  %v1139 = vpop.f32.mrf.mxu0
  %1140 = vmatprep.mubr.f32.mxu0 0.0
  %1141 = vmatmul.mubr.f32.gmra.mxu0 %v261
  %v1142 = vpop.f32.mrf.mxu0
  %v1143 = vadd.f32 0.0, %v1142
  %v1144 = vpop.f32.mrf.mxu0
  %1145 = vmatprep.mubr.f32.mxu0 0.0
  %1146 = vmatmul.mubr.f32.gmra.mxu0 %v264
  %v1147 = vpop.f32.mrf.mxu0
  %v1148 = vadd.f32 0.0, %v1147
  %v1149 = vpop.f32.mrf.mxu0
  %1150 = vmatprep.mubr.f32.mxu0 0.0
  %1151 = vmatmul.mubr.f32.gmra.mxu0 %v267
  %v1152 = vpop.f32.mrf.mxu0
  %v1153 = vadd.f32 0.0, %v1152
  %v1154 = vpop.f32.mrf.mxu0
  %1155 = vmatprep.mubr.f32.mxu0 0.0
  %1156 = vmatmul.mubr.f32.gmra.mxu0 %v270
  %v1157 = vpop.f32.mrf.mxu0
  %v1158 = vadd.f32 0.0, %v1157
  %v1159 = vpop.f32.mrf.mxu0
  %1160 = vmatprep.mubr.f32.mxu0 0.0
  %1161 = vmatmul.mubr.f32.gmra.mxu0 %v273
  %v1162 = vpop.f32.mrf.mxu0
  %v1163 = vadd.f32 0.0, %v1162
  %v1164 = vpop.f32.mrf.mxu0
  %1165 = vmatprep.mubr.f32.mxu0 0.0
  %1166 = vmatmul.mubr.f32.gmra.mxu0 %v276
  %v1167 = vpop.f32.mrf.mxu0
  %v1168 = vadd.f32 0.0, %v1167
  %v1169 = vpop.f32.mrf.mxu0
  %1170 = vmatprep.mubr.f32.mxu0 0.0
  %1171 = vmatmul.mubr.f32.gmra.mxu0 %v279
  %v1172 = vpop.f32.mrf.mxu0
  %v1173 = vadd.f32 0.0, %v1172
  %v1174 = vpop.f32.mrf.mxu0
  %1175 = vmatprep.mubr.f32.mxu0 0.0
  %1176 = vmatmul.mubr.f32.gmra.mxu0 %v282
  %v1177 = vpop.f32.mrf.mxu0
  %v1178 = vadd.f32 0.0, %v1177
  %v1179 = vpop.f32.mrf.mxu0
  %1180 = vmatprep.mubr.f32.mxu0 0.0
  %1181 = vmatmul.mubr.f32.gmra.mxu0 %v285
  %v1182 = vpop.f32.mrf.mxu0
  %v1183 = vadd.f32 0.0, %v1182
  %v1184 = vpop.f32.mrf.mxu0
  %1185 = vmatprep.mubr.f32.mxu0 0.0
  %1186 = vmatmul.mubr.f32.gmra.mxu0 %v288
  %v1187 = vpop.f32.mrf.mxu0
  %v1188 = vadd.f32 0.0, %v1187
  %v1189 = vpop.f32.mrf.mxu0
  %1190 = vmatprep.mubr.f32.mxu0 0.0
  %1191 = vmatmul.mubr.f32.gmra.mxu0 %v291
  %v1192 = vpop.f32.mrf.mxu0
  %v1193 = vadd.f32 0.0, %v1192
  %v1194 = vpop.f32.mrf.mxu0
  %1195 = vmatprep.mubr.f32.mxu0 0.0
  %1196 = vmatmul.mubr.f32.gmra.mxu0 %v294
  %v1197 = vpop.f32.mrf.mxu0
  %v1198 = vadd.f32 0.0, %v1197
  %v1199 = vpop.f32.mrf.mxu0
  %1200 = vmatprep.mubr.f32.mxu0 0.0
  %1201 = vmatmul.mubr.f32.gmra.mxu0 %v297
  %v1202 = vpop.f32.mrf.mxu0
  %v1203 = vadd.f32 0.0, %v1202
  %v1204 = vpop.f32.mrf.mxu0
  %1205 = vmatprep.mubr.f32.mxu0 0.0
  %1206 = vmatmul.mubr.f32.gmra.mxu0 %v300
  %v1207 = vpop.f32.mrf.mxu0
  %v1208 = vadd.f32 0.0, %v1207
  %v1209 = vpop.f32.mrf.mxu0
  %1210 = vmatprep.mubr.f32.mxu0 0.0
  %1211 = vmatmul.mubr.f32.gmra.mxu0 %v303
  %v1212 = vpop.f32.mrf.mxu0
  %v1213 = vadd.f32 0.0, %v1212
  %v1214 = vpop.f32.mrf.mxu0
  %1215 = vmatprep.mubr.f32.mxu0 0.0
  %1216 = vmatmul.mubr.f32.gmra.mxu0 %v306
  %v1217 = vpop.f32.mrf.mxu0
  %v1218 = vadd.f32 0.0, %v1217
  %v1219 = vpop.f32.mrf.mxu0
  %1220 = vmatprep.mubr.f32.mxu0 0.0
  %1221 = vmatmul.mubr.f32.gmra.mxu0 %v309
  %v1222 = vpop.f32.mrf.mxu0
  %v1223 = vadd.f32 0.0, %v1222
  %v1224 = vpop.f32.mrf.mxu0
  %1225 = vmatprep.mubr.f32.mxu0 0.0
  %1226 = vmatmul.mubr.f32.gmra.mxu0 %v312
  %v1227 = vpop.f32.mrf.mxu0
  %v1228 = vadd.f32 0.0, %v1227
  %v1229 = vpop.f32.mrf.mxu0
  %1230 = vmatprep.mubr.f32.mxu0 0.0
  %1231 = vmatmul.mubr.f32.gmra.mxu0 %v315
  %v1232 = vpop.f32.mrf.mxu0
  %v1233 = vadd.f32 0.0, %v1232
  %v1234 = vpop.f32.mrf.mxu0
  %1235 = vmatprep.mubr.f32.mxu0 0.0
  %1236 = vmatmul.mubr.f32.gmra.mxu0 %v318
  %v1237 = vpop.f32.mrf.mxu0
  %v1238 = vadd.f32 0.0, %v1237
  %v1239 = vpop.f32.mrf.mxu0
  %1240 = vmatprep.mubr.f32.mxu0 0.0
  %1241 = vmatmul.mubr.f32.gmra.mxu0 %v321
  %v1242 = vpop.f32.mrf.mxu0
  %v1243 = vadd.f32 0.0, %v1242
  %v1244 = vpop.f32.mrf.mxu0
  %1245 = vmatprep.mubr.f32.mxu0 0.0
  %1246 = vmatmul.mubr.f32.gmra.mxu0 %v324
  %v1247 = vpop.f32.mrf.mxu0
  %v1248 = vadd.f32 0.0, %v1247
  %v1249 = vpop.f32.mrf.mxu0
  %1250 = vmatprep.mubr.f32.mxu0 0.0
  %1251 = vmatmul.mubr.f32.gmra.mxu0 %v327
  %v1252 = vpop.f32.mrf.mxu0
  %v1253 = vadd.f32 0.0, %v1252
  %v1254 = vpop.f32.mrf.mxu0
  %1255 = vmatprep.mubr.f32.mxu0 0.0
  %1256 = vmatmul.mubr.f32.gmra.mxu0 %v330
  %v1257 = vpop.f32.mrf.mxu0
  %v1258 = vadd.f32 0.0, %v1257
  %v1259 = vpop.f32.mrf.mxu0
  %1260 = vmatprep.mubr.f32.mxu0 0.0
  %1261 = vmatmul.mubr.f32.gmra.mxu0 %v333
  %v1262 = vpop.f32.mrf.mxu0
  %v1263 = vadd.f32 0.0, %v1262
  %v1264 = vpop.f32.mrf.mxu0
  %1265 = vmatprep.mubr.f32.mxu0 0.0
  %1266 = vmatmul.mubr.f32.gmra.mxu0 %v336
  %v1267 = vpop.f32.mrf.mxu0
  %v1268 = vadd.f32 0.0, %v1267
  %v1269 = vpop.f32.mrf.mxu0
  %1270 = vmatprep.mubr.f32.mxu0 0.0
  %1271 = vmatmul.mubr.f32.gmra.mxu0 %v339
  %v1272 = vpop.f32.mrf.mxu0
  %v1273 = vadd.f32 0.0, %v1272
  %v1274 = vpop.f32.mrf.mxu0
  %1275 = vmatprep.mubr.f32.mxu0 0.0
  %1276 = vmatmul.mubr.f32.gmra.mxu0 %v342
  %v1277 = vpop.f32.mrf.mxu0
  %v1278 = vadd.f32 0.0, %v1277
  %v1279 = vpop.f32.mrf.mxu0
  %1280 = vmatprep.mubr.f32.mxu0 0.0
  %1281 = vmatmul.mubr.f32.gmra.mxu0 %v345
  %v1282 = vpop.f32.mrf.mxu0
  %v1283 = vadd.f32 0.0, %v1282
  %v1284 = vpop.f32.mrf.mxu0
  %1285 = vmatprep.mubr.f32.mxu0 0.0
  %1286 = vmatmul.mubr.f32.gmra.mxu0 %v348
  %v1287 = vpop.f32.mrf.mxu0
  %v1288 = vadd.f32 0.0, %v1287
  %v1289 = vpop.f32.mrf.mxu0
  %1290 = vmatprep.mubr.f32.mxu0 0.0
  %1291 = vmatmul.mubr.f32.gmra.mxu0 %v351
  %v1292 = vpop.f32.mrf.mxu0
  %v1293 = vadd.f32 0.0, %v1292
  %v1294 = vpop.f32.mrf.mxu0
  %1295 = vmatprep.mubr.f32.mxu0 0.0
  %1296 = vmatmul.mubr.f32.gmra.mxu0 %v354
  %v1297 = vpop.f32.mrf.mxu0
  %v1298 = vadd.f32 0.0, %v1297
  %v1299 = vpop.f32.mrf.mxu0
  %1300 = vmatprep.mubr.f32.mxu0 0.0
  %1301 = vmatmul.mubr.f32.gmra.mxu0 %v357
  %v1302 = vpop.f32.mrf.mxu0
  %v1303 = vadd.f32 0.0, %v1302
  %v1304 = vpop.f32.mrf.mxu0
  %1305 = vmatprep.mubr.f32.mxu0 0.0
  %1306 = vmatmul.mubr.f32.gmra.mxu0 %v360
  %v1307 = vpop.f32.mrf.mxu0
  %v1308 = vadd.f32 0.0, %v1307
  %v1309 = vpop.f32.mrf.mxu0
  %1310 = vmatprep.mubr.f32.mxu0 0.0
  %1311 = vmatmul.mubr.f32.gmra.mxu0 %v363
  %v1312 = vpop.f32.mrf.mxu0
  %v1313 = vadd.f32 0.0, %v1312
  %v1314 = vpop.f32.mrf.mxu0
  %1315 = vmatprep.mubr.f32.mxu0 0.0
  %1316 = vmatmul.mubr.f32.gmra.mxu0 %v366
  %v1317 = vpop.f32.mrf.mxu0
  %v1318 = vadd.f32 0.0, %v1317
  %v1319 = vpop.f32.mrf.mxu0
  %1320 = vmatprep.mubr.f32.mxu0 0.0
  %1321 = vmatmul.mubr.f32.gmra.mxu0 %v369
  %v1322 = vpop.f32.mrf.mxu0
  %v1323 = vadd.f32 0.0, %v1322
  %v1324 = vpop.f32.mrf.mxu0
  %1325 = vmatprep.mubr.f32.mxu0 0.0
  %1326 = vmatmul.mubr.f32.gmra.mxu0 %v372
  %v1327 = vpop.f32.mrf.mxu0
  %v1328 = vadd.f32 0.0, %v1327
  %v1329 = vpop.f32.mrf.mxu0
  %1330 = vmatprep.mubr.f32.mxu0 0.0
  %1331 = vmatmul.mubr.f32.gmra.mxu0 %v375
  %v1332 = vpop.f32.mrf.mxu0
  %v1333 = vadd.f32 0.0, %v1332
  %v1334 = vpop.f32.mrf.mxu0
  %1335 = vmatprep.mubr.f32.mxu0 0.0
  %1336 = vmatmul.mubr.f32.gmra.mxu0 %v378
  %v1337 = vpop.f32.mrf.mxu0
  %v1338 = vadd.f32 0.0, %v1337
  %v1339 = vpop.f32.mrf.mxu0
  %1340 = vmatprep.mubr.f32.mxu0 0.0
  %1341 = vmatmul.mubr.f32.gmra.mxu0 %v381
  %v1342 = vpop.f32.mrf.mxu0
  %v1343 = vadd.f32 0.0, %v1342
  %v1344 = vpop.f32.mrf.mxu0
  %1345 = vmatprep.mubr.f32.mxu0 0.0
  %1346 = vmatmul.mubr.f32.gmra.mxu0 %v384
  %v1347 = vpop.f32.mrf.mxu0
  %v1348 = vadd.f32 0.0, %v1347
  %v1349 = vpop.f32.mrf.mxu0
  %1350 = vmatprep.mubr.f32.mxu0 0.0
  %1351 = vmatmul.mubr.f32.gmra.mxu0 %v387
  %v1352 = vpop.f32.mrf.mxu0
  %v1353 = vadd.f32 0.0, %v1352
  %v1354 = vpop.f32.mrf.mxu0
  %1355 = vmatprep.mubr.f32.mxu0 0.0
  %1356 = vmatmul.mubr.f32.gmra.mxu0 %v390
  %v1357 = vpop.f32.mrf.mxu0
  %v1358 = vadd.f32 0.0, %v1357
  %v1359 = vpop.f32.mrf.mxu0
  %1360 = vmatprep.mubr.f32.mxu0 0.0
  %1361 = vmatmul.mubr.f32.gmra.mxu0 %v393
  %v1362 = vpop.f32.mrf.mxu0
  %v1363 = vadd.f32 0.0, %v1362
  %v1364 = vpop.f32.mrf.mxu0
  %1365 = vdwg.mxu0
  %v1366 = vld [vmem:[#allocation2 + $0x1] sm:$0xff]
  %v1367 = vld [vmem:[#allocation2 + $0x9] sm:$0xff]
  %v1368 = vld [vmem:[#allocation2 + $0x19] sm:$0xff]
  %v1369 = vld [vmem:[#allocation2 + $0x21] sm:$0xff]
  %v1370 = vld [vmem:[#allocation2 + $0x31] sm:$0xff]
  %v1371 = vld [vmem:[#allocation2 + $0x39] sm:$0xff]
  %v1372 = vld [vmem:[#allocation2 + $0x49] sm:$0xff]
  %v1373 = vld [vmem:[#allocation2 + $0x51] sm:$0xff]
  %v1374 = vld [vmem:[#allocation2 + $0x61] sm:$0xff]
  %v1375 = vld [vmem:[#allocation2 + $0x69] sm:$0xff]
  %v1376 = vld [vmem:[#allocation2 + $0x79] sm:$0xff]
  %v1377 = vld [vmem:[#allocation2 + $0x81] sm:$0xff]
  %v1378 = vld [vmem:[#allocation2 + $0x91] sm:$0xff]
  %v1379 = vld [vmem:[#allocation2 + $0x99] sm:$0xff]
  %v1380 = vld [vmem:[#allocation2 + $0xa9] sm:$0xff]
  %v1381 = vld [vmem:[#allocation2 + $0xb1] sm:$0xff]
  %v1382 = vld [vmem:[#allocation2 + $0xc1] sm:$0xff]
  %v1383 = vld [vmem:[#allocation2 + $0xc9] sm:$0xff]
  %v1384 = vld [vmem:[#allocation2 + $0xd9] sm:$0xff]
  %v1385 = vld [vmem:[#allocation2 + $0xe1] sm:$0xff]
  %v1386 = vld [vmem:[#allocation2 + $0xf1] sm:$0xff]
  %v1387 = vld [vmem:[#allocation2 + $0xf9] sm:$0xff]
  %v1388 = vld [vmem:[#allocation2 + $0x109] sm:$0xff]
  %v1389 = vld [vmem:[#allocation2 + $0x111] sm:$0xff]
  %v1390 = vld [vmem:[#allocation2 + $0x121] sm:$0xff]
  %v1391 = vld [vmem:[#allocation2 + $0x129] sm:$0xff]
  %v1392 = vld [vmem:[#allocation2 + $0x139] sm:$0xff]
  %v1393 = vld [vmem:[#allocation2 + $0x141] sm:$0xff]
  %v1394 = vld [vmem:[#allocation2 + $0x151] sm:$0xff]
  %v1395 = vld [vmem:[#allocation2 + $0x159] sm:$0xff]
  %v1396 = vld [vmem:[#allocation2 + $0x169] sm:$0xff]
  %v1397 = vld [vmem:[#allocation2 + $0x171] sm:$0xff]
  %v1398 = vld [vmem:[#allocation2 + $0x199] sm:$0xff]
  %v1399 = vld [vmem:[#allocation2 + $0x1a1] sm:$0xff]
  %v1400 = vld [vmem:[#allocation2 + $0x1b1] sm:$0xff]
  %v1401 = vld [vmem:[#allocation2 + $0x1b9] sm:$0xff]
  %v1402 = vld [vmem:[#allocation2 + $0x1c9] sm:$0xff]
  %v1403 = vld [vmem:[#allocation2 + $0x1d1] sm:$0xff]
  %v1404 = vld [vmem:[#allocation2 + $0x1e1] sm:$0xff]
  %v1405 = vld [vmem:[#allocation2 + $0x1e9] sm:$0xff]
  %v1406 = vld [vmem:[#allocation2 + $0x1f9] sm:$0xff]
  %v1407 = vld [vmem:[#allocation2 + $0x201] sm:$0xff]
  %v1408 = vld [vmem:[#allocation2 + $0x211] sm:$0xff]
  %v1409 = vld [vmem:[#allocation2 + $0x219] sm:$0xff]
  %v1410 = vld [vmem:[#allocation2 + $0x229] sm:$0xff]
  %v1411 = vld [vmem:[#allocation2 + $0x231] sm:$0xff]
  %v1412 = vld [vmem:[#allocation2 + $0x241] sm:$0xff]
  %v1413 = vld [vmem:[#allocation2 + $0x249] sm:$0xff]
  %v1414 = vld [vmem:[#allocation2 + $0x259] sm:$0xff]
  %v1415 = vld [vmem:[#allocation2 + $0x261] sm:$0xff]
  %v1416 = vld [vmem:[#allocation2 + $0x271] sm:$0xff]
  %v1417 = vld [vmem:[#allocation2 + $0x279] sm:$0xff]
  %v1418 = vld [vmem:[#allocation2 + $0x289] sm:$0xff]
  %v1419 = vld [vmem:[#allocation2 + $0x291] sm:$0xff]
  %v1420 = vld [vmem:[#allocation2 + $0x2a1] sm:$0xff]
  %v1421 = vld [vmem:[#allocation2 + $0x2a9] sm:$0xff]
  %v1422 = vld [vmem:[#allocation2 + $0x2b9] sm:$0xff]
  %v1423 = vld [vmem:[#allocation2 + $0x2c1] sm:$0xff]
  %v1424 = vld [vmem:[#allocation2 + $0x2d1] sm:$0xff]
  %v1425 = vld [vmem:[#allocation2 + $0x2d9] sm:$0xff]
  %v1426 = vld [vmem:[#allocation2 + $0x2e9] sm:$0xff]
  %v1427 = vld [vmem:[#allocation2 + $0x2f1] sm:$0xff]
  %v1428 = vld [vmem:[#allocation2 + $0x301] sm:$0xff]
  %v1429 = vld [vmem:[#allocation2 + $0x309] sm:$0xff]
  %v1430 = vadd.f32 %v1366, %v1048
  %v1431 = vadd.f32 %v1367, %v1053
  %v1432 = vadd.f32 %v1368, %v1058
  %v1433 = vadd.f32 %v1369, %v1063
  %v1434 = vadd.f32 %v1370, %v1068
  %v1435 = vadd.f32 %v1371, %v1073
  %v1436 = vadd.f32 %v1372, %v1078
  %v1437 = vadd.f32 %v1373, %v1083
  %v1438 = vadd.f32 %v1374, %v1088
  %v1439 = vadd.f32 %v1375, %v1093
  %v1440 = vadd.f32 %v1376, %v1098
  %v1441 = vadd.f32 %v1377, %v1103
  %v1442 = vadd.f32 %v1378, %v1108
  %v1443 = vadd.f32 %v1379, %v1113
  %v1444 = vadd.f32 %v1380, %v1118
  %v1445 = vadd.f32 %v1381, %v1123
  %v1446 = vadd.f32 %v1382, %v1128
  %v1447 = vadd.f32 %v1383, %v1133
  %v1448 = vadd.f32 %v1384, %v1138
  %v1449 = vadd.f32 %v1385, %v1143
  %v1450 = vadd.f32 %v1386, %v1148
  %v1451 = vadd.f32 %v1387, %v1153
  %v1452 = vadd.f32 %v1388, %v1158
  %v1453 = vadd.f32 %v1389, %v1163
  %v1454 = vadd.f32 %v1390, %v1168
  %v1455 = vadd.f32 %v1391, %v1173
  %v1456 = vadd.f32 %v1392, %v1178
  %v1457 = vadd.f32 %v1393, %v1183
  %v1458 = vadd.f32 %v1394, %v1188
  %v1459 = vadd.f32 %v1395, %v1193
  %v1460 = vadd.f32 %v1396, %v1198
  %v1461 = vadd.f32 %v1397, %v1203
  %v1462 = vadd.f32 %v1398, %v1208
  %v1463 = vadd.f32 %v1399, %v1213
  %v1464 = vadd.f32 %v1400, %v1218
  %v1465 = vadd.f32 %v1401, %v1223
  %v1466 = vadd.f32 %v1402, %v1228
  %v1467 = vadd.f32 %v1403, %v1233
  %v1468 = vadd.f32 %v1404, %v1238
  %v1469 = vadd.f32 %v1405, %v1243
  %v1470 = vadd.f32 %v1406, %v1248
  %v1471 = vadd.f32 %v1407, %v1253
  %v1472 = vadd.f32 %v1408, %v1258
  %v1473 = vadd.f32 %v1409, %v1263
  %v1474 = vadd.f32 %v1410, %v1268
  %v1475 = vadd.f32 %v1411, %v1273
  %v1476 = vadd.f32 %v1412, %v1278
  %v1477 = vadd.f32 %v1413, %v1283
  %v1478 = vadd.f32 %v1414, %v1288
  %v1479 = vadd.f32 %v1415, %v1293
  %v1480 = vadd.f32 %v1416, %v1298
  %v1481 = vadd.f32 %v1417, %v1303
  %v1482 = vadd.f32 %v1418, %v1308
  %v1483 = vadd.f32 %v1419, %v1313
  %v1484 = vadd.f32 %v1420, %v1318
  %v1485 = vadd.f32 %v1421, %v1323
  %v1486 = vadd.f32 %v1422, %v1328
  %v1487 = vadd.f32 %v1423, %v1333
  %v1488 = vadd.f32 %v1424, %v1338
  %v1489 = vadd.f32 %v1425, %v1343
  %v1490 = vadd.f32 %v1426, %v1348
  %v1491 = vadd.f32 %v1427, %v1353
  %v1492 = vadd.f32 %v1428, %v1358
  %v1493 = vadd.f32 %v1429, %v1363
  %1494 = vst.msk [vmem:[#allocation2 + $0x1] sm:$0xff] %vm99, %v1430
  %1495 = vst.msk [vmem:[#allocation2 + $0x9] sm:$0xff] %vm99, %v1431
  %1496 = vst.msk [vmem:[#allocation2 + $0x19] sm:$0xff] %vm99, %v1432
  %1497 = vst.msk [vmem:[#allocation2 + $0x21] sm:$0xff] %vm99, %v1433
  %1498 = vst.msk [vmem:[#allocation2 + $0x31] sm:$0xff] %vm99, %v1434
  %1499 = vst.msk [vmem:[#allocation2 + $0x39] sm:$0xff] %vm99, %v1435
  %1500 = vst.msk [vmem:[#allocation2 + $0x49] sm:$0xff] %vm99, %v1436
  %1501 = vst.msk [vmem:[#allocation2 + $0x51] sm:$0xff] %vm99, %v1437
  %1502 = vst.msk [vmem:[#allocation2 + $0x61] sm:$0xff] %vm99, %v1438
  %1503 = vst.msk [vmem:[#allocation2 + $0x69] sm:$0xff] %vm99, %v1439
  %1504 = vst.msk [vmem:[#allocation2 + $0x79] sm:$0xff] %vm99, %v1440
  %1505 = vst.msk [vmem:[#allocation2 + $0x81] sm:$0xff] %vm99, %v1441
  %1506 = vst.msk [vmem:[#allocation2 + $0x91] sm:$0xff] %vm99, %v1442
  %1507 = vst.msk [vmem:[#allocation2 + $0x99] sm:$0xff] %vm99, %v1443
  %1508 = vst.msk [vmem:[#allocation2 + $0xa9] sm:$0xff] %vm99, %v1444
  %1509 = vst.msk [vmem:[#allocation2 + $0xb1] sm:$0xff] %vm99, %v1445
  %1510 = vst.msk [vmem:[#allocation2 + $0xc1] sm:$0xff] %vm99, %v1446
  %1511 = vst.msk [vmem:[#allocation2 + $0xc9] sm:$0xff] %vm99, %v1447
  %1512 = vst.msk [vmem:[#allocation2 + $0xd9] sm:$0xff] %vm99, %v1448
  %1513 = vst.msk [vmem:[#allocation2 + $0xe1] sm:$0xff] %vm99, %v1449
  %1514 = vst.msk [vmem:[#allocation2 + $0xf1] sm:$0xff] %vm99, %v1450
  %1515 = vst.msk [vmem:[#allocation2 + $0xf9] sm:$0xff] %vm99, %v1451
  %1516 = vst.msk [vmem:[#allocation2 + $0x109] sm:$0xff] %vm99, %v1452
  %1517 = vst.msk [vmem:[#allocation2 + $0x111] sm:$0xff] %vm99, %v1453
  %1518 = vst.msk [vmem:[#allocation2 + $0x121] sm:$0xff] %vm99, %v1454
  %1519 = vst.msk [vmem:[#allocation2 + $0x129] sm:$0xff] %vm99, %v1455
  %1520 = vst.msk [vmem:[#allocation2 + $0x139] sm:$0xff] %vm99, %v1456
  %1521 = vst.msk [vmem:[#allocation2 + $0x141] sm:$0xff] %vm99, %v1457
  %1522 = vst.msk [vmem:[#allocation2 + $0x151] sm:$0xff] %vm99, %v1458
  %1523 = vst.msk [vmem:[#allocation2 + $0x159] sm:$0xff] %vm99, %v1459
  %1524 = vst.msk [vmem:[#allocation2 + $0x169] sm:$0xff] %vm99, %v1460
  %1525 = vst.msk [vmem:[#allocation2 + $0x171] sm:$0xff] %vm99, %v1461
  %1526 = vst.msk [vmem:[#allocation2 + $0x199] sm:$0xff] %vm99, %v1462
  %1527 = vst.msk [vmem:[#allocation2 + $0x1a1] sm:$0xff] %vm99, %v1463
  %1528 = vst.msk [vmem:[#allocation2 + $0x1b1] sm:$0xff] %vm99, %v1464
  %1529 = vst.msk [vmem:[#allocation2 + $0x1b9] sm:$0xff] %vm99, %v1465
  %1530 = vst.msk [vmem:[#allocation2 + $0x1c9] sm:$0xff] %vm99, %v1466
  %1531 = vst.msk [vmem:[#allocation2 + $0x1d1] sm:$0xff] %vm99, %v1467
  %1532 = vst.msk [vmem:[#allocation2 + $0x1e1] sm:$0xff] %vm99, %v1468
  %1533 = vst.msk [vmem:[#allocation2 + $0x1e9] sm:$0xff] %vm99, %v1469
  %1534 = vst.msk [vmem:[#allocation2 + $0x1f9] sm:$0xff] %vm99, %v1470
  %1535 = vst.msk [vmem:[#allocation2 + $0x201] sm:$0xff] %vm99, %v1471
  %1536 = vst.msk [vmem:[#allocation2 + $0x211] sm:$0xff] %vm99, %v1472
  %1537 = vst.msk [vmem:[#allocation2 + $0x219] sm:$0xff] %vm99, %v1473
  %1538 = vst.msk [vmem:[#allocation2 + $0x229] sm:$0xff] %vm99, %v1474
  %1539 = vst.msk [vmem:[#allocation2 + $0x231] sm:$0xff] %vm99, %v1475
  %1540 = vst.msk [vmem:[#allocation2 + $0x241] sm:$0xff] %vm99, %v1476
  %1541 = vst.msk [vmem:[#allocation2 + $0x249] sm:$0xff] %vm99, %v1477
  %1542 = vst.msk [vmem:[#allocation2 + $0x259] sm:$0xff] %vm99, %v1478
  %1543 = vst.msk [vmem:[#allocation2 + $0x261] sm:$0xff] %vm99, %v1479
  %1544 = vst.msk [vmem:[#allocation2 + $0x271] sm:$0xff] %vm99, %v1480
  %1545 = vst.msk [vmem:[#allocation2 + $0x279] sm:$0xff] %vm99, %v1481
  %1546 = vst.msk [vmem:[#allocation2 + $0x289] sm:$0xff] %vm99, %v1482
  %1547 = vst.msk [vmem:[#allocation2 + $0x291] sm:$0xff] %vm99, %v1483
  %1548 = vst.msk [vmem:[#allocation2 + $0x2a1] sm:$0xff] %vm99, %v1484
  %1549 = vst.msk [vmem:[#allocation2 + $0x2a9] sm:$0xff] %vm99, %v1485
  %1550 = vst.msk [vmem:[#allocation2 + $0x2b9] sm:$0xff] %vm99, %v1486
  %1551 = vst.msk [vmem:[#allocation2 + $0x2c1] sm:$0xff] %vm99, %v1487
  %1552 = vst.msk [vmem:[#allocation2 + $0x2d1] sm:$0xff] %vm99, %v1488
  %1553 = vst.msk [vmem:[#allocation2 + $0x2d9] sm:$0xff] %vm99, %v1489
  %1554 = vst.msk [vmem:[#allocation2 + $0x2e9] sm:$0xff] %vm99, %v1490
  %1555 = vst.msk [vmem:[#allocation2 + $0x2f1] sm:$0xff] %vm99, %v1491
  %1556 = vst.msk [vmem:[#allocation2 + $0x301] sm:$0xff] %vm99, %v1492
  %1557 = vst.msk [vmem:[#allocation2 + $0x309] sm:$0xff] %vm99, %v1493
  %s1558 = scalar_lea.vmem %s2, 8
  %v1559 = vld [vmem:[%s1558] sm:$0xf]
  %v1561 = vsel %vm395, %v1559, 0
  %1563 = vmatprep.subr.mxu0 0.0
  %1564 = vmatpush1.msra.mxu0 0.0
  %1565 = vmatprep.subr.mxu0 0.0
  %1566 = vmatpush1.msra.mxu0 0.0
  %1567 = vmatprep.subr.mxu0 0.0
  %1568 = vmatpush1.msra.mxu0 0.0
  %1569 = vmatprep.subr.mxu0 0.0
  %1570 = vmatpush1.msra.mxu0 0.0
  %1571 = vmatprep.subr.mxu0 0.0
  %1572 = vmatpush1.msra.mxu0 0.0
  %1573 = vmatprep.subr.mxu0 0.0
  %1574 = vmatpush1.msra.mxu0 0.0
  %1575 = vmatprep.subr.mxu0 0.0
  %1576 = vmatpush1.msra.mxu0 0.0
  %1577 = vmatprep.subr.mxu0 0.0
  %1578 = vmatpush1.msra.mxu0 0.0
  %1579 = vmatprep.subr.mxu0 0.0
  %1580 = vmatpush1.msra.mxu0 0.0
  %1581 = vmatprep.subr.mxu0 0.0
  %1582 = vmatpush1.msra.mxu0 0.0
  %1583 = vmatprep.subr.mxu0 0.0
  %1584 = vmatpush1.msra.mxu0 0.0
  %1585 = vmatprep.subr.mxu0 0.0
  %1586 = vmatpush1.msra.mxu0 0.0
  %1587 = vmatprep.subr.mxu0 0.0
  %1588 = vmatpush1.msra.mxu0 0.0
  %1589 = vmatprep.subr.mxu0 0.0
  %1590 = vmatpush1.msra.mxu0 0.0
  %1591 = vmatprep.subr.mxu0 0.0
  %1592 = vmatpush1.msra.mxu0 0.0
  %1593 = vmatprep.subr.mxu0 0.0
  %1594 = vmatpush1.msra.mxu0 %v1561
  %1595 = vmatprep.subr.mxu0 0.0
  %1596 = vmatpush2.msra.mxu0 0.0
  %1597 = vmatprep.subr.mxu0 0.0
  %1598 = vmatpush2.msra.mxu0 0.0
  %1599 = vmatprep.subr.mxu0 0.0
  %1600 = vmatpush2.msra.mxu0 0.0
  %1601 = vmatprep.subr.mxu0 0.0
  %1602 = vmatpush2.msra.mxu0 0.0
  %1603 = vmatprep.subr.mxu0 0.0
  %1604 = vmatpush2.msra.mxu0 0.0
  %1605 = vmatprep.subr.mxu0 0.0
  %1606 = vmatpush2.msra.mxu0 0.0
  %1607 = vmatprep.subr.mxu0 0.0
  %1608 = vmatpush2.msra.mxu0 0.0
  %1609 = vmatprep.subr.mxu0 0.0
  %1610 = vmatpush2.msra.mxu0 0.0
  %1611 = vmatprep.subr.mxu0 0.0
  %1612 = vmatpush2.msra.mxu0 0.0
  %1613 = vmatprep.subr.mxu0 0.0
  %1614 = vmatpush2.msra.mxu0 0.0
  %1615 = vmatprep.subr.mxu0 0.0
  %1616 = vmatpush2.msra.mxu0 0.0
  %1617 = vmatprep.subr.mxu0 0.0
  %1618 = vmatpush2.msra.mxu0 0.0
  %1619 = vmatprep.subr.mxu0 0.0
  %1620 = vmatpush2.msra.mxu0 0.0
  %1621 = vmatprep.subr.mxu0 0.0
  %1622 = vmatpush2.msra.mxu0 0.0
  %1623 = vmatprep.subr.mxu0 0.0
  %1624 = vmatpush2.msra.mxu0 0.0
  %1625 = vmatprep.subr.mxu0 0.0
  %1626 = vmatpush2.msra.mxu0 0.0
  %1627 = vmatprep.mubr.f32.mxu0 0.0
  %1628 = vmatmul.mubr.f32.gmra.mxu0 %v204
  %v1629 = vpop.f32.mrf.mxu0
  %v1630 = vadd.f32 0.0, %v1629
  %v1631 = vpop.f32.mrf.mxu0
  %1632 = vmatprep.mubr.f32.mxu0 0.0
  %1633 = vmatmul.mubr.f32.gmra.mxu0 %v207
  %v1634 = vpop.f32.mrf.mxu0
  %v1635 = vadd.f32 0.0, %v1634
  %v1636 = vpop.f32.mrf.mxu0
  %1637 = vmatprep.mubr.f32.mxu0 0.0
  %1638 = vmatmul.mubr.f32.gmra.mxu0 %v210
  %v1639 = vpop.f32.mrf.mxu0
  %v1640 = vadd.f32 0.0, %v1639
  %v1641 = vpop.f32.mrf.mxu0
  %1642 = vmatprep.mubr.f32.mxu0 0.0
  %1643 = vmatmul.mubr.f32.gmra.mxu0 %v213
  %v1644 = vpop.f32.mrf.mxu0
  %v1645 = vadd.f32 0.0, %v1644
  %v1646 = vpop.f32.mrf.mxu0
  %1647 = vmatprep.mubr.f32.mxu0 0.0
  %1648 = vmatmul.mubr.f32.gmra.mxu0 %v216
  %v1649 = vpop.f32.mrf.mxu0
  %v1650 = vadd.f32 0.0, %v1649
  %v1651 = vpop.f32.mrf.mxu0
  %1652 = vmatprep.mubr.f32.mxu0 0.0
  %1653 = vmatmul.mubr.f32.gmra.mxu0 %v219
  %v1654 = vpop.f32.mrf.mxu0
  %v1655 = vadd.f32 0.0, %v1654
  %v1656 = vpop.f32.mrf.mxu0
  %1657 = vmatprep.mubr.f32.mxu0 0.0
  %1658 = vmatmul.mubr.f32.gmra.mxu0 %v222
  %v1659 = vpop.f32.mrf.mxu0
  %v1660 = vadd.f32 0.0, %v1659
  %v1661 = vpop.f32.mrf.mxu0
  %1662 = vmatprep.mubr.f32.mxu0 0.0
  %1663 = vmatmul.mubr.f32.gmra.mxu0 %v225
  %v1664 = vpop.f32.mrf.mxu0
  %v1665 = vadd.f32 0.0, %v1664
  %v1666 = vpop.f32.mrf.mxu0
  %1667 = vmatprep.mubr.f32.mxu0 0.0
  %1668 = vmatmul.mubr.f32.gmra.mxu0 %v228
  %v1669 = vpop.f32.mrf.mxu0
  %v1670 = vadd.f32 0.0, %v1669
  %v1671 = vpop.f32.mrf.mxu0
  %1672 = vmatprep.mubr.f32.mxu0 0.0
  %1673 = vmatmul.mubr.f32.gmra.mxu0 %v231
  %v1674 = vpop.f32.mrf.mxu0
  %v1675 = vadd.f32 0.0, %v1674
  %v1676 = vpop.f32.mrf.mxu0
  %1677 = vmatprep.mubr.f32.mxu0 0.0
  %1678 = vmatmul.mubr.f32.gmra.mxu0 %v234
  %v1679 = vpop.f32.mrf.mxu0
  %v1680 = vadd.f32 0.0, %v1679
  %v1681 = vpop.f32.mrf.mxu0
  %1682 = vmatprep.mubr.f32.mxu0 0.0
  %1683 = vmatmul.mubr.f32.gmra.mxu0 %v237
  %v1684 = vpop.f32.mrf.mxu0
  %v1685 = vadd.f32 0.0, %v1684
  %v1686 = vpop.f32.mrf.mxu0
  %1687 = vmatprep.mubr.f32.mxu0 0.0
  %1688 = vmatmul.mubr.f32.gmra.mxu0 %v240
  %v1689 = vpop.f32.mrf.mxu0
  %v1690 = vadd.f32 0.0, %v1689
  %v1691 = vpop.f32.mrf.mxu0
  %1692 = vmatprep.mubr.f32.mxu0 0.0
  %1693 = vmatmul.mubr.f32.gmra.mxu0 %v243
  %v1694 = vpop.f32.mrf.mxu0
  %v1695 = vadd.f32 0.0, %v1694
  %v1696 = vpop.f32.mrf.mxu0
  %1697 = vmatprep.mubr.f32.mxu0 0.0
  %1698 = vmatmul.mubr.f32.gmra.mxu0 %v246
  %v1699 = vpop.f32.mrf.mxu0
  %v1700 = vadd.f32 0.0, %v1699
  %v1701 = vpop.f32.mrf.mxu0
  %1702 = vmatprep.mubr.f32.mxu0 0.0
  %1703 = vmatmul.mubr.f32.gmra.mxu0 %v249
  %v1704 = vpop.f32.mrf.mxu0
  %v1705 = vadd.f32 0.0, %v1704
  %v1706 = vpop.f32.mrf.mxu0
  %1707 = vmatprep.mubr.f32.mxu0 0.0
  %1708 = vmatmul.mubr.f32.gmra.mxu0 %v252
  %v1709 = vpop.f32.mrf.mxu0
  %v1710 = vadd.f32 0.0, %v1709
  %v1711 = vpop.f32.mrf.mxu0
  %1712 = vmatprep.mubr.f32.mxu0 0.0
  %1713 = vmatmul.mubr.f32.gmra.mxu0 %v255
  %v1714 = vpop.f32.mrf.mxu0
  %v1715 = vadd.f32 0.0, %v1714
  %v1716 = vpop.f32.mrf.mxu0
  %1717 = vmatprep.mubr.f32.mxu0 0.0
  %1718 = vmatmul.mubr.f32.gmra.mxu0 %v258
  %v1719 = vpop.f32.mrf.mxu0
  %v1720 = vadd.f32 0.0, %v1719
  %v1721 = vpop.f32.mrf.mxu0
  %1722 = vmatprep.mubr.f32.mxu0 0.0
  %1723 = vmatmul.mubr.f32.gmra.mxu0 %v261
  %v1724 = vpop.f32.mrf.mxu0
  %v1725 = vadd.f32 0.0, %v1724
  %v1726 = vpop.f32.mrf.mxu0
  %1727 = vmatprep.mubr.f32.mxu0 0.0
  %1728 = vmatmul.mubr.f32.gmra.mxu0 %v264
  %v1729 = vpop.f32.mrf.mxu0
  %v1730 = vadd.f32 0.0, %v1729
  %v1731 = vpop.f32.mrf.mxu0
  %1732 = vmatprep.mubr.f32.mxu0 0.0
  %1733 = vmatmul.mubr.f32.gmra.mxu0 %v267
  %v1734 = vpop.f32.mrf.mxu0
  %v1735 = vadd.f32 0.0, %v1734
  %v1736 = vpop.f32.mrf.mxu0
  %1737 = vmatprep.mubr.f32.mxu0 0.0
  %1738 = vmatmul.mubr.f32.gmra.mxu0 %v270
  %v1739 = vpop.f32.mrf.mxu0
  %v1740 = vadd.f32 0.0, %v1739
  %v1741 = vpop.f32.mrf.mxu0
  %1742 = vmatprep.mubr.f32.mxu0 0.0
  %1743 = vmatmul.mubr.f32.gmra.mxu0 %v273
  %v1744 = vpop.f32.mrf.mxu0
  %v1745 = vadd.f32 0.0, %v1744
  %v1746 = vpop.f32.mrf.mxu0
  %1747 = vmatprep.mubr.f32.mxu0 0.0
  %1748 = vmatmul.mubr.f32.gmra.mxu0 %v276
  %v1749 = vpop.f32.mrf.mxu0
  %v1750 = vadd.f32 0.0, %v1749
  %v1751 = vpop.f32.mrf.mxu0
  %1752 = vmatprep.mubr.f32.mxu0 0.0
  %1753 = vmatmul.mubr.f32.gmra.mxu0 %v279
  %v1754 = vpop.f32.mrf.mxu0
  %v1755 = vadd.f32 0.0, %v1754
  %v1756 = vpop.f32.mrf.mxu0
  %1757 = vmatprep.mubr.f32.mxu0 0.0
  %1758 = vmatmul.mubr.f32.gmra.mxu0 %v282
  %v1759 = vpop.f32.mrf.mxu0
  %v1760 = vadd.f32 0.0, %v1759
  %v1761 = vpop.f32.mrf.mxu0
  %1762 = vmatprep.mubr.f32.mxu0 0.0
  %1763 = vmatmul.mubr.f32.gmra.mxu0 %v285
  %v1764 = vpop.f32.mrf.mxu0
  %v1765 = vadd.f32 0.0, %v1764
  %v1766 = vpop.f32.mrf.mxu0
  %1767 = vmatprep.mubr.f32.mxu0 0.0
  %1768 = vmatmul.mubr.f32.gmra.mxu0 %v288
  %v1769 = vpop.f32.mrf.mxu0
  %v1770 = vadd.f32 0.0, %v1769
  %v1771 = vpop.f32.mrf.mxu0
  %1772 = vmatprep.mubr.f32.mxu0 0.0
  %1773 = vmatmul.mubr.f32.gmra.mxu0 %v291
  %v1774 = vpop.f32.mrf.mxu0
  %v1775 = vadd.f32 0.0, %v1774
  %v1776 = vpop.f32.mrf.mxu0
  %1777 = vmatprep.mubr.f32.mxu0 0.0
  %1778 = vmatmul.mubr.f32.gmra.mxu0 %v294
  %v1779 = vpop.f32.mrf.mxu0
  %v1780 = vadd.f32 0.0, %v1779
  %v1781 = vpop.f32.mrf.mxu0
  %1782 = vmatprep.mubr.f32.mxu0 0.0
  %1783 = vmatmul.mubr.f32.gmra.mxu0 %v297
  %v1784 = vpop.f32.mrf.mxu0
  %v1785 = vadd.f32 0.0, %v1784
  %v1786 = vpop.f32.mrf.mxu0
  %1787 = vmatprep.mubr.f32.mxu0 0.0
  %1788 = vmatmul.mubr.f32.gmra.mxu0 %v300
  %v1789 = vpop.f32.mrf.mxu0
  %v1790 = vadd.f32 0.0, %v1789
  %v1791 = vpop.f32.mrf.mxu0
  %1792 = vmatprep.mubr.f32.mxu0 0.0
  %1793 = vmatmul.mubr.f32.gmra.mxu0 %v303
  %v1794 = vpop.f32.mrf.mxu0
  %v1795 = vadd.f32 0.0, %v1794
  %v1796 = vpop.f32.mrf.mxu0
  %1797 = vmatprep.mubr.f32.mxu0 0.0
  %1798 = vmatmul.mubr.f32.gmra.mxu0 %v306
  %v1799 = vpop.f32.mrf.mxu0
  %v1800 = vadd.f32 0.0, %v1799
  %v1801 = vpop.f32.mrf.mxu0
  %1802 = vmatprep.mubr.f32.mxu0 0.0
  %1803 = vmatmul.mubr.f32.gmra.mxu0 %v309
  %v1804 = vpop.f32.mrf.mxu0
  %v1805 = vadd.f32 0.0, %v1804
  %v1806 = vpop.f32.mrf.mxu0
  %1807 = vmatprep.mubr.f32.mxu0 0.0
  %1808 = vmatmul.mubr.f32.gmra.mxu0 %v312
  %v1809 = vpop.f32.mrf.mxu0
  %v1810 = vadd.f32 0.0, %v1809
  %v1811 = vpop.f32.mrf.mxu0
  %1812 = vmatprep.mubr.f32.mxu0 0.0
  %1813 = vmatmul.mubr.f32.gmra.mxu0 %v315
  %v1814 = vpop.f32.mrf.mxu0
  %v1815 = vadd.f32 0.0, %v1814
  %v1816 = vpop.f32.mrf.mxu0
  %1817 = vmatprep.mubr.f32.mxu0 0.0
  %1818 = vmatmul.mubr.f32.gmra.mxu0 %v318
  %v1819 = vpop.f32.mrf.mxu0
  %v1820 = vadd.f32 0.0, %v1819
  %v1821 = vpop.f32.mrf.mxu0
  %1822 = vmatprep.mubr.f32.mxu0 0.0
  %1823 = vmatmul.mubr.f32.gmra.mxu0 %v321
  %v1824 = vpop.f32.mrf.mxu0
  %v1825 = vadd.f32 0.0, %v1824
  %v1826 = vpop.f32.mrf.mxu0
  %1827 = vmatprep.mubr.f32.mxu0 0.0
  %1828 = vmatmul.mubr.f32.gmra.mxu0 %v324
  %v1829 = vpop.f32.mrf.mxu0
  %v1830 = vadd.f32 0.0, %v1829
  %v1831 = vpop.f32.mrf.mxu0
  %1832 = vmatprep.mubr.f32.mxu0 0.0
  %1833 = vmatmul.mubr.f32.gmra.mxu0 %v327
  %v1834 = vpop.f32.mrf.mxu0
  %v1835 = vadd.f32 0.0, %v1834
  %v1836 = vpop.f32.mrf.mxu0
  %1837 = vmatprep.mubr.f32.mxu0 0.0
  %1838 = vmatmul.mubr.f32.gmra.mxu0 %v330
  %v1839 = vpop.f32.mrf.mxu0
  %v1840 = vadd.f32 0.0, %v1839
  %v1841 = vpop.f32.mrf.mxu0
  %1842 = vmatprep.mubr.f32.mxu0 0.0
  %1843 = vmatmul.mubr.f32.gmra.mxu0 %v333
  %v1844 = vpop.f32.mrf.mxu0
  %v1845 = vadd.f32 0.0, %v1844
  %v1846 = vpop.f32.mrf.mxu0
  %1847 = vmatprep.mubr.f32.mxu0 0.0
  %1848 = vmatmul.mubr.f32.gmra.mxu0 %v336
  %v1849 = vpop.f32.mrf.mxu0
  %v1850 = vadd.f32 0.0, %v1849
  %v1851 = vpop.f32.mrf.mxu0
  %1852 = vmatprep.mubr.f32.mxu0 0.0
  %1853 = vmatmul.mubr.f32.gmra.mxu0 %v339
  %v1854 = vpop.f32.mrf.mxu0
  %v1855 = vadd.f32 0.0, %v1854
  %v1856 = vpop.f32.mrf.mxu0
  %1857 = vmatprep.mubr.f32.mxu0 0.0
  %1858 = vmatmul.mubr.f32.gmra.mxu0 %v342
  %v1859 = vpop.f32.mrf.mxu0
  %v1860 = vadd.f32 0.0, %v1859
  %v1861 = vpop.f32.mrf.mxu0
  %1862 = vmatprep.mubr.f32.mxu0 0.0
  %1863 = vmatmul.mubr.f32.gmra.mxu0 %v345
  %v1864 = vpop.f32.mrf.mxu0
  %v1865 = vadd.f32 0.0, %v1864
  %v1866 = vpop.f32.mrf.mxu0
  %1867 = vmatprep.mubr.f32.mxu0 0.0
  %1868 = vmatmul.mubr.f32.gmra.mxu0 %v348
  %v1869 = vpop.f32.mrf.mxu0
  %v1870 = vadd.f32 0.0, %v1869
  %v1871 = vpop.f32.mrf.mxu0
  %1872 = vmatprep.mubr.f32.mxu0 0.0
  %1873 = vmatmul.mubr.f32.gmra.mxu0 %v351
  %v1874 = vpop.f32.mrf.mxu0
  %v1875 = vadd.f32 0.0, %v1874
  %v1876 = vpop.f32.mrf.mxu0
  %1877 = vmatprep.mubr.f32.mxu0 0.0
  %1878 = vmatmul.mubr.f32.gmra.mxu0 %v354
  %v1879 = vpop.f32.mrf.mxu0
  %v1880 = vadd.f32 0.0, %v1879
  %v1881 = vpop.f32.mrf.mxu0
  %1882 = vmatprep.mubr.f32.mxu0 0.0
  %1883 = vmatmul.mubr.f32.gmra.mxu0 %v357
  %v1884 = vpop.f32.mrf.mxu0
  %v1885 = vadd.f32 0.0, %v1884
  %v1886 = vpop.f32.mrf.mxu0
  %1887 = vmatprep.mubr.f32.mxu0 0.0
  %1888 = vmatmul.mubr.f32.gmra.mxu0 %v360
  %v1889 = vpop.f32.mrf.mxu0
  %v1890 = vadd.f32 0.0, %v1889
  %v1891 = vpop.f32.mrf.mxu0
  %1892 = vmatprep.mubr.f32.mxu0 0.0
  %1893 = vmatmul.mubr.f32.gmra.mxu0 %v363
  %v1894 = vpop.f32.mrf.mxu0
  %v1895 = vadd.f32 0.0, %v1894
  %v1896 = vpop.f32.mrf.mxu0
  %1897 = vmatprep.mubr.f32.mxu0 0.0
  %1898 = vmatmul.mubr.f32.gmra.mxu0 %v366
  %v1899 = vpop.f32.mrf.mxu0
  %v1900 = vadd.f32 0.0, %v1899
  %v1901 = vpop.f32.mrf.mxu0
  %1902 = vmatprep.mubr.f32.mxu0 0.0
  %1903 = vmatmul.mubr.f32.gmra.mxu0 %v369
  %v1904 = vpop.f32.mrf.mxu0
  %v1905 = vadd.f32 0.0, %v1904
  %v1906 = vpop.f32.mrf.mxu0
  %1907 = vmatprep.mubr.f32.mxu0 0.0
  %1908 = vmatmul.mubr.f32.gmra.mxu0 %v372
  %v1909 = vpop.f32.mrf.mxu0
  %v1910 = vadd.f32 0.0, %v1909
  %v1911 = vpop.f32.mrf.mxu0
  %1912 = vmatprep.mubr.f32.mxu0 0.0
  %1913 = vmatmul.mubr.f32.gmra.mxu0 %v375
  %v1914 = vpop.f32.mrf.mxu0
  %v1915 = vadd.f32 0.0, %v1914
  %v1916 = vpop.f32.mrf.mxu0
  %1917 = vmatprep.mubr.f32.mxu0 0.0
  %1918 = vmatmul.mubr.f32.gmra.mxu0 %v378
  %v1919 = vpop.f32.mrf.mxu0
  %v1920 = vadd.f32 0.0, %v1919
  %v1921 = vpop.f32.mrf.mxu0
  %1922 = vmatprep.mubr.f32.mxu0 0.0
  %1923 = vmatmul.mubr.f32.gmra.mxu0 %v381
  %v1924 = vpop.f32.mrf.mxu0
  %v1925 = vadd.f32 0.0, %v1924
  %v1926 = vpop.f32.mrf.mxu0
  %1927 = vmatprep.mubr.f32.mxu0 0.0
  %1928 = vmatmul.mubr.f32.gmra.mxu0 %v384
  %v1929 = vpop.f32.mrf.mxu0
  %v1930 = vadd.f32 0.0, %v1929
  %v1931 = vpop.f32.mrf.mxu0
  %1932 = vmatprep.mubr.f32.mxu0 0.0
  %1933 = vmatmul.mubr.f32.gmra.mxu0 %v387
  %v1934 = vpop.f32.mrf.mxu0
  %v1935 = vadd.f32 0.0, %v1934
  %v1936 = vpop.f32.mrf.mxu0
  %1937 = vmatprep.mubr.f32.mxu0 0.0
  %1938 = vmatmul.mubr.f32.gmra.mxu0 %v390
  %v1939 = vpop.f32.mrf.mxu0
  %v1940 = vadd.f32 0.0, %v1939
  %v1941 = vpop.f32.mrf.mxu0
  %1942 = vmatprep.mubr.f32.mxu0 0.0
  %1943 = vmatmul.mubr.f32.gmra.mxu0 %v393
  %v1944 = vpop.f32.mrf.mxu0
  %v1945 = vadd.f32 0.0, %v1944
  %v1946 = vpop.f32.mrf.mxu0
  %1947 = vdwg.mxu0
  %s1948 = scalar_lea.vmem [#allocation2], 24
  %v1949 = vld [vmem:[%s1948] sm:$0xff]
  %v1950 = vld [vmem:[%s1948 + $0x8] sm:$0xff]
  %v1951 = vld [vmem:[%s1948 + $0x18] sm:$0xff]
  %v1952 = vld [vmem:[%s1948 + $0x20] sm:$0xff]
  %v1953 = vld [vmem:[%s1948 + $0x30] sm:$0xff]
  %v1954 = vld [vmem:[%s1948 + $0x38] sm:$0xff]
  %v1955 = vld [vmem:[%s1948 + $0x48] sm:$0xff]
  %v1956 = vld [vmem:[%s1948 + $0x50] sm:$0xff]
  %v1957 = vld [vmem:[%s1948 + $0x60] sm:$0xff]
  %v1958 = vld [vmem:[%s1948 + $0x68] sm:$0xff]
  %v1959 = vld [vmem:[%s1948 + $0x78] sm:$0xff]
  %v1960 = vld [vmem:[%s1948 + $0x80] sm:$0xff]
  %v1961 = vld [vmem:[%s1948 + $0x90] sm:$0xff]
  %v1962 = vld [vmem:[%s1948 + $0x98] sm:$0xff]
  %v1963 = vld [vmem:[%s1948 + $0xa8] sm:$0xff]
  %v1964 = vld [vmem:[%s1948 + $0xb0] sm:$0xff]
  %v1965 = vld [vmem:[%s1948 + $0xc0] sm:$0xff]
  %v1966 = vld [vmem:[%s1948 + $0xc8] sm:$0xff]
  %v1967 = vld [vmem:[%s1948 + $0xd8] sm:$0xff]
  %v1968 = vld [vmem:[%s1948 + $0xe0] sm:$0xff]
  %v1969 = vld [vmem:[%s1948 + $0xf0] sm:$0xff]
  %v1970 = vld [vmem:[%s1948 + $0xf8] sm:$0xff]
  %v1971 = vld [vmem:[%s1948 + $0x108] sm:$0xff]
  %v1972 = vld [vmem:[%s1948 + $0x110] sm:$0xff]
  %v1973 = vld [vmem:[%s1948 + $0x120] sm:$0xff]
  %v1974 = vld [vmem:[%s1948 + $0x128] sm:$0xff]
  %v1975 = vld [vmem:[%s1948 + $0x138] sm:$0xff]
  %v1976 = vld [vmem:[%s1948 + $0x140] sm:$0xff]
  %v1977 = vld [vmem:[%s1948 + $0x150] sm:$0xff]
  %v1978 = vld [vmem:[%s1948 + $0x158] sm:$0xff]
  %v1979 = vld [vmem:[%s1948 + $0x168] sm:$0xff]
  %v1980 = vld [vmem:[%s1948 + $0x170] sm:$0xff]
  %v1981 = vld [vmem:[%s1948 + $0x198] sm:$0xff]
  %v1982 = vld [vmem:[%s1948 + $0x1a0] sm:$0xff]
  %v1983 = vld [vmem:[%s1948 + $0x1b0] sm:$0xff]
  %v1984 = vld [vmem:[%s1948 + $0x1b8] sm:$0xff]
  %v1985 = vld [vmem:[%s1948 + $0x1c8] sm:$0xff]
  %v1986 = vld [vmem:[%s1948 + $0x1d0] sm:$0xff]
  %v1987 = vld [vmem:[%s1948 + $0x1e0] sm:$0xff]
  %v1988 = vld [vmem:[%s1948 + $0x1e8] sm:$0xff]
  %v1989 = vld [vmem:[%s1948 + $0x1f8] sm:$0xff]
  %v1990 = vld [vmem:[%s1948 + $0x200] sm:$0xff]
  %v1991 = vld [vmem:[%s1948 + $0x210] sm:$0xff]
  %v1992 = vld [vmem:[%s1948 + $0x218] sm:$0xff]
  %v1993 = vld [vmem:[%s1948 + $0x228] sm:$0xff]
  %v1994 = vld [vmem:[%s1948 + $0x230] sm:$0xff]
  %v1995 = vld [vmem:[%s1948 + $0x240] sm:$0xff]
  %v1996 = vld [vmem:[%s1948 + $0x248] sm:$0xff]
  %v1997 = vld [vmem:[%s1948 + $0x258] sm:$0xff]
  %v1998 = vld [vmem:[%s1948 + $0x260] sm:$0xff]
  %v1999 = vld [vmem:[%s1948 + $0x270] sm:$0xff]
  %v2000 = vld [vmem:[%s1948 + $0x278] sm:$0xff]
  %v2001 = vld [vmem:[%s1948 + $0x288] sm:$0xff]
  %v2002 = vld [vmem:[%s1948 + $0x290] sm:$0xff]
  %v2003 = vld [vmem:[%s1948 + $0x2a0] sm:$0xff]
  %v2004 = vld [vmem:[%s1948 + $0x2a8] sm:$0xff]
  %v2005 = vld [vmem:[%s1948 + $0x2b8] sm:$0xff]
  %v2006 = vld [vmem:[%s1948 + $0x2c0] sm:$0xff]
  %v2007 = vld [vmem:[%s1948 + $0x2d0] sm:$0xff]
  %v2008 = vld [vmem:[%s1948 + $0x2d8] sm:$0xff]
  %v2009 = vld [vmem:[%s1948 + $0x2e8] sm:$0xff]
  %v2010 = vld [vmem:[%s1948 + $0x2f0] sm:$0xff]
  %v2011 = vld [vmem:[%s1948 + $0x300] sm:$0xff]
  %v2012 = vld [vmem:[%s1948 + $0x308] sm:$0xff]
  %v2013 = vadd.f32 %v1949, %v1630
  %v2014 = vadd.f32 %v1950, %v1635
  %v2015 = vadd.f32 %v1951, %v1640
  %v2016 = vadd.f32 %v1952, %v1645
  %v2017 = vadd.f32 %v1953, %v1650
  %v2018 = vadd.f32 %v1954, %v1655
  %v2019 = vadd.f32 %v1955, %v1660
  %v2020 = vadd.f32 %v1956, %v1665
  %v2021 = vadd.f32 %v1957, %v1670
  %v2022 = vadd.f32 %v1958, %v1675
  %v2023 = vadd.f32 %v1959, %v1680
  %v2024 = vadd.f32 %v1960, %v1685
  %v2025 = vadd.f32 %v1961, %v1690
  %v2026 = vadd.f32 %v1962, %v1695
  %v2027 = vadd.f32 %v1963, %v1700
  %v2028 = vadd.f32 %v1964, %v1705
  %v2029 = vadd.f32 %v1965, %v1710
  %v2030 = vadd.f32 %v1966, %v1715
  %v2031 = vadd.f32 %v1967, %v1720
  %v2032 = vadd.f32 %v1968, %v1725
  %v2033 = vadd.f32 %v1969, %v1730
  %v2034 = vadd.f32 %v1970, %v1735
  %v2035 = vadd.f32 %v1971, %v1740
  %v2036 = vadd.f32 %v1972, %v1745
  %v2037 = vadd.f32 %v1973, %v1750
  %v2038 = vadd.f32 %v1974, %v1755
  %v2039 = vadd.f32 %v1975, %v1760
  %v2040 = vadd.f32 %v1976, %v1765
  %v2041 = vadd.f32 %v1977, %v1770
  %v2042 = vadd.f32 %v1978, %v1775
  %v2043 = vadd.f32 %v1979, %v1780
  %v2044 = vadd.f32 %v1980, %v1785
  %v2045 = vadd.f32 %v1981, %v1790
  %v2046 = vadd.f32 %v1982, %v1795
  %v2047 = vadd.f32 %v1983, %v1800
  %v2048 = vadd.f32 %v1984, %v1805
  %v2049 = vadd.f32 %v1985, %v1810
  %v2050 = vadd.f32 %v1986, %v1815
  %v2051 = vadd.f32 %v1987, %v1820
  %v2052 = vadd.f32 %v1988, %v1825
  %v2053 = vadd.f32 %v1989, %v1830
  %v2054 = vadd.f32 %v1990, %v1835
  %v2055 = vadd.f32 %v1991, %v1840
  %v2056 = vadd.f32 %v1992, %v1845
  %v2057 = vadd.f32 %v1993, %v1850
  %v2058 = vadd.f32 %v1994, %v1855
  %v2059 = vadd.f32 %v1995, %v1860
  %v2060 = vadd.f32 %v1996, %v1865
  %v2061 = vadd.f32 %v1997, %v1870
  %v2062 = vadd.f32 %v1998, %v1875
  %v2063 = vadd.f32 %v1999, %v1880
  %v2064 = vadd.f32 %v2000, %v1885
  %v2065 = vadd.f32 %v2001, %v1890
  %v2066 = vadd.f32 %v2002, %v1895
  %v2067 = vadd.f32 %v2003, %v1900
  %v2068 = vadd.f32 %v2004, %v1905
  %v2069 = vadd.f32 %v2005, %v1910
  %v2070 = vadd.f32 %v2006, %v1915
  %v2071 = vadd.f32 %v2007, %v1920
  %v2072 = vadd.f32 %v2008, %v1925
  %v2073 = vadd.f32 %v2009, %v1930
  %v2074 = vadd.f32 %v2010, %v1935
  %v2075 = vadd.f32 %v2011, %v1940
  %v2076 = vadd.f32 %v2012, %v1945
  %2077 = vst.msk [vmem:[%s1948] sm:$0xff] %vm99, %v2013
  %2078 = vst.msk [vmem:[%s1948 + $0x8] sm:$0xff] %vm99, %v2014
  %2079 = vst.msk [vmem:[%s1948 + $0x18] sm:$0xff] %vm99, %v2015
  %2080 = vst.msk [vmem:[%s1948 + $0x20] sm:$0xff] %vm99, %v2016
  %2081 = vst.msk [vmem:[%s1948 + $0x30] sm:$0xff] %vm99, %v2017
  %2082 = vst.msk [vmem:[%s1948 + $0x38] sm:$0xff] %vm99, %v2018
  %2083 = vst.msk [vmem:[%s1948 + $0x48] sm:$0xff] %vm99, %v2019
  %2084 = vst.msk [vmem:[%s1948 + $0x50] sm:$0xff] %vm99, %v2020
  %2085 = vst.msk [vmem:[%s1948 + $0x60] sm:$0xff] %vm99, %v2021
  %2086 = vst.msk [vmem:[%s1948 + $0x68] sm:$0xff] %vm99, %v2022
  %2087 = vst.msk [vmem:[%s1948 + $0x78] sm:$0xff] %vm99, %v2023
  %2088 = vst.msk [vmem:[%s1948 + $0x80] sm:$0xff] %vm99, %v2024
  %2089 = vst.msk [vmem:[%s1948 + $0x90] sm:$0xff] %vm99, %v2025
  %2090 = vst.msk [vmem:[%s1948 + $0x98] sm:$0xff] %vm99, %v2026
  %2091 = vst.msk [vmem:[%s1948 + $0xa8] sm:$0xff] %vm99, %v2027
  %2092 = vst.msk [vmem:[%s1948 + $0xb0] sm:$0xff] %vm99, %v2028
  %2093 = vst.msk [vmem:[%s1948 + $0xc0] sm:$0xff] %vm99, %v2029
  %2094 = vst.msk [vmem:[%s1948 + $0xc8] sm:$0xff] %vm99, %v2030
  %2095 = vst.msk [vmem:[%s1948 + $0xd8] sm:$0xff] %vm99, %v2031
  %2096 = vst.msk [vmem:[%s1948 + $0xe0] sm:$0xff] %vm99, %v2032
  %2097 = vst.msk [vmem:[%s1948 + $0xf0] sm:$0xff] %vm99, %v2033
  %2098 = vst.msk [vmem:[%s1948 + $0xf8] sm:$0xff] %vm99, %v2034
  %2099 = vst.msk [vmem:[%s1948 + $0x108] sm:$0xff] %vm99, %v2035
  %2100 = vst.msk [vmem:[%s1948 + $0x110] sm:$0xff] %vm99, %v2036
  %2101 = vst.msk [vmem:[%s1948 + $0x120] sm:$0xff] %vm99, %v2037
  %2102 = vst.msk [vmem:[%s1948 + $0x128] sm:$0xff] %vm99, %v2038
  %2103 = vst.msk [vmem:[%s1948 + $0x138] sm:$0xff] %vm99, %v2039
  %2104 = vst.msk [vmem:[%s1948 + $0x140] sm:$0xff] %vm99, %v2040
  %2105 = vst.msk [vmem:[%s1948 + $0x150] sm:$0xff] %vm99, %v2041
  %2106 = vst.msk [vmem:[%s1948 + $0x158] sm:$0xff] %vm99, %v2042
  %2107 = vst.msk [vmem:[%s1948 + $0x168] sm:$0xff] %vm99, %v2043
  %2108 = vst.msk [vmem:[%s1948 + $0x170] sm:$0xff] %vm99, %v2044
  %2109 = vst.msk [vmem:[%s1948 + $0x198] sm:$0xff] %vm99, %v2045
  %2110 = vst.msk [vmem:[%s1948 + $0x1a0] sm:$0xff] %vm99, %v2046
  %2111 = vst.msk [vmem:[%s1948 + $0x1b0] sm:$0xff] %vm99, %v2047
  %2112 = vst.msk [vmem:[%s1948 + $0x1b8] sm:$0xff] %vm99, %v2048
  %2113 = vst.msk [vmem:[%s1948 + $0x1c8] sm:$0xff] %vm99, %v2049
  %2114 = vst.msk [vmem:[%s1948 + $0x1d0] sm:$0xff] %vm99, %v2050
  %2115 = vst.msk [vmem:[%s1948 + $0x1e0] sm:$0xff] %vm99, %v2051
  %2116 = vst.msk [vmem:[%s1948 + $0x1e8] sm:$0xff] %vm99, %v2052
  %2117 = vst.msk [vmem:[%s1948 + $0x1f8] sm:$0xff] %vm99, %v2053
  %2118 = vst.msk [vmem:[%s1948 + $0x200] sm:$0xff] %vm99, %v2054
  %2119 = vst.msk [vmem:[%s1948 + $0x210] sm:$0xff] %vm99, %v2055
  %2120 = vst.msk [vmem:[%s1948 + $0x218] sm:$0xff] %vm99, %v2056
  %2121 = vst.msk [vmem:[%s1948 + $0x228] sm:$0xff] %vm99, %v2057
  %2122 = vst.msk [vmem:[%s1948 + $0x230] sm:$0xff] %vm99, %v2058
  %2123 = vst.msk [vmem:[%s1948 + $0x240] sm:$0xff] %vm99, %v2059
  %2124 = vst.msk [vmem:[%s1948 + $0x248] sm:$0xff] %vm99, %v2060
  %2125 = vst.msk [vmem:[%s1948 + $0x258] sm:$0xff] %vm99, %v2061
  %2126 = vst.msk [vmem:[%s1948 + $0x260] sm:$0xff] %vm99, %v2062
  %2127 = vst.msk [vmem:[%s1948 + $0x270] sm:$0xff] %vm99, %v2063
  %2128 = vst.msk [vmem:[%s1948 + $0x278] sm:$0xff] %vm99, %v2064
  %2129 = vst.msk [vmem:[%s1948 + $0x288] sm:$0xff] %vm99, %v2065
  %2130 = vst.msk [vmem:[%s1948 + $0x290] sm:$0xff] %vm99, %v2066
  %2131 = vst.msk [vmem:[%s1948 + $0x2a0] sm:$0xff] %vm99, %v2067
  %2132 = vst.msk [vmem:[%s1948 + $0x2a8] sm:$0xff] %vm99, %v2068
  %2133 = vst.msk [vmem:[%s1948 + $0x2b8] sm:$0xff] %vm99, %v2069
  %2134 = vst.msk [vmem:[%s1948 + $0x2c0] sm:$0xff] %vm99, %v2070
  %2135 = vst.msk [vmem:[%s1948 + $0x2d0] sm:$0xff] %vm99, %v2071
  %2136 = vst.msk [vmem:[%s1948 + $0x2d8] sm:$0xff] %vm99, %v2072
  %2137 = vst.msk [vmem:[%s1948 + $0x2e8] sm:$0xff] %vm99, %v2073
  %2138 = vst.msk [vmem:[%s1948 + $0x2f0] sm:$0xff] %vm99, %v2074
  %2139 = vst.msk [vmem:[%s1948 + $0x300] sm:$0xff] %vm99, %v2075
  %2140 = vst.msk [vmem:[%s1948 + $0x308] sm:$0xff] %vm99, %v2076
  %s2141 = scalar_lea.vmem %s2, 12
  %v2142 = vld [vmem:[%s2141] sm:$0xf]
  %v2144 = vsel %vm395, %v2142, 0
  %2146 = vmatprep.subr.mxu0 0.0
  %2147 = vmatpush1.msra.mxu0 0.0
  %2148 = vmatprep.subr.mxu0 0.0
  %2149 = vmatpush1.msra.mxu0 0.0
  %2150 = vmatprep.subr.mxu0 0.0
  %2151 = vmatpush1.msra.mxu0 0.0
  %2152 = vmatprep.subr.mxu0 0.0
  %2153 = vmatpush1.msra.mxu0 0.0
  %2154 = vmatprep.subr.mxu0 0.0
  %2155 = vmatpush1.msra.mxu0 0.0
  %2156 = vmatprep.subr.mxu0 0.0
  %2157 = vmatpush1.msra.mxu0 0.0
  %2158 = vmatprep.subr.mxu0 0.0
  %2159 = vmatpush1.msra.mxu0 0.0
  %2160 = vmatprep.subr.mxu0 0.0
  %2161 = vmatpush1.msra.mxu0 0.0
  %2162 = vmatprep.subr.mxu0 0.0
  %2163 = vmatpush1.msra.mxu0 0.0
  %2164 = vmatprep.subr.mxu0 0.0
  %2165 = vmatpush1.msra.mxu0 0.0
  %2166 = vmatprep.subr.mxu0 0.0
  %2167 = vmatpush1.msra.mxu0 0.0
  %2168 = vmatprep.subr.mxu0 0.0
  %2169 = vmatpush1.msra.mxu0 0.0
  %2170 = vmatprep.subr.mxu0 0.0
  %2171 = vmatpush1.msra.mxu0 0.0
  %2172 = vmatprep.subr.mxu0 0.0
  %2173 = vmatpush1.msra.mxu0 0.0
  %2174 = vmatprep.subr.mxu0 0.0
  %2175 = vmatpush1.msra.mxu0 0.0
  %2176 = vmatprep.subr.mxu0 0.0
  %2177 = vmatpush1.msra.mxu0 %v2144
  %2178 = vmatprep.subr.mxu0 0.0
  %2179 = vmatpush2.msra.mxu0 0.0
  %2180 = vmatprep.subr.mxu0 0.0
  %2181 = vmatpush2.msra.mxu0 0.0
  %2182 = vmatprep.subr.mxu0 0.0
  %2183 = vmatpush2.msra.mxu0 0.0
  %2184 = vmatprep.subr.mxu0 0.0
  %2185 = vmatpush2.msra.mxu0 0.0
  %2186 = vmatprep.subr.mxu0 0.0
  %2187 = vmatpush2.msra.mxu0 0.0
  %2188 = vmatprep.subr.mxu0 0.0
  %2189 = vmatpush2.msra.mxu0 0.0
  %2190 = vmatprep.subr.mxu0 0.0
  %2191 = vmatpush2.msra.mxu0 0.0
  %2192 = vmatprep.subr.mxu0 0.0
  %2193 = vmatpush2.msra.mxu0 0.0
  %2194 = vmatprep.subr.mxu0 0.0
  %2195 = vmatpush2.msra.mxu0 0.0
  %2196 = vmatprep.subr.mxu0 0.0
  %2197 = vmatpush2.msra.mxu0 0.0
  %2198 = vmatprep.subr.mxu0 0.0
  %2199 = vmatpush2.msra.mxu0 0.0
  %2200 = vmatprep.subr.mxu0 0.0
  %2201 = vmatpush2.msra.mxu0 0.0
  %2202 = vmatprep.subr.mxu0 0.0
  %2203 = vmatpush2.msra.mxu0 0.0
  %2204 = vmatprep.subr.mxu0 0.0
  %2205 = vmatpush2.msra.mxu0 0.0
  %2206 = vmatprep.subr.mxu0 0.0
  %2207 = vmatpush2.msra.mxu0 0.0
  %2208 = vmatprep.subr.mxu0 0.0
  %2209 = vmatpush2.msra.mxu0 0.0
  %2210 = vmatprep.mubr.f32.mxu0 0.0
  %2211 = vmatmul.mubr.f32.gmra.mxu0 %v204
  %v2212 = vpop.f32.mrf.mxu0
  %v2213 = vadd.f32 0.0, %v2212
  %v2214 = vpop.f32.mrf.mxu0
  %2215 = vmatprep.mubr.f32.mxu0 0.0
  %2216 = vmatmul.mubr.f32.gmra.mxu0 %v207
  %v2217 = vpop.f32.mrf.mxu0
  %v2218 = vadd.f32 0.0, %v2217
  %v2219 = vpop.f32.mrf.mxu0
  %2220 = vmatprep.mubr.f32.mxu0 0.0
  %2221 = vmatmul.mubr.f32.gmra.mxu0 %v210
  %v2222 = vpop.f32.mrf.mxu0
  %v2223 = vadd.f32 0.0, %v2222
  %v2224 = vpop.f32.mrf.mxu0
  %2225 = vmatprep.mubr.f32.mxu0 0.0
  %2226 = vmatmul.mubr.f32.gmra.mxu0 %v213
  %v2227 = vpop.f32.mrf.mxu0
  %v2228 = vadd.f32 0.0, %v2227
  %v2229 = vpop.f32.mrf.mxu0
  %2230 = vmatprep.mubr.f32.mxu0 0.0
  %2231 = vmatmul.mubr.f32.gmra.mxu0 %v216
  %v2232 = vpop.f32.mrf.mxu0
  %v2233 = vadd.f32 0.0, %v2232
  %v2234 = vpop.f32.mrf.mxu0
  %2235 = vmatprep.mubr.f32.mxu0 0.0
  %2236 = vmatmul.mubr.f32.gmra.mxu0 %v219
  %v2237 = vpop.f32.mrf.mxu0
  %v2238 = vadd.f32 0.0, %v2237
  %v2239 = vpop.f32.mrf.mxu0
  %2240 = vmatprep.mubr.f32.mxu0 0.0
  %2241 = vmatmul.mubr.f32.gmra.mxu0 %v222
  %v2242 = vpop.f32.mrf.mxu0
  %v2243 = vadd.f32 0.0, %v2242
  %v2244 = vpop.f32.mrf.mxu0
  %2245 = vmatprep.mubr.f32.mxu0 0.0
  %2246 = vmatmul.mubr.f32.gmra.mxu0 %v225
  %v2247 = vpop.f32.mrf.mxu0
  %v2248 = vadd.f32 0.0, %v2247
  %v2249 = vpop.f32.mrf.mxu0
  %2250 = vmatprep.mubr.f32.mxu0 0.0
  %2251 = vmatmul.mubr.f32.gmra.mxu0 %v228
  %v2252 = vpop.f32.mrf.mxu0
  %v2253 = vadd.f32 0.0, %v2252
  %v2254 = vpop.f32.mrf.mxu0
  %2255 = vmatprep.mubr.f32.mxu0 0.0
  %2256 = vmatmul.mubr.f32.gmra.mxu0 %v231
  %v2257 = vpop.f32.mrf.mxu0
  %v2258 = vadd.f32 0.0, %v2257
  %v2259 = vpop.f32.mrf.mxu0
  %2260 = vmatprep.mubr.f32.mxu0 0.0
  %2261 = vmatmul.mubr.f32.gmra.mxu0 %v234
  %v2262 = vpop.f32.mrf.mxu0
  %v2263 = vadd.f32 0.0, %v2262
  %v2264 = vpop.f32.mrf.mxu0
  %2265 = vmatprep.mubr.f32.mxu0 0.0
  %2266 = vmatmul.mubr.f32.gmra.mxu0 %v237
  %v2267 = vpop.f32.mrf.mxu0
  %v2268 = vadd.f32 0.0, %v2267
  %v2269 = vpop.f32.mrf.mxu0
  %2270 = vmatprep.mubr.f32.mxu0 0.0
  %2271 = vmatmul.mubr.f32.gmra.mxu0 %v240
  %v2272 = vpop.f32.mrf.mxu0
  %v2273 = vadd.f32 0.0, %v2272
  %v2274 = vpop.f32.mrf.mxu0
  %2275 = vmatprep.mubr.f32.mxu0 0.0
  %2276 = vmatmul.mubr.f32.gmra.mxu0 %v243
  %v2277 = vpop.f32.mrf.mxu0
  %v2278 = vadd.f32 0.0, %v2277
  %v2279 = vpop.f32.mrf.mxu0
  %2280 = vmatprep.mubr.f32.mxu0 0.0
  %2281 = vmatmul.mubr.f32.gmra.mxu0 %v246
  %v2282 = vpop.f32.mrf.mxu0
  %v2283 = vadd.f32 0.0, %v2282
  %v2284 = vpop.f32.mrf.mxu0
  %2285 = vmatprep.mubr.f32.mxu0 0.0
  %2286 = vmatmul.mubr.f32.gmra.mxu0 %v249
  %v2287 = vpop.f32.mrf.mxu0
  %v2288 = vadd.f32 0.0, %v2287
  %v2289 = vpop.f32.mrf.mxu0
  %2290 = vmatprep.mubr.f32.mxu0 0.0
  %2291 = vmatmul.mubr.f32.gmra.mxu0 %v252
  %v2292 = vpop.f32.mrf.mxu0
  %v2293 = vadd.f32 0.0, %v2292
  %v2294 = vpop.f32.mrf.mxu0
  %2295 = vmatprep.mubr.f32.mxu0 0.0
  %2296 = vmatmul.mubr.f32.gmra.mxu0 %v255
  %v2297 = vpop.f32.mrf.mxu0
  %v2298 = vadd.f32 0.0, %v2297
  %v2299 = vpop.f32.mrf.mxu0
  %2300 = vmatprep.mubr.f32.mxu0 0.0
  %2301 = vmatmul.mubr.f32.gmra.mxu0 %v258
  %v2302 = vpop.f32.mrf.mxu0
  %v2303 = vadd.f32 0.0, %v2302
  %v2304 = vpop.f32.mrf.mxu0
  %2305 = vmatprep.mubr.f32.mxu0 0.0
  %2306 = vmatmul.mubr.f32.gmra.mxu0 %v261
  %v2307 = vpop.f32.mrf.mxu0
  %v2308 = vadd.f32 0.0, %v2307
  %v2309 = vpop.f32.mrf.mxu0
  %2310 = vmatprep.mubr.f32.mxu0 0.0
  %2311 = vmatmul.mubr.f32.gmra.mxu0 %v264
  %v2312 = vpop.f32.mrf.mxu0
  %v2313 = vadd.f32 0.0, %v2312
  %v2314 = vpop.f32.mrf.mxu0
  %2315 = vmatprep.mubr.f32.mxu0 0.0
  %2316 = vmatmul.mubr.f32.gmra.mxu0 %v267
  %v2317 = vpop.f32.mrf.mxu0
  %v2318 = vadd.f32 0.0, %v2317
  %v2319 = vpop.f32.mrf.mxu0
  %2320 = vmatprep.mubr.f32.mxu0 0.0
  %2321 = vmatmul.mubr.f32.gmra.mxu0 %v270
  %v2322 = vpop.f32.mrf.mxu0
  %v2323 = vadd.f32 0.0, %v2322
  %v2324 = vpop.f32.mrf.mxu0
  %2325 = vmatprep.mubr.f32.mxu0 0.0
  %2326 = vmatmul.mubr.f32.gmra.mxu0 %v273
  %v2327 = vpop.f32.mrf.mxu0
  %v2328 = vadd.f32 0.0, %v2327
  %v2329 = vpop.f32.mrf.mxu0
  %2330 = vmatprep.mubr.f32.mxu0 0.0
  %2331 = vmatmul.mubr.f32.gmra.mxu0 %v276
  %v2332 = vpop.f32.mrf.mxu0
  %v2333 = vadd.f32 0.0, %v2332
  %v2334 = vpop.f32.mrf.mxu0
  %2335 = vmatprep.mubr.f32.mxu0 0.0
  %2336 = vmatmul.mubr.f32.gmra.mxu0 %v279
  %v2337 = vpop.f32.mrf.mxu0
  %v2338 = vadd.f32 0.0, %v2337
  %v2339 = vpop.f32.mrf.mxu0
  %2340 = vmatprep.mubr.f32.mxu0 0.0
  %2341 = vmatmul.mubr.f32.gmra.mxu0 %v282
  %v2342 = vpop.f32.mrf.mxu0
  %v2343 = vadd.f32 0.0, %v2342
  %v2344 = vpop.f32.mrf.mxu0
  %2345 = vmatprep.mubr.f32.mxu0 0.0
  %2346 = vmatmul.mubr.f32.gmra.mxu0 %v285
  %v2347 = vpop.f32.mrf.mxu0
  %v2348 = vadd.f32 0.0, %v2347
  %v2349 = vpop.f32.mrf.mxu0
  %2350 = vmatprep.mubr.f32.mxu0 0.0
  %2351 = vmatmul.mubr.f32.gmra.mxu0 %v288
  %v2352 = vpop.f32.mrf.mxu0
  %v2353 = vadd.f32 0.0, %v2352
  %v2354 = vpop.f32.mrf.mxu0
  %2355 = vmatprep.mubr.f32.mxu0 0.0
  %2356 = vmatmul.mubr.f32.gmra.mxu0 %v291
  %v2357 = vpop.f32.mrf.mxu0
  %v2358 = vadd.f32 0.0, %v2357
  %v2359 = vpop.f32.mrf.mxu0
  %2360 = vmatprep.mubr.f32.mxu0 0.0
  %2361 = vmatmul.mubr.f32.gmra.mxu0 %v294
  %v2362 = vpop.f32.mrf.mxu0
  %v2363 = vadd.f32 0.0, %v2362
  %v2364 = vpop.f32.mrf.mxu0
  %2365 = vmatprep.mubr.f32.mxu0 0.0
  %2366 = vmatmul.mubr.f32.gmra.mxu0 %v297
  %v2367 = vpop.f32.mrf.mxu0
  %v2368 = vadd.f32 0.0, %v2367
  %v2369 = vpop.f32.mrf.mxu0
  %2370 = vmatprep.mubr.f32.mxu0 0.0
  %2371 = vmatmul.mubr.f32.gmra.mxu0 %v300
  %v2372 = vpop.f32.mrf.mxu0
  %v2373 = vadd.f32 0.0, %v2372
  %v2374 = vpop.f32.mrf.mxu0
  %2375 = vmatprep.mubr.f32.mxu0 0.0
  %2376 = vmatmul.mubr.f32.gmra.mxu0 %v303
  %v2377 = vpop.f32.mrf.mxu0
  %v2378 = vadd.f32 0.0, %v2377
  %v2379 = vpop.f32.mrf.mxu0
  %2380 = vmatprep.mubr.f32.mxu0 0.0
  %2381 = vmatmul.mubr.f32.gmra.mxu0 %v306
  %v2382 = vpop.f32.mrf.mxu0
  %v2383 = vadd.f32 0.0, %v2382
  %v2384 = vpop.f32.mrf.mxu0
  %2385 = vmatprep.mubr.f32.mxu0 0.0
  %2386 = vmatmul.mubr.f32.gmra.mxu0 %v309
  %v2387 = vpop.f32.mrf.mxu0
  %v2388 = vadd.f32 0.0, %v2387
  %v2389 = vpop.f32.mrf.mxu0
  %2390 = vmatprep.mubr.f32.mxu0 0.0
  %2391 = vmatmul.mubr.f32.gmra.mxu0 %v312
  %v2392 = vpop.f32.mrf.mxu0
  %v2393 = vadd.f32 0.0, %v2392
  %v2394 = vpop.f32.mrf.mxu0
  %2395 = vmatprep.mubr.f32.mxu0 0.0
  %2396 = vmatmul.mubr.f32.gmra.mxu0 %v315
  %v2397 = vpop.f32.mrf.mxu0
  %v2398 = vadd.f32 0.0, %v2397
  %v2399 = vpop.f32.mrf.mxu0
  %2400 = vmatprep.mubr.f32.mxu0 0.0
  %2401 = vmatmul.mubr.f32.gmra.mxu0 %v318
  %v2402 = vpop.f32.mrf.mxu0
  %v2403 = vadd.f32 0.0, %v2402
  %v2404 = vpop.f32.mrf.mxu0
  %2405 = vmatprep.mubr.f32.mxu0 0.0
  %2406 = vmatmul.mubr.f32.gmra.mxu0 %v321
  %v2407 = vpop.f32.mrf.mxu0
  %v2408 = vadd.f32 0.0, %v2407
  %v2409 = vpop.f32.mrf.mxu0
  %2410 = vmatprep.mubr.f32.mxu0 0.0
  %2411 = vmatmul.mubr.f32.gmra.mxu0 %v324
  %v2412 = vpop.f32.mrf.mxu0
  %v2413 = vadd.f32 0.0, %v2412
  %v2414 = vpop.f32.mrf.mxu0
  %2415 = vmatprep.mubr.f32.mxu0 0.0
  %2416 = vmatmul.mubr.f32.gmra.mxu0 %v327
  %v2417 = vpop.f32.mrf.mxu0
  %v2418 = vadd.f32 0.0, %v2417
  %v2419 = vpop.f32.mrf.mxu0
  %2420 = vmatprep.mubr.f32.mxu0 0.0
  %2421 = vmatmul.mubr.f32.gmra.mxu0 %v330
  %v2422 = vpop.f32.mrf.mxu0
  %v2423 = vadd.f32 0.0, %v2422
  %v2424 = vpop.f32.mrf.mxu0
  %2425 = vmatprep.mubr.f32.mxu0 0.0
  %2426 = vmatmul.mubr.f32.gmra.mxu0 %v333
  %v2427 = vpop.f32.mrf.mxu0
  %v2428 = vadd.f32 0.0, %v2427
  %v2429 = vpop.f32.mrf.mxu0
  %2430 = vmatprep.mubr.f32.mxu0 0.0
  %2431 = vmatmul.mubr.f32.gmra.mxu0 %v336
  %v2432 = vpop.f32.mrf.mxu0
  %v2433 = vadd.f32 0.0, %v2432
  %v2434 = vpop.f32.mrf.mxu0
  %2435 = vmatprep.mubr.f32.mxu0 0.0
  %2436 = vmatmul.mubr.f32.gmra.mxu0 %v339
  %v2437 = vpop.f32.mrf.mxu0
  %v2438 = vadd.f32 0.0, %v2437
  %v2439 = vpop.f32.mrf.mxu0
  %2440 = vmatprep.mubr.f32.mxu0 0.0
  %2441 = vmatmul.mubr.f32.gmra.mxu0 %v342
  %v2442 = vpop.f32.mrf.mxu0
  %v2443 = vadd.f32 0.0, %v2442
  %v2444 = vpop.f32.mrf.mxu0
  %2445 = vmatprep.mubr.f32.mxu0 0.0
  %2446 = vmatmul.mubr.f32.gmra.mxu0 %v345
  %v2447 = vpop.f32.mrf.mxu0
  %v2448 = vadd.f32 0.0, %v2447
  %v2449 = vpop.f32.mrf.mxu0
  %2450 = vmatprep.mubr.f32.mxu0 0.0
  %2451 = vmatmul.mubr.f32.gmra.mxu0 %v348
  %v2452 = vpop.f32.mrf.mxu0
  %v2453 = vadd.f32 0.0, %v2452
  %v2454 = vpop.f32.mrf.mxu0
  %2455 = vmatprep.mubr.f32.mxu0 0.0
  %2456 = vmatmul.mubr.f32.gmra.mxu0 %v351
  %v2457 = vpop.f32.mrf.mxu0
  %v2458 = vadd.f32 0.0, %v2457
  %v2459 = vpop.f32.mrf.mxu0
  %2460 = vmatprep.mubr.f32.mxu0 0.0
  %2461 = vmatmul.mubr.f32.gmra.mxu0 %v354
  %v2462 = vpop.f32.mrf.mxu0
  %v2463 = vadd.f32 0.0, %v2462
  %v2464 = vpop.f32.mrf.mxu0
  %2465 = vmatprep.mubr.f32.mxu0 0.0
  %2466 = vmatmul.mubr.f32.gmra.mxu0 %v357
  %v2467 = vpop.f32.mrf.mxu0
  %v2468 = vadd.f32 0.0, %v2467
  %v2469 = vpop.f32.mrf.mxu0
  %2470 = vmatprep.mubr.f32.mxu0 0.0
  %2471 = vmatmul.mubr.f32.gmra.mxu0 %v360
  %v2472 = vpop.f32.mrf.mxu0
  %v2473 = vadd.f32 0.0, %v2472
  %v2474 = vpop.f32.mrf.mxu0
  %2475 = vmatprep.mubr.f32.mxu0 0.0
  %2476 = vmatmul.mubr.f32.gmra.mxu0 %v363
  %v2477 = vpop.f32.mrf.mxu0
  %v2478 = vadd.f32 0.0, %v2477
  %v2479 = vpop.f32.mrf.mxu0
  %2480 = vmatprep.mubr.f32.mxu0 0.0
  %2481 = vmatmul.mubr.f32.gmra.mxu0 %v366
  %v2482 = vpop.f32.mrf.mxu0
  %v2483 = vadd.f32 0.0, %v2482
  %v2484 = vpop.f32.mrf.mxu0
  %2485 = vmatprep.mubr.f32.mxu0 0.0
  %2486 = vmatmul.mubr.f32.gmra.mxu0 %v369
  %v2487 = vpop.f32.mrf.mxu0
  %v2488 = vadd.f32 0.0, %v2487
  %v2489 = vpop.f32.mrf.mxu0
  %2490 = vmatprep.mubr.f32.mxu0 0.0
  %2491 = vmatmul.mubr.f32.gmra.mxu0 %v372
  %v2492 = vpop.f32.mrf.mxu0
  %v2493 = vadd.f32 0.0, %v2492
  %v2494 = vpop.f32.mrf.mxu0
  %2495 = vmatprep.mubr.f32.mxu0 0.0
  %2496 = vmatmul.mubr.f32.gmra.mxu0 %v375
  %v2497 = vpop.f32.mrf.mxu0
  %v2498 = vadd.f32 0.0, %v2497
  %v2499 = vpop.f32.mrf.mxu0
  %2500 = vmatprep.mubr.f32.mxu0 0.0
  %2501 = vmatmul.mubr.f32.gmra.mxu0 %v378
  %v2502 = vpop.f32.mrf.mxu0
  %v2503 = vadd.f32 0.0, %v2502
  %v2504 = vpop.f32.mrf.mxu0
  %2505 = vmatprep.mubr.f32.mxu0 0.0
  %2506 = vmatmul.mubr.f32.gmra.mxu0 %v381
  %v2507 = vpop.f32.mrf.mxu0
  %v2508 = vadd.f32 0.0, %v2507
  %v2509 = vpop.f32.mrf.mxu0
  %2510 = vmatprep.mubr.f32.mxu0 0.0
  %2511 = vmatmul.mubr.f32.gmra.mxu0 %v384
  %v2512 = vpop.f32.mrf.mxu0
  %v2513 = vadd.f32 0.0, %v2512
  %v2514 = vpop.f32.mrf.mxu0
  %2515 = vmatprep.mubr.f32.mxu0 0.0
  %2516 = vmatmul.mubr.f32.gmra.mxu0 %v387
  %v2517 = vpop.f32.mrf.mxu0
  %v2518 = vadd.f32 0.0, %v2517
  %v2519 = vpop.f32.mrf.mxu0
  %2520 = vmatprep.mubr.f32.mxu0 0.0
  %2521 = vmatmul.mubr.f32.gmra.mxu0 %v390
  %v2522 = vpop.f32.mrf.mxu0
  %v2523 = vadd.f32 0.0, %v2522
  %v2524 = vpop.f32.mrf.mxu0
  %2525 = vmatprep.mubr.f32.mxu0 0.0
  %2526 = vmatmul.mubr.f32.gmra.mxu0 %v393
  %v2527 = vpop.f32.mrf.mxu0
  %v2528 = vadd.f32 0.0, %v2527
  %v2529 = vpop.f32.mrf.mxu0
  %2530 = vdwg.mxu0
  %v2531 = vld [vmem:[%s1948 + $0x1] sm:$0xff]
  %v2532 = vld [vmem:[%s1948 + $0x9] sm:$0xff]
  %v2533 = vld [vmem:[%s1948 + $0x19] sm:$0xff]
  %v2534 = vld [vmem:[%s1948 + $0x21] sm:$0xff]
  %v2535 = vld [vmem:[%s1948 + $0x31] sm:$0xff]
  %v2536 = vld [vmem:[%s1948 + $0x39] sm:$0xff]
  %v2537 = vld [vmem:[%s1948 + $0x49] sm:$0xff]
  %v2538 = vld [vmem:[%s1948 + $0x51] sm:$0xff]
  %v2539 = vld [vmem:[%s1948 + $0x61] sm:$0xff]
  %v2540 = vld [vmem:[%s1948 + $0x69] sm:$0xff]
  %v2541 = vld [vmem:[%s1948 + $0x79] sm:$0xff]
  %v2542 = vld [vmem:[%s1948 + $0x81] sm:$0xff]
  %v2543 = vld [vmem:[%s1948 + $0x91] sm:$0xff]
  %v2544 = vld [vmem:[%s1948 + $0x99] sm:$0xff]
  %v2545 = vld [vmem:[%s1948 + $0xa9] sm:$0xff]
  %v2546 = vld [vmem:[%s1948 + $0xb1] sm:$0xff]
  %v2547 = vld [vmem:[%s1948 + $0xc1] sm:$0xff]
  %v2548 = vld [vmem:[%s1948 + $0xc9] sm:$0xff]
  %v2549 = vld [vmem:[%s1948 + $0xd9] sm:$0xff]
  %v2550 = vld [vmem:[%s1948 + $0xe1] sm:$0xff]
  %v2551 = vld [vmem:[%s1948 + $0xf1] sm:$0xff]
  %v2552 = vld [vmem:[%s1948 + $0xf9] sm:$0xff]
  %v2553 = vld [vmem:[%s1948 + $0x109] sm:$0xff]
  %v2554 = vld [vmem:[%s1948 + $0x111] sm:$0xff]
  %v2555 = vld [vmem:[%s1948 + $0x121] sm:$0xff]
  %v2556 = vld [vmem:[%s1948 + $0x129] sm:$0xff]
  %v2557 = vld [vmem:[%s1948 + $0x139] sm:$0xff]
  %v2558 = vld [vmem:[%s1948 + $0x141] sm:$0xff]
  %v2559 = vld [vmem:[%s1948 + $0x151] sm:$0xff]
  %v2560 = vld [vmem:[%s1948 + $0x159] sm:$0xff]
  %v2561 = vld [vmem:[%s1948 + $0x169] sm:$0xff]
  %v2562 = vld [vmem:[%s1948 + $0x171] sm:$0xff]
  %v2563 = vld [vmem:[%s1948 + $0x199] sm:$0xff]
  %v2564 = vld [vmem:[%s1948 + $0x1a1] sm:$0xff]
  %v2565 = vld [vmem:[%s1948 + $0x1b1] sm:$0xff]
  %v2566 = vld [vmem:[%s1948 + $0x1b9] sm:$0xff]
  %v2567 = vld [vmem:[%s1948 + $0x1c9] sm:$0xff]
  %v2568 = vld [vmem:[%s1948 + $0x1d1] sm:$0xff]
  %v2569 = vld [vmem:[%s1948 + $0x1e1] sm:$0xff]
  %v2570 = vld [vmem:[%s1948 + $0x1e9] sm:$0xff]
  %v2571 = vld [vmem:[%s1948 + $0x1f9] sm:$0xff]
  %v2572 = vld [vmem:[%s1948 + $0x201] sm:$0xff]
  %v2573 = vld [vmem:[%s1948 + $0x211] sm:$0xff]
  %v2574 = vld [vmem:[%s1948 + $0x219] sm:$0xff]
  %v2575 = vld [vmem:[%s1948 + $0x229] sm:$0xff]
  %v2576 = vld [vmem:[%s1948 + $0x231] sm:$0xff]
  %v2577 = vld [vmem:[%s1948 + $0x241] sm:$0xff]
  %v2578 = vld [vmem:[%s1948 + $0x249] sm:$0xff]
  %v2579 = vld [vmem:[%s1948 + $0x259] sm:$0xff]
  %v2580 = vld [vmem:[%s1948 + $0x261] sm:$0xff]
  %v2581 = vld [vmem:[%s1948 + $0x271] sm:$0xff]
  %v2582 = vld [vmem:[%s1948 + $0x279] sm:$0xff]
  %v2583 = vld [vmem:[%s1948 + $0x289] sm:$0xff]
  %v2584 = vld [vmem:[%s1948 + $0x291] sm:$0xff]
  %v2585 = vld [vmem:[%s1948 + $0x2a1] sm:$0xff]
  %v2586 = vld [vmem:[%s1948 + $0x2a9] sm:$0xff]
  %v2587 = vld [vmem:[%s1948 + $0x2b9] sm:$0xff]
  %v2588 = vld [vmem:[%s1948 + $0x2c1] sm:$0xff]
  %v2589 = vld [vmem:[%s1948 + $0x2d1] sm:$0xff]
  %v2590 = vld [vmem:[%s1948 + $0x2d9] sm:$0xff]
  %v2591 = vld [vmem:[%s1948 + $0x2e9] sm:$0xff]
  %v2592 = vld [vmem:[%s1948 + $0x2f1] sm:$0xff]
  %v2593 = vld [vmem:[%s1948 + $0x301] sm:$0xff]
  %v2594 = vld [vmem:[%s1948 + $0x309] sm:$0xff]
  %v2595 = vadd.f32 %v2531, %v2213
  %v2596 = vadd.f32 %v2532, %v2218
  %v2597 = vadd.f32 %v2533, %v2223
  %v2598 = vadd.f32 %v2534, %v2228
  %v2599 = vadd.f32 %v2535, %v2233
  %v2600 = vadd.f32 %v2536, %v2238
  %v2601 = vadd.f32 %v2537, %v2243
  %v2602 = vadd.f32 %v2538, %v2248
  %v2603 = vadd.f32 %v2539, %v2253
  %v2604 = vadd.f32 %v2540, %v2258
  %v2605 = vadd.f32 %v2541, %v2263
  %v2606 = vadd.f32 %v2542, %v2268
  %v2607 = vadd.f32 %v2543, %v2273
  %v2608 = vadd.f32 %v2544, %v2278
  %v2609 = vadd.f32 %v2545, %v2283
  %v2610 = vadd.f32 %v2546, %v2288
  %v2611 = vadd.f32 %v2547, %v2293
  %v2612 = vadd.f32 %v2548, %v2298
  %v2613 = vadd.f32 %v2549, %v2303
  %v2614 = vadd.f32 %v2550, %v2308
  %v2615 = vadd.f32 %v2551, %v2313
  %v2616 = vadd.f32 %v2552, %v2318
  %v2617 = vadd.f32 %v2553, %v2323
  %v2618 = vadd.f32 %v2554, %v2328
  %v2619 = vadd.f32 %v2555, %v2333
  %v2620 = vadd.f32 %v2556, %v2338
  %v2621 = vadd.f32 %v2557, %v2343
  %v2622 = vadd.f32 %v2558, %v2348
  %v2623 = vadd.f32 %v2559, %v2353
  %v2624 = vadd.f32 %v2560, %v2358
  %v2625 = vadd.f32 %v2561, %v2363
  %v2626 = vadd.f32 %v2562, %v2368
  %v2627 = vadd.f32 %v2563, %v2373
  %v2628 = vadd.f32 %v2564, %v2378
  %v2629 = vadd.f32 %v2565, %v2383
  %v2630 = vadd.f32 %v2566, %v2388
  %v2631 = vadd.f32 %v2567, %v2393
  %v2632 = vadd.f32 %v2568, %v2398
  %v2633 = vadd.f32 %v2569, %v2403
  %v2634 = vadd.f32 %v2570, %v2408
  %v2635 = vadd.f32 %v2571, %v2413
  %v2636 = vadd.f32 %v2572, %v2418
  %v2637 = vadd.f32 %v2573, %v2423
  %v2638 = vadd.f32 %v2574, %v2428
  %v2639 = vadd.f32 %v2575, %v2433
  %v2640 = vadd.f32 %v2576, %v2438
  %v2641 = vadd.f32 %v2577, %v2443
  %v2642 = vadd.f32 %v2578, %v2448
  %v2643 = vadd.f32 %v2579, %v2453
  %v2644 = vadd.f32 %v2580, %v2458
  %v2645 = vadd.f32 %v2581, %v2463
  %v2646 = vadd.f32 %v2582, %v2468
  %v2647 = vadd.f32 %v2583, %v2473
  %v2648 = vadd.f32 %v2584, %v2478
  %v2649 = vadd.f32 %v2585, %v2483
  %v2650 = vadd.f32 %v2586, %v2488
  %v2651 = vadd.f32 %v2587, %v2493
  %v2652 = vadd.f32 %v2588, %v2498
  %v2653 = vadd.f32 %v2589, %v2503
  %v2654 = vadd.f32 %v2590, %v2508
  %v2655 = vadd.f32 %v2591, %v2513
  %v2656 = vadd.f32 %v2592, %v2518
  %v2657 = vadd.f32 %v2593, %v2523
  %v2658 = vadd.f32 %v2594, %v2528
  %2659 = vst.msk [vmem:[%s1948 + $0x1] sm:$0xff] %vm99, %v2595
  %2660 = vst.msk [vmem:[%s1948 + $0x9] sm:$0xff] %vm99, %v2596
  %2661 = vst.msk [vmem:[%s1948 + $0x19] sm:$0xff] %vm99, %v2597
  %2662 = vst.msk [vmem:[%s1948 + $0x21] sm:$0xff] %vm99, %v2598
  %2663 = vst.msk [vmem:[%s1948 + $0x31] sm:$0xff] %vm99, %v2599
  %2664 = vst.msk [vmem:[%s1948 + $0x39] sm:$0xff] %vm99, %v2600
  %2665 = vst.msk [vmem:[%s1948 + $0x49] sm:$0xff] %vm99, %v2601
  %2666 = vst.msk [vmem:[%s1948 + $0x51] sm:$0xff] %vm99, %v2602
  %2667 = vst.msk [vmem:[%s1948 + $0x61] sm:$0xff] %vm99, %v2603
  %2668 = vst.msk [vmem:[%s1948 + $0x69] sm:$0xff] %vm99, %v2604
  %2669 = vst.msk [vmem:[%s1948 + $0x79] sm:$0xff] %vm99, %v2605
  %2670 = vst.msk [vmem:[%s1948 + $0x81] sm:$0xff] %vm99, %v2606
  %2671 = vst.msk [vmem:[%s1948 + $0x91] sm:$0xff] %vm99, %v2607
  %2672 = vst.msk [vmem:[%s1948 + $0x99] sm:$0xff] %vm99, %v2608
  %2673 = vst.msk [vmem:[%s1948 + $0xa9] sm:$0xff] %vm99, %v2609
  %2674 = vst.msk [vmem:[%s1948 + $0xb1] sm:$0xff] %vm99, %v2610
  %2675 = vst.msk [vmem:[%s1948 + $0xc1] sm:$0xff] %vm99, %v2611
  %2676 = vst.msk [vmem:[%s1948 + $0xc9] sm:$0xff] %vm99, %v2612
  %2677 = vst.msk [vmem:[%s1948 + $0xd9] sm:$0xff] %vm99, %v2613
  %2678 = vst.msk [vmem:[%s1948 + $0xe1] sm:$0xff] %vm99, %v2614
  %2679 = vst.msk [vmem:[%s1948 + $0xf1] sm:$0xff] %vm99, %v2615
  %2680 = vst.msk [vmem:[%s1948 + $0xf9] sm:$0xff] %vm99, %v2616
  %2681 = vst.msk [vmem:[%s1948 + $0x109] sm:$0xff] %vm99, %v2617
  %2682 = vst.msk [vmem:[%s1948 + $0x111] sm:$0xff] %vm99, %v2618
  %2683 = vst.msk [vmem:[%s1948 + $0x121] sm:$0xff] %vm99, %v2619
  %2684 = vst.msk [vmem:[%s1948 + $0x129] sm:$0xff] %vm99, %v2620
  %2685 = vst.msk [vmem:[%s1948 + $0x139] sm:$0xff] %vm99, %v2621
  %2686 = vst.msk [vmem:[%s1948 + $0x141] sm:$0xff] %vm99, %v2622
  %2687 = vst.msk [vmem:[%s1948 + $0x151] sm:$0xff] %vm99, %v2623
  %2688 = vst.msk [vmem:[%s1948 + $0x159] sm:$0xff] %vm99, %v2624
  %2689 = vst.msk [vmem:[%s1948 + $0x169] sm:$0xff] %vm99, %v2625
  %2690 = vst.msk [vmem:[%s1948 + $0x171] sm:$0xff] %vm99, %v2626
  %2691 = vst.msk [vmem:[%s1948 + $0x199] sm:$0xff] %vm99, %v2627
  %2692 = vst.msk [vmem:[%s1948 + $0x1a1] sm:$0xff] %vm99, %v2628
  %2693 = vst.msk [vmem:[%s1948 + $0x1b1] sm:$0xff] %vm99, %v2629
  %2694 = vst.msk [vmem:[%s1948 + $0x1b9] sm:$0xff] %vm99, %v2630
  %2695 = vst.msk [vmem:[%s1948 + $0x1c9] sm:$0xff] %vm99, %v2631
  %2696 = vst.msk [vmem:[%s1948 + $0x1d1] sm:$0xff] %vm99, %v2632
  %2697 = vst.msk [vmem:[%s1948 + $0x1e1] sm:$0xff] %vm99, %v2633
  %2698 = vst.msk [vmem:[%s1948 + $0x1e9] sm:$0xff] %vm99, %v2634
  %2699 = vst.msk [vmem:[%s1948 + $0x1f9] sm:$0xff] %vm99, %v2635
  %2700 = vst.msk [vmem:[%s1948 + $0x201] sm:$0xff] %vm99, %v2636
  %2701 = vst.msk [vmem:[%s1948 + $0x211] sm:$0xff] %vm99, %v2637
  %2702 = vst.msk [vmem:[%s1948 + $0x219] sm:$0xff] %vm99, %v2638
  %2703 = vst.msk [vmem:[%s1948 + $0x229] sm:$0xff] %vm99, %v2639
  %2704 = vst.msk [vmem:[%s1948 + $0x231] sm:$0xff] %vm99, %v2640
  %2705 = vst.msk [vmem:[%s1948 + $0x241] sm:$0xff] %vm99, %v2641
  %2706 = vst.msk [vmem:[%s1948 + $0x249] sm:$0xff] %vm99, %v2642
  %2707 = vst.msk [vmem:[%s1948 + $0x259] sm:$0xff] %vm99, %v2643
  %2708 = vst.msk [vmem:[%s1948 + $0x261] sm:$0xff] %vm99, %v2644
  %2709 = vst.msk [vmem:[%s1948 + $0x271] sm:$0xff] %vm99, %v2645
  %2710 = vst.msk [vmem:[%s1948 + $0x279] sm:$0xff] %vm99, %v2646
  %2711 = vst.msk [vmem:[%s1948 + $0x289] sm:$0xff] %vm99, %v2647
  %2712 = vst.msk [vmem:[%s1948 + $0x291] sm:$0xff] %vm99, %v2648
  %2713 = vst.msk [vmem:[%s1948 + $0x2a1] sm:$0xff] %vm99, %v2649
  %2714 = vst.msk [vmem:[%s1948 + $0x2a9] sm:$0xff] %vm99, %v2650
  %2715 = vst.msk [vmem:[%s1948 + $0x2b9] sm:$0xff] %vm99, %v2651
  %2716 = vst.msk [vmem:[%s1948 + $0x2c1] sm:$0xff] %vm99, %v2652
  %2717 = vst.msk [vmem:[%s1948 + $0x2d1] sm:$0xff] %vm99, %v2653
  %2718 = vst.msk [vmem:[%s1948 + $0x2d9] sm:$0xff] %vm99, %v2654
  %2719 = vst.msk [vmem:[%s1948 + $0x2e9] sm:$0xff] %vm99, %v2655
  %2720 = vst.msk [vmem:[%s1948 + $0x2f1] sm:$0xff] %vm99, %v2656
  %2721 = vst.msk [vmem:[%s1948 + $0x301] sm:$0xff] %vm99, %v2657
  %2722 = vst.msk [vmem:[%s1948 + $0x309] sm:$0xff] %vm99, %v2658
  %v2723 = vld [vmem:[%s1] sm:$0xff]
  %v2724 = vld [vmem:[%s1 + $0x8] sm:$0xff]
  %v2725 = vld [vmem:[%s1 + $0x10] sm:$0xff]
  %v2726 = vld [vmem:[%s1 + $0x18] sm:$0xff]
  %v2727 = vld [vmem:[%s1 + $0x20] sm:$0xff]
  %v2728 = vld [vmem:[%s1 + $0x28] sm:$0xff]
  %v2729 = vld [vmem:[%s1 + $0x30] sm:$0xff]
  %v2730 = vld [vmem:[%s1 + $0x38] sm:$0xff]
  %v2731 = vld [vmem:[%s1 + $0x40] sm:$0xff]
  %v2732 = vld [vmem:[%s1 + $0x48] sm:$0xff]
  %v2733 = vld [vmem:[%s1 + $0x50] sm:$0xff]
  %v2734 = vld [vmem:[%s1 + $0x58] sm:$0xff]
  %v2735 = vld [vmem:[%s1 + $0x60] sm:$0xff]
  %v2736 = vld [vmem:[%s1 + $0x68] sm:$0xff]
  %v2737 = vld [vmem:[%s1 + $0x70] sm:$0xff]
  %v2738 = vld [vmem:[%s1 + $0x78] sm:$0xff]
  %v2739 = vld [vmem:[%s1 + $0x80] sm:$0xff]
  %v2740 = vld [vmem:[%s1 + $0x88] sm:$0xff]
  %v2741 = vld [vmem:[%s1 + $0x90] sm:$0xff]
  %v2742 = vld [vmem:[%s1 + $0x98] sm:$0xff]
  %v2743 = vld [vmem:[%s1 + $0xa0] sm:$0xff]
  %v2744 = vld [vmem:[%s1 + $0xa8] sm:$0xff]
  %v2745 = vld [vmem:[%s1 + $0xb0] sm:$0xff]
  %v2746 = vld [vmem:[%s1 + $0xb8] sm:$0xff]
  %v2747 = vld [vmem:[%s1 + $0xc0] sm:$0xff]
  %v2748 = vld [vmem:[%s1 + $0xc8] sm:$0xff]
  %v2749 = vld [vmem:[%s1 + $0xd0] sm:$0xff]
  %v2750 = vld [vmem:[%s1 + $0xd8] sm:$0xff]
  %v2751 = vld [vmem:[%s1 + $0xe0] sm:$0xff]
  %v2752 = vld [vmem:[%s1 + $0xe8] sm:$0xff]
  %v2753 = vld [vmem:[%s1 + $0xf0] sm:$0xff]
  %v2754 = vld [vmem:[%s1 + $0xf8] sm:$0xff]
  %v2755 = vld [vmem:[%s1 + $0x100] sm:$0xff]
  %v2756 = vld [vmem:[%s1 + $0x108] sm:$0xff]
  %v2757 = vld [vmem:[%s1 + $0x110] sm:$0xff]
  %v2758 = vld [vmem:[%s1 + $0x118] sm:$0xff]
  %v2759 = vld [vmem:[%s1 + $0x120] sm:$0xff]
  %v2760 = vld [vmem:[%s1 + $0x128] sm:$0xff]
  %v2761 = vld [vmem:[%s1 + $0x130] sm:$0xff]
  %v2762 = vld [vmem:[%s1 + $0x138] sm:$0xff]
  %v2763 = vld [vmem:[%s1 + $0x140] sm:$0xff]
  %v2764 = vld [vmem:[%s1 + $0x148] sm:$0xff]
  %v2765 = vld [vmem:[%s1 + $0x150] sm:$0xff]
  %v2766 = vld [vmem:[%s1 + $0x158] sm:$0xff]
  %v2767 = vld [vmem:[%s1 + $0x160] sm:$0xff]
  %v2768 = vld [vmem:[%s1 + $0x168] sm:$0xff]
  %v2769 = vld [vmem:[%s1 + $0x170] sm:$0xff]
  %v2770 = vld [vmem:[%s1 + $0x178] sm:$0xff]
  %v2771 = vld [vmem:[%s1 + $0x180] sm:$0xff]
  %v2772 = vld [vmem:[%s1 + $0x188] sm:$0xff]
  %v2773 = vld [vmem:[%s1 + $0x190] sm:$0xff]
  %v2774 = vld [vmem:[%s1 + $0x198] sm:$0xff]
  %v2775 = vld [vmem:[%s1 + $0x1a0] sm:$0xff]
  %v2776 = vld [vmem:[%s1 + $0x1a8] sm:$0xff]
  %v2777 = vld [vmem:[%s1 + $0x1b0] sm:$0xff]
  %v2778 = vld [vmem:[%s1 + $0x1b8] sm:$0xff]
  %v2779 = vld [vmem:[%s1 + $0x1c0] sm:$0xff]
  %v2780 = vld [vmem:[%s1 + $0x1c8] sm:$0xff]
  %v2781 = vld [vmem:[%s1 + $0x1d0] sm:$0xff]
  %v2782 = vld [vmem:[%s1 + $0x1d8] sm:$0xff]
  %v2783 = vld [vmem:[%s1 + $0x1e0] sm:$0xff]
  %v2784 = vld [vmem:[%s1 + $0x1e8] sm:$0xff]
  %v2785 = vld [vmem:[%s1 + $0x1f0] sm:$0xff]
  %v2786 = vld [vmem:[%s1 + $0x1f8] sm:$0xff]
  %v2787 = vld [vmem:[%s1 + $0x200] sm:$0xff]
  %v2788 = vld [vmem:[%s1 + $0x208] sm:$0xff]
  %v2789 = vld [vmem:[%s1 + $0x210] sm:$0xff]
  %v2790 = vld [vmem:[%s1 + $0x218] sm:$0xff]
  %v2791 = vld [vmem:[%s1 + $0x220] sm:$0xff]
  %v2792 = vld [vmem:[%s1 + $0x228] sm:$0xff]
  %v2793 = vld [vmem:[%s1 + $0x230] sm:$0xff]
  %v2794 = vld [vmem:[%s1 + $0x238] sm:$0xff]
  %v2795 = vld [vmem:[%s1 + $0x240] sm:$0xff]
  %v2796 = vld [vmem:[%s1 + $0x248] sm:$0xff]
  %v2797 = vld [vmem:[%s1 + $0x250] sm:$0xff]
  %v2798 = vld [vmem:[%s1 + $0x258] sm:$0xff]
  %v2799 = vld [vmem:[%s1 + $0x260] sm:$0xff]
  %v2800 = vld [vmem:[%s1 + $0x268] sm:$0xff]
  %v2801 = vld [vmem:[%s1 + $0x270] sm:$0xff]
  %v2802 = vld [vmem:[%s1 + $0x278] sm:$0xff]
  %v2803 = vld [vmem:[%s1 + $0x280] sm:$0xff]
  %v2804 = vld [vmem:[%s1 + $0x288] sm:$0xff]
  %v2805 = vld [vmem:[%s1 + $0x290] sm:$0xff]
  %v2806 = vld [vmem:[%s1 + $0x298] sm:$0xff]
  %v2807 = vld [vmem:[%s1 + $0x2a0] sm:$0xff]
  %v2808 = vld [vmem:[%s1 + $0x2a8] sm:$0xff]
  %v2809 = vld [vmem:[%s1 + $0x2b0] sm:$0xff]
  %v2810 = vld [vmem:[%s1 + $0x2b8] sm:$0xff]
  %v2811 = vld [vmem:[%s1 + $0x2c0] sm:$0xff]
  %v2812 = vld [vmem:[%s1 + $0x2c8] sm:$0xff]
  %v2813 = vld [vmem:[%s1 + $0x2d0] sm:$0xff]
  %v2814 = vld [vmem:[%s1 + $0x2d8] sm:$0xff]
  %v2815 = vld [vmem:[%s1 + $0x2e0] sm:$0xff]
  %v2816 = vld [vmem:[%s1 + $0x2e8] sm:$0xff]
  %v2817 = vld [vmem:[%s1 + $0x2f0] sm:$0xff]
  %v2818 = vld [vmem:[%s1 + $0x2f8] sm:$0xff]
  %v2819 = vld [vmem:[%s1 + $0x300] sm:$0xff]
  %v2820 = vld [vmem:[%s1 + $0x308] sm:$0xff]
  %v2821 = vld [vmem:[%s1 + $0x310] sm:$0xff]
  %v2822 = vld [vmem:[%s1 + $0x318] sm:$0xff]
  %v2823 = vld [vmem:[%s1 + $0x320] sm:$0xff]
  %v2824 = vld [vmem:[%s1 + $0x328] sm:$0xff]
  %v2825 = vld [vmem:[#allocation2] sm:$0xff]
  %v2826 = vld [vmem:[#allocation2 + $0x8] sm:$0xff]
  %v2827 = vld [vmem:[#allocation2 + $0x10] sm:$0xff]
  %v2828 = vld [vmem:[#allocation2 + $0x18] sm:$0xff]
  %v2829 = vld [vmem:[#allocation2 + $0x20] sm:$0xff]
  %v2830 = vld [vmem:[#allocation2 + $0x28] sm:$0xff]
  %v2831 = vld [vmem:[#allocation2 + $0x30] sm:$0xff]
  %v2832 = vld [vmem:[#allocation2 + $0x38] sm:$0xff]
  %v2833 = vld [vmem:[#allocation2 + $0x40] sm:$0xff]
  %v2834 = vld [vmem:[#allocation2 + $0x48] sm:$0xff]
  %v2835 = vld [vmem:[#allocation2 + $0x50] sm:$0xff]
  %v2836 = vld [vmem:[#allocation2 + $0x58] sm:$0xff]
  %v2837 = vld [vmem:[#allocation2 + $0x60] sm:$0xff]
  %v2838 = vld [vmem:[#allocation2 + $0x68] sm:$0xff]
  %v2839 = vld [vmem:[#allocation2 + $0x70] sm:$0xff]
  %v2840 = vld [vmem:[#allocation2 + $0x78] sm:$0xff]
  %v2841 = vld [vmem:[#allocation2 + $0x80] sm:$0xff]
  %v2842 = vld [vmem:[#allocation2 + $0x88] sm:$0xff]
  %v2843 = vld [vmem:[#allocation2 + $0x90] sm:$0xff]
  %v2844 = vld [vmem:[#allocation2 + $0x98] sm:$0xff]
  %v2845 = vld [vmem:[#allocation2 + $0xa0] sm:$0xff]
  %v2846 = vld [vmem:[#allocation2 + $0xa8] sm:$0xff]
  %v2847 = vld [vmem:[#allocation2 + $0xb0] sm:$0xff]
  %v2848 = vld [vmem:[#allocation2 + $0xb8] sm:$0xff]
  %v2849 = vld [vmem:[#allocation2 + $0xc0] sm:$0xff]
  %v2850 = vld [vmem:[#allocation2 + $0xc8] sm:$0xff]
  %v2851 = vld [vmem:[#allocation2 + $0xd0] sm:$0xff]
  %v2852 = vld [vmem:[#allocation2 + $0xd8] sm:$0xff]
  %v2853 = vld [vmem:[#allocation2 + $0xe0] sm:$0xff]
  %v2854 = vld [vmem:[#allocation2 + $0xe8] sm:$0xff]
  %v2855 = vld [vmem:[#allocation2 + $0xf0] sm:$0xff]
  %v2856 = vld [vmem:[#allocation2 + $0xf8] sm:$0xff]
  %v2857 = vld [vmem:[#allocation2 + $0x100] sm:$0xff]
  %v2858 = vld [vmem:[#allocation2 + $0x108] sm:$0xff]
  %v2859 = vld [vmem:[#allocation2 + $0x110] sm:$0xff]
  %v2860 = vld [vmem:[#allocation2 + $0x118] sm:$0xff]
  %v2861 = vld [vmem:[#allocation2 + $0x120] sm:$0xff]
  %v2862 = vld [vmem:[#allocation2 + $0x128] sm:$0xff]
  %v2863 = vld [vmem:[#allocation2 + $0x130] sm:$0xff]
  %v2864 = vld [vmem:[#allocation2 + $0x138] sm:$0xff]
  %v2865 = vld [vmem:[#allocation2 + $0x140] sm:$0xff]
  %v2866 = vld [vmem:[#allocation2 + $0x148] sm:$0xff]
  %v2867 = vld [vmem:[#allocation2 + $0x150] sm:$0xff]
  %v2868 = vld [vmem:[#allocation2 + $0x158] sm:$0xff]
  %v2869 = vld [vmem:[#allocation2 + $0x160] sm:$0xff]
  %v2870 = vld [vmem:[#allocation2 + $0x168] sm:$0xff]
  %v2871 = vld [vmem:[#allocation2 + $0x170] sm:$0xff]
  %v2872 = vld [vmem:[#allocation2 + $0x178] sm:$0xff]
  %v2873 = vld [vmem:[#allocation2 + $0x180] sm:$0xff]
  %v2874 = vld [vmem:[#allocation2 + $0x188] sm:$0xff]
  %v2875 = vld [vmem:[#allocation2 + $0x190] sm:$0xff]
  %v2876 = vld [vmem:[#allocation2 + $0x198] sm:$0xff]
  %v2877 = vld [vmem:[#allocation2 + $0x1a0] sm:$0xff]
  %v2878 = vld [vmem:[#allocation2 + $0x1a8] sm:$0xff]
  %v2879 = vld [vmem:[#allocation2 + $0x1b0] sm:$0xff]
  %v2880 = vld [vmem:[#allocation2 + $0x1b8] sm:$0xff]
  %v2881 = vld [vmem:[#allocation2 + $0x1c0] sm:$0xff]
  %v2882 = vld [vmem:[#allocation2 + $0x1c8] sm:$0xff]
  %v2883 = vld [vmem:[#allocation2 + $0x1d0] sm:$0xff]
  %v2884 = vld [vmem:[#allocation2 + $0x1d8] sm:$0xff]
  %v2885 = vld [vmem:[#allocation2 + $0x1e0] sm:$0xff]
  %v2886 = vld [vmem:[#allocation2 + $0x1e8] sm:$0xff]
  %v2887 = vld [vmem:[#allocation2 + $0x1f0] sm:$0xff]
  %v2888 = vld [vmem:[#allocation2 + $0x1f8] sm:$0xff]
  %v2889 = vld [vmem:[#allocation2 + $0x200] sm:$0xff]
  %v2890 = vld [vmem:[#allocation2 + $0x208] sm:$0xff]
  %v2891 = vld [vmem:[#allocation2 + $0x210] sm:$0xff]
  %v2892 = vld [vmem:[#allocation2 + $0x218] sm:$0xff]
  %v2893 = vld [vmem:[#allocation2 + $0x220] sm:$0xff]
  %v2894 = vld [vmem:[#allocation2 + $0x228] sm:$0xff]
  %v2895 = vld [vmem:[#allocation2 + $0x230] sm:$0xff]
  %v2896 = vld [vmem:[#allocation2 + $0x238] sm:$0xff]
  %v2897 = vld [vmem:[#allocation2 + $0x240] sm:$0xff]
  %v2898 = vld [vmem:[#allocation2 + $0x248] sm:$0xff]
  %v2899 = vld [vmem:[#allocation2 + $0x250] sm:$0xff]
  %v2900 = vld [vmem:[#allocation2 + $0x258] sm:$0xff]
  %v2901 = vld [vmem:[#allocation2 + $0x260] sm:$0xff]
  %v2902 = vld [vmem:[#allocation2 + $0x268] sm:$0xff]
  %v2903 = vld [vmem:[#allocation2 + $0x270] sm:$0xff]
  %v2904 = vld [vmem:[#allocation2 + $0x278] sm:$0xff]
  %v2905 = vld [vmem:[#allocation2 + $0x280] sm:$0xff]
  %v2906 = vld [vmem:[#allocation2 + $0x288] sm:$0xff]
  %v2907 = vld [vmem:[#allocation2 + $0x290] sm:$0xff]
  %v2908 = vld [vmem:[#allocation2 + $0x298] sm:$0xff]
  %v2909 = vld [vmem:[#allocation2 + $0x2a0] sm:$0xff]
  %v2910 = vld [vmem:[#allocation2 + $0x2a8] sm:$0xff]
  %v2911 = vld [vmem:[#allocation2 + $0x2b0] sm:$0xff]
  %v2912 = vld [vmem:[#allocation2 + $0x2b8] sm:$0xff]
  %v2913 = vld [vmem:[#allocation2 + $0x2c0] sm:$0xff]
  %v2914 = vld [vmem:[#allocation2 + $0x2c8] sm:$0xff]
  %v2915 = vld [vmem:[#allocation2 + $0x2d0] sm:$0xff]
  %v2916 = vld [vmem:[#allocation2 + $0x2d8] sm:$0xff]
  %v2917 = vld [vmem:[#allocation2 + $0x2e0] sm:$0xff]
  %v2918 = vld [vmem:[#allocation2 + $0x2e8] sm:$0xff]
  %v2919 = vld [vmem:[#allocation2 + $0x2f0] sm:$0xff]
  %v2920 = vld [vmem:[#allocation2 + $0x2f8] sm:$0xff]
  %v2921 = vld [vmem:[#allocation2 + $0x300] sm:$0xff]
  %v2922 = vld [vmem:[#allocation2 + $0x308] sm:$0xff]
  %v2923 = vld [vmem:[#allocation2 + $0x310] sm:$0xff]
  %v2924 = vld [vmem:[#allocation2 + $0x318] sm:$0xff]
  %v2925 = vld [vmem:[#allocation2 + $0x320] sm:$0xff]
  %v2926 = vld [vmem:[#allocation2 + $0x328] sm:$0xff]
  %v2927 = vld [vmem:[%s3] sm:$0x1]
  %v2929 = vlaneseq
  %v2930 = vshrl.u32 %v2929, 7
  %v2931 = vsub.s32 0, %v2930
  %v2932 = vrot.slane %v2927, %v2931
  %v2934 = vadd.f32 %v2825, %v2932
  %v2935 = vadd.f32 %v2826, %v2932
  %v2936 = vadd.f32 %v2827, %v2932
  %v2937 = vadd.f32 %v2828, %v2932
  %v2938 = vadd.f32 %v2829, %v2932
  %v2939 = vadd.f32 %v2830, %v2932
  %v2940 = vadd.f32 %v2831, %v2932
  %v2941 = vadd.f32 %v2832, %v2932
  %v2942 = vadd.f32 %v2833, %v2932
  %v2943 = vadd.f32 %v2834, %v2932
  %v2944 = vadd.f32 %v2835, %v2932
  %v2945 = vadd.f32 %v2836, %v2932
  %v2946 = vadd.f32 %v2837, %v2932
  %v2947 = vadd.f32 %v2838, %v2932
  %v2948 = vadd.f32 %v2839, %v2932
  %v2949 = vadd.f32 %v2840, %v2932
  %v2950 = vadd.f32 %v2841, %v2932
  %v2951 = vadd.f32 %v2842, %v2932
  %v2952 = vadd.f32 %v2843, %v2932
  %v2953 = vadd.f32 %v2844, %v2932
  %v2954 = vadd.f32 %v2845, %v2932
  %v2955 = vadd.f32 %v2846, %v2932
  %v2956 = vadd.f32 %v2847, %v2932
  %v2957 = vadd.f32 %v2848, %v2932
  %v2958 = vadd.f32 %v2849, %v2932
  %v2959 = vadd.f32 %v2850, %v2932
  %v2960 = vadd.f32 %v2851, %v2932
  %v2961 = vadd.f32 %v2852, %v2932
  %v2962 = vadd.f32 %v2853, %v2932
  %v2963 = vadd.f32 %v2854, %v2932
  %v2964 = vadd.f32 %v2855, %v2932
  %v2965 = vadd.f32 %v2856, %v2932
  %v2966 = vadd.f32 %v2857, %v2932
  %v2967 = vadd.f32 %v2858, %v2932
  %v2968 = vadd.f32 %v2859, %v2932
  %v2969 = vadd.f32 %v2860, %v2932
  %v2970 = vadd.f32 %v2861, %v2932
  %v2971 = vadd.f32 %v2862, %v2932
  %v2972 = vadd.f32 %v2863, %v2932
  %v2973 = vadd.f32 %v2864, %v2932
  %v2974 = vadd.f32 %v2865, %v2932
  %v2975 = vadd.f32 %v2866, %v2932
  %v2976 = vadd.f32 %v2867, %v2932
  %v2977 = vadd.f32 %v2868, %v2932
  %v2978 = vadd.f32 %v2869, %v2932
  %v2979 = vadd.f32 %v2870, %v2932
  %v2980 = vadd.f32 %v2871, %v2932
  %v2981 = vadd.f32 %v2872, %v2932
  %v2982 = vadd.f32 %v2873, %v2932
  %v2983 = vadd.f32 %v2874, %v2932
  %v2984 = vadd.f32 %v2875, %v2932
  %v2985 = vadd.f32 %v2876, %v2932
  %v2986 = vadd.f32 %v2877, %v2932
  %v2987 = vadd.f32 %v2878, %v2932
  %v2988 = vadd.f32 %v2879, %v2932
  %v2989 = vadd.f32 %v2880, %v2932
  %v2990 = vadd.f32 %v2881, %v2932
  %v2991 = vadd.f32 %v2882, %v2932
  %v2992 = vadd.f32 %v2883, %v2932
  %v2993 = vadd.f32 %v2884, %v2932
  %v2994 = vadd.f32 %v2885, %v2932
  %v2995 = vadd.f32 %v2886, %v2932
  %v2996 = vadd.f32 %v2887, %v2932
  %v2997 = vadd.f32 %v2888, %v2932
  %v2998 = vadd.f32 %v2889, %v2932
  %v2999 = vadd.f32 %v2890, %v2932
  %v3000 = vadd.f32 %v2891, %v2932
  %v3001 = vadd.f32 %v2892, %v2932
  %v3002 = vadd.f32 %v2893, %v2932
  %v3003 = vadd.f32 %v2894, %v2932
  %v3004 = vadd.f32 %v2895, %v2932
  %v3005 = vadd.f32 %v2896, %v2932
  %v3006 = vadd.f32 %v2897, %v2932
  %v3007 = vadd.f32 %v2898, %v2932
  %v3008 = vadd.f32 %v2899, %v2932
  %v3009 = vadd.f32 %v2900, %v2932
  %v3010 = vadd.f32 %v2901, %v2932
  %v3011 = vadd.f32 %v2902, %v2932
  %v3012 = vadd.f32 %v2903, %v2932
  %v3013 = vadd.f32 %v2904, %v2932
  %v3014 = vadd.f32 %v2905, %v2932
  %v3015 = vadd.f32 %v2906, %v2932
  %v3016 = vadd.f32 %v2907, %v2932
  %v3017 = vadd.f32 %v2908, %v2932
  %v3018 = vadd.f32 %v2909, %v2932
  %v3019 = vadd.f32 %v2910, %v2932
  %v3020 = vadd.f32 %v2911, %v2932
  %v3021 = vadd.f32 %v2912, %v2932
  %v3022 = vadd.f32 %v2913, %v2932
  %v3023 = vadd.f32 %v2914, %v2932
  %v3024 = vadd.f32 %v2915, %v2932
  %v3025 = vadd.f32 %v2916, %v2932
  %v3026 = vadd.f32 %v2917, %v2932
  %v3027 = vadd.f32 %v2918, %v2932
  %v3028 = vadd.f32 %v2919, %v2932
  %v3029 = vadd.f32 %v2920, %v2932
  %v3030 = vadd.f32 %v2921, %v2932
  %v3031 = vadd.f32 %v2922, %v2932
  %v3032 = vadd.f32 %v2923, %v2932
  %v3033 = vadd.f32 %v2924, %v2932
  %v3034 = vadd.f32 %v2925, %v2932
  %v3035 = vadd.f32 %v2926, %v2932
  %3037 = vset.pattern.permute.xlu0 0
  %3038 = vperm.xlu0 %3037, %v2723
  %v3039 = vpop.permute.xlu0 %3038
  %3042 = vset.pattern.permute.xlu0 0
  %3043 = vperm.xlu0 %3042, %v2724
  %v3044 = vpop.permute.xlu0 %3043
  %3047 = vset.pattern.permute.xlu0 0
  %3048 = vperm.xlu0 %3047, %v2725
  %v3049 = vpop.permute.xlu0 %3048
  %3052 = vset.pattern.permute.xlu0 0
  %3053 = vperm.xlu0 %3052, %v2726
  %v3054 = vpop.permute.xlu0 %3053
  %3057 = vset.pattern.permute.xlu0 0
  %3058 = vperm.xlu0 %3057, %v2727
  %v3059 = vpop.permute.xlu0 %3058
  %3062 = vset.pattern.permute.xlu0 0
  %3063 = vperm.xlu0 %3062, %v2728
  %v3064 = vpop.permute.xlu0 %3063
  %3067 = vset.pattern.permute.xlu0 0
  %3068 = vperm.xlu0 %3067, %v2729
  %v3069 = vpop.permute.xlu0 %3068
  %3072 = vset.pattern.permute.xlu0 0
  %3073 = vperm.xlu0 %3072, %v2730
  %v3074 = vpop.permute.xlu0 %3073
  %3077 = vset.pattern.permute.xlu0 0
  %3078 = vperm.xlu0 %3077, %v2731
  %v3079 = vpop.permute.xlu0 %3078
  %3082 = vset.pattern.permute.xlu0 0
  %3083 = vperm.xlu0 %3082, %v2732
  %v3084 = vpop.permute.xlu0 %3083
  %3087 = vset.pattern.permute.xlu0 0
  %3088 = vperm.xlu0 %3087, %v2733
  %v3089 = vpop.permute.xlu0 %3088
  %3092 = vset.pattern.permute.xlu0 0
  %3093 = vperm.xlu0 %3092, %v2734
  %v3094 = vpop.permute.xlu0 %3093
  %3097 = vset.pattern.permute.xlu0 0
  %3098 = vperm.xlu0 %3097, %v2735
  %v3099 = vpop.permute.xlu0 %3098
  %3102 = vset.pattern.permute.xlu0 0
  %3103 = vperm.xlu0 %3102, %v2736
  %v3104 = vpop.permute.xlu0 %3103
  %3107 = vset.pattern.permute.xlu0 0
  %3108 = vperm.xlu0 %3107, %v2737
  %v3109 = vpop.permute.xlu0 %3108
  %3112 = vset.pattern.permute.xlu0 0
  %3113 = vperm.xlu0 %3112, %v2738
  %v3114 = vpop.permute.xlu0 %3113
  %3117 = vset.pattern.permute.xlu0 0
  %3118 = vperm.xlu0 %3117, %v2739
  %v3119 = vpop.permute.xlu0 %3118
  %3122 = vset.pattern.permute.xlu0 0
  %3123 = vperm.xlu0 %3122, %v2740
  %v3124 = vpop.permute.xlu0 %3123
  %3127 = vset.pattern.permute.xlu0 0
  %3128 = vperm.xlu0 %3127, %v2741
  %v3129 = vpop.permute.xlu0 %3128
  %3132 = vset.pattern.permute.xlu0 0
  %3133 = vperm.xlu0 %3132, %v2742
  %v3134 = vpop.permute.xlu0 %3133
  %3137 = vset.pattern.permute.xlu0 0
  %3138 = vperm.xlu0 %3137, %v2743
  %v3139 = vpop.permute.xlu0 %3138
  %3142 = vset.pattern.permute.xlu0 0
  %3143 = vperm.xlu0 %3142, %v2744
  %v3144 = vpop.permute.xlu0 %3143
  %3147 = vset.pattern.permute.xlu0 0
  %3148 = vperm.xlu0 %3147, %v2745
  %v3149 = vpop.permute.xlu0 %3148
  %3152 = vset.pattern.permute.xlu0 0
  %3153 = vperm.xlu0 %3152, %v2746
  %v3154 = vpop.permute.xlu0 %3153
  %3157 = vset.pattern.permute.xlu0 0
  %3158 = vperm.xlu0 %3157, %v2747
  %v3159 = vpop.permute.xlu0 %3158
  %3162 = vset.pattern.permute.xlu0 0
  %3163 = vperm.xlu0 %3162, %v2748
  %v3164 = vpop.permute.xlu0 %3163
  %3167 = vset.pattern.permute.xlu0 0
  %3168 = vperm.xlu0 %3167, %v2749
  %v3169 = vpop.permute.xlu0 %3168
  %3172 = vset.pattern.permute.xlu0 0
  %3173 = vperm.xlu0 %3172, %v2750
  %v3174 = vpop.permute.xlu0 %3173
  %3177 = vset.pattern.permute.xlu0 0
  %3178 = vperm.xlu0 %3177, %v2751
  %v3179 = vpop.permute.xlu0 %3178
  %3182 = vset.pattern.permute.xlu0 0
  %3183 = vperm.xlu0 %3182, %v2752
  %v3184 = vpop.permute.xlu0 %3183
  %3187 = vset.pattern.permute.xlu0 0
  %3188 = vperm.xlu0 %3187, %v2753
  %v3189 = vpop.permute.xlu0 %3188
  %3192 = vset.pattern.permute.xlu0 0
  %3193 = vperm.xlu0 %3192, %v2754
  %v3194 = vpop.permute.xlu0 %3193
  %3197 = vset.pattern.permute.xlu0 0
  %3198 = vperm.xlu0 %3197, %v2755
  %v3199 = vpop.permute.xlu0 %3198
  %3202 = vset.pattern.permute.xlu0 0
  %3203 = vperm.xlu0 %3202, %v2756
  %v3204 = vpop.permute.xlu0 %3203
  %3207 = vset.pattern.permute.xlu0 0
  %3208 = vperm.xlu0 %3207, %v2757
  %v3209 = vpop.permute.xlu0 %3208
  %3212 = vset.pattern.permute.xlu0 0
  %3213 = vperm.xlu0 %3212, %v2758
  %v3214 = vpop.permute.xlu0 %3213
  %3217 = vset.pattern.permute.xlu0 0
  %3218 = vperm.xlu0 %3217, %v2759
  %v3219 = vpop.permute.xlu0 %3218
  %3222 = vset.pattern.permute.xlu0 0
  %3223 = vperm.xlu0 %3222, %v2760
  %v3224 = vpop.permute.xlu0 %3223
  %3227 = vset.pattern.permute.xlu0 0
  %3228 = vperm.xlu0 %3227, %v2761
  %v3229 = vpop.permute.xlu0 %3228
  %3232 = vset.pattern.permute.xlu0 0
  %3233 = vperm.xlu0 %3232, %v2762
  %v3234 = vpop.permute.xlu0 %3233
  %3237 = vset.pattern.permute.xlu0 0
  %3238 = vperm.xlu0 %3237, %v2763
  %v3239 = vpop.permute.xlu0 %3238
  %3242 = vset.pattern.permute.xlu0 0
  %3243 = vperm.xlu0 %3242, %v2764
  %v3244 = vpop.permute.xlu0 %3243
  %3247 = vset.pattern.permute.xlu0 0
  %3248 = vperm.xlu0 %3247, %v2765
  %v3249 = vpop.permute.xlu0 %3248
  %3252 = vset.pattern.permute.xlu0 0
  %3253 = vperm.xlu0 %3252, %v2766
  %v3254 = vpop.permute.xlu0 %3253
  %3257 = vset.pattern.permute.xlu0 0
  %3258 = vperm.xlu0 %3257, %v2767
  %v3259 = vpop.permute.xlu0 %3258
  %3262 = vset.pattern.permute.xlu0 0
  %3263 = vperm.xlu0 %3262, %v2768
  %v3264 = vpop.permute.xlu0 %3263
  %3267 = vset.pattern.permute.xlu0 0
  %3268 = vperm.xlu0 %3267, %v2769
  %v3269 = vpop.permute.xlu0 %3268
  %3272 = vset.pattern.permute.xlu0 0
  %3273 = vperm.xlu0 %3272, %v2770
  %v3274 = vpop.permute.xlu0 %3273
  %3277 = vset.pattern.permute.xlu0 0
  %3278 = vperm.xlu0 %3277, %v2771
  %v3279 = vpop.permute.xlu0 %3278
  %3282 = vset.pattern.permute.xlu0 0
  %3283 = vperm.xlu0 %3282, %v2772
  %v3284 = vpop.permute.xlu0 %3283
  %3287 = vset.pattern.permute.xlu0 0
  %3288 = vperm.xlu0 %3287, %v2773
  %v3289 = vpop.permute.xlu0 %3288
  %3292 = vset.pattern.permute.xlu0 0
  %3293 = vperm.xlu0 %3292, %v2774
  %v3294 = vpop.permute.xlu0 %3293
  %3297 = vset.pattern.permute.xlu0 0
  %3298 = vperm.xlu0 %3297, %v2775
  %v3299 = vpop.permute.xlu0 %3298
  %3302 = vset.pattern.permute.xlu0 0
  %3303 = vperm.xlu0 %3302, %v2776
  %v3304 = vpop.permute.xlu0 %3303
  %3307 = vset.pattern.permute.xlu0 0
  %3308 = vperm.xlu0 %3307, %v2777
  %v3309 = vpop.permute.xlu0 %3308
  %3312 = vset.pattern.permute.xlu0 0
  %3313 = vperm.xlu0 %3312, %v2778
  %v3314 = vpop.permute.xlu0 %3313
  %3317 = vset.pattern.permute.xlu0 0
  %3318 = vperm.xlu0 %3317, %v2779
  %v3319 = vpop.permute.xlu0 %3318
  %3322 = vset.pattern.permute.xlu0 0
  %3323 = vperm.xlu0 %3322, %v2780
  %v3324 = vpop.permute.xlu0 %3323
  %3327 = vset.pattern.permute.xlu0 0
  %3328 = vperm.xlu0 %3327, %v2781
  %v3329 = vpop.permute.xlu0 %3328
  %3332 = vset.pattern.permute.xlu0 0
  %3333 = vperm.xlu0 %3332, %v2782
  %v3334 = vpop.permute.xlu0 %3333
  %3337 = vset.pattern.permute.xlu0 0
  %3338 = vperm.xlu0 %3337, %v2783
  %v3339 = vpop.permute.xlu0 %3338
  %3342 = vset.pattern.permute.xlu0 0
  %3343 = vperm.xlu0 %3342, %v2784
  %v3344 = vpop.permute.xlu0 %3343
  %3347 = vset.pattern.permute.xlu0 0
  %3348 = vperm.xlu0 %3347, %v2785
  %v3349 = vpop.permute.xlu0 %3348
  %3352 = vset.pattern.permute.xlu0 0
  %3353 = vperm.xlu0 %3352, %v2786
  %v3354 = vpop.permute.xlu0 %3353
  %3357 = vset.pattern.permute.xlu0 0
  %3358 = vperm.xlu0 %3357, %v2787
  %v3359 = vpop.permute.xlu0 %3358
  %3362 = vset.pattern.permute.xlu0 0
  %3363 = vperm.xlu0 %3362, %v2788
  %v3364 = vpop.permute.xlu0 %3363
  %3367 = vset.pattern.permute.xlu0 0
  %3368 = vperm.xlu0 %3367, %v2789
  %v3369 = vpop.permute.xlu0 %3368
  %3372 = vset.pattern.permute.xlu0 0
  %3373 = vperm.xlu0 %3372, %v2790
  %v3374 = vpop.permute.xlu0 %3373
  %3377 = vset.pattern.permute.xlu0 0
  %3378 = vperm.xlu0 %3377, %v2791
  %v3379 = vpop.permute.xlu0 %3378
  %3382 = vset.pattern.permute.xlu0 0
  %3383 = vperm.xlu0 %3382, %v2792
  %v3384 = vpop.permute.xlu0 %3383
  %3387 = vset.pattern.permute.xlu0 0
  %3388 = vperm.xlu0 %3387, %v2793
  %v3389 = vpop.permute.xlu0 %3388
  %3392 = vset.pattern.permute.xlu0 0
  %3393 = vperm.xlu0 %3392, %v2794
  %v3394 = vpop.permute.xlu0 %3393
  %3397 = vset.pattern.permute.xlu0 0
  %3398 = vperm.xlu0 %3397, %v2795
  %v3399 = vpop.permute.xlu0 %3398
  %3402 = vset.pattern.permute.xlu0 0
  %3403 = vperm.xlu0 %3402, %v2796
  %v3404 = vpop.permute.xlu0 %3403
  %3407 = vset.pattern.permute.xlu0 0
  %3408 = vperm.xlu0 %3407, %v2797
  %v3409 = vpop.permute.xlu0 %3408
  %3412 = vset.pattern.permute.xlu0 0
  %3413 = vperm.xlu0 %3412, %v2798
  %v3414 = vpop.permute.xlu0 %3413
  %3417 = vset.pattern.permute.xlu0 0
  %3418 = vperm.xlu0 %3417, %v2799
  %v3419 = vpop.permute.xlu0 %3418
  %3422 = vset.pattern.permute.xlu0 0
  %3423 = vperm.xlu0 %3422, %v2800
  %v3424 = vpop.permute.xlu0 %3423
  %3427 = vset.pattern.permute.xlu0 0
  %3428 = vperm.xlu0 %3427, %v2801
  %v3429 = vpop.permute.xlu0 %3428
  %3432 = vset.pattern.permute.xlu0 0
  %3433 = vperm.xlu0 %3432, %v2802
  %v3434 = vpop.permute.xlu0 %3433
  %3437 = vset.pattern.permute.xlu0 0
  %3438 = vperm.xlu0 %3437, %v2803
  %v3439 = vpop.permute.xlu0 %3438
  %3442 = vset.pattern.permute.xlu0 0
  %3443 = vperm.xlu0 %3442, %v2804
  %v3444 = vpop.permute.xlu0 %3443
  %3447 = vset.pattern.permute.xlu0 0
  %3448 = vperm.xlu0 %3447, %v2805
  %v3449 = vpop.permute.xlu0 %3448
  %3452 = vset.pattern.permute.xlu0 0
  %3453 = vperm.xlu0 %3452, %v2806
  %v3454 = vpop.permute.xlu0 %3453
  %3457 = vset.pattern.permute.xlu0 0
  %3458 = vperm.xlu0 %3457, %v2807
  %v3459 = vpop.permute.xlu0 %3458
  %3462 = vset.pattern.permute.xlu0 0
  %3463 = vperm.xlu0 %3462, %v2808
  %v3464 = vpop.permute.xlu0 %3463
  %3467 = vset.pattern.permute.xlu0 0
  %3468 = vperm.xlu0 %3467, %v2809
  %v3469 = vpop.permute.xlu0 %3468
  %3472 = vset.pattern.permute.xlu0 0
  %3473 = vperm.xlu0 %3472, %v2810
  %v3474 = vpop.permute.xlu0 %3473
  %3477 = vset.pattern.permute.xlu0 0
  %3478 = vperm.xlu0 %3477, %v2811
  %v3479 = vpop.permute.xlu0 %3478
  %3482 = vset.pattern.permute.xlu0 0
  %3483 = vperm.xlu0 %3482, %v2812
  %v3484 = vpop.permute.xlu0 %3483
  %3487 = vset.pattern.permute.xlu0 0
  %3488 = vperm.xlu0 %3487, %v2813
  %v3489 = vpop.permute.xlu0 %3488
  %3492 = vset.pattern.permute.xlu0 0
  %3493 = vperm.xlu0 %3492, %v2814
  %v3494 = vpop.permute.xlu0 %3493
  %3497 = vset.pattern.permute.xlu0 0
  %3498 = vperm.xlu0 %3497, %v2815
  %v3499 = vpop.permute.xlu0 %3498
  %3502 = vset.pattern.permute.xlu0 0
  %3503 = vperm.xlu0 %3502, %v2816
  %v3504 = vpop.permute.xlu0 %3503
  %3507 = vset.pattern.permute.xlu0 0
  %3508 = vperm.xlu0 %3507, %v2817
  %v3509 = vpop.permute.xlu0 %3508
  %3512 = vset.pattern.permute.xlu0 0
  %3513 = vperm.xlu0 %3512, %v2818
  %v3514 = vpop.permute.xlu0 %3513
  %3517 = vset.pattern.permute.xlu0 0
  %3518 = vperm.xlu0 %3517, %v2819
  %v3519 = vpop.permute.xlu0 %3518
  %3522 = vset.pattern.permute.xlu0 0
  %3523 = vperm.xlu0 %3522, %v2820
  %v3524 = vpop.permute.xlu0 %3523
  %3527 = vset.pattern.permute.xlu0 0
  %3528 = vperm.xlu0 %3527, %v2821
  %v3529 = vpop.permute.xlu0 %3528
  %3532 = vset.pattern.permute.xlu0 0
  %3533 = vperm.xlu0 %3532, %v2822
  %v3534 = vpop.permute.xlu0 %3533
  %3537 = vset.pattern.permute.xlu0 0
  %3538 = vperm.xlu0 %3537, %v2823
  %v3539 = vpop.permute.xlu0 %3538
  %3542 = vset.pattern.permute.xlu0 0
  %3543 = vperm.xlu0 %3542, %v2824
  %v3544 = vpop.permute.xlu0 %3543
  %v3546 = vmul.f32 %v2934, %v3039
  %v3547 = vmul.f32 %v2935, %v3044
  %v3548 = vmul.f32 %v2936, %v3049
  %v3549 = vmul.f32 %v2937, %v3054
  %v3550 = vmul.f32 %v2938, %v3059
  %v3551 = vmul.f32 %v2939, %v3064
  %v3552 = vmul.f32 %v2940, %v3069
  %v3553 = vmul.f32 %v2941, %v3074
  %v3554 = vmul.f32 %v2942, %v3079
  %v3555 = vmul.f32 %v2943, %v3084
  %v3556 = vmul.f32 %v2944, %v3089
  %v3557 = vmul.f32 %v2945, %v3094
  %v3558 = vmul.f32 %v2946, %v3099
  %v3559 = vmul.f32 %v2947, %v3104
  %v3560 = vmul.f32 %v2948, %v3109
  %v3561 = vmul.f32 %v2949, %v3114
  %v3562 = vmul.f32 %v2950, %v3119
  %v3563 = vmul.f32 %v2951, %v3124
  %v3564 = vmul.f32 %v2952, %v3129
  %v3565 = vmul.f32 %v2953, %v3134
  %v3566 = vmul.f32 %v2954, %v3139
  %v3567 = vmul.f32 %v2955, %v3144
  %v3568 = vmul.f32 %v2956, %v3149
  %v3569 = vmul.f32 %v2957, %v3154
  %v3570 = vmul.f32 %v2958, %v3159
  %v3571 = vmul.f32 %v2959, %v3164
  %v3572 = vmul.f32 %v2960, %v3169
  %v3573 = vmul.f32 %v2961, %v3174
  %v3574 = vmul.f32 %v2962, %v3179
  %v3575 = vmul.f32 %v2963, %v3184
  %v3576 = vmul.f32 %v2964, %v3189
  %v3577 = vmul.f32 %v2965, %v3194
  %v3578 = vmul.f32 %v2966, %v3199
  %v3579 = vmul.f32 %v2967, %v3204
  %v3580 = vmul.f32 %v2968, %v3209
  %v3581 = vmul.f32 %v2969, %v3214
  %v3582 = vmul.f32 %v2970, %v3219
  %v3583 = vmul.f32 %v2971, %v3224
  %v3584 = vmul.f32 %v2972, %v3229
  %v3585 = vmul.f32 %v2973, %v3234
  %v3586 = vmul.f32 %v2974, %v3239
  %v3587 = vmul.f32 %v2975, %v3244
  %v3588 = vmul.f32 %v2976, %v3249
  %v3589 = vmul.f32 %v2977, %v3254
  %v3590 = vmul.f32 %v2978, %v3259
  %v3591 = vmul.f32 %v2979, %v3264
  %v3592 = vmul.f32 %v2980, %v3269
  %v3593 = vmul.f32 %v2981, %v3274
  %v3594 = vmul.f32 %v2982, %v3279
  %v3595 = vmul.f32 %v2983, %v3284
  %v3596 = vmul.f32 %v2984, %v3289
  %v3597 = vmul.f32 %v2985, %v3294
  %v3598 = vmul.f32 %v2986, %v3299
  %v3599 = vmul.f32 %v2987, %v3304
  %v3600 = vmul.f32 %v2988, %v3309
  %v3601 = vmul.f32 %v2989, %v3314
  %v3602 = vmul.f32 %v2990, %v3319
  %v3603 = vmul.f32 %v2991, %v3324
  %v3604 = vmul.f32 %v2992, %v3329
  %v3605 = vmul.f32 %v2993, %v3334
  %v3606 = vmul.f32 %v2994, %v3339
  %v3607 = vmul.f32 %v2995, %v3344
  %v3608 = vmul.f32 %v2996, %v3349
  %v3609 = vmul.f32 %v2997, %v3354
  %v3610 = vmul.f32 %v2998, %v3359
  %v3611 = vmul.f32 %v2999, %v3364
  %v3612 = vmul.f32 %v3000, %v3369
  %v3613 = vmul.f32 %v3001, %v3374
  %v3614 = vmul.f32 %v3002, %v3379
  %v3615 = vmul.f32 %v3003, %v3384
  %v3616 = vmul.f32 %v3004, %v3389
  %v3617 = vmul.f32 %v3005, %v3394
  %v3618 = vmul.f32 %v3006, %v3399
  %v3619 = vmul.f32 %v3007, %v3404
  %v3620 = vmul.f32 %v3008, %v3409
  %v3621 = vmul.f32 %v3009, %v3414
  %v3622 = vmul.f32 %v3010, %v3419
  %v3623 = vmul.f32 %v3011, %v3424
  %v3624 = vmul.f32 %v3012, %v3429
  %v3625 = vmul.f32 %v3013, %v3434
  %v3626 = vmul.f32 %v3014, %v3439
  %v3627 = vmul.f32 %v3015, %v3444
  %v3628 = vmul.f32 %v3016, %v3449
  %v3629 = vmul.f32 %v3017, %v3454
  %v3630 = vmul.f32 %v3018, %v3459
  %v3631 = vmul.f32 %v3019, %v3464
  %v3632 = vmul.f32 %v3020, %v3469
  %v3633 = vmul.f32 %v3021, %v3474
  %v3634 = vmul.f32 %v3022, %v3479
  %v3635 = vmul.f32 %v3023, %v3484
  %v3636 = vmul.f32 %v3024, %v3489
  %v3637 = vmul.f32 %v3025, %v3494
  %v3638 = vmul.f32 %v3026, %v3499
  %v3639 = vmul.f32 %v3027, %v3504
  %v3640 = vmul.f32 %v3028, %v3509
  %v3641 = vmul.f32 %v3029, %v3514
  %v3642 = vmul.f32 %v3030, %v3519
  %v3643 = vmul.f32 %v3031, %v3524
  %v3644 = vmul.f32 %v3032, %v3529
  %v3645 = vmul.f32 %v3033, %v3534
  %v3646 = vmul.f32 %v3034, %v3539
  %v3647 = vmul.f32 %v3035, %v3544
  %v3648 = vsel %vm99, %v3546, 0.0
  %v3649 = vsel %vm99, %v3547, 0.0
  %v3650 = vadd.f32 %v3648, %v3649
  %v3651 = vsel %vm99, %v3548, 0.0
  %v3652 = vadd.f32 %v3650, %v3651
  %v3653 = vsel %vm99, %v3549, 0.0
  %v3654 = vadd.f32 %v3652, %v3653
  %v3655 = vsel %vm99, %v3550, 0.0
  %v3656 = vadd.f32 %v3654, %v3655
  %v3657 = vsel %vm99, %v3551, 0.0
  %v3658 = vadd.f32 %v3656, %v3657
  %v3659 = vsel %vm99, %v3552, 0.0
  %v3660 = vadd.f32 %v3658, %v3659
  %v3661 = vsel %vm99, %v3553, 0.0
  %v3662 = vadd.f32 %v3660, %v3661
  %v3663 = vsel %vm99, %v3554, 0.0
  %v3664 = vadd.f32 %v3662, %v3663
  %v3665 = vsel %vm99, %v3555, 0.0
  %v3666 = vadd.f32 %v3664, %v3665
  %v3667 = vsel %vm99, %v3556, 0.0
  %v3668 = vadd.f32 %v3666, %v3667
  %v3669 = vsel %vm99, %v3557, 0.0
  %v3670 = vadd.f32 %v3668, %v3669
  %v3671 = vsel %vm99, %v3558, 0.0
  %v3672 = vadd.f32 %v3670, %v3671
  %v3673 = vsel %vm99, %v3559, 0.0
  %v3674 = vadd.f32 %v3672, %v3673
  %v3675 = vsel %vm99, %v3560, 0.0
  %v3676 = vadd.f32 %v3674, %v3675
  %v3677 = vsel %vm99, %v3561, 0.0
  %v3678 = vadd.f32 %v3676, %v3677
  %v3679 = vsel %vm99, %v3562, 0.0
  %v3680 = vadd.f32 %v3678, %v3679
  %v3681 = vsel %vm99, %v3563, 0.0
  %v3682 = vadd.f32 %v3680, %v3681
  %v3683 = vsel %vm99, %v3564, 0.0
  %v3684 = vadd.f32 %v3682, %v3683
  %v3685 = vsel %vm99, %v3565, 0.0
  %v3686 = vadd.f32 %v3684, %v3685
  %v3687 = vsel %vm99, %v3566, 0.0
  %v3688 = vadd.f32 %v3686, %v3687
  %v3689 = vsel %vm99, %v3567, 0.0
  %v3690 = vadd.f32 %v3688, %v3689
  %v3691 = vsel %vm99, %v3568, 0.0
  %v3692 = vadd.f32 %v3690, %v3691
  %v3693 = vsel %vm99, %v3569, 0.0
  %v3694 = vadd.f32 %v3692, %v3693
  %v3695 = vsel %vm99, %v3570, 0.0
  %v3696 = vadd.f32 %v3694, %v3695
  %v3697 = vsel %vm99, %v3571, 0.0
  %v3698 = vadd.f32 %v3696, %v3697
  %v3699 = vsel %vm99, %v3572, 0.0
  %v3700 = vadd.f32 %v3698, %v3699
  %v3701 = vsel %vm99, %v3573, 0.0
  %v3702 = vadd.f32 %v3700, %v3701
  %v3703 = vsel %vm99, %v3574, 0.0
  %v3704 = vadd.f32 %v3702, %v3703
  %v3705 = vsel %vm99, %v3575, 0.0
  %v3706 = vadd.f32 %v3704, %v3705
  %v3707 = vsel %vm99, %v3576, 0.0
  %v3708 = vadd.f32 %v3706, %v3707
  %v3709 = vsel %vm99, %v3577, 0.0
  %v3710 = vadd.f32 %v3708, %v3709
  %v3711 = vsel %vm99, %v3578, 0.0
  %v3712 = vadd.f32 %v3710, %v3711
  %v3713 = vsel %vm99, %v3579, 0.0
  %v3714 = vadd.f32 %v3712, %v3713
  %v3715 = vsel %vm99, %v3580, 0.0
  %v3716 = vadd.f32 %v3714, %v3715
  %v3717 = vsel %vm99, %v3581, 0.0
  %v3718 = vadd.f32 %v3716, %v3717
  %v3719 = vsel %vm99, %v3582, 0.0
  %v3720 = vadd.f32 %v3718, %v3719
  %v3721 = vsel %vm99, %v3583, 0.0
  %v3722 = vadd.f32 %v3720, %v3721
  %v3723 = vsel %vm99, %v3584, 0.0
  %v3724 = vadd.f32 %v3722, %v3723
  %v3725 = vsel %vm99, %v3585, 0.0
  %v3726 = vadd.f32 %v3724, %v3725
  %v3727 = vsel %vm99, %v3586, 0.0
  %v3728 = vadd.f32 %v3726, %v3727
  %v3729 = vsel %vm99, %v3587, 0.0
  %v3730 = vadd.f32 %v3728, %v3729
  %v3731 = vsel %vm99, %v3588, 0.0
  %v3732 = vadd.f32 %v3730, %v3731
  %v3733 = vsel %vm99, %v3589, 0.0
  %v3734 = vadd.f32 %v3732, %v3733
  %v3735 = vsel %vm99, %v3590, 0.0
  %v3736 = vadd.f32 %v3734, %v3735
  %v3737 = vsel %vm99, %v3591, 0.0
  %v3738 = vadd.f32 %v3736, %v3737
  %v3739 = vsel %vm99, %v3592, 0.0
  %v3740 = vadd.f32 %v3738, %v3739
  %v3741 = vsel %vm99, %v3593, 0.0
  %v3742 = vadd.f32 %v3740, %v3741
  %v3743 = vsel %vm99, %v3594, 0.0
  %v3744 = vadd.f32 %v3742, %v3743
  %v3745 = vsel %vm99, %v3595, 0.0
  %v3746 = vadd.f32 %v3744, %v3745
  %v3747 = vsel %vm99, %v3596, 0.0
  %v3748 = vadd.f32 %v3746, %v3747
  %v3749 = vsel %vm99, %v3597, 0.0
  %v3750 = vadd.f32 %v3748, %v3749
  %v3751 = vsel %vm99, %v3598, 0.0
  %v3752 = vadd.f32 %v3750, %v3751
  %v3753 = vsel %vm99, %v3599, 0.0
  %v3754 = vadd.f32 %v3752, %v3753
  %v3755 = vsel %vm99, %v3600, 0.0
  %v3756 = vadd.f32 %v3754, %v3755
  %v3757 = vsel %vm99, %v3601, 0.0
  %v3758 = vadd.f32 %v3756, %v3757
  %v3759 = vsel %vm99, %v3602, 0.0
  %v3760 = vadd.f32 %v3758, %v3759
  %v3761 = vsel %vm99, %v3603, 0.0
  %v3762 = vadd.f32 %v3760, %v3761
  %v3763 = vsel %vm99, %v3604, 0.0
  %v3764 = vadd.f32 %v3762, %v3763
  %v3765 = vsel %vm99, %v3605, 0.0
  %v3766 = vadd.f32 %v3764, %v3765
  %v3767 = vsel %vm99, %v3606, 0.0
  %v3768 = vadd.f32 %v3766, %v3767
  %v3769 = vsel %vm99, %v3607, 0.0
  %v3770 = vadd.f32 %v3768, %v3769
  %v3771 = vsel %vm99, %v3608, 0.0
  %v3772 = vadd.f32 %v3770, %v3771
  %v3773 = vsel %vm99, %v3609, 0.0
  %v3774 = vadd.f32 %v3772, %v3773
  %v3775 = vsel %vm99, %v3610, 0.0
  %v3776 = vadd.f32 %v3774, %v3775
  %v3777 = vsel %vm99, %v3611, 0.0
  %v3778 = vadd.f32 %v3776, %v3777
  %v3779 = vsel %vm99, %v3612, 0.0
  %v3780 = vadd.f32 %v3778, %v3779
  %v3781 = vsel %vm99, %v3613, 0.0
  %v3782 = vadd.f32 %v3780, %v3781
  %v3783 = vsel %vm99, %v3614, 0.0
  %v3784 = vadd.f32 %v3782, %v3783
  %v3785 = vsel %vm99, %v3615, 0.0
  %v3786 = vadd.f32 %v3784, %v3785
  %v3787 = vsel %vm99, %v3616, 0.0
  %v3788 = vadd.f32 %v3786, %v3787
  %v3789 = vsel %vm99, %v3617, 0.0
  %v3790 = vadd.f32 %v3788, %v3789
  %v3791 = vsel %vm99, %v3618, 0.0
  %v3792 = vadd.f32 %v3790, %v3791
  %v3793 = vsel %vm99, %v3619, 0.0
  %v3794 = vadd.f32 %v3792, %v3793
  %v3795 = vsel %vm99, %v3620, 0.0
  %v3796 = vadd.f32 %v3794, %v3795
  %v3797 = vsel %vm99, %v3621, 0.0
  %v3798 = vadd.f32 %v3796, %v3797
  %v3799 = vsel %vm99, %v3622, 0.0
  %v3800 = vadd.f32 %v3798, %v3799
  %v3801 = vsel %vm99, %v3623, 0.0
  %v3802 = vadd.f32 %v3800, %v3801
  %v3803 = vsel %vm99, %v3624, 0.0
  %v3804 = vadd.f32 %v3802, %v3803
  %v3805 = vsel %vm99, %v3625, 0.0
  %v3806 = vadd.f32 %v3804, %v3805
  %v3807 = vsel %vm99, %v3626, 0.0
  %v3808 = vadd.f32 %v3806, %v3807
  %v3809 = vsel %vm99, %v3627, 0.0
  %v3810 = vadd.f32 %v3808, %v3809
  %v3811 = vsel %vm99, %v3628, 0.0
  %v3812 = vadd.f32 %v3810, %v3811
  %v3813 = vsel %vm99, %v3629, 0.0
  %v3814 = vadd.f32 %v3812, %v3813
  %v3815 = vsel %vm99, %v3630, 0.0
  %v3816 = vadd.f32 %v3814, %v3815
  %v3817 = vsel %vm99, %v3631, 0.0
  %v3818 = vadd.f32 %v3816, %v3817
  %v3819 = vsel %vm99, %v3632, 0.0
  %v3820 = vadd.f32 %v3818, %v3819
  %v3821 = vsel %vm99, %v3633, 0.0
  %v3822 = vadd.f32 %v3820, %v3821
  %v3823 = vsel %vm99, %v3634, 0.0
  %v3824 = vadd.f32 %v3822, %v3823
  %v3825 = vsel %vm99, %v3635, 0.0
  %v3826 = vadd.f32 %v3824, %v3825
  %v3827 = vsel %vm99, %v3636, 0.0
  %v3828 = vadd.f32 %v3826, %v3827
  %v3829 = vsel %vm99, %v3637, 0.0
  %v3830 = vadd.f32 %v3828, %v3829
  %v3831 = vsel %vm99, %v3638, 0.0
  %v3832 = vadd.f32 %v3830, %v3831
  %v3833 = vsel %vm99, %v3639, 0.0
  %v3834 = vadd.f32 %v3832, %v3833
  %v3835 = vsel %vm99, %v3640, 0.0
  %v3836 = vadd.f32 %v3834, %v3835
  %v3837 = vsel %vm99, %v3641, 0.0
  %v3838 = vadd.f32 %v3836, %v3837
  %v3839 = vsel %vm99, %v3642, 0.0
  %v3840 = vadd.f32 %v3838, %v3839
  %v3841 = vsel %vm99, %v3643, 0.0
  %v3842 = vadd.f32 %v3840, %v3841
  %v3843 = vsel %vm99, %v3644, 0.0
  %v3844 = vadd.f32 %v3842, %v3843
  %v3845 = vsel %vm99, %v3645, 0.0
  %v3846 = vadd.f32 %v3844, %v3845
  %v3847 = vsel %vm99, %v3646, 0.0
  %v3848 = vadd.f32 %v3846, %v3847
  %v3849 = vsel %vm99, %v3647, 0.0
  %v3850 = vadd.f32 %v3848, %v3849
  %v3851 = vrot.slane %v3850, 4
  %v3852 = vadd.f32 %v3850, %v3851
  %v3853 = vrot.slane %v3852, 2
  %v3854 = vadd.f32 %v3852, %v3853
  %v3855 = vrot.slane %v3854, 1
  %v3856 = vadd.f32 %v3854, %v3855
  %v3857 = vrcp.pop 578.0
  %v3858 = vmul.f32 %v3856, %v3857
  %v3859 = vsub.f32 %v2934, %v3858
  %v3860 = vsub.f32 %v2935, %v3858
  %v3861 = vsub.f32 %v2936, %v3858
  %v3862 = vsub.f32 %v2937, %v3858
  %v3863 = vsub.f32 %v2938, %v3858
  %v3864 = vsub.f32 %v2939, %v3858
  %v3865 = vsub.f32 %v2940, %v3858
  %v3866 = vsub.f32 %v2941, %v3858
  %v3867 = vsub.f32 %v2942, %v3858
  %v3868 = vsub.f32 %v2943, %v3858
  %v3869 = vsub.f32 %v2944, %v3858
  %v3870 = vsub.f32 %v2945, %v3858
  %v3871 = vsub.f32 %v2946, %v3858
  %v3872 = vsub.f32 %v2947, %v3858
  %v3873 = vsub.f32 %v2948, %v3858
  %v3874 = vsub.f32 %v2949, %v3858
  %v3875 = vsub.f32 %v2950, %v3858
  %v3876 = vsub.f32 %v2951, %v3858
  %v3877 = vsub.f32 %v2952, %v3858
  %v3878 = vsub.f32 %v2953, %v3858
  %v3879 = vsub.f32 %v2954, %v3858
  %v3880 = vsub.f32 %v2955, %v3858
  %v3881 = vsub.f32 %v2956, %v3858
  %v3882 = vsub.f32 %v2957, %v3858
  %v3883 = vsub.f32 %v2958, %v3858
  %v3884 = vsub.f32 %v2959, %v3858
  %v3885 = vsub.f32 %v2960, %v3858
  %v3886 = vsub.f32 %v2961, %v3858
  %v3887 = vsub.f32 %v2962, %v3858
  %v3888 = vsub.f32 %v2963, %v3858
  %v3889 = vsub.f32 %v2964, %v3858
  %v3890 = vsub.f32 %v2965, %v3858
  %v3891 = vsub.f32 %v2966, %v3858
  %v3892 = vsub.f32 %v2967, %v3858
  %v3893 = vsub.f32 %v2968, %v3858
  %v3894 = vsub.f32 %v2969, %v3858
  %v3895 = vsub.f32 %v2970, %v3858
  %v3896 = vsub.f32 %v2971, %v3858
  %v3897 = vsub.f32 %v2972, %v3858
  %v3898 = vsub.f32 %v2973, %v3858
  %v3899 = vsub.f32 %v2974, %v3858
  %v3900 = vsub.f32 %v2975, %v3858
  %v3901 = vsub.f32 %v2976, %v3858
  %v3902 = vsub.f32 %v2977, %v3858
  %v3903 = vsub.f32 %v2978, %v3858
  %v3904 = vsub.f32 %v2979, %v3858
  %v3905 = vsub.f32 %v2980, %v3858
  %v3906 = vsub.f32 %v2981, %v3858
  %v3907 = vsub.f32 %v2982, %v3858
  %v3908 = vsub.f32 %v2983, %v3858
  %v3909 = vsub.f32 %v2984, %v3858
  %v3910 = vsub.f32 %v2985, %v3858
  %v3911 = vsub.f32 %v2986, %v3858
  %v3912 = vsub.f32 %v2987, %v3858
  %v3913 = vsub.f32 %v2988, %v3858
  %v3914 = vsub.f32 %v2989, %v3858
  %v3915 = vsub.f32 %v2990, %v3858
  %v3916 = vsub.f32 %v2991, %v3858
  %v3917 = vsub.f32 %v2992, %v3858
  %v3918 = vsub.f32 %v2993, %v3858
  %v3919 = vsub.f32 %v2994, %v3858
  %v3920 = vsub.f32 %v2995, %v3858
  %v3921 = vsub.f32 %v2996, %v3858
  %v3922 = vsub.f32 %v2997, %v3858
  %v3923 = vsub.f32 %v2998, %v3858
  %v3924 = vsub.f32 %v2999, %v3858
  %v3925 = vsub.f32 %v3000, %v3858
  %v3926 = vsub.f32 %v3001, %v3858
  %v3927 = vsub.f32 %v3002, %v3858
  %v3928 = vsub.f32 %v3003, %v3858
  %v3929 = vsub.f32 %v3004, %v3858
  %v3930 = vsub.f32 %v3005, %v3858
  %v3931 = vsub.f32 %v3006, %v3858
  %v3932 = vsub.f32 %v3007, %v3858
  %v3933 = vsub.f32 %v3008, %v3858
  %v3934 = vsub.f32 %v3009, %v3858
  %v3935 = vsub.f32 %v3010, %v3858
  %v3936 = vsub.f32 %v3011, %v3858
  %v3937 = vsub.f32 %v3012, %v3858
  %v3938 = vsub.f32 %v3013, %v3858
  %v3939 = vsub.f32 %v3014, %v3858
  %v3940 = vsub.f32 %v3015, %v3858
  %v3941 = vsub.f32 %v3016, %v3858
  %v3942 = vsub.f32 %v3017, %v3858
  %v3943 = vsub.f32 %v3018, %v3858
  %v3944 = vsub.f32 %v3019, %v3858
  %v3945 = vsub.f32 %v3020, %v3858
  %v3946 = vsub.f32 %v3021, %v3858
  %v3947 = vsub.f32 %v3022, %v3858
  %v3948 = vsub.f32 %v3023, %v3858
  %v3949 = vsub.f32 %v3024, %v3858
  %v3950 = vsub.f32 %v3025, %v3858
  %v3951 = vsub.f32 %v3026, %v3858
  %v3952 = vsub.f32 %v3027, %v3858
  %v3953 = vsub.f32 %v3028, %v3858
  %v3954 = vsub.f32 %v3029, %v3858
  %v3955 = vsub.f32 %v3030, %v3858
  %v3956 = vsub.f32 %v3031, %v3858
  %v3957 = vsub.f32 %v3032, %v3858
  %v3958 = vsub.f32 %v3033, %v3858
  %v3959 = vsub.f32 %v3034, %v3858
  %v3960 = vsub.f32 %v3035, %v3858
  %v3961 = vmul.f32 %v3859, %v3039
  %v3962 = vmul.f32 %v3860, %v3044
  %v3963 = vmul.f32 %v3861, %v3049
  %v3964 = vmul.f32 %v3862, %v3054
  %v3965 = vmul.f32 %v3863, %v3059
  %v3966 = vmul.f32 %v3864, %v3064
  %v3967 = vmul.f32 %v3865, %v3069
  %v3968 = vmul.f32 %v3866, %v3074
  %v3969 = vmul.f32 %v3867, %v3079
  %v3970 = vmul.f32 %v3868, %v3084
  %v3971 = vmul.f32 %v3869, %v3089
  %v3972 = vmul.f32 %v3870, %v3094
  %v3973 = vmul.f32 %v3871, %v3099
  %v3974 = vmul.f32 %v3872, %v3104
  %v3975 = vmul.f32 %v3873, %v3109
  %v3976 = vmul.f32 %v3874, %v3114
  %v3977 = vmul.f32 %v3875, %v3119
  %v3978 = vmul.f32 %v3876, %v3124
  %v3979 = vmul.f32 %v3877, %v3129
  %v3980 = vmul.f32 %v3878, %v3134
  %v3981 = vmul.f32 %v3879, %v3139
  %v3982 = vmul.f32 %v3880, %v3144
  %v3983 = vmul.f32 %v3881, %v3149
  %v3984 = vmul.f32 %v3882, %v3154
  %v3985 = vmul.f32 %v3883, %v3159
  %v3986 = vmul.f32 %v3884, %v3164
  %v3987 = vmul.f32 %v3885, %v3169
  %v3988 = vmul.f32 %v3886, %v3174
  %v3989 = vmul.f32 %v3887, %v3179
  %v3990 = vmul.f32 %v3888, %v3184
  %v3991 = vmul.f32 %v3889, %v3189
  %v3992 = vmul.f32 %v3890, %v3194
  %v3993 = vmul.f32 %v3891, %v3199
  %v3994 = vmul.f32 %v3892, %v3204
  %v3995 = vmul.f32 %v3893, %v3209
  %v3996 = vmul.f32 %v3894, %v3214
  %v3997 = vmul.f32 %v3895, %v3219
  %v3998 = vmul.f32 %v3896, %v3224
  %v3999 = vmul.f32 %v3897, %v3229
  %v4000 = vmul.f32 %v3898, %v3234
  %v4001 = vmul.f32 %v3899, %v3239
  %v4002 = vmul.f32 %v3900, %v3244
  %v4003 = vmul.f32 %v3901, %v3249
  %v4004 = vmul.f32 %v3902, %v3254
  %v4005 = vmul.f32 %v3903, %v3259
  %v4006 = vmul.f32 %v3904, %v3264
  %v4007 = vmul.f32 %v3905, %v3269
  %v4008 = vmul.f32 %v3906, %v3274
  %v4009 = vmul.f32 %v3907, %v3279
  %v4010 = vmul.f32 %v3908, %v3284
  %v4011 = vmul.f32 %v3909, %v3289
  %v4012 = vmul.f32 %v3910, %v3294
  %v4013 = vmul.f32 %v3911, %v3299
  %v4014 = vmul.f32 %v3912, %v3304
  %v4015 = vmul.f32 %v3913, %v3309
  %v4016 = vmul.f32 %v3914, %v3314
  %v4017 = vmul.f32 %v3915, %v3319
  %v4018 = vmul.f32 %v3916, %v3324
  %v4019 = vmul.f32 %v3917, %v3329
  %v4020 = vmul.f32 %v3918, %v3334
  %v4021 = vmul.f32 %v3919, %v3339
  %v4022 = vmul.f32 %v3920, %v3344
  %v4023 = vmul.f32 %v3921, %v3349
  %v4024 = vmul.f32 %v3922, %v3354
  %v4025 = vmul.f32 %v3923, %v3359
  %v4026 = vmul.f32 %v3924, %v3364
  %v4027 = vmul.f32 %v3925, %v3369
  %v4028 = vmul.f32 %v3926, %v3374
  %v4029 = vmul.f32 %v3927, %v3379
  %v4030 = vmul.f32 %v3928, %v3384
  %v4031 = vmul.f32 %v3929, %v3389
  %v4032 = vmul.f32 %v3930, %v3394
  %v4033 = vmul.f32 %v3931, %v3399
  %v4034 = vmul.f32 %v3932, %v3404
  %v4035 = vmul.f32 %v3933, %v3409
  %v4036 = vmul.f32 %v3934, %v3414
  %v4037 = vmul.f32 %v3935, %v3419
  %v4038 = vmul.f32 %v3936, %v3424
  %v4039 = vmul.f32 %v3937, %v3429
  %v4040 = vmul.f32 %v3938, %v3434
  %v4041 = vmul.f32 %v3939, %v3439
  %v4042 = vmul.f32 %v3940, %v3444
  %v4043 = vmul.f32 %v3941, %v3449
  %v4044 = vmul.f32 %v3942, %v3454
  %v4045 = vmul.f32 %v3943, %v3459
  %v4046 = vmul.f32 %v3944, %v3464
  %v4047 = vmul.f32 %v3945, %v3469
  %v4048 = vmul.f32 %v3946, %v3474
  %v4049 = vmul.f32 %v3947, %v3479
  %v4050 = vmul.f32 %v3948, %v3484
  %v4051 = vmul.f32 %v3949, %v3489
  %v4052 = vmul.f32 %v3950, %v3494
  %v4053 = vmul.f32 %v3951, %v3499
  %v4054 = vmul.f32 %v3952, %v3504
  %v4055 = vmul.f32 %v3953, %v3509
  %v4056 = vmul.f32 %v3954, %v3514
  %v4057 = vmul.f32 %v3955, %v3519
  %v4058 = vmul.f32 %v3956, %v3524
  %v4059 = vmul.f32 %v3957, %v3529
  %v4060 = vmul.f32 %v3958, %v3534
  %v4061 = vmul.f32 %v3959, %v3539
  %v4062 = vmul.f32 %v3960, %v3544
  %v4063 = vmul.f32 %v3961, %v3961
  %v4064 = vmul.f32 %v3962, %v3962
  %v4065 = vmul.f32 %v3963, %v3963
  %v4066 = vmul.f32 %v3964, %v3964
  %v4067 = vmul.f32 %v3965, %v3965
  %v4068 = vmul.f32 %v3966, %v3966
  %v4069 = vmul.f32 %v3967, %v3967
  %v4070 = vmul.f32 %v3968, %v3968
  %v4071 = vmul.f32 %v3969, %v3969
  %v4072 = vmul.f32 %v3970, %v3970
  %v4073 = vmul.f32 %v3971, %v3971
  %v4074 = vmul.f32 %v3972, %v3972
  %v4075 = vmul.f32 %v3973, %v3973
  %v4076 = vmul.f32 %v3974, %v3974
  %v4077 = vmul.f32 %v3975, %v3975
  %v4078 = vmul.f32 %v3976, %v3976
  %v4079 = vmul.f32 %v3977, %v3977
  %v4080 = vmul.f32 %v3978, %v3978
  %v4081 = vmul.f32 %v3979, %v3979
  %v4082 = vmul.f32 %v3980, %v3980
  %v4083 = vmul.f32 %v3981, %v3981
  %v4084 = vmul.f32 %v3982, %v3982
  %v4085 = vmul.f32 %v3983, %v3983
  %v4086 = vmul.f32 %v3984, %v3984
  %v4087 = vmul.f32 %v3985, %v3985
  %v4088 = vmul.f32 %v3986, %v3986
  %v4089 = vmul.f32 %v3987, %v3987
  %v4090 = vmul.f32 %v3988, %v3988
  %v4091 = vmul.f32 %v3989, %v3989
  %v4092 = vmul.f32 %v3990, %v3990
  %v4093 = vmul.f32 %v3991, %v3991
  %v4094 = vmul.f32 %v3992, %v3992
  %v4095 = vmul.f32 %v3993, %v3993
  %v4096 = vmul.f32 %v3994, %v3994
  %v4097 = vmul.f32 %v3995, %v3995
  %v4098 = vmul.f32 %v3996, %v3996
  %v4099 = vmul.f32 %v3997, %v3997
  %v4100 = vmul.f32 %v3998, %v3998
  %v4101 = vmul.f32 %v3999, %v3999
  %v4102 = vmul.f32 %v4000, %v4000
  %v4103 = vmul.f32 %v4001, %v4001
  %v4104 = vmul.f32 %v4002, %v4002
  %v4105 = vmul.f32 %v4003, %v4003
  %v4106 = vmul.f32 %v4004, %v4004
  %v4107 = vmul.f32 %v4005, %v4005
  %v4108 = vmul.f32 %v4006, %v4006
  %v4109 = vmul.f32 %v4007, %v4007
  %v4110 = vmul.f32 %v4008, %v4008
  %v4111 = vmul.f32 %v4009, %v4009
  %v4112 = vmul.f32 %v4010, %v4010
  %v4113 = vmul.f32 %v4011, %v4011
  %v4114 = vmul.f32 %v4012, %v4012
  %v4115 = vmul.f32 %v4013, %v4013
  %v4116 = vmul.f32 %v4014, %v4014
  %v4117 = vmul.f32 %v4015, %v4015
  %v4118 = vmul.f32 %v4016, %v4016
  %v4119 = vmul.f32 %v4017, %v4017
  %v4120 = vmul.f32 %v4018, %v4018
  %v4121 = vmul.f32 %v4019, %v4019
  %v4122 = vmul.f32 %v4020, %v4020
  %v4123 = vmul.f32 %v4021, %v4021
  %v4124 = vmul.f32 %v4022, %v4022
  %v4125 = vmul.f32 %v4023, %v4023
  %v4126 = vmul.f32 %v4024, %v4024
  %v4127 = vmul.f32 %v4025, %v4025
  %v4128 = vmul.f32 %v4026, %v4026
  %v4129 = vmul.f32 %v4027, %v4027
  %v4130 = vmul.f32 %v4028, %v4028
  %v4131 = vmul.f32 %v4029, %v4029
  %v4132 = vmul.f32 %v4030, %v4030
  %v4133 = vmul.f32 %v4031, %v4031
  %v4134 = vmul.f32 %v4032, %v4032
  %v4135 = vmul.f32 %v4033, %v4033
  %v4136 = vmul.f32 %v4034, %v4034
  %v4137 = vmul.f32 %v4035, %v4035
  %v4138 = vmul.f32 %v4036, %v4036
  %v4139 = vmul.f32 %v4037, %v4037
  %v4140 = vmul.f32 %v4038, %v4038
  %v4141 = vmul.f32 %v4039, %v4039
  %v4142 = vmul.f32 %v4040, %v4040
  %v4143 = vmul.f32 %v4041, %v4041
  %v4144 = vmul.f32 %v4042, %v4042
  %v4145 = vmul.f32 %v4043, %v4043
  %v4146 = vmul.f32 %v4044, %v4044
  %v4147 = vmul.f32 %v4045, %v4045
  %v4148 = vmul.f32 %v4046, %v4046
  %v4149 = vmul.f32 %v4047, %v4047
  %v4150 = vmul.f32 %v4048, %v4048
  %v4151 = vmul.f32 %v4049, %v4049
  %v4152 = vmul.f32 %v4050, %v4050
  %v4153 = vmul.f32 %v4051, %v4051
  %v4154 = vmul.f32 %v4052, %v4052
  %v4155 = vmul.f32 %v4053, %v4053
  %v4156 = vmul.f32 %v4054, %v4054
  %v4157 = vmul.f32 %v4055, %v4055
  %v4158 = vmul.f32 %v4056, %v4056
  %v4159 = vmul.f32 %v4057, %v4057
  %v4160 = vmul.f32 %v4058, %v4058
  %v4161 = vmul.f32 %v4059, %v4059
  %v4162 = vmul.f32 %v4060, %v4060
  %v4163 = vmul.f32 %v4061, %v4061
  %v4164 = vmul.f32 %v4062, %v4062
  %v4165 = vsel %vm99, %v4063, 0.0
  %v4166 = vsel %vm99, %v4064, 0.0
  %v4167 = vadd.f32 %v4165, %v4166
  %v4168 = vsel %vm99, %v4065, 0.0
  %v4169 = vadd.f32 %v4167, %v4168
  %v4170 = vsel %vm99, %v4066, 0.0
  %v4171 = vadd.f32 %v4169, %v4170
  %v4172 = vsel %vm99, %v4067, 0.0
  %v4173 = vadd.f32 %v4171, %v4172
  %v4174 = vsel %vm99, %v4068, 0.0
  %v4175 = vadd.f32 %v4173, %v4174
  %v4176 = vsel %vm99, %v4069, 0.0
  %v4177 = vadd.f32 %v4175, %v4176
  %v4178 = vsel %vm99, %v4070, 0.0
  %v4179 = vadd.f32 %v4177, %v4178
  %v4180 = vsel %vm99, %v4071, 0.0
  %v4181 = vadd.f32 %v4179, %v4180
  %v4182 = vsel %vm99, %v4072, 0.0
  %v4183 = vadd.f32 %v4181, %v4182
  %v4184 = vsel %vm99, %v4073, 0.0
  %v4185 = vadd.f32 %v4183, %v4184
  %v4186 = vsel %vm99, %v4074, 0.0
  %v4187 = vadd.f32 %v4185, %v4186
  %v4188 = vsel %vm99, %v4075, 0.0
  %v4189 = vadd.f32 %v4187, %v4188
  %v4190 = vsel %vm99, %v4076, 0.0
  %v4191 = vadd.f32 %v4189, %v4190
  %v4192 = vsel %vm99, %v4077, 0.0
  %v4193 = vadd.f32 %v4191, %v4192
  %v4194 = vsel %vm99, %v4078, 0.0
  %v4195 = vadd.f32 %v4193, %v4194
  %v4196 = vsel %vm99, %v4079, 0.0
  %v4197 = vadd.f32 %v4195, %v4196
  %v4198 = vsel %vm99, %v4080, 0.0
  %v4199 = vadd.f32 %v4197, %v4198
  %v4200 = vsel %vm99, %v4081, 0.0
  %v4201 = vadd.f32 %v4199, %v4200
  %v4202 = vsel %vm99, %v4082, 0.0
  %v4203 = vadd.f32 %v4201, %v4202
  %v4204 = vsel %vm99, %v4083, 0.0
  %v4205 = vadd.f32 %v4203, %v4204
  %v4206 = vsel %vm99, %v4084, 0.0
  %v4207 = vadd.f32 %v4205, %v4206
  %v4208 = vsel %vm99, %v4085, 0.0
  %v4209 = vadd.f32 %v4207, %v4208
  %v4210 = vsel %vm99, %v4086, 0.0
  %v4211 = vadd.f32 %v4209, %v4210
  %v4212 = vsel %vm99, %v4087, 0.0
  %v4213 = vadd.f32 %v4211, %v4212
  %v4214 = vsel %vm99, %v4088, 0.0
  %v4215 = vadd.f32 %v4213, %v4214
  %v4216 = vsel %vm99, %v4089, 0.0
  %v4217 = vadd.f32 %v4215, %v4216
  %v4218 = vsel %vm99, %v4090, 0.0
  %v4219 = vadd.f32 %v4217, %v4218
  %v4220 = vsel %vm99, %v4091, 0.0
  %v4221 = vadd.f32 %v4219, %v4220
  %v4222 = vsel %vm99, %v4092, 0.0
  %v4223 = vadd.f32 %v4221, %v4222
  %v4224 = vsel %vm99, %v4093, 0.0
  %v4225 = vadd.f32 %v4223, %v4224
  %v4226 = vsel %vm99, %v4094, 0.0
  %v4227 = vadd.f32 %v4225, %v4226
  %v4228 = vsel %vm99, %v4095, 0.0
  %v4229 = vadd.f32 %v4227, %v4228
  %v4230 = vsel %vm99, %v4096, 0.0
  %v4231 = vadd.f32 %v4229, %v4230
  %v4232 = vsel %vm99, %v4097, 0.0
  %v4233 = vadd.f32 %v4231, %v4232
  %v4234 = vsel %vm99, %v4098, 0.0
  %v4235 = vadd.f32 %v4233, %v4234
  %v4236 = vsel %vm99, %v4099, 0.0
  %v4237 = vadd.f32 %v4235, %v4236
  %v4238 = vsel %vm99, %v4100, 0.0
  %v4239 = vadd.f32 %v4237, %v4238
  %v4240 = vsel %vm99, %v4101, 0.0
  %v4241 = vadd.f32 %v4239, %v4240
  %v4242 = vsel %vm99, %v4102, 0.0
  %v4243 = vadd.f32 %v4241, %v4242
  %v4244 = vsel %vm99, %v4103, 0.0
  %v4245 = vadd.f32 %v4243, %v4244
  %v4246 = vsel %vm99, %v4104, 0.0
  %v4247 = vadd.f32 %v4245, %v4246
  %v4248 = vsel %vm99, %v4105, 0.0
  %v4249 = vadd.f32 %v4247, %v4248
  %v4250 = vsel %vm99, %v4106, 0.0
  %v4251 = vadd.f32 %v4249, %v4250
  %v4252 = vsel %vm99, %v4107, 0.0
  %v4253 = vadd.f32 %v4251, %v4252
  %v4254 = vsel %vm99, %v4108, 0.0
  %v4255 = vadd.f32 %v4253, %v4254
  %v4256 = vsel %vm99, %v4109, 0.0
  %v4257 = vadd.f32 %v4255, %v4256
  %v4258 = vsel %vm99, %v4110, 0.0
  %v4259 = vadd.f32 %v4257, %v4258
  %v4260 = vsel %vm99, %v4111, 0.0
  %v4261 = vadd.f32 %v4259, %v4260
  %v4262 = vsel %vm99, %v4112, 0.0
  %v4263 = vadd.f32 %v4261, %v4262
  %v4264 = vsel %vm99, %v4113, 0.0
  %v4265 = vadd.f32 %v4263, %v4264
  %v4266 = vsel %vm99, %v4114, 0.0
  %v4267 = vadd.f32 %v4265, %v4266
  %v4268 = vsel %vm99, %v4115, 0.0
  %v4269 = vadd.f32 %v4267, %v4268
  %v4270 = vsel %vm99, %v4116, 0.0
  %v4271 = vadd.f32 %v4269, %v4270
  %v4272 = vsel %vm99, %v4117, 0.0
  %v4273 = vadd.f32 %v4271, %v4272
  %v4274 = vsel %vm99, %v4118, 0.0
  %v4275 = vadd.f32 %v4273, %v4274
  %v4276 = vsel %vm99, %v4119, 0.0
  %v4277 = vadd.f32 %v4275, %v4276
  %v4278 = vsel %vm99, %v4120, 0.0
  %v4279 = vadd.f32 %v4277, %v4278
  %v4280 = vsel %vm99, %v4121, 0.0
  %v4281 = vadd.f32 %v4279, %v4280
  %v4282 = vsel %vm99, %v4122, 0.0
  %v4283 = vadd.f32 %v4281, %v4282
  %v4284 = vsel %vm99, %v4123, 0.0
  %v4285 = vadd.f32 %v4283, %v4284
  %v4286 = vsel %vm99, %v4124, 0.0
  %v4287 = vadd.f32 %v4285, %v4286
  %v4288 = vsel %vm99, %v4125, 0.0
  %v4289 = vadd.f32 %v4287, %v4288
  %v4290 = vsel %vm99, %v4126, 0.0
  %v4291 = vadd.f32 %v4289, %v4290
  %v4292 = vsel %vm99, %v4127, 0.0
  %v4293 = vadd.f32 %v4291, %v4292
  %v4294 = vsel %vm99, %v4128, 0.0
  %v4295 = vadd.f32 %v4293, %v4294
  %v4296 = vsel %vm99, %v4129, 0.0
  %v4297 = vadd.f32 %v4295, %v4296
  %v4298 = vsel %vm99, %v4130, 0.0
  %v4299 = vadd.f32 %v4297, %v4298
  %v4300 = vsel %vm99, %v4131, 0.0
  %v4301 = vadd.f32 %v4299, %v4300
  %v4302 = vsel %vm99, %v4132, 0.0
  %v4303 = vadd.f32 %v4301, %v4302
  %v4304 = vsel %vm99, %v4133, 0.0
  %v4305 = vadd.f32 %v4303, %v4304
  %v4306 = vsel %vm99, %v4134, 0.0
  %v4307 = vadd.f32 %v4305, %v4306
  %v4308 = vsel %vm99, %v4135, 0.0
  %v4309 = vadd.f32 %v4307, %v4308
  %v4310 = vsel %vm99, %v4136, 0.0
  %v4311 = vadd.f32 %v4309, %v4310
  %v4312 = vsel %vm99, %v4137, 0.0
  %v4313 = vadd.f32 %v4311, %v4312
  %v4314 = vsel %vm99, %v4138, 0.0
  %v4315 = vadd.f32 %v4313, %v4314
  %v4316 = vsel %vm99, %v4139, 0.0
  %v4317 = vadd.f32 %v4315, %v4316
  %v4318 = vsel %vm99, %v4140, 0.0
  %v4319 = vadd.f32 %v4317, %v4318
  %v4320 = vsel %vm99, %v4141, 0.0
  %v4321 = vadd.f32 %v4319, %v4320
  %v4322 = vsel %vm99, %v4142, 0.0
  %v4323 = vadd.f32 %v4321, %v4322
  %v4324 = vsel %vm99, %v4143, 0.0
  %v4325 = vadd.f32 %v4323, %v4324
  %v4326 = vsel %vm99, %v4144, 0.0
  %v4327 = vadd.f32 %v4325, %v4326
  %v4328 = vsel %vm99, %v4145, 0.0
  %v4329 = vadd.f32 %v4327, %v4328
  %v4330 = vsel %vm99, %v4146, 0.0
  %v4331 = vadd.f32 %v4329, %v4330
  %v4332 = vsel %vm99, %v4147, 0.0
  %v4333 = vadd.f32 %v4331, %v4332
  %v4334 = vsel %vm99, %v4148, 0.0
  %v4335 = vadd.f32 %v4333, %v4334
  %v4336 = vsel %vm99, %v4149, 0.0
  %v4337 = vadd.f32 %v4335, %v4336
  %v4338 = vsel %vm99, %v4150, 0.0
  %v4339 = vadd.f32 %v4337, %v4338
  %v4340 = vsel %vm99, %v4151, 0.0
  %v4341 = vadd.f32 %v4339, %v4340
  %v4342 = vsel %vm99, %v4152, 0.0
  %v4343 = vadd.f32 %v4341, %v4342
  %v4344 = vsel %vm99, %v4153, 0.0
  %v4345 = vadd.f32 %v4343, %v4344
  %v4346 = vsel %vm99, %v4154, 0.0
  %v4347 = vadd.f32 %v4345, %v4346
  %v4348 = vsel %vm99, %v4155, 0.0
  %v4349 = vadd.f32 %v4347, %v4348
  %v4350 = vsel %vm99, %v4156, 0.0
  %v4351 = vadd.f32 %v4349, %v4350
  %v4352 = vsel %vm99, %v4157, 0.0
  %v4353 = vadd.f32 %v4351, %v4352
  %v4354 = vsel %vm99, %v4158, 0.0
  %v4355 = vadd.f32 %v4353, %v4354
  %v4356 = vsel %vm99, %v4159, 0.0
  %v4357 = vadd.f32 %v4355, %v4356
  %v4358 = vsel %vm99, %v4160, 0.0
  %v4359 = vadd.f32 %v4357, %v4358
  %v4360 = vsel %vm99, %v4161, 0.0
  %v4361 = vadd.f32 %v4359, %v4360
  %v4362 = vsel %vm99, %v4162, 0.0
  %v4363 = vadd.f32 %v4361, %v4362
  %v4364 = vsel %vm99, %v4163, 0.0
  %v4365 = vadd.f32 %v4363, %v4364
  %v4366 = vsel %vm99, %v4164, 0.0
  %v4367 = vadd.f32 %v4365, %v4366
  %v4368 = vrot.slane %v4367, 4
  %v4369 = vadd.f32 %v4367, %v4368
  %v4370 = vrot.slane %v4369, 2
  %v4371 = vadd.f32 %v4369, %v4370
  %v4372 = vrot.slane %v4371, 1
  %v4373 = vadd.f32 %v4371, %v4372
  %v4374 = vmul.f32 %v4373, %v3857
  %v4375 = vld [vmem:[%s6] sm:$0x1]
  %v4376 = vadd.f32 %v4374, 1e-05
  %v4377 = vrsqrt.pop %v4376
  %v4378 = vmul.f32 %v4375, %v4377
  %v4380 = vlaneseq
  %v4381 = vshrl.u32 %v4380, 7
  %v4382 = vsub.s32 0, %v4381
  %v4383 = vrot.slane %v4378, %v4382
  %v4385 = vmul.f32 %v3859, %v4383
  %v4386 = vmul.f32 %v3860, %v4383
  %v4387 = vmul.f32 %v3861, %v4383
  %v4388 = vmul.f32 %v3862, %v4383
  %v4389 = vmul.f32 %v3863, %v4383
  %v4390 = vmul.f32 %v3864, %v4383
  %v4391 = vmul.f32 %v3865, %v4383
  %v4392 = vmul.f32 %v3866, %v4383
  %v4393 = vmul.f32 %v3867, %v4383
  %v4394 = vmul.f32 %v3868, %v4383
  %v4395 = vmul.f32 %v3869, %v4383
  %v4396 = vmul.f32 %v3870, %v4383
  %v4397 = vmul.f32 %v3871, %v4383
  %v4398 = vmul.f32 %v3872, %v4383
  %v4399 = vmul.f32 %v3873, %v4383
  %v4400 = vmul.f32 %v3874, %v4383
  %v4401 = vmul.f32 %v3875, %v4383
  %v4402 = vmul.f32 %v3876, %v4383
  %v4403 = vmul.f32 %v3877, %v4383
  %v4404 = vmul.f32 %v3878, %v4383
  %v4405 = vmul.f32 %v3879, %v4383
  %v4406 = vmul.f32 %v3880, %v4383
  %v4407 = vmul.f32 %v3881, %v4383
  %v4408 = vmul.f32 %v3882, %v4383
  %v4409 = vmul.f32 %v3883, %v4383
  %v4410 = vmul.f32 %v3884, %v4383
  %v4411 = vmul.f32 %v3885, %v4383
  %v4412 = vmul.f32 %v3886, %v4383
  %v4413 = vmul.f32 %v3887, %v4383
  %v4414 = vmul.f32 %v3888, %v4383
  %v4415 = vmul.f32 %v3889, %v4383
  %v4416 = vmul.f32 %v3890, %v4383
  %v4417 = vmul.f32 %v3891, %v4383
  %v4418 = vmul.f32 %v3892, %v4383
  %v4419 = vmul.f32 %v3893, %v4383
  %v4420 = vmul.f32 %v3894, %v4383
  %v4421 = vmul.f32 %v3895, %v4383
  %v4422 = vmul.f32 %v3896, %v4383
  %v4423 = vmul.f32 %v3897, %v4383
  %v4424 = vmul.f32 %v3898, %v4383
  %v4425 = vmul.f32 %v3899, %v4383
  %v4426 = vmul.f32 %v3900, %v4383
  %v4427 = vmul.f32 %v3901, %v4383
  %v4428 = vmul.f32 %v3902, %v4383
  %v4429 = vmul.f32 %v3903, %v4383
  %v4430 = vmul.f32 %v3904, %v4383
  %v4431 = vmul.f32 %v3905, %v4383
  %v4432 = vmul.f32 %v3906, %v4383
  %v4433 = vmul.f32 %v3907, %v4383
  %v4434 = vmul.f32 %v3908, %v4383
  %v4435 = vmul.f32 %v3909, %v4383
  %v4436 = vmul.f32 %v3910, %v4383
  %v4437 = vmul.f32 %v3911, %v4383
  %v4438 = vmul.f32 %v3912, %v4383
  %v4439 = vmul.f32 %v3913, %v4383
  %v4440 = vmul.f32 %v3914, %v4383
  %v4441 = vmul.f32 %v3915, %v4383
  %v4442 = vmul.f32 %v3916, %v4383
  %v4443 = vmul.f32 %v3917, %v4383
  %v4444 = vmul.f32 %v3918, %v4383
  %v4445 = vmul.f32 %v3919, %v4383
  %v4446 = vmul.f32 %v3920, %v4383
  %v4447 = vmul.f32 %v3921, %v4383
  %v4448 = vmul.f32 %v3922, %v4383
  %v4449 = vmul.f32 %v3923, %v4383
  %v4450 = vmul.f32 %v3924, %v4383
  %v4451 = vmul.f32 %v3925, %v4383
  %v4452 = vmul.f32 %v3926, %v4383
  %v4453 = vmul.f32 %v3927, %v4383
  %v4454 = vmul.f32 %v3928, %v4383
  %v4455 = vmul.f32 %v3929, %v4383
  %v4456 = vmul.f32 %v3930, %v4383
  %v4457 = vmul.f32 %v3931, %v4383
  %v4458 = vmul.f32 %v3932, %v4383
  %v4459 = vmul.f32 %v3933, %v4383
  %v4460 = vmul.f32 %v3934, %v4383
  %v4461 = vmul.f32 %v3935, %v4383
  %v4462 = vmul.f32 %v3936, %v4383
  %v4463 = vmul.f32 %v3937, %v4383
  %v4464 = vmul.f32 %v3938, %v4383
  %v4465 = vmul.f32 %v3939, %v4383
  %v4466 = vmul.f32 %v3940, %v4383
  %v4467 = vmul.f32 %v3941, %v4383
  %v4468 = vmul.f32 %v3942, %v4383
  %v4469 = vmul.f32 %v3943, %v4383
  %v4470 = vmul.f32 %v3944, %v4383
  %v4471 = vmul.f32 %v3945, %v4383
  %v4472 = vmul.f32 %v3946, %v4383
  %v4473 = vmul.f32 %v3947, %v4383
  %v4474 = vmul.f32 %v3948, %v4383
  %v4475 = vmul.f32 %v3949, %v4383
  %v4476 = vmul.f32 %v3950, %v4383
  %v4477 = vmul.f32 %v3951, %v4383
  %v4478 = vmul.f32 %v3952, %v4383
  %v4479 = vmul.f32 %v3953, %v4383
  %v4480 = vmul.f32 %v3954, %v4383
  %v4481 = vmul.f32 %v3955, %v4383
  %v4482 = vmul.f32 %v3956, %v4383
  %v4483 = vmul.f32 %v3957, %v4383
  %v4484 = vmul.f32 %v3958, %v4383
  %v4485 = vmul.f32 %v3959, %v4383
  %v4486 = vmul.f32 %v3960, %v4383
  %v4487 = vld [vmem:[%s7] sm:$0x1]
  %v4489 = vlaneseq
  %v4490 = vshrl.u32 %v4489, 7
  %v4491 = vsub.s32 0, %v4490
  %v4492 = vrot.slane %v4487, %v4491
  %v4494 = vadd.f32 %v4385, %v4492
  %v4495 = vadd.f32 %v4386, %v4492
  %v4496 = vadd.f32 %v4387, %v4492
  %v4497 = vadd.f32 %v4388, %v4492
  %v4498 = vadd.f32 %v4389, %v4492
  %v4499 = vadd.f32 %v4390, %v4492
  %v4500 = vadd.f32 %v4391, %v4492
  %v4501 = vadd.f32 %v4392, %v4492
  %v4502 = vadd.f32 %v4393, %v4492
  %v4503 = vadd.f32 %v4394, %v4492
  %v4504 = vadd.f32 %v4395, %v4492
  %v4505 = vadd.f32 %v4396, %v4492
  %v4506 = vadd.f32 %v4397, %v4492
  %v4507 = vadd.f32 %v4398, %v4492
  %v4508 = vadd.f32 %v4399, %v4492
  %v4509 = vadd.f32 %v4400, %v4492
  %v4510 = vadd.f32 %v4401, %v4492
  %v4511 = vadd.f32 %v4402, %v4492
  %v4512 = vadd.f32 %v4403, %v4492
  %v4513 = vadd.f32 %v4404, %v4492
  %v4514 = vadd.f32 %v4405, %v4492
  %v4515 = vadd.f32 %v4406, %v4492
  %v4516 = vadd.f32 %v4407, %v4492
  %v4517 = vadd.f32 %v4408, %v4492
  %v4518 = vadd.f32 %v4409, %v4492
  %v4519 = vadd.f32 %v4410, %v4492
  %v4520 = vadd.f32 %v4411, %v4492
  %v4521 = vadd.f32 %v4412, %v4492
  %v4522 = vadd.f32 %v4413, %v4492
  %v4523 = vadd.f32 %v4414, %v4492
  %v4524 = vadd.f32 %v4415, %v4492
  %v4525 = vadd.f32 %v4416, %v4492
  %v4526 = vadd.f32 %v4417, %v4492
  %v4527 = vadd.f32 %v4418, %v4492
  %v4528 = vadd.f32 %v4419, %v4492
  %v4529 = vadd.f32 %v4420, %v4492
  %v4530 = vadd.f32 %v4421, %v4492
  %v4531 = vadd.f32 %v4422, %v4492
  %v4532 = vadd.f32 %v4423, %v4492
  %v4533 = vadd.f32 %v4424, %v4492
  %v4534 = vadd.f32 %v4425, %v4492
  %v4535 = vadd.f32 %v4426, %v4492
  %v4536 = vadd.f32 %v4427, %v4492
  %v4537 = vadd.f32 %v4428, %v4492
  %v4538 = vadd.f32 %v4429, %v4492
  %v4539 = vadd.f32 %v4430, %v4492
  %v4540 = vadd.f32 %v4431, %v4492
  %v4541 = vadd.f32 %v4432, %v4492
  %v4542 = vadd.f32 %v4433, %v4492
  %v4543 = vadd.f32 %v4434, %v4492
  %v4544 = vadd.f32 %v4435, %v4492
  %v4545 = vadd.f32 %v4436, %v4492
  %v4546 = vadd.f32 %v4437, %v4492
  %v4547 = vadd.f32 %v4438, %v4492
  %v4548 = vadd.f32 %v4439, %v4492
  %v4549 = vadd.f32 %v4440, %v4492
  %v4550 = vadd.f32 %v4441, %v4492
  %v4551 = vadd.f32 %v4442, %v4492
  %v4552 = vadd.f32 %v4443, %v4492
  %v4553 = vadd.f32 %v4444, %v4492
  %v4554 = vadd.f32 %v4445, %v4492
  %v4555 = vadd.f32 %v4446, %v4492
  %v4556 = vadd.f32 %v4447, %v4492
  %v4557 = vadd.f32 %v4448, %v4492
  %v4558 = vadd.f32 %v4449, %v4492
  %v4559 = vadd.f32 %v4450, %v4492
  %v4560 = vadd.f32 %v4451, %v4492
  %v4561 = vadd.f32 %v4452, %v4492
  %v4562 = vadd.f32 %v4453, %v4492
  %v4563 = vadd.f32 %v4454, %v4492
  %v4564 = vadd.f32 %v4455, %v4492
  %v4565 = vadd.f32 %v4456, %v4492
  %v4566 = vadd.f32 %v4457, %v4492
  %v4567 = vadd.f32 %v4458, %v4492
  %v4568 = vadd.f32 %v4459, %v4492
  %v4569 = vadd.f32 %v4460, %v4492
  %v4570 = vadd.f32 %v4461, %v4492
  %v4571 = vadd.f32 %v4462, %v4492
  %v4572 = vadd.f32 %v4463, %v4492
  %v4573 = vadd.f32 %v4464, %v4492
  %v4574 = vadd.f32 %v4465, %v4492
  %v4575 = vadd.f32 %v4466, %v4492
  %v4576 = vadd.f32 %v4467, %v4492
  %v4577 = vadd.f32 %v4468, %v4492
  %v4578 = vadd.f32 %v4469, %v4492
  %v4579 = vadd.f32 %v4470, %v4492
  %v4580 = vadd.f32 %v4471, %v4492
  %v4581 = vadd.f32 %v4472, %v4492
  %v4582 = vadd.f32 %v4473, %v4492
  %v4583 = vadd.f32 %v4474, %v4492
  %v4584 = vadd.f32 %v4475, %v4492
  %v4585 = vadd.f32 %v4476, %v4492
  %v4586 = vadd.f32 %v4477, %v4492
  %v4587 = vadd.f32 %v4478, %v4492
  %v4588 = vadd.f32 %v4479, %v4492
  %v4589 = vadd.f32 %v4480, %v4492
  %v4590 = vadd.f32 %v4481, %v4492
  %v4591 = vadd.f32 %v4482, %v4492
  %v4592 = vadd.f32 %v4483, %v4492
  %v4593 = vadd.f32 %v4484, %v4492
  %v4594 = vadd.f32 %v4485, %v4492
  %v4595 = vadd.f32 %v4486, %v4492
  %vm4596 = vcmp.ge.f32.partialorder %v4494, 0.0
  %vm4597 = vcmp.ge.f32.partialorder %v4495, 0.0
  %vm4598 = vcmp.ge.f32.partialorder %v4496, 0.0
  %vm4599 = vcmp.ge.f32.partialorder %v4497, 0.0
  %vm4600 = vcmp.ge.f32.partialorder %v4498, 0.0
  %vm4601 = vcmp.ge.f32.partialorder %v4499, 0.0
  %vm4602 = vcmp.ge.f32.partialorder %v4500, 0.0
  %vm4603 = vcmp.ge.f32.partialorder %v4501, 0.0
  %vm4604 = vcmp.ge.f32.partialorder %v4502, 0.0
  %vm4605 = vcmp.ge.f32.partialorder %v4503, 0.0
  %vm4606 = vcmp.ge.f32.partialorder %v4504, 0.0
  %vm4607 = vcmp.ge.f32.partialorder %v4505, 0.0
  %vm4608 = vcmp.ge.f32.partialorder %v4506, 0.0
  %vm4609 = vcmp.ge.f32.partialorder %v4507, 0.0
  %vm4610 = vcmp.ge.f32.partialorder %v4508, 0.0
  %vm4611 = vcmp.ge.f32.partialorder %v4509, 0.0
  %vm4612 = vcmp.ge.f32.partialorder %v4510, 0.0
  %vm4613 = vcmp.ge.f32.partialorder %v4511, 0.0
  %vm4614 = vcmp.ge.f32.partialorder %v4512, 0.0
  %vm4615 = vcmp.ge.f32.partialorder %v4513, 0.0
  %vm4616 = vcmp.ge.f32.partialorder %v4514, 0.0
  %vm4617 = vcmp.ge.f32.partialorder %v4515, 0.0
  %vm4618 = vcmp.ge.f32.partialorder %v4516, 0.0
  %vm4619 = vcmp.ge.f32.partialorder %v4517, 0.0
  %vm4620 = vcmp.ge.f32.partialorder %v4518, 0.0
  %vm4621 = vcmp.ge.f32.partialorder %v4519, 0.0
  %vm4622 = vcmp.ge.f32.partialorder %v4520, 0.0
  %vm4623 = vcmp.ge.f32.partialorder %v4521, 0.0
  %vm4624 = vcmp.ge.f32.partialorder %v4522, 0.0
  %vm4625 = vcmp.ge.f32.partialorder %v4523, 0.0
  %vm4626 = vcmp.ge.f32.partialorder %v4524, 0.0
  %vm4627 = vcmp.ge.f32.partialorder %v4525, 0.0
  %vm4628 = vcmp.ge.f32.partialorder %v4526, 0.0
  %vm4629 = vcmp.ge.f32.partialorder %v4527, 0.0
  %vm4630 = vcmp.ge.f32.partialorder %v4528, 0.0
  %vm4631 = vcmp.ge.f32.partialorder %v4529, 0.0
  %vm4632 = vcmp.ge.f32.partialorder %v4530, 0.0
  %vm4633 = vcmp.ge.f32.partialorder %v4531, 0.0
  %vm4634 = vcmp.ge.f32.partialorder %v4532, 0.0
  %vm4635 = vcmp.ge.f32.partialorder %v4533, 0.0
  %vm4636 = vcmp.ge.f32.partialorder %v4534, 0.0
  %vm4637 = vcmp.ge.f32.partialorder %v4535, 0.0
  %vm4638 = vcmp.ge.f32.partialorder %v4536, 0.0
  %vm4639 = vcmp.ge.f32.partialorder %v4537, 0.0
  %vm4640 = vcmp.ge.f32.partialorder %v4538, 0.0
  %vm4641 = vcmp.ge.f32.partialorder %v4539, 0.0
  %vm4642 = vcmp.ge.f32.partialorder %v4540, 0.0
  %vm4643 = vcmp.ge.f32.partialorder %v4541, 0.0
  %vm4644 = vcmp.ge.f32.partialorder %v4542, 0.0
  %vm4645 = vcmp.ge.f32.partialorder %v4543, 0.0
  %vm4646 = vcmp.ge.f32.partialorder %v4544, 0.0
  %vm4647 = vcmp.ge.f32.partialorder %v4545, 0.0
  %vm4648 = vcmp.ge.f32.partialorder %v4546, 0.0
  %vm4649 = vcmp.ge.f32.partialorder %v4547, 0.0
  %vm4650 = vcmp.ge.f32.partialorder %v4548, 0.0
  %vm4651 = vcmp.ge.f32.partialorder %v4549, 0.0
  %vm4652 = vcmp.ge.f32.partialorder %v4550, 0.0
  %vm4653 = vcmp.ge.f32.partialorder %v4551, 0.0
  %vm4654 = vcmp.ge.f32.partialorder %v4552, 0.0
  %vm4655 = vcmp.ge.f32.partialorder %v4553, 0.0
  %vm4656 = vcmp.ge.f32.partialorder %v4554, 0.0
  %vm4657 = vcmp.ge.f32.partialorder %v4555, 0.0
  %vm4658 = vcmp.ge.f32.partialorder %v4556, 0.0
  %vm4659 = vcmp.ge.f32.partialorder %v4557, 0.0
  %vm4660 = vcmp.ge.f32.partialorder %v4558, 0.0
  %vm4661 = vcmp.ge.f32.partialorder %v4559, 0.0
  %vm4662 = vcmp.ge.f32.partialorder %v4560, 0.0
  %vm4663 = vcmp.ge.f32.partialorder %v4561, 0.0
  %vm4664 = vcmp.ge.f32.partialorder %v4562, 0.0
  %vm4665 = vcmp.ge.f32.partialorder %v4563, 0.0
  %vm4666 = vcmp.ge.f32.partialorder %v4564, 0.0
  %vm4667 = vcmp.ge.f32.partialorder %v4565, 0.0
  %vm4668 = vcmp.ge.f32.partialorder %v4566, 0.0
  %vm4669 = vcmp.ge.f32.partialorder %v4567, 0.0
  %vm4670 = vcmp.ge.f32.partialorder %v4568, 0.0
  %vm4671 = vcmp.ge.f32.partialorder %v4569, 0.0
  %vm4672 = vcmp.ge.f32.partialorder %v4570, 0.0
  %vm4673 = vcmp.ge.f32.partialorder %v4571, 0.0
  %vm4674 = vcmp.ge.f32.partialorder %v4572, 0.0
  %vm4675 = vcmp.ge.f32.partialorder %v4573, 0.0
  %vm4676 = vcmp.ge.f32.partialorder %v4574, 0.0
  %vm4677 = vcmp.ge.f32.partialorder %v4575, 0.0
  %vm4678 = vcmp.ge.f32.partialorder %v4576, 0.0
  %vm4679 = vcmp.ge.f32.partialorder %v4577, 0.0
  %vm4680 = vcmp.ge.f32.partialorder %v4578, 0.0
  %vm4681 = vcmp.ge.f32.partialorder %v4579, 0.0
  %vm4682 = vcmp.ge.f32.partialorder %v4580, 0.0
  %vm4683 = vcmp.ge.f32.partialorder %v4581, 0.0
  %vm4684 = vcmp.ge.f32.partialorder %v4582, 0.0
  %vm4685 = vcmp.ge.f32.partialorder %v4583, 0.0
  %vm4686 = vcmp.ge.f32.partialorder %v4584, 0.0
  %vm4687 = vcmp.ge.f32.partialorder %v4585, 0.0
  %vm4688 = vcmp.ge.f32.partialorder %v4586, 0.0
  %vm4689 = vcmp.ge.f32.partialorder %v4587, 0.0
  %vm4690 = vcmp.ge.f32.partialorder %v4588, 0.0
  %vm4691 = vcmp.ge.f32.partialorder %v4589, 0.0
  %vm4692 = vcmp.ge.f32.partialorder %v4590, 0.0
  %vm4693 = vcmp.ge.f32.partialorder %v4591, 0.0
  %vm4694 = vcmp.ge.f32.partialorder %v4592, 0.0
  %vm4695 = vcmp.ge.f32.partialorder %v4593, 0.0
  %vm4696 = vcmp.ge.f32.partialorder %v4594, 0.0
  %vm4697 = vcmp.ge.f32.partialorder %v4595, 0.0
  %v4698 = vmul.f32 %v4494, 0.01
  %v4699 = vmul.f32 %v4495, 0.01
  %v4700 = vmul.f32 %v4496, 0.01
  %v4701 = vmul.f32 %v4497, 0.01
  %v4702 = vmul.f32 %v4498, 0.01
  %v4703 = vmul.f32 %v4499, 0.01
  %v4704 = vmul.f32 %v4500, 0.01
  %v4705 = vmul.f32 %v4501, 0.01
  %v4706 = vmul.f32 %v4502, 0.01
  %v4707 = vmul.f32 %v4503, 0.01
  %v4708 = vmul.f32 %v4504, 0.01
  %v4709 = vmul.f32 %v4505, 0.01
  %v4710 = vmul.f32 %v4506, 0.01
  %v4711 = vmul.f32 %v4507, 0.01
  %v4712 = vmul.f32 %v4508, 0.01
  %v4713 = vmul.f32 %v4509, 0.01
  %v4714 = vmul.f32 %v4510, 0.01
  %v4715 = vmul.f32 %v4511, 0.01
  %v4716 = vmul.f32 %v4512, 0.01
  %v4717 = vmul.f32 %v4513, 0.01
  %v4718 = vmul.f32 %v4514, 0.01
  %v4719 = vmul.f32 %v4515, 0.01
  %v4720 = vmul.f32 %v4516, 0.01
  %v4721 = vmul.f32 %v4517, 0.01
  %v4722 = vmul.f32 %v4518, 0.01
  %v4723 = vmul.f32 %v4519, 0.01
  %v4724 = vmul.f32 %v4520, 0.01
  %v4725 = vmul.f32 %v4521, 0.01
  %v4726 = vmul.f32 %v4522, 0.01
  %v4727 = vmul.f32 %v4523, 0.01
  %v4728 = vmul.f32 %v4524, 0.01
  %v4729 = vmul.f32 %v4525, 0.01
  %v4730 = vmul.f32 %v4526, 0.01
  %v4731 = vmul.f32 %v4527, 0.01
  %v4732 = vmul.f32 %v4528, 0.01
  %v4733 = vmul.f32 %v4529, 0.01
  %v4734 = vmul.f32 %v4530, 0.01
  %v4735 = vmul.f32 %v4531, 0.01
  %v4736 = vmul.f32 %v4532, 0.01
  %v4737 = vmul.f32 %v4533, 0.01
  %v4738 = vmul.f32 %v4534, 0.01
  %v4739 = vmul.f32 %v4535, 0.01
  %v4740 = vmul.f32 %v4536, 0.01
  %v4741 = vmul.f32 %v4537, 0.01
  %v4742 = vmul.f32 %v4538, 0.01
  %v4743 = vmul.f32 %v4539, 0.01
  %v4744 = vmul.f32 %v4540, 0.01
  %v4745 = vmul.f32 %v4541, 0.01
  %v4746 = vmul.f32 %v4542, 0.01
  %v4747 = vmul.f32 %v4543, 0.01
  %v4748 = vmul.f32 %v4544, 0.01
  %v4749 = vmul.f32 %v4545, 0.01
  %v4750 = vmul.f32 %v4546, 0.01
  %v4751 = vmul.f32 %v4547, 0.01
  %v4752 = vmul.f32 %v4548, 0.01
  %v4753 = vmul.f32 %v4549, 0.01
  %v4754 = vmul.f32 %v4550, 0.01
  %v4755 = vmul.f32 %v4551, 0.01
  %v4756 = vmul.f32 %v4552, 0.01
  %v4757 = vmul.f32 %v4553, 0.01
  %v4758 = vmul.f32 %v4554, 0.01
  %v4759 = vmul.f32 %v4555, 0.01
  %v4760 = vmul.f32 %v4556, 0.01
  %v4761 = vmul.f32 %v4557, 0.01
  %v4762 = vmul.f32 %v4558, 0.01
  %v4763 = vmul.f32 %v4559, 0.01
  %v4764 = vmul.f32 %v4560, 0.01
  %v4765 = vmul.f32 %v4561, 0.01
  %v4766 = vmul.f32 %v4562, 0.01
  %v4767 = vmul.f32 %v4563, 0.01
  %v4768 = vmul.f32 %v4564, 0.01
  %v4769 = vmul.f32 %v4565, 0.01
  %v4770 = vmul.f32 %v4566, 0.01
  %v4771 = vmul.f32 %v4567, 0.01
  %v4772 = vmul.f32 %v4568, 0.01
  %v4773 = vmul.f32 %v4569, 0.01
  %v4774 = vmul.f32 %v4570, 0.01
  %v4775 = vmul.f32 %v4571, 0.01
  %v4776 = vmul.f32 %v4572, 0.01
  %v4777 = vmul.f32 %v4573, 0.01
  %v4778 = vmul.f32 %v4574, 0.01
  %v4779 = vmul.f32 %v4575, 0.01
  %v4780 = vmul.f32 %v4576, 0.01
  %v4781 = vmul.f32 %v4577, 0.01
  %v4782 = vmul.f32 %v4578, 0.01
  %v4783 = vmul.f32 %v4579, 0.01
  %v4784 = vmul.f32 %v4580, 0.01
  %v4785 = vmul.f32 %v4581, 0.01
  %v4786 = vmul.f32 %v4582, 0.01
  %v4787 = vmul.f32 %v4583, 0.01
  %v4788 = vmul.f32 %v4584, 0.01
  %v4789 = vmul.f32 %v4585, 0.01
  %v4790 = vmul.f32 %v4586, 0.01
  %v4791 = vmul.f32 %v4587, 0.01
  %v4792 = vmul.f32 %v4588, 0.01
  %v4793 = vmul.f32 %v4589, 0.01
  %v4794 = vmul.f32 %v4590, 0.01
  %v4795 = vmul.f32 %v4591, 0.01
  %v4796 = vmul.f32 %v4592, 0.01
  %v4797 = vmul.f32 %v4593, 0.01
  %v4798 = vmul.f32 %v4594, 0.01
  %v4799 = vmul.f32 %v4595, 0.01
  %v4800 = vsel %vm4596, %v4494, %v4698
  %v4801 = vsel %vm4597, %v4495, %v4699
  %v4802 = vsel %vm4598, %v4496, %v4700
  %v4803 = vsel %vm4599, %v4497, %v4701
  %v4804 = vsel %vm4600, %v4498, %v4702
  %v4805 = vsel %vm4601, %v4499, %v4703
  %v4806 = vsel %vm4602, %v4500, %v4704
  %v4807 = vsel %vm4603, %v4501, %v4705
  %v4808 = vsel %vm4604, %v4502, %v4706
  %v4809 = vsel %vm4605, %v4503, %v4707
  %v4810 = vsel %vm4606, %v4504, %v4708
  %v4811 = vsel %vm4607, %v4505, %v4709
  %v4812 = vsel %vm4608, %v4506, %v4710
  %v4813 = vsel %vm4609, %v4507, %v4711
  %v4814 = vsel %vm4610, %v4508, %v4712
  %v4815 = vsel %vm4611, %v4509, %v4713
  %v4816 = vsel %vm4612, %v4510, %v4714
  %v4817 = vsel %vm4613, %v4511, %v4715
  %v4818 = vsel %vm4614, %v4512, %v4716
  %v4819 = vsel %vm4615, %v4513, %v4717
  %v4820 = vsel %vm4616, %v4514, %v4718
  %v4821 = vsel %vm4617, %v4515, %v4719
  %v4822 = vsel %vm4618, %v4516, %v4720
  %v4823 = vsel %vm4619, %v4517, %v4721
  %v4824 = vsel %vm4620, %v4518, %v4722
  %v4825 = vsel %vm4621, %v4519, %v4723
  %v4826 = vsel %vm4622, %v4520, %v4724
  %v4827 = vsel %vm4623, %v4521, %v4725
  %v4828 = vsel %vm4624, %v4522, %v4726
  %v4829 = vsel %vm4625, %v4523, %v4727
  %v4830 = vsel %vm4626, %v4524, %v4728
  %v4831 = vsel %vm4627, %v4525, %v4729
  %v4832 = vsel %vm4628, %v4526, %v4730
  %v4833 = vsel %vm4629, %v4527, %v4731
  %v4834 = vsel %vm4630, %v4528, %v4732
  %v4835 = vsel %vm4631, %v4529, %v4733
  %v4836 = vsel %vm4632, %v4530, %v4734
  %v4837 = vsel %vm4633, %v4531, %v4735
  %v4838 = vsel %vm4634, %v4532, %v4736
  %v4839 = vsel %vm4635, %v4533, %v4737
  %v4840 = vsel %vm4636, %v4534, %v4738
  %v4841 = vsel %vm4637, %v4535, %v4739
  %v4842 = vsel %vm4638, %v4536, %v4740
  %v4843 = vsel %vm4639, %v4537, %v4741
  %v4844 = vsel %vm4640, %v4538, %v4742
  %v4845 = vsel %vm4641, %v4539, %v4743
  %v4846 = vsel %vm4642, %v4540, %v4744
  %v4847 = vsel %vm4643, %v4541, %v4745
  %v4848 = vsel %vm4644, %v4542, %v4746
  %v4849 = vsel %vm4645, %v4543, %v4747
  %v4850 = vsel %vm4646, %v4544, %v4748
  %v4851 = vsel %vm4647, %v4545, %v4749
  %v4852 = vsel %vm4648, %v4546, %v4750
  %v4853 = vsel %vm4649, %v4547, %v4751
  %v4854 = vsel %vm4650, %v4548, %v4752
  %v4855 = vsel %vm4651, %v4549, %v4753
  %v4856 = vsel %vm4652, %v4550, %v4754
  %v4857 = vsel %vm4653, %v4551, %v4755
  %v4858 = vsel %vm4654, %v4552, %v4756
  %v4859 = vsel %vm4655, %v4553, %v4757
  %v4860 = vsel %vm4656, %v4554, %v4758
  %v4861 = vsel %vm4657, %v4555, %v4759
  %v4862 = vsel %vm4658, %v4556, %v4760
  %v4863 = vsel %vm4659, %v4557, %v4761
  %v4864 = vsel %vm4660, %v4558, %v4762
  %v4865 = vsel %vm4661, %v4559, %v4763
  %v4866 = vsel %vm4662, %v4560, %v4764
  %v4867 = vsel %vm4663, %v4561, %v4765
  %v4868 = vsel %vm4664, %v4562, %v4766
  %v4869 = vsel %vm4665, %v4563, %v4767
  %v4870 = vsel %vm4666, %v4564, %v4768
  %v4871 = vsel %vm4667, %v4565, %v4769
  %v4872 = vsel %vm4668, %v4566, %v4770
  %v4873 = vsel %vm4669, %v4567, %v4771
  %v4874 = vsel %vm4670, %v4568, %v4772
  %v4875 = vsel %vm4671, %v4569, %v4773
  %v4876 = vsel %vm4672, %v4570, %v4774
  %v4877 = vsel %vm4673, %v4571, %v4775
  %v4878 = vsel %vm4674, %v4572, %v4776
  %v4879 = vsel %vm4675, %v4573, %v4777
  %v4880 = vsel %vm4676, %v4574, %v4778
  %v4881 = vsel %vm4677, %v4575, %v4779
  %v4882 = vsel %vm4678, %v4576, %v4780
  %v4883 = vsel %vm4679, %v4577, %v4781
  %v4884 = vsel %vm4680, %v4578, %v4782
  %v4885 = vsel %vm4681, %v4579, %v4783
  %v4886 = vsel %vm4682, %v4580, %v4784
  %v4887 = vsel %vm4683, %v4581, %v4785
  %v4888 = vsel %vm4684, %v4582, %v4786
  %v4889 = vsel %vm4685, %v4583, %v4787
  %v4890 = vsel %vm4686, %v4584, %v4788
  %v4891 = vsel %vm4687, %v4585, %v4789
  %v4892 = vsel %vm4688, %v4586, %v4790
  %v4893 = vsel %vm4689, %v4587, %v4791
  %v4894 = vsel %vm4690, %v4588, %v4792
  %v4895 = vsel %vm4691, %v4589, %v4793
  %v4896 = vsel %vm4692, %v4590, %v4794
  %v4897 = vsel %vm4693, %v4591, %v4795
  %v4898 = vsel %vm4694, %v4592, %v4796
  %v4899 = vsel %vm4695, %v4593, %v4797
  %v4900 = vsel %vm4696, %v4594, %v4798
  %v4901 = vsel %vm4697, %v4595, %v4799
  %v4902 = vld [vmem:[%s4] sm:$0xf]
  %v4904 = vsel %vm99, %v4800, 0
  %v4907 = vsel %vm99, %v4801, 0
  %v4910 = vsel %vm99, %v4802, 0
  %v4913 = vsel %vm99, %v4803, 0
  %v4916 = vsel %vm99, %v4804, 0
  %v4919 = vsel %vm99, %v4805, 0
  %v4922 = vsel %vm99, %v4806, 0
  %v4925 = vsel %vm99, %v4807, 0
  %v4928 = vsel %vm99, %v4808, 0
  %v4931 = vsel %vm99, %v4809, 0
  %v4934 = vsel %vm99, %v4810, 0
  %v4937 = vsel %vm99, %v4811, 0
  %v4940 = vsel %vm99, %v4812, 0
  %v4943 = vsel %vm99, %v4813, 0
  %v4946 = vsel %vm99, %v4814, 0
  %v4949 = vsel %vm99, %v4815, 0
  %v4952 = vsel %vm99, %v4816, 0
  %v4955 = vsel %vm99, %v4817, 0
  %v4958 = vsel %vm99, %v4818, 0
  %v4961 = vsel %vm99, %v4819, 0
  %v4964 = vsel %vm99, %v4820, 0
  %v4967 = vsel %vm99, %v4821, 0
  %v4970 = vsel %vm99, %v4822, 0
  %v4973 = vsel %vm99, %v4823, 0
  %v4976 = vsel %vm99, %v4824, 0
  %v4979 = vsel %vm99, %v4825, 0
  %v4982 = vsel %vm99, %v4826, 0
  %v4985 = vsel %vm99, %v4827, 0
  %v4988 = vsel %vm99, %v4828, 0
  %v4991 = vsel %vm99, %v4829, 0
  %v4994 = vsel %vm99, %v4830, 0
  %v4997 = vsel %vm99, %v4831, 0
  %v5000 = vsel %vm99, %v4832, 0
  %v5003 = vsel %vm99, %v4833, 0
  %v5006 = vsel %vm99, %v4834, 0
  %v5009 = vsel %vm99, %v4835, 0
  %v5012 = vsel %vm99, %v4836, 0
  %v5015 = vsel %vm99, %v4837, 0
  %v5018 = vsel %vm99, %v4838, 0
  %v5021 = vsel %vm99, %v4839, 0
  %v5024 = vsel %vm99, %v4840, 0
  %v5027 = vsel %vm99, %v4841, 0
  %v5030 = vsel %vm99, %v4842, 0
  %v5033 = vsel %vm99, %v4843, 0
  %v5036 = vsel %vm99, %v4844, 0
  %v5039 = vsel %vm99, %v4845, 0
  %v5042 = vsel %vm99, %v4846, 0
  %v5045 = vsel %vm99, %v4847, 0
  %v5048 = vsel %vm99, %v4848, 0
  %v5051 = vsel %vm99, %v4849, 0
  %v5054 = vsel %vm99, %v4850, 0
  %v5057 = vsel %vm99, %v4851, 0
  %v5060 = vsel %vm99, %v4852, 0
  %v5063 = vsel %vm99, %v4853, 0
  %v5066 = vsel %vm99, %v4854, 0
  %v5069 = vsel %vm99, %v4855, 0
  %v5072 = vsel %vm99, %v4856, 0
  %v5075 = vsel %vm99, %v4857, 0
  %v5078 = vsel %vm99, %v4858, 0
  %v5081 = vsel %vm99, %v4859, 0
  %v5084 = vsel %vm99, %v4860, 0
  %v5087 = vsel %vm99, %v4861, 0
  %v5090 = vsel %vm99, %v4862, 0
  %v5093 = vsel %vm99, %v4863, 0
  %v5096 = vsel %vm99, %v4864, 0
  %v5099 = vsel %vm99, %v4865, 0
  %v5102 = vsel %vm99, %v4866, 0
  %v5105 = vsel %vm99, %v4867, 0
  %v5108 = vsel %vm99, %v4868, 0
  %v5111 = vsel %vm99, %v4869, 0
  %v5114 = vsel %vm99, %v4870, 0
  %v5117 = vsel %vm99, %v4871, 0
  %v5120 = vsel %vm99, %v4872, 0
  %v5123 = vsel %vm99, %v4873, 0
  %v5126 = vsel %vm99, %v4874, 0
  %v5129 = vsel %vm99, %v4875, 0
  %v5132 = vsel %vm99, %v4876, 0
  %v5135 = vsel %vm99, %v4877, 0
  %v5138 = vsel %vm99, %v4878, 0
  %v5141 = vsel %vm99, %v4879, 0
  %v5144 = vsel %vm99, %v4880, 0
  %v5147 = vsel %vm99, %v4881, 0
  %v5150 = vsel %vm99, %v4882, 0
  %v5153 = vsel %vm99, %v4883, 0
  %v5156 = vsel %vm99, %v4884, 0
  %v5159 = vsel %vm99, %v4885, 0
  %v5162 = vsel %vm99, %v4886, 0
  %v5165 = vsel %vm99, %v4887, 0
  %v5168 = vsel %vm99, %v4888, 0
  %v5171 = vsel %vm99, %v4889, 0
  %v5174 = vsel %vm99, %v4890, 0
  %v5177 = vsel %vm99, %v4891, 0
  %v5180 = vsel %vm99, %v4892, 0
  %v5183 = vsel %vm99, %v4893, 0
  %v5186 = vsel %vm99, %v4894, 0
  %v5189 = vsel %vm99, %v4895, 0
  %v5192 = vsel %vm99, %v4896, 0
  %v5195 = vsel %vm99, %v4897, 0
  %v5198 = vsel %vm99, %v4898, 0
  %v5201 = vsel %vm99, %v4899, 0
  %v5204 = vsel %vm99, %v4900, 0
  %v5207 = vsel %vm99, %v4901, 0
  %v5210 = vsel %vm395, %v4902, 0
  %5212 = vmatprep.subr.mxu0 0.0
  %5213 = vmatpush1.msra.mxu0 0.0
  %5214 = vmatprep.subr.mxu0 0.0
  %5215 = vmatpush1.msra.mxu0 0.0
  %5216 = vmatprep.subr.mxu0 0.0
  %5217 = vmatpush1.msra.mxu0 0.0
  %5218 = vmatprep.subr.mxu0 0.0
  %5219 = vmatpush1.msra.mxu0 0.0
  %5220 = vmatprep.subr.mxu0 0.0
  %5221 = vmatpush1.msra.mxu0 0.0
  %5222 = vmatprep.subr.mxu0 0.0
  %5223 = vmatpush1.msra.mxu0 0.0
  %5224 = vmatprep.subr.mxu0 0.0
  %5225 = vmatpush1.msra.mxu0 0.0
  %5226 = vmatprep.subr.mxu0 0.0
  %5227 = vmatpush1.msra.mxu0 0.0
  %5228 = vmatprep.subr.mxu0 0.0
  %5229 = vmatpush1.msra.mxu0 0.0
  %5230 = vmatprep.subr.mxu0 0.0
  %5231 = vmatpush1.msra.mxu0 0.0
  %5232 = vmatprep.subr.mxu0 0.0
  %5233 = vmatpush1.msra.mxu0 0.0
  %5234 = vmatprep.subr.mxu0 0.0
  %5235 = vmatpush1.msra.mxu0 0.0
  %5236 = vmatprep.subr.mxu0 0.0
  %5237 = vmatpush1.msra.mxu0 0.0
  %5238 = vmatprep.subr.mxu0 0.0
  %5239 = vmatpush1.msra.mxu0 0.0
  %5240 = vmatprep.subr.mxu0 0.0
  %5241 = vmatpush1.msra.mxu0 0.0
  %5242 = vmatprep.subr.mxu0 0.0
  %5243 = vmatpush1.msra.mxu0 %v5210
  %5244 = vmatprep.subr.mxu0 0.0
  %5245 = vmatpush2.msra.mxu0 0.0
  %5246 = vmatprep.subr.mxu0 0.0
  %5247 = vmatpush2.msra.mxu0 0.0
  %5248 = vmatprep.subr.mxu0 0.0
  %5249 = vmatpush2.msra.mxu0 0.0
  %5250 = vmatprep.subr.mxu0 0.0
  %5251 = vmatpush2.msra.mxu0 0.0
  %5252 = vmatprep.subr.mxu0 0.0
  %5253 = vmatpush2.msra.mxu0 0.0
  %5254 = vmatprep.subr.mxu0 0.0
  %5255 = vmatpush2.msra.mxu0 0.0
  %5256 = vmatprep.subr.mxu0 0.0
  %5257 = vmatpush2.msra.mxu0 0.0
  %5258 = vmatprep.subr.mxu0 0.0
  %5259 = vmatpush2.msra.mxu0 0.0
  %5260 = vmatprep.subr.mxu0 0.0
  %5261 = vmatpush2.msra.mxu0 0.0
  %5262 = vmatprep.subr.mxu0 0.0
  %5263 = vmatpush2.msra.mxu0 0.0
  %5264 = vmatprep.subr.mxu0 0.0
  %5265 = vmatpush2.msra.mxu0 0.0
  %5266 = vmatprep.subr.mxu0 0.0
  %5267 = vmatpush2.msra.mxu0 0.0
  %5268 = vmatprep.subr.mxu0 0.0
  %5269 = vmatpush2.msra.mxu0 0.0
  %5270 = vmatprep.subr.mxu0 0.0
  %5271 = vmatpush2.msra.mxu0 0.0
  %5272 = vmatprep.subr.mxu0 0.0
  %5273 = vmatpush2.msra.mxu0 0.0
  %5274 = vmatprep.subr.mxu0 0.0
  %5275 = vmatpush2.msra.mxu0 0.0
  %5276 = vmatprep.mubr.f32.mxu0 0.0
  %5277 = vmatmul.mubr.f32.gmra.mxu0 %v4904
  %v5278 = vpop.f32.mrf.mxu0
  %v5279 = vpop.f32.mrf.mxu0
  %5280 = vmatprep.mubr.f32.mxu0 0.0
  %5281 = vmatmul.mubr.f32.gmra.mxu0 %v4907
  %v5282 = vpop.f32.mrf.mxu0
  %v5283 = vpop.f32.mrf.mxu0
  %5284 = vmatprep.mubr.f32.mxu0 0.0
  %5285 = vmatmul.mubr.f32.gmra.mxu0 %v4910
  %v5286 = vpop.f32.mrf.mxu0
  %v5287 = vpop.f32.mrf.mxu0
  %5288 = vmatprep.mubr.f32.mxu0 0.0
  %5289 = vmatmul.mubr.f32.gmra.mxu0 %v4913
  %v5290 = vpop.f32.mrf.mxu0
  %v5291 = vadd.f32 0.0, %v5290
  %v5292 = vpop.f32.mrf.mxu0
  %5293 = vmatprep.mubr.f32.mxu0 0.0
  %5294 = vmatmul.mubr.f32.gmra.mxu0 %v4916
  %v5295 = vpop.f32.mrf.mxu0
  %v5296 = vadd.f32 0.0, %v5295
  %v5297 = vpop.f32.mrf.mxu0
  %5298 = vmatprep.mubr.f32.mxu0 0.0
  %5299 = vmatmul.mubr.f32.gmra.mxu0 %v4919
  %v5300 = vpop.f32.mrf.mxu0
  %v5301 = vadd.f32 0.0, %v5300
  %v5302 = vpop.f32.mrf.mxu0
  %5303 = vmatprep.mubr.f32.mxu0 0.0
  %5304 = vmatmul.mubr.f32.gmra.mxu0 %v4922
  %v5305 = vpop.f32.mrf.mxu0
  %v5306 = vadd.f32 0.0, %v5305
  %v5307 = vpop.f32.mrf.mxu0
  %5308 = vmatprep.mubr.f32.mxu0 0.0
  %5309 = vmatmul.mubr.f32.gmra.mxu0 %v4925
  %v5310 = vpop.f32.mrf.mxu0
  %v5311 = vadd.f32 0.0, %v5310
  %v5312 = vpop.f32.mrf.mxu0
  %5313 = vmatprep.mubr.f32.mxu0 0.0
  %5314 = vmatmul.mubr.f32.gmra.mxu0 %v4928
  %v5315 = vpop.f32.mrf.mxu0
  %v5316 = vadd.f32 0.0, %v5315
  %v5317 = vpop.f32.mrf.mxu0
  %5318 = vmatprep.mubr.f32.mxu0 0.0
  %5319 = vmatmul.mubr.f32.gmra.mxu0 %v4931
  %v5320 = vpop.f32.mrf.mxu0
  %v5321 = vadd.f32 0.0, %v5320
  %v5322 = vpop.f32.mrf.mxu0
  %5323 = vmatprep.mubr.f32.mxu0 0.0
  %5324 = vmatmul.mubr.f32.gmra.mxu0 %v4934
  %v5325 = vpop.f32.mrf.mxu0
  %v5326 = vadd.f32 0.0, %v5325
  %v5327 = vpop.f32.mrf.mxu0
  %5328 = vmatprep.mubr.f32.mxu0 0.0
  %5329 = vmatmul.mubr.f32.gmra.mxu0 %v4937
  %v5330 = vpop.f32.mrf.mxu0
  %v5331 = vadd.f32 0.0, %v5330
  %v5332 = vpop.f32.mrf.mxu0
  %5333 = vmatprep.mubr.f32.mxu0 0.0
  %5334 = vmatmul.mubr.f32.gmra.mxu0 %v4940
  %v5335 = vpop.f32.mrf.mxu0
  %v5336 = vadd.f32 0.0, %v5335
  %v5337 = vpop.f32.mrf.mxu0
  %5338 = vmatprep.mubr.f32.mxu0 0.0
  %5339 = vmatmul.mubr.f32.gmra.mxu0 %v4943
  %v5340 = vpop.f32.mrf.mxu0
  %v5341 = vadd.f32 0.0, %v5340
  %v5342 = vpop.f32.mrf.mxu0
  %5343 = vmatprep.mubr.f32.mxu0 0.0
  %5344 = vmatmul.mubr.f32.gmra.mxu0 %v4946
  %v5345 = vpop.f32.mrf.mxu0
  %v5346 = vadd.f32 0.0, %v5345
  %v5347 = vpop.f32.mrf.mxu0
  %5348 = vmatprep.mubr.f32.mxu0 0.0
  %5349 = vmatmul.mubr.f32.gmra.mxu0 %v4949
  %v5350 = vpop.f32.mrf.mxu0
  %v5351 = vadd.f32 0.0, %v5350
  %v5352 = vpop.f32.mrf.mxu0
  %5353 = vmatprep.mubr.f32.mxu0 0.0
  %5354 = vmatmul.mubr.f32.gmra.mxu0 %v4952
  %v5355 = vpop.f32.mrf.mxu0
  %v5356 = vadd.f32 0.0, %v5355
  %v5357 = vpop.f32.mrf.mxu0
  %5358 = vmatprep.mubr.f32.mxu0 0.0
  %5359 = vmatmul.mubr.f32.gmra.mxu0 %v4955
  %v5360 = vpop.f32.mrf.mxu0
  %v5361 = vadd.f32 0.0, %v5360
  %v5362 = vpop.f32.mrf.mxu0
  %5363 = vmatprep.mubr.f32.mxu0 0.0
  %5364 = vmatmul.mubr.f32.gmra.mxu0 %v4958
  %v5365 = vpop.f32.mrf.mxu0
  %v5366 = vadd.f32 0.0, %v5365
  %v5367 = vpop.f32.mrf.mxu0
  %5368 = vmatprep.mubr.f32.mxu0 0.0
  %5369 = vmatmul.mubr.f32.gmra.mxu0 %v4961
  %v5370 = vpop.f32.mrf.mxu0
  %v5371 = vadd.f32 0.0, %v5370
  %v5372 = vpop.f32.mrf.mxu0
  %5373 = vmatprep.mubr.f32.mxu0 0.0
  %5374 = vmatmul.mubr.f32.gmra.mxu0 %v4964
  %v5375 = vpop.f32.mrf.mxu0
  %v5376 = vadd.f32 0.0, %v5375
  %v5377 = vpop.f32.mrf.mxu0
  %5378 = vmatprep.mubr.f32.mxu0 0.0
  %5379 = vmatmul.mubr.f32.gmra.mxu0 %v4967
  %v5380 = vpop.f32.mrf.mxu0
  %v5381 = vadd.f32 0.0, %v5380
  %v5382 = vpop.f32.mrf.mxu0
  %5383 = vmatprep.mubr.f32.mxu0 0.0
  %5384 = vmatmul.mubr.f32.gmra.mxu0 %v4970
  %v5385 = vpop.f32.mrf.mxu0
  %v5386 = vadd.f32 0.0, %v5385
  %v5387 = vpop.f32.mrf.mxu0
  %5388 = vmatprep.mubr.f32.mxu0 0.0
  %5389 = vmatmul.mubr.f32.gmra.mxu0 %v4973
  %v5390 = vpop.f32.mrf.mxu0
  %v5391 = vadd.f32 0.0, %v5390
  %v5392 = vpop.f32.mrf.mxu0
  %5393 = vmatprep.mubr.f32.mxu0 0.0
  %5394 = vmatmul.mubr.f32.gmra.mxu0 %v4976
  %v5395 = vpop.f32.mrf.mxu0
  %v5396 = vadd.f32 0.0, %v5395
  %v5397 = vpop.f32.mrf.mxu0
  %5398 = vmatprep.mubr.f32.mxu0 0.0
  %5399 = vmatmul.mubr.f32.gmra.mxu0 %v4979
  %v5400 = vpop.f32.mrf.mxu0
  %v5401 = vadd.f32 0.0, %v5400
  %v5402 = vpop.f32.mrf.mxu0
  %5403 = vmatprep.mubr.f32.mxu0 0.0
  %5404 = vmatmul.mubr.f32.gmra.mxu0 %v4982
  %v5405 = vpop.f32.mrf.mxu0
  %v5406 = vadd.f32 0.0, %v5405
  %v5407 = vpop.f32.mrf.mxu0
  %5408 = vmatprep.mubr.f32.mxu0 0.0
  %5409 = vmatmul.mubr.f32.gmra.mxu0 %v4985
  %v5410 = vpop.f32.mrf.mxu0
  %v5411 = vadd.f32 0.0, %v5410
  %v5412 = vpop.f32.mrf.mxu0
  %5413 = vmatprep.mubr.f32.mxu0 0.0
  %5414 = vmatmul.mubr.f32.gmra.mxu0 %v4988
  %v5415 = vpop.f32.mrf.mxu0
  %v5416 = vadd.f32 0.0, %v5415
  %v5417 = vpop.f32.mrf.mxu0
  %5418 = vmatprep.mubr.f32.mxu0 0.0
  %5419 = vmatmul.mubr.f32.gmra.mxu0 %v4991
  %v5420 = vpop.f32.mrf.mxu0
  %v5421 = vadd.f32 0.0, %v5420
  %v5422 = vpop.f32.mrf.mxu0
  %5423 = vmatprep.mubr.f32.mxu0 0.0
  %5424 = vmatmul.mubr.f32.gmra.mxu0 %v4994
  %v5425 = vpop.f32.mrf.mxu0
  %v5426 = vadd.f32 0.0, %v5425
  %v5427 = vpop.f32.mrf.mxu0
  %5428 = vmatprep.mubr.f32.mxu0 0.0
  %5429 = vmatmul.mubr.f32.gmra.mxu0 %v4997
  %v5430 = vpop.f32.mrf.mxu0
  %v5431 = vadd.f32 0.0, %v5430
  %v5432 = vpop.f32.mrf.mxu0
  %5433 = vmatprep.mubr.f32.mxu0 0.0
  %5434 = vmatmul.mubr.f32.gmra.mxu0 %v5000
  %v5435 = vpop.f32.mrf.mxu0
  %v5436 = vadd.f32 0.0, %v5435
  %v5437 = vpop.f32.mrf.mxu0
  %5438 = vmatprep.mubr.f32.mxu0 0.0
  %5439 = vmatmul.mubr.f32.gmra.mxu0 %v5003
  %v5440 = vpop.f32.mrf.mxu0
  %v5441 = vadd.f32 0.0, %v5440
  %v5442 = vpop.f32.mrf.mxu0
  %5443 = vmatprep.mubr.f32.mxu0 0.0
  %5444 = vmatmul.mubr.f32.gmra.mxu0 %v5006
  %v5445 = vpop.f32.mrf.mxu0
  %v5446 = vadd.f32 0.0, %v5445
  %v5447 = vpop.f32.mrf.mxu0
  %5448 = vmatprep.mubr.f32.mxu0 0.0
  %5449 = vmatmul.mubr.f32.gmra.mxu0 %v5009
  %v5450 = vpop.f32.mrf.mxu0
  %v5451 = vadd.f32 0.0, %v5450
  %v5452 = vpop.f32.mrf.mxu0
  %5453 = vmatprep.mubr.f32.mxu0 0.0
  %5454 = vmatmul.mubr.f32.gmra.mxu0 %v5012
  %v5455 = vpop.f32.mrf.mxu0
  %v5456 = vadd.f32 0.0, %v5455
  %v5457 = vpop.f32.mrf.mxu0
  %5458 = vmatprep.mubr.f32.mxu0 0.0
  %5459 = vmatmul.mubr.f32.gmra.mxu0 %v5015
  %v5460 = vpop.f32.mrf.mxu0
  %v5461 = vadd.f32 0.0, %v5460
  %v5462 = vpop.f32.mrf.mxu0
  %5463 = vmatprep.mubr.f32.mxu0 0.0
  %5464 = vmatmul.mubr.f32.gmra.mxu0 %v5018
  %v5465 = vpop.f32.mrf.mxu0
  %v5466 = vadd.f32 0.0, %v5465
  %v5467 = vpop.f32.mrf.mxu0
  %5468 = vmatprep.mubr.f32.mxu0 0.0
  %5469 = vmatmul.mubr.f32.gmra.mxu0 %v5021
  %v5470 = vpop.f32.mrf.mxu0
  %v5471 = vadd.f32 0.0, %v5470
  %v5472 = vpop.f32.mrf.mxu0
  %5473 = vmatprep.mubr.f32.mxu0 0.0
  %5474 = vmatmul.mubr.f32.gmra.mxu0 %v5024
  %v5475 = vpop.f32.mrf.mxu0
  %v5476 = vadd.f32 0.0, %v5475
  %v5477 = vpop.f32.mrf.mxu0
  %5478 = vmatprep.mubr.f32.mxu0 0.0
  %5479 = vmatmul.mubr.f32.gmra.mxu0 %v5027
  %v5480 = vpop.f32.mrf.mxu0
  %v5481 = vadd.f32 0.0, %v5480
  %v5482 = vpop.f32.mrf.mxu0
  %5483 = vmatprep.mubr.f32.mxu0 0.0
  %5484 = vmatmul.mubr.f32.gmra.mxu0 %v5030
  %v5485 = vpop.f32.mrf.mxu0
  %v5486 = vadd.f32 0.0, %v5485
  %v5487 = vpop.f32.mrf.mxu0
  %5488 = vmatprep.mubr.f32.mxu0 0.0
  %5489 = vmatmul.mubr.f32.gmra.mxu0 %v5033
  %v5490 = vpop.f32.mrf.mxu0
  %v5491 = vadd.f32 0.0, %v5490
  %v5492 = vpop.f32.mrf.mxu0
  %5493 = vmatprep.mubr.f32.mxu0 0.0
  %5494 = vmatmul.mubr.f32.gmra.mxu0 %v5036
  %v5495 = vpop.f32.mrf.mxu0
  %v5496 = vadd.f32 0.0, %v5495
  %v5497 = vpop.f32.mrf.mxu0
  %5498 = vmatprep.mubr.f32.mxu0 0.0
  %5499 = vmatmul.mubr.f32.gmra.mxu0 %v5039
  %v5500 = vpop.f32.mrf.mxu0
  %v5501 = vadd.f32 0.0, %v5500
  %v5502 = vpop.f32.mrf.mxu0
  %5503 = vmatprep.mubr.f32.mxu0 0.0
  %5504 = vmatmul.mubr.f32.gmra.mxu0 %v5042
  %v5505 = vpop.f32.mrf.mxu0
  %v5506 = vadd.f32 0.0, %v5505
  %v5507 = vpop.f32.mrf.mxu0
  %5508 = vmatprep.mubr.f32.mxu0 0.0
  %5509 = vmatmul.mubr.f32.gmra.mxu0 %v5045
  %v5510 = vpop.f32.mrf.mxu0
  %v5511 = vadd.f32 0.0, %v5510
  %v5512 = vpop.f32.mrf.mxu0
  %5513 = vmatprep.mubr.f32.mxu0 0.0
  %5514 = vmatmul.mubr.f32.gmra.mxu0 %v5048
  %v5515 = vpop.f32.mrf.mxu0
  %v5516 = vadd.f32 0.0, %v5515
  %v5517 = vpop.f32.mrf.mxu0
  %5518 = vmatprep.mubr.f32.mxu0 0.0
  %5519 = vmatmul.mubr.f32.gmra.mxu0 %v5051
  %v5520 = vpop.f32.mrf.mxu0
  %v5521 = vadd.f32 0.0, %v5520
  %v5522 = vpop.f32.mrf.mxu0
  %5523 = vmatprep.mubr.f32.mxu0 0.0
  %5524 = vmatmul.mubr.f32.gmra.mxu0 %v5054
  %v5525 = vpop.f32.mrf.mxu0
  %v5526 = vadd.f32 0.0, %v5525
  %v5527 = vpop.f32.mrf.mxu0
  %5528 = vmatprep.mubr.f32.mxu0 0.0
  %5529 = vmatmul.mubr.f32.gmra.mxu0 %v5057
  %v5530 = vpop.f32.mrf.mxu0
  %v5531 = vpop.f32.mrf.mxu0
  %5532 = vmatprep.mubr.f32.mxu0 0.0
  %5533 = vmatmul.mubr.f32.gmra.mxu0 %v5060
  %v5534 = vpop.f32.mrf.mxu0
  %v5535 = vpop.f32.mrf.mxu0
  %5536 = vmatprep.mubr.f32.mxu0 0.0
  %5537 = vmatmul.mubr.f32.gmra.mxu0 %v5063
  %v5538 = vpop.f32.mrf.mxu0
  %v5539 = vpop.f32.mrf.mxu0
  %5540 = vmatprep.mubr.f32.mxu0 0.0
  %5541 = vmatmul.mubr.f32.gmra.mxu0 %v5066
  %v5542 = vpop.f32.mrf.mxu0
  %v5543 = vadd.f32 0.0, %v5542
  %v5544 = vpop.f32.mrf.mxu0
  %5545 = vmatprep.mubr.f32.mxu0 0.0
  %5546 = vmatmul.mubr.f32.gmra.mxu0 %v5069
  %v5547 = vpop.f32.mrf.mxu0
  %v5548 = vadd.f32 0.0, %v5547
  %v5549 = vpop.f32.mrf.mxu0
  %5550 = vmatprep.mubr.f32.mxu0 0.0
  %5551 = vmatmul.mubr.f32.gmra.mxu0 %v5072
  %v5552 = vpop.f32.mrf.mxu0
  %v5553 = vadd.f32 0.0, %v5552
  %v5554 = vpop.f32.mrf.mxu0
  %5555 = vmatprep.mubr.f32.mxu0 0.0
  %5556 = vmatmul.mubr.f32.gmra.mxu0 %v5075
  %v5557 = vpop.f32.mrf.mxu0
  %v5558 = vadd.f32 0.0, %v5557
  %v5559 = vpop.f32.mrf.mxu0
  %5560 = vmatprep.mubr.f32.mxu0 0.0
  %5561 = vmatmul.mubr.f32.gmra.mxu0 %v5078
  %v5562 = vpop.f32.mrf.mxu0
  %v5563 = vadd.f32 0.0, %v5562
  %v5564 = vpop.f32.mrf.mxu0
  %5565 = vmatprep.mubr.f32.mxu0 0.0
  %5566 = vmatmul.mubr.f32.gmra.mxu0 %v5081
  %v5567 = vpop.f32.mrf.mxu0
  %v5568 = vadd.f32 0.0, %v5567
  %v5569 = vpop.f32.mrf.mxu0
  %5570 = vmatprep.mubr.f32.mxu0 0.0
  %5571 = vmatmul.mubr.f32.gmra.mxu0 %v5084
  %v5572 = vpop.f32.mrf.mxu0
  %v5573 = vadd.f32 0.0, %v5572
  %v5574 = vpop.f32.mrf.mxu0
  %5575 = vmatprep.mubr.f32.mxu0 0.0
  %5576 = vmatmul.mubr.f32.gmra.mxu0 %v5087
  %v5577 = vpop.f32.mrf.mxu0
  %v5578 = vadd.f32 0.0, %v5577
  %v5579 = vpop.f32.mrf.mxu0
  %5580 = vmatprep.mubr.f32.mxu0 0.0
  %5581 = vmatmul.mubr.f32.gmra.mxu0 %v5090
  %v5582 = vpop.f32.mrf.mxu0
  %v5583 = vadd.f32 0.0, %v5582
  %v5584 = vpop.f32.mrf.mxu0
  %5585 = vmatprep.mubr.f32.mxu0 0.0
  %5586 = vmatmul.mubr.f32.gmra.mxu0 %v5093
  %v5587 = vpop.f32.mrf.mxu0
  %v5588 = vadd.f32 0.0, %v5587
  %v5589 = vpop.f32.mrf.mxu0
  %5590 = vmatprep.mubr.f32.mxu0 0.0
  %5591 = vmatmul.mubr.f32.gmra.mxu0 %v5096
  %v5592 = vpop.f32.mrf.mxu0
  %v5593 = vadd.f32 0.0, %v5592
  %v5594 = vpop.f32.mrf.mxu0
  %5595 = vmatprep.mubr.f32.mxu0 0.0
  %5596 = vmatmul.mubr.f32.gmra.mxu0 %v5099
  %v5597 = vpop.f32.mrf.mxu0
  %v5598 = vadd.f32 0.0, %v5597
  %v5599 = vpop.f32.mrf.mxu0
  %5600 = vmatprep.mubr.f32.mxu0 0.0
  %5601 = vmatmul.mubr.f32.gmra.mxu0 %v5102
  %v5602 = vpop.f32.mrf.mxu0
  %v5603 = vadd.f32 0.0, %v5602
  %v5604 = vpop.f32.mrf.mxu0
  %5605 = vmatprep.mubr.f32.mxu0 0.0
  %5606 = vmatmul.mubr.f32.gmra.mxu0 %v5105
  %v5607 = vpop.f32.mrf.mxu0
  %v5608 = vadd.f32 0.0, %v5607
  %v5609 = vpop.f32.mrf.mxu0
  %5610 = vmatprep.mubr.f32.mxu0 0.0
  %5611 = vmatmul.mubr.f32.gmra.mxu0 %v5108
  %v5612 = vpop.f32.mrf.mxu0
  %v5613 = vadd.f32 0.0, %v5612
  %v5614 = vpop.f32.mrf.mxu0
  %5615 = vmatprep.mubr.f32.mxu0 0.0
  %5616 = vmatmul.mubr.f32.gmra.mxu0 %v5111
  %v5617 = vpop.f32.mrf.mxu0
  %v5618 = vadd.f32 0.0, %v5617
  %v5619 = vpop.f32.mrf.mxu0
  %5620 = vmatprep.mubr.f32.mxu0 0.0
  %5621 = vmatmul.mubr.f32.gmra.mxu0 %v5114
  %v5622 = vpop.f32.mrf.mxu0
  %v5623 = vadd.f32 0.0, %v5622
  %v5624 = vpop.f32.mrf.mxu0
  %5625 = vmatprep.mubr.f32.mxu0 0.0
  %5626 = vmatmul.mubr.f32.gmra.mxu0 %v5117
  %v5627 = vpop.f32.mrf.mxu0
  %v5628 = vadd.f32 0.0, %v5627
  %v5629 = vpop.f32.mrf.mxu0
  %5630 = vmatprep.mubr.f32.mxu0 0.0
  %5631 = vmatmul.mubr.f32.gmra.mxu0 %v5120
  %v5632 = vpop.f32.mrf.mxu0
  %v5633 = vadd.f32 0.0, %v5632
  %v5634 = vpop.f32.mrf.mxu0
  %5635 = vmatprep.mubr.f32.mxu0 0.0
  %5636 = vmatmul.mubr.f32.gmra.mxu0 %v5123
  %v5637 = vpop.f32.mrf.mxu0
  %v5638 = vadd.f32 0.0, %v5637
  %v5639 = vpop.f32.mrf.mxu0
  %5640 = vmatprep.mubr.f32.mxu0 0.0
  %5641 = vmatmul.mubr.f32.gmra.mxu0 %v5126
  %v5642 = vpop.f32.mrf.mxu0
  %v5643 = vadd.f32 0.0, %v5642
  %v5644 = vpop.f32.mrf.mxu0
  %5645 = vmatprep.mubr.f32.mxu0 0.0
  %5646 = vmatmul.mubr.f32.gmra.mxu0 %v5129
  %v5647 = vpop.f32.mrf.mxu0
  %v5648 = vadd.f32 0.0, %v5647
  %v5649 = vpop.f32.mrf.mxu0
  %5650 = vmatprep.mubr.f32.mxu0 0.0
  %5651 = vmatmul.mubr.f32.gmra.mxu0 %v5132
  %v5652 = vpop.f32.mrf.mxu0
  %v5653 = vadd.f32 0.0, %v5652
  %v5654 = vpop.f32.mrf.mxu0
  %5655 = vmatprep.mubr.f32.mxu0 0.0
  %5656 = vmatmul.mubr.f32.gmra.mxu0 %v5135
  %v5657 = vpop.f32.mrf.mxu0
  %v5658 = vadd.f32 0.0, %v5657
  %v5659 = vpop.f32.mrf.mxu0
  %5660 = vmatprep.mubr.f32.mxu0 0.0
  %5661 = vmatmul.mubr.f32.gmra.mxu0 %v5138
  %v5662 = vpop.f32.mrf.mxu0
  %v5663 = vadd.f32 0.0, %v5662
  %v5664 = vpop.f32.mrf.mxu0
  %5665 = vmatprep.mubr.f32.mxu0 0.0
  %5666 = vmatmul.mubr.f32.gmra.mxu0 %v5141
  %v5667 = vpop.f32.mrf.mxu0
  %v5668 = vadd.f32 0.0, %v5667
  %v5669 = vpop.f32.mrf.mxu0
  %5670 = vmatprep.mubr.f32.mxu0 0.0
  %5671 = vmatmul.mubr.f32.gmra.mxu0 %v5144
  %v5672 = vpop.f32.mrf.mxu0
  %v5673 = vadd.f32 0.0, %v5672
  %v5674 = vpop.f32.mrf.mxu0
  %5675 = vmatprep.mubr.f32.mxu0 0.0
  %5676 = vmatmul.mubr.f32.gmra.mxu0 %v5147
  %v5677 = vpop.f32.mrf.mxu0
  %v5678 = vadd.f32 0.0, %v5677
  %v5679 = vpop.f32.mrf.mxu0
  %5680 = vmatprep.mubr.f32.mxu0 0.0
  %5681 = vmatmul.mubr.f32.gmra.mxu0 %v5150
  %v5682 = vpop.f32.mrf.mxu0
  %v5683 = vadd.f32 0.0, %v5682
  %v5684 = vpop.f32.mrf.mxu0
  %5685 = vmatprep.mubr.f32.mxu0 0.0
  %5686 = vmatmul.mubr.f32.gmra.mxu0 %v5153
  %v5687 = vpop.f32.mrf.mxu0
  %v5688 = vadd.f32 0.0, %v5687
  %v5689 = vpop.f32.mrf.mxu0
  %5690 = vmatprep.mubr.f32.mxu0 0.0
  %5691 = vmatmul.mubr.f32.gmra.mxu0 %v5156
  %v5692 = vpop.f32.mrf.mxu0
  %v5693 = vadd.f32 0.0, %v5692
  %v5694 = vpop.f32.mrf.mxu0
  %5695 = vmatprep.mubr.f32.mxu0 0.0
  %5696 = vmatmul.mubr.f32.gmra.mxu0 %v5159
  %v5697 = vpop.f32.mrf.mxu0
  %v5698 = vadd.f32 0.0, %v5697
  %v5699 = vpop.f32.mrf.mxu0
  %5700 = vmatprep.mubr.f32.mxu0 0.0
  %5701 = vmatmul.mubr.f32.gmra.mxu0 %v5162
  %v5702 = vpop.f32.mrf.mxu0
  %v5703 = vadd.f32 0.0, %v5702
  %v5704 = vpop.f32.mrf.mxu0
  %5705 = vmatprep.mubr.f32.mxu0 0.0
  %5706 = vmatmul.mubr.f32.gmra.mxu0 %v5165
  %v5707 = vpop.f32.mrf.mxu0
  %v5708 = vadd.f32 0.0, %v5707
  %v5709 = vpop.f32.mrf.mxu0
  %5710 = vmatprep.mubr.f32.mxu0 0.0
  %5711 = vmatmul.mubr.f32.gmra.mxu0 %v5168
  %v5712 = vpop.f32.mrf.mxu0
  %v5713 = vadd.f32 0.0, %v5712
  %v5714 = vpop.f32.mrf.mxu0
  %5715 = vmatprep.mubr.f32.mxu0 0.0
  %5716 = vmatmul.mubr.f32.gmra.mxu0 %v5171
  %v5717 = vpop.f32.mrf.mxu0
  %v5718 = vadd.f32 0.0, %v5717
  %v5719 = vpop.f32.mrf.mxu0
  %5720 = vmatprep.mubr.f32.mxu0 0.0
  %5721 = vmatmul.mubr.f32.gmra.mxu0 %v5174
  %v5722 = vpop.f32.mrf.mxu0
  %v5723 = vadd.f32 0.0, %v5722
  %v5724 = vpop.f32.mrf.mxu0
  %5725 = vmatprep.mubr.f32.mxu0 0.0
  %5726 = vmatmul.mubr.f32.gmra.mxu0 %v5177
  %v5727 = vpop.f32.mrf.mxu0
  %v5728 = vadd.f32 0.0, %v5727
  %v5729 = vpop.f32.mrf.mxu0
  %5730 = vmatprep.mubr.f32.mxu0 0.0
  %5731 = vmatmul.mubr.f32.gmra.mxu0 %v5180
  %v5732 = vpop.f32.mrf.mxu0
  %v5733 = vadd.f32 0.0, %v5732
  %v5734 = vpop.f32.mrf.mxu0
  %5735 = vmatprep.mubr.f32.mxu0 0.0
  %5736 = vmatmul.mubr.f32.gmra.mxu0 %v5183
  %v5737 = vpop.f32.mrf.mxu0
  %v5738 = vadd.f32 0.0, %v5737
  %v5739 = vpop.f32.mrf.mxu0
  %5740 = vmatprep.mubr.f32.mxu0 0.0
  %5741 = vmatmul.mubr.f32.gmra.mxu0 %v5186
  %v5742 = vpop.f32.mrf.mxu0
  %v5743 = vadd.f32 0.0, %v5742
  %v5744 = vpop.f32.mrf.mxu0
  %5745 = vmatprep.mubr.f32.mxu0 0.0
  %5746 = vmatmul.mubr.f32.gmra.mxu0 %v5189
  %v5747 = vpop.f32.mrf.mxu0
  %v5748 = vadd.f32 0.0, %v5747
  %v5749 = vpop.f32.mrf.mxu0
  %5750 = vmatprep.mubr.f32.mxu0 0.0
  %5751 = vmatmul.mubr.f32.gmra.mxu0 %v5192
  %v5752 = vpop.f32.mrf.mxu0
  %v5753 = vadd.f32 0.0, %v5752
  %v5754 = vpop.f32.mrf.mxu0
  %5755 = vmatprep.mubr.f32.mxu0 0.0
  %5756 = vmatmul.mubr.f32.gmra.mxu0 %v5195
  %v5757 = vpop.f32.mrf.mxu0
  %v5758 = vadd.f32 0.0, %v5757
  %v5759 = vpop.f32.mrf.mxu0
  %5760 = vmatprep.mubr.f32.mxu0 0.0
  %5761 = vmatmul.mubr.f32.gmra.mxu0 %v5198
  %v5762 = vpop.f32.mrf.mxu0
  %v5763 = vadd.f32 0.0, %v5762
  %v5764 = vpop.f32.mrf.mxu0
  %5765 = vmatprep.mubr.f32.mxu0 0.0
  %5766 = vmatmul.mubr.f32.gmra.mxu0 %v5201
  %v5767 = vpop.f32.mrf.mxu0
  %v5768 = vadd.f32 0.0, %v5767
  %v5769 = vpop.f32.mrf.mxu0
  %5770 = vmatprep.mubr.f32.mxu0 0.0
  %5771 = vmatmul.mubr.f32.gmra.mxu0 %v5204
  %v5772 = vpop.f32.mrf.mxu0
  %v5773 = vadd.f32 0.0, %v5772
  %v5774 = vpop.f32.mrf.mxu0
  %5775 = vmatprep.mubr.f32.mxu0 0.0
  %5776 = vmatmul.mubr.f32.gmra.mxu0 %v5207
  %v5777 = vpop.f32.mrf.mxu0
  %v5778 = vadd.f32 0.0, %v5777
  %v5779 = vpop.f32.mrf.mxu0
  %5780 = vdwg.mxu0
  %s5781 = scalar_lea.vmem %s4, 4
  %v5782 = vld [vmem:[%s5781] sm:$0xf]
  %v5784 = vsel %vm395, %v5782, 0
  %5786 = vmatprep.subr.mxu0 0.0
  %5787 = vmatpush1.msra.mxu0 0.0
  %5788 = vmatprep.subr.mxu0 0.0
  %5789 = vmatpush1.msra.mxu0 0.0
  %5790 = vmatprep.subr.mxu0 0.0
  %5791 = vmatpush1.msra.mxu0 0.0
  %5792 = vmatprep.subr.mxu0 0.0
  %5793 = vmatpush1.msra.mxu0 0.0
  %5794 = vmatprep.subr.mxu0 0.0
  %5795 = vmatpush1.msra.mxu0 0.0
  %5796 = vmatprep.subr.mxu0 0.0
  %5797 = vmatpush1.msra.mxu0 0.0
  %5798 = vmatprep.subr.mxu0 0.0
  %5799 = vmatpush1.msra.mxu0 0.0
  %5800 = vmatprep.subr.mxu0 0.0
  %5801 = vmatpush1.msra.mxu0 0.0
  %5802 = vmatprep.subr.mxu0 0.0
  %5803 = vmatpush1.msra.mxu0 0.0
  %5804 = vmatprep.subr.mxu0 0.0
  %5805 = vmatpush1.msra.mxu0 0.0
  %5806 = vmatprep.subr.mxu0 0.0
  %5807 = vmatpush1.msra.mxu0 0.0
  %5808 = vmatprep.subr.mxu0 0.0
  %5809 = vmatpush1.msra.mxu0 0.0
  %5810 = vmatprep.subr.mxu0 0.0
  %5811 = vmatpush1.msra.mxu0 0.0
  %5812 = vmatprep.subr.mxu0 0.0
  %5813 = vmatpush1.msra.mxu0 0.0
  %5814 = vmatprep.subr.mxu0 0.0
  %5815 = vmatpush1.msra.mxu0 0.0
  %5816 = vmatprep.subr.mxu0 0.0
  %5817 = vmatpush1.msra.mxu0 %v5784
  %5818 = vmatprep.subr.mxu0 0.0
  %5819 = vmatpush2.msra.mxu0 0.0
  %5820 = vmatprep.subr.mxu0 0.0
  %5821 = vmatpush2.msra.mxu0 0.0
  %5822 = vmatprep.subr.mxu0 0.0
  %5823 = vmatpush2.msra.mxu0 0.0
  %5824 = vmatprep.subr.mxu0 0.0
  %5825 = vmatpush2.msra.mxu0 0.0
  %5826 = vmatprep.subr.mxu0 0.0
  %5827 = vmatpush2.msra.mxu0 0.0
  %5828 = vmatprep.subr.mxu0 0.0
  %5829 = vmatpush2.msra.mxu0 0.0
  %5830 = vmatprep.subr.mxu0 0.0
  %5831 = vmatpush2.msra.mxu0 0.0
  %5832 = vmatprep.subr.mxu0 0.0
  %5833 = vmatpush2.msra.mxu0 0.0
  %5834 = vmatprep.subr.mxu0 0.0
  %5835 = vmatpush2.msra.mxu0 0.0
  %5836 = vmatprep.subr.mxu0 0.0
  %5837 = vmatpush2.msra.mxu0 0.0
  %5838 = vmatprep.subr.mxu0 0.0
  %5839 = vmatpush2.msra.mxu0 0.0
  %5840 = vmatprep.subr.mxu0 0.0
  %5841 = vmatpush2.msra.mxu0 0.0
  %5842 = vmatprep.subr.mxu0 0.0
  %5843 = vmatpush2.msra.mxu0 0.0
  %5844 = vmatprep.subr.mxu0 0.0
  %5845 = vmatpush2.msra.mxu0 0.0
  %5846 = vmatprep.subr.mxu0 0.0
  %5847 = vmatpush2.msra.mxu0 0.0
  %5848 = vmatprep.subr.mxu0 0.0
  %5849 = vmatpush2.msra.mxu0 0.0
  %5850 = vmatprep.mubr.f32.mxu0 0.0
  %5851 = vmatmul.mubr.f32.gmra.mxu0 %v4904
  %v5852 = vpop.f32.mrf.mxu0
  %v5853 = vpop.f32.mrf.mxu0
  %5854 = vmatprep.mubr.f32.mxu0 0.0
  %5855 = vmatmul.mubr.f32.gmra.mxu0 %v4907
  %v5856 = vpop.f32.mrf.mxu0
  %v5857 = vpop.f32.mrf.mxu0
  %5858 = vmatprep.mubr.f32.mxu0 0.0
  %5859 = vmatmul.mubr.f32.gmra.mxu0 %v4910
  %v5860 = vpop.f32.mrf.mxu0
  %v5861 = vpop.f32.mrf.mxu0
  %5862 = vmatprep.mubr.f32.mxu0 0.0
  %5863 = vmatmul.mubr.f32.gmra.mxu0 %v4913
  %v5864 = vpop.f32.mrf.mxu0
  %v5865 = vadd.f32 0.0, %v5864
  %v5866 = vpop.f32.mrf.mxu0
  %5867 = vmatprep.mubr.f32.mxu0 0.0
  %5868 = vmatmul.mubr.f32.gmra.mxu0 %v4916
  %v5869 = vpop.f32.mrf.mxu0
  %v5870 = vadd.f32 0.0, %v5869
  %v5871 = vpop.f32.mrf.mxu0
  %5872 = vmatprep.mubr.f32.mxu0 0.0
  %5873 = vmatmul.mubr.f32.gmra.mxu0 %v4919
  %v5874 = vpop.f32.mrf.mxu0
  %v5875 = vpop.f32.mrf.mxu0
  %5876 = vmatprep.mubr.f32.mxu0 0.0
  %5877 = vmatmul.mubr.f32.gmra.mxu0 %v4922
  %v5878 = vpop.f32.mrf.mxu0
  %v5879 = vadd.f32 0.0, %v5878
  %v5880 = vpop.f32.mrf.mxu0
  %5881 = vmatprep.mubr.f32.mxu0 0.0
  %5882 = vmatmul.mubr.f32.gmra.mxu0 %v4925
  %v5883 = vpop.f32.mrf.mxu0
  %v5884 = vadd.f32 0.0, %v5883
  %v5885 = vpop.f32.mrf.mxu0
  %5886 = vmatprep.mubr.f32.mxu0 0.0
  %5887 = vmatmul.mubr.f32.gmra.mxu0 %v4928
  %v5888 = vpop.f32.mrf.mxu0
  %v5889 = vpop.f32.mrf.mxu0
  %5890 = vmatprep.mubr.f32.mxu0 0.0
  %5891 = vmatmul.mubr.f32.gmra.mxu0 %v4931
  %v5892 = vpop.f32.mrf.mxu0
  %v5893 = vadd.f32 0.0, %v5892
  %v5894 = vpop.f32.mrf.mxu0
  %5895 = vmatprep.mubr.f32.mxu0 0.0
  %5896 = vmatmul.mubr.f32.gmra.mxu0 %v4934
  %v5897 = vpop.f32.mrf.mxu0
  %v5898 = vadd.f32 0.0, %v5897
  %v5899 = vpop.f32.mrf.mxu0
  %5900 = vmatprep.mubr.f32.mxu0 0.0
  %5901 = vmatmul.mubr.f32.gmra.mxu0 %v4937
  %v5902 = vpop.f32.mrf.mxu0
  %v5903 = vpop.f32.mrf.mxu0
  %5904 = vmatprep.mubr.f32.mxu0 0.0
  %5905 = vmatmul.mubr.f32.gmra.mxu0 %v4940
  %v5906 = vpop.f32.mrf.mxu0
  %v5907 = vadd.f32 0.0, %v5906
  %v5908 = vpop.f32.mrf.mxu0
  %5909 = vmatprep.mubr.f32.mxu0 0.0
  %5910 = vmatmul.mubr.f32.gmra.mxu0 %v4943
  %v5911 = vpop.f32.mrf.mxu0
  %v5912 = vadd.f32 0.0, %v5911
  %v5913 = vpop.f32.mrf.mxu0
  %5914 = vmatprep.mubr.f32.mxu0 0.0
  %5915 = vmatmul.mubr.f32.gmra.mxu0 %v4946
  %v5916 = vpop.f32.mrf.mxu0
  %v5917 = vpop.f32.mrf.mxu0
  %5918 = vmatprep.mubr.f32.mxu0 0.0
  %5919 = vmatmul.mubr.f32.gmra.mxu0 %v4949
  %v5920 = vpop.f32.mrf.mxu0
  %v5921 = vadd.f32 0.0, %v5920
  %v5922 = vpop.f32.mrf.mxu0
  %5923 = vmatprep.mubr.f32.mxu0 0.0
  %5924 = vmatmul.mubr.f32.gmra.mxu0 %v4952
  %v5925 = vpop.f32.mrf.mxu0
  %v5926 = vadd.f32 0.0, %v5925
  %v5927 = vpop.f32.mrf.mxu0
  %5928 = vmatprep.mubr.f32.mxu0 0.0
  %5929 = vmatmul.mubr.f32.gmra.mxu0 %v4955
  %v5930 = vpop.f32.mrf.mxu0
  %v5931 = vpop.f32.mrf.mxu0
  %5932 = vmatprep.mubr.f32.mxu0 0.0
  %5933 = vmatmul.mubr.f32.gmra.mxu0 %v4958
  %v5934 = vpop.f32.mrf.mxu0
  %v5935 = vadd.f32 0.0, %v5934
  %v5936 = vpop.f32.mrf.mxu0
  %5937 = vmatprep.mubr.f32.mxu0 0.0
  %5938 = vmatmul.mubr.f32.gmra.mxu0 %v4961
  %v5939 = vpop.f32.mrf.mxu0
  %v5940 = vadd.f32 0.0, %v5939
  %v5941 = vpop.f32.mrf.mxu0
  %5942 = vmatprep.mubr.f32.mxu0 0.0
  %5943 = vmatmul.mubr.f32.gmra.mxu0 %v4964
  %v5944 = vpop.f32.mrf.mxu0
  %v5945 = vpop.f32.mrf.mxu0
  %5946 = vmatprep.mubr.f32.mxu0 0.0
  %5947 = vmatmul.mubr.f32.gmra.mxu0 %v4967
  %v5948 = vpop.f32.mrf.mxu0
  %v5949 = vadd.f32 0.0, %v5948
  %v5950 = vpop.f32.mrf.mxu0
  %5951 = vmatprep.mubr.f32.mxu0 0.0
  %5952 = vmatmul.mubr.f32.gmra.mxu0 %v4970
  %v5953 = vpop.f32.mrf.mxu0
  %v5954 = vadd.f32 0.0, %v5953
  %v5955 = vpop.f32.mrf.mxu0
  %5956 = vmatprep.mubr.f32.mxu0 0.0
  %5957 = vmatmul.mubr.f32.gmra.mxu0 %v4973
  %v5958 = vpop.f32.mrf.mxu0
  %v5959 = vpop.f32.mrf.mxu0
  %5960 = vmatprep.mubr.f32.mxu0 0.0
  %5961 = vmatmul.mubr.f32.gmra.mxu0 %v4976
  %v5962 = vpop.f32.mrf.mxu0
  %v5963 = vadd.f32 0.0, %v5962
  %v5964 = vpop.f32.mrf.mxu0
  %5965 = vmatprep.mubr.f32.mxu0 0.0
  %5966 = vmatmul.mubr.f32.gmra.mxu0 %v4979
  %v5967 = vpop.f32.mrf.mxu0
  %v5968 = vadd.f32 0.0, %v5967
  %v5969 = vpop.f32.mrf.mxu0
  %5970 = vmatprep.mubr.f32.mxu0 0.0
  %5971 = vmatmul.mubr.f32.gmra.mxu0 %v4982
  %v5972 = vpop.f32.mrf.mxu0
  %v5973 = vpop.f32.mrf.mxu0
  %5974 = vmatprep.mubr.f32.mxu0 0.0
  %5975 = vmatmul.mubr.f32.gmra.mxu0 %v4985
  %v5976 = vpop.f32.mrf.mxu0
  %v5977 = vadd.f32 0.0, %v5976
  %v5978 = vpop.f32.mrf.mxu0
  %5979 = vmatprep.mubr.f32.mxu0 0.0
  %5980 = vmatmul.mubr.f32.gmra.mxu0 %v4988
  %v5981 = vpop.f32.mrf.mxu0
  %v5982 = vadd.f32 0.0, %v5981
  %v5983 = vpop.f32.mrf.mxu0
  %5984 = vmatprep.mubr.f32.mxu0 0.0
  %5985 = vmatmul.mubr.f32.gmra.mxu0 %v4991
  %v5986 = vpop.f32.mrf.mxu0
  %v5987 = vpop.f32.mrf.mxu0
  %5988 = vmatprep.mubr.f32.mxu0 0.0
  %5989 = vmatmul.mubr.f32.gmra.mxu0 %v4994
  %v5990 = vpop.f32.mrf.mxu0
  %v5991 = vadd.f32 0.0, %v5990
  %v5992 = vpop.f32.mrf.mxu0
  %5993 = vmatprep.mubr.f32.mxu0 0.0
  %5994 = vmatmul.mubr.f32.gmra.mxu0 %v4997
  %v5995 = vpop.f32.mrf.mxu0
  %v5996 = vadd.f32 0.0, %v5995
  %v5997 = vpop.f32.mrf.mxu0
  %5998 = vmatprep.mubr.f32.mxu0 0.0
  %5999 = vmatmul.mubr.f32.gmra.mxu0 %v5000
  %v6000 = vpop.f32.mrf.mxu0
  %v6001 = vpop.f32.mrf.mxu0
  %6002 = vmatprep.mubr.f32.mxu0 0.0
  %6003 = vmatmul.mubr.f32.gmra.mxu0 %v5003
  %v6004 = vpop.f32.mrf.mxu0
  %v6005 = vadd.f32 0.0, %v6004
  %v6006 = vpop.f32.mrf.mxu0
  %6007 = vmatprep.mubr.f32.mxu0 0.0
  %6008 = vmatmul.mubr.f32.gmra.mxu0 %v5006
  %v6009 = vpop.f32.mrf.mxu0
  %v6010 = vadd.f32 0.0, %v6009
  %v6011 = vpop.f32.mrf.mxu0
  %6012 = vmatprep.mubr.f32.mxu0 0.0
  %6013 = vmatmul.mubr.f32.gmra.mxu0 %v5009
  %v6014 = vpop.f32.mrf.mxu0
  %v6015 = vpop.f32.mrf.mxu0
  %6016 = vmatprep.mubr.f32.mxu0 0.0
  %6017 = vmatmul.mubr.f32.gmra.mxu0 %v5012
  %v6018 = vpop.f32.mrf.mxu0
  %v6019 = vadd.f32 0.0, %v6018
  %v6020 = vpop.f32.mrf.mxu0
  %6021 = vmatprep.mubr.f32.mxu0 0.0
  %6022 = vmatmul.mubr.f32.gmra.mxu0 %v5015
  %v6023 = vpop.f32.mrf.mxu0
  %v6024 = vadd.f32 0.0, %v6023
  %v6025 = vpop.f32.mrf.mxu0
  %6026 = vmatprep.mubr.f32.mxu0 0.0
  %6027 = vmatmul.mubr.f32.gmra.mxu0 %v5018
  %v6028 = vpop.f32.mrf.mxu0
  %v6029 = vpop.f32.mrf.mxu0
  %6030 = vmatprep.mubr.f32.mxu0 0.0
  %6031 = vmatmul.mubr.f32.gmra.mxu0 %v5021
  %v6032 = vpop.f32.mrf.mxu0
  %v6033 = vadd.f32 0.0, %v6032
  %v6034 = vpop.f32.mrf.mxu0
  %6035 = vmatprep.mubr.f32.mxu0 0.0
  %6036 = vmatmul.mubr.f32.gmra.mxu0 %v5024
  %v6037 = vpop.f32.mrf.mxu0
  %v6038 = vadd.f32 0.0, %v6037
  %v6039 = vpop.f32.mrf.mxu0
  %6040 = vmatprep.mubr.f32.mxu0 0.0
  %6041 = vmatmul.mubr.f32.gmra.mxu0 %v5027
  %v6042 = vpop.f32.mrf.mxu0
  %v6043 = vpop.f32.mrf.mxu0
  %6044 = vmatprep.mubr.f32.mxu0 0.0
  %6045 = vmatmul.mubr.f32.gmra.mxu0 %v5030
  %v6046 = vpop.f32.mrf.mxu0
  %v6047 = vadd.f32 0.0, %v6046
  %v6048 = vpop.f32.mrf.mxu0
  %6049 = vmatprep.mubr.f32.mxu0 0.0
  %6050 = vmatmul.mubr.f32.gmra.mxu0 %v5033
  %v6051 = vpop.f32.mrf.mxu0
  %v6052 = vadd.f32 0.0, %v6051
  %v6053 = vpop.f32.mrf.mxu0
  %6054 = vmatprep.mubr.f32.mxu0 0.0
  %6055 = vmatmul.mubr.f32.gmra.mxu0 %v5036
  %v6056 = vpop.f32.mrf.mxu0
  %v6057 = vpop.f32.mrf.mxu0
  %6058 = vmatprep.mubr.f32.mxu0 0.0
  %6059 = vmatmul.mubr.f32.gmra.mxu0 %v5039
  %v6060 = vpop.f32.mrf.mxu0
  %v6061 = vadd.f32 0.0, %v6060
  %v6062 = vpop.f32.mrf.mxu0
  %6063 = vmatprep.mubr.f32.mxu0 0.0
  %6064 = vmatmul.mubr.f32.gmra.mxu0 %v5042
  %v6065 = vpop.f32.mrf.mxu0
  %v6066 = vadd.f32 0.0, %v6065
  %v6067 = vpop.f32.mrf.mxu0
  %6068 = vmatprep.mubr.f32.mxu0 0.0
  %6069 = vmatmul.mubr.f32.gmra.mxu0 %v5045
  %v6070 = vpop.f32.mrf.mxu0
  %v6071 = vpop.f32.mrf.mxu0
  %6072 = vmatprep.mubr.f32.mxu0 0.0
  %6073 = vmatmul.mubr.f32.gmra.mxu0 %v5048
  %v6074 = vpop.f32.mrf.mxu0
  %v6075 = vadd.f32 0.0, %v6074
  %v6076 = vpop.f32.mrf.mxu0
  %6077 = vmatprep.mubr.f32.mxu0 0.0
  %6078 = vmatmul.mubr.f32.gmra.mxu0 %v5051
  %v6079 = vpop.f32.mrf.mxu0
  %v6080 = vadd.f32 0.0, %v6079
  %v6081 = vpop.f32.mrf.mxu0
  %6082 = vmatprep.mubr.f32.mxu0 0.0
  %6083 = vmatmul.mubr.f32.gmra.mxu0 %v5054
  %v6084 = vpop.f32.mrf.mxu0
  %v6085 = vpop.f32.mrf.mxu0
  %6086 = vmatprep.mubr.f32.mxu0 0.0
  %6087 = vmatmul.mubr.f32.gmra.mxu0 %v5057
  %v6088 = vpop.f32.mrf.mxu0
  %v6089 = vpop.f32.mrf.mxu0
  %6090 = vmatprep.mubr.f32.mxu0 0.0
  %6091 = vmatmul.mubr.f32.gmra.mxu0 %v5060
  %v6092 = vpop.f32.mrf.mxu0
  %v6093 = vpop.f32.mrf.mxu0
  %6094 = vmatprep.mubr.f32.mxu0 0.0
  %6095 = vmatmul.mubr.f32.gmra.mxu0 %v5063
  %v6096 = vpop.f32.mrf.mxu0
  %v6097 = vpop.f32.mrf.mxu0
  %6098 = vmatprep.mubr.f32.mxu0 0.0
  %6099 = vmatmul.mubr.f32.gmra.mxu0 %v5066
  %v6100 = vpop.f32.mrf.mxu0
  %v6101 = vadd.f32 0.0, %v6100
  %v6102 = vpop.f32.mrf.mxu0
  %6103 = vmatprep.mubr.f32.mxu0 0.0
  %6104 = vmatmul.mubr.f32.gmra.mxu0 %v5069
  %v6105 = vpop.f32.mrf.mxu0
  %v6106 = vadd.f32 0.0, %v6105
  %v6107 = vpop.f32.mrf.mxu0
  %6108 = vmatprep.mubr.f32.mxu0 0.0
  %6109 = vmatmul.mubr.f32.gmra.mxu0 %v5072
  %v6110 = vpop.f32.mrf.mxu0
  %v6111 = vpop.f32.mrf.mxu0
  %6112 = vmatprep.mubr.f32.mxu0 0.0
  %6113 = vmatmul.mubr.f32.gmra.mxu0 %v5075
  %v6114 = vpop.f32.mrf.mxu0
  %v6115 = vadd.f32 0.0, %v6114
  %v6116 = vpop.f32.mrf.mxu0
  %6117 = vmatprep.mubr.f32.mxu0 0.0
  %6118 = vmatmul.mubr.f32.gmra.mxu0 %v5078
  %v6119 = vpop.f32.mrf.mxu0
  %v6120 = vadd.f32 0.0, %v6119
  %v6121 = vpop.f32.mrf.mxu0
  %6122 = vmatprep.mubr.f32.mxu0 0.0
  %6123 = vmatmul.mubr.f32.gmra.mxu0 %v5081
  %v6124 = vpop.f32.mrf.mxu0
  %v6125 = vpop.f32.mrf.mxu0
  %6126 = vmatprep.mubr.f32.mxu0 0.0
  %6127 = vmatmul.mubr.f32.gmra.mxu0 %v5084
  %v6128 = vpop.f32.mrf.mxu0
  %v6129 = vadd.f32 0.0, %v6128
  %v6130 = vpop.f32.mrf.mxu0
  %6131 = vmatprep.mubr.f32.mxu0 0.0
  %6132 = vmatmul.mubr.f32.gmra.mxu0 %v5087
  %v6133 = vpop.f32.mrf.mxu0
  %v6134 = vadd.f32 0.0, %v6133
  %v6135 = vpop.f32.mrf.mxu0
  %6136 = vmatprep.mubr.f32.mxu0 0.0
  %6137 = vmatmul.mubr.f32.gmra.mxu0 %v5090
  %v6138 = vpop.f32.mrf.mxu0
  %v6139 = vpop.f32.mrf.mxu0
  %6140 = vmatprep.mubr.f32.mxu0 0.0
  %6141 = vmatmul.mubr.f32.gmra.mxu0 %v5093
  %v6142 = vpop.f32.mrf.mxu0
  %v6143 = vadd.f32 0.0, %v6142
  %v6144 = vpop.f32.mrf.mxu0
  %6145 = vmatprep.mubr.f32.mxu0 0.0
  %6146 = vmatmul.mubr.f32.gmra.mxu0 %v5096
  %v6147 = vpop.f32.mrf.mxu0
  %v6148 = vadd.f32 0.0, %v6147
  %v6149 = vpop.f32.mrf.mxu0
  %6150 = vmatprep.mubr.f32.mxu0 0.0
  %6151 = vmatmul.mubr.f32.gmra.mxu0 %v5099
  %v6152 = vpop.f32.mrf.mxu0
  %v6153 = vpop.f32.mrf.mxu0
  %6154 = vmatprep.mubr.f32.mxu0 0.0
  %6155 = vmatmul.mubr.f32.gmra.mxu0 %v5102
  %v6156 = vpop.f32.mrf.mxu0
  %v6157 = vadd.f32 0.0, %v6156
  %v6158 = vpop.f32.mrf.mxu0
  %6159 = vmatprep.mubr.f32.mxu0 0.0
  %6160 = vmatmul.mubr.f32.gmra.mxu0 %v5105
  %v6161 = vpop.f32.mrf.mxu0
  %v6162 = vadd.f32 0.0, %v6161
  %v6163 = vpop.f32.mrf.mxu0
  %6164 = vmatprep.mubr.f32.mxu0 0.0
  %6165 = vmatmul.mubr.f32.gmra.mxu0 %v5108
  %v6166 = vpop.f32.mrf.mxu0
  %v6167 = vpop.f32.mrf.mxu0
  %6168 = vmatprep.mubr.f32.mxu0 0.0
  %6169 = vmatmul.mubr.f32.gmra.mxu0 %v5111
  %v6170 = vpop.f32.mrf.mxu0
  %v6171 = vadd.f32 0.0, %v6170
  %v6172 = vpop.f32.mrf.mxu0
  %6173 = vmatprep.mubr.f32.mxu0 0.0
  %6174 = vmatmul.mubr.f32.gmra.mxu0 %v5114
  %v6175 = vpop.f32.mrf.mxu0
  %v6176 = vadd.f32 0.0, %v6175
  %v6177 = vpop.f32.mrf.mxu0
  %6178 = vmatprep.mubr.f32.mxu0 0.0
  %6179 = vmatmul.mubr.f32.gmra.mxu0 %v5117
  %v6180 = vpop.f32.mrf.mxu0
  %v6181 = vpop.f32.mrf.mxu0
  %6182 = vmatprep.mubr.f32.mxu0 0.0
  %6183 = vmatmul.mubr.f32.gmra.mxu0 %v5120
  %v6184 = vpop.f32.mrf.mxu0
  %v6185 = vadd.f32 0.0, %v6184
  %v6186 = vpop.f32.mrf.mxu0
  %6187 = vmatprep.mubr.f32.mxu0 0.0
  %6188 = vmatmul.mubr.f32.gmra.mxu0 %v5123
  %v6189 = vpop.f32.mrf.mxu0
  %v6190 = vadd.f32 0.0, %v6189
  %v6191 = vpop.f32.mrf.mxu0
  %6192 = vmatprep.mubr.f32.mxu0 0.0
  %6193 = vmatmul.mubr.f32.gmra.mxu0 %v5126
  %v6194 = vpop.f32.mrf.mxu0
  %v6195 = vpop.f32.mrf.mxu0
  %6196 = vmatprep.mubr.f32.mxu0 0.0
  %6197 = vmatmul.mubr.f32.gmra.mxu0 %v5129
  %v6198 = vpop.f32.mrf.mxu0
  %v6199 = vadd.f32 0.0, %v6198
  %v6200 = vpop.f32.mrf.mxu0
  %6201 = vmatprep.mubr.f32.mxu0 0.0
  %6202 = vmatmul.mubr.f32.gmra.mxu0 %v5132
  %v6203 = vpop.f32.mrf.mxu0
  %v6204 = vadd.f32 0.0, %v6203
  %v6205 = vpop.f32.mrf.mxu0
  %6206 = vmatprep.mubr.f32.mxu0 0.0
  %6207 = vmatmul.mubr.f32.gmra.mxu0 %v5135
  %v6208 = vpop.f32.mrf.mxu0
  %v6209 = vpop.f32.mrf.mxu0
  %6210 = vmatprep.mubr.f32.mxu0 0.0
  %6211 = vmatmul.mubr.f32.gmra.mxu0 %v5138
  %v6212 = vpop.f32.mrf.mxu0
  %v6213 = vadd.f32 0.0, %v6212
  %v6214 = vpop.f32.mrf.mxu0
  %6215 = vmatprep.mubr.f32.mxu0 0.0
  %6216 = vmatmul.mubr.f32.gmra.mxu0 %v5141
  %v6217 = vpop.f32.mrf.mxu0
  %v6218 = vadd.f32 0.0, %v6217
  %v6219 = vpop.f32.mrf.mxu0
  %6220 = vmatprep.mubr.f32.mxu0 0.0
  %6221 = vmatmul.mubr.f32.gmra.mxu0 %v5144
  %v6222 = vpop.f32.mrf.mxu0
  %v6223 = vpop.f32.mrf.mxu0
  %6224 = vmatprep.mubr.f32.mxu0 0.0
  %6225 = vmatmul.mubr.f32.gmra.mxu0 %v5147
  %v6226 = vpop.f32.mrf.mxu0
  %v6227 = vadd.f32 0.0, %v6226
  %v6228 = vpop.f32.mrf.mxu0
  %6229 = vmatprep.mubr.f32.mxu0 0.0
  %6230 = vmatmul.mubr.f32.gmra.mxu0 %v5150
  %v6231 = vpop.f32.mrf.mxu0
  %v6232 = vadd.f32 0.0, %v6231
  %v6233 = vpop.f32.mrf.mxu0
  %6234 = vmatprep.mubr.f32.mxu0 0.0
  %6235 = vmatmul.mubr.f32.gmra.mxu0 %v5153
  %v6236 = vpop.f32.mrf.mxu0
  %v6237 = vpop.f32.mrf.mxu0
  %6238 = vmatprep.mubr.f32.mxu0 0.0
  %6239 = vmatmul.mubr.f32.gmra.mxu0 %v5156
  %v6240 = vpop.f32.mrf.mxu0
  %v6241 = vadd.f32 0.0, %v6240
  %v6242 = vpop.f32.mrf.mxu0
  %6243 = vmatprep.mubr.f32.mxu0 0.0
  %6244 = vmatmul.mubr.f32.gmra.mxu0 %v5159
  %v6245 = vpop.f32.mrf.mxu0
  %v6246 = vadd.f32 0.0, %v6245
  %v6247 = vpop.f32.mrf.mxu0
  %6248 = vmatprep.mubr.f32.mxu0 0.0
  %6249 = vmatmul.mubr.f32.gmra.mxu0 %v5162
  %v6250 = vpop.f32.mrf.mxu0
  %v6251 = vpop.f32.mrf.mxu0
  %6252 = vmatprep.mubr.f32.mxu0 0.0
  %6253 = vmatmul.mubr.f32.gmra.mxu0 %v5165
  %v6254 = vpop.f32.mrf.mxu0
  %v6255 = vadd.f32 0.0, %v6254
  %v6256 = vpop.f32.mrf.mxu0
  %6257 = vmatprep.mubr.f32.mxu0 0.0
  %6258 = vmatmul.mubr.f32.gmra.mxu0 %v5168
  %v6259 = vpop.f32.mrf.mxu0
  %v6260 = vadd.f32 0.0, %v6259
  %v6261 = vpop.f32.mrf.mxu0
  %6262 = vmatprep.mubr.f32.mxu0 0.0
  %6263 = vmatmul.mubr.f32.gmra.mxu0 %v5171
  %v6264 = vpop.f32.mrf.mxu0
  %v6265 = vpop.f32.mrf.mxu0
  %6266 = vmatprep.mubr.f32.mxu0 0.0
  %6267 = vmatmul.mubr.f32.gmra.mxu0 %v5174
  %v6268 = vpop.f32.mrf.mxu0
  %v6269 = vadd.f32 0.0, %v6268
  %v6270 = vpop.f32.mrf.mxu0
  %6271 = vmatprep.mubr.f32.mxu0 0.0
  %6272 = vmatmul.mubr.f32.gmra.mxu0 %v5177
  %v6273 = vpop.f32.mrf.mxu0
  %v6274 = vadd.f32 0.0, %v6273
  %v6275 = vpop.f32.mrf.mxu0
  %6276 = vmatprep.mubr.f32.mxu0 0.0
  %6277 = vmatmul.mubr.f32.gmra.mxu0 %v5180
  %v6278 = vpop.f32.mrf.mxu0
  %v6279 = vpop.f32.mrf.mxu0
  %6280 = vmatprep.mubr.f32.mxu0 0.0
  %6281 = vmatmul.mubr.f32.gmra.mxu0 %v5183
  %v6282 = vpop.f32.mrf.mxu0
  %v6283 = vadd.f32 0.0, %v6282
  %v6284 = vpop.f32.mrf.mxu0
  %6285 = vmatprep.mubr.f32.mxu0 0.0
  %6286 = vmatmul.mubr.f32.gmra.mxu0 %v5186
  %v6287 = vpop.f32.mrf.mxu0
  %v6288 = vadd.f32 0.0, %v6287
  %v6289 = vpop.f32.mrf.mxu0
  %6290 = vmatprep.mubr.f32.mxu0 0.0
  %6291 = vmatmul.mubr.f32.gmra.mxu0 %v5189
  %v6292 = vpop.f32.mrf.mxu0
  %v6293 = vpop.f32.mrf.mxu0
  %6294 = vmatprep.mubr.f32.mxu0 0.0
  %6295 = vmatmul.mubr.f32.gmra.mxu0 %v5192
  %v6296 = vpop.f32.mrf.mxu0
  %v6297 = vadd.f32 0.0, %v6296
  %v6298 = vpop.f32.mrf.mxu0
  %6299 = vmatprep.mubr.f32.mxu0 0.0
  %6300 = vmatmul.mubr.f32.gmra.mxu0 %v5195
  %v6301 = vpop.f32.mrf.mxu0
  %v6302 = vadd.f32 0.0, %v6301
  %v6303 = vpop.f32.mrf.mxu0
  %6304 = vmatprep.mubr.f32.mxu0 0.0
  %6305 = vmatmul.mubr.f32.gmra.mxu0 %v5198
  %v6306 = vpop.f32.mrf.mxu0
  %v6307 = vpop.f32.mrf.mxu0
  %6308 = vmatprep.mubr.f32.mxu0 0.0
  %6309 = vmatmul.mubr.f32.gmra.mxu0 %v5201
  %v6310 = vpop.f32.mrf.mxu0
  %v6311 = vadd.f32 0.0, %v6310
  %v6312 = vpop.f32.mrf.mxu0
  %6313 = vmatprep.mubr.f32.mxu0 0.0
  %6314 = vmatmul.mubr.f32.gmra.mxu0 %v5204
  %v6315 = vpop.f32.mrf.mxu0
  %v6316 = vadd.f32 0.0, %v6315
  %v6317 = vpop.f32.mrf.mxu0
  %6318 = vmatprep.mubr.f32.mxu0 0.0
  %6319 = vmatmul.mubr.f32.gmra.mxu0 %v5207
  %v6320 = vpop.f32.mrf.mxu0
  %v6321 = vpop.f32.mrf.mxu0
  %6322 = vdwg.mxu0
  %s6323 = scalar_lea.vmem %s4, 8
  %v6324 = vld [vmem:[%s6323] sm:$0xf]
  %v6326 = vsel %vm395, %v6324, 0
  %6328 = vmatprep.subr.mxu0 0.0
  %6329 = vmatpush1.msra.mxu0 0.0
  %6330 = vmatprep.subr.mxu0 0.0
  %6331 = vmatpush1.msra.mxu0 0.0
  %6332 = vmatprep.subr.mxu0 0.0
  %6333 = vmatpush1.msra.mxu0 0.0
  %6334 = vmatprep.subr.mxu0 0.0
  %6335 = vmatpush1.msra.mxu0 0.0
  %6336 = vmatprep.subr.mxu0 0.0
  %6337 = vmatpush1.msra.mxu0 0.0
  %6338 = vmatprep.subr.mxu0 0.0
  %6339 = vmatpush1.msra.mxu0 0.0
  %6340 = vmatprep.subr.mxu0 0.0
  %6341 = vmatpush1.msra.mxu0 0.0
  %6342 = vmatprep.subr.mxu0 0.0
  %6343 = vmatpush1.msra.mxu0 0.0
  %6344 = vmatprep.subr.mxu0 0.0
  %6345 = vmatpush1.msra.mxu0 0.0
  %6346 = vmatprep.subr.mxu0 0.0
  %6347 = vmatpush1.msra.mxu0 0.0
  %6348 = vmatprep.subr.mxu0 0.0
  %6349 = vmatpush1.msra.mxu0 0.0
  %6350 = vmatprep.subr.mxu0 0.0
  %6351 = vmatpush1.msra.mxu0 0.0
  %6352 = vmatprep.subr.mxu0 0.0
  %6353 = vmatpush1.msra.mxu0 0.0
  %6354 = vmatprep.subr.mxu0 0.0
  %6355 = vmatpush1.msra.mxu0 0.0
  %6356 = vmatprep.subr.mxu0 0.0
  %6357 = vmatpush1.msra.mxu0 0.0
  %6358 = vmatprep.subr.mxu0 0.0
  %6359 = vmatpush1.msra.mxu0 %v6326
  %6360 = vmatprep.subr.mxu0 0.0
  %6361 = vmatpush2.msra.mxu0 0.0
  %6362 = vmatprep.subr.mxu0 0.0
  %6363 = vmatpush2.msra.mxu0 0.0
  %6364 = vmatprep.subr.mxu0 0.0
  %6365 = vmatpush2.msra.mxu0 0.0
  %6366 = vmatprep.subr.mxu0 0.0
  %6367 = vmatpush2.msra.mxu0 0.0
  %6368 = vmatprep.subr.mxu0 0.0
  %6369 = vmatpush2.msra.mxu0 0.0
  %6370 = vmatprep.subr.mxu0 0.0
  %6371 = vmatpush2.msra.mxu0 0.0
  %6372 = vmatprep.subr.mxu0 0.0
  %6373 = vmatpush2.msra.mxu0 0.0
  %6374 = vmatprep.subr.mxu0 0.0
  %6375 = vmatpush2.msra.mxu0 0.0
  %6376 = vmatprep.subr.mxu0 0.0
  %6377 = vmatpush2.msra.mxu0 0.0
  %6378 = vmatprep.subr.mxu0 0.0
  %6379 = vmatpush2.msra.mxu0 0.0
  %6380 = vmatprep.subr.mxu0 0.0
  %6381 = vmatpush2.msra.mxu0 0.0
  %6382 = vmatprep.subr.mxu0 0.0
  %6383 = vmatpush2.msra.mxu0 0.0
  %6384 = vmatprep.subr.mxu0 0.0
  %6385 = vmatpush2.msra.mxu0 0.0
  %6386 = vmatprep.subr.mxu0 0.0
  %6387 = vmatpush2.msra.mxu0 0.0
  %6388 = vmatprep.subr.mxu0 0.0
  %6389 = vmatpush2.msra.mxu0 0.0
  %6390 = vmatprep.subr.mxu0 0.0
  %6391 = vmatpush2.msra.mxu0 0.0
  %6392 = vmatprep.mubr.f32.mxu0 0.0
  %6393 = vmatmul.mubr.f32.gmra.mxu0 %v4904
  %v6394 = vpop.f32.mrf.mxu0
  %v6395 = vadd.f32 0.0, %v6394
  %v6396 = vpop.f32.mrf.mxu0
  %6397 = vmatprep.mubr.f32.mxu0 0.0
  %6398 = vmatmul.mubr.f32.gmra.mxu0 %v4907
  %v6399 = vpop.f32.mrf.mxu0
  %v6400 = vadd.f32 0.0, %v6399
  %v6401 = vpop.f32.mrf.mxu0
  %6402 = vmatprep.mubr.f32.mxu0 0.0
  %6403 = vmatmul.mubr.f32.gmra.mxu0 %v4910
  %v6404 = vpop.f32.mrf.mxu0
  %v6405 = vadd.f32 0.0, %v6404
  %v6406 = vpop.f32.mrf.mxu0
  %6407 = vmatprep.mubr.f32.mxu0 0.0
  %6408 = vmatmul.mubr.f32.gmra.mxu0 %v4913
  %v6409 = vpop.f32.mrf.mxu0
  %v6410 = vadd.f32 0.0, %v6409
  %v6411 = vpop.f32.mrf.mxu0
  %6412 = vmatprep.mubr.f32.mxu0 0.0
  %6413 = vmatmul.mubr.f32.gmra.mxu0 %v4916
  %v6414 = vpop.f32.mrf.mxu0
  %v6415 = vadd.f32 0.0, %v6414
  %v6416 = vpop.f32.mrf.mxu0
  %6417 = vmatprep.mubr.f32.mxu0 0.0
  %6418 = vmatmul.mubr.f32.gmra.mxu0 %v4919
  %v6419 = vpop.f32.mrf.mxu0
  %v6420 = vadd.f32 0.0, %v6419
  %v6421 = vpop.f32.mrf.mxu0
  %6422 = vmatprep.mubr.f32.mxu0 0.0
  %6423 = vmatmul.mubr.f32.gmra.mxu0 %v4922
  %v6424 = vpop.f32.mrf.mxu0
  %v6425 = vadd.f32 0.0, %v6424
  %v6426 = vpop.f32.mrf.mxu0
  %6427 = vmatprep.mubr.f32.mxu0 0.0
  %6428 = vmatmul.mubr.f32.gmra.mxu0 %v4925
  %v6429 = vpop.f32.mrf.mxu0
  %v6430 = vadd.f32 0.0, %v6429
  %v6431 = vpop.f32.mrf.mxu0
  %6432 = vmatprep.mubr.f32.mxu0 0.0
  %6433 = vmatmul.mubr.f32.gmra.mxu0 %v4928
  %v6434 = vpop.f32.mrf.mxu0
  %v6435 = vadd.f32 0.0, %v6434
  %v6436 = vpop.f32.mrf.mxu0
  %6437 = vmatprep.mubr.f32.mxu0 0.0
  %6438 = vmatmul.mubr.f32.gmra.mxu0 %v4931
  %v6439 = vpop.f32.mrf.mxu0
  %v6440 = vadd.f32 0.0, %v6439
  %v6441 = vpop.f32.mrf.mxu0
  %6442 = vmatprep.mubr.f32.mxu0 0.0
  %6443 = vmatmul.mubr.f32.gmra.mxu0 %v4934
  %v6444 = vpop.f32.mrf.mxu0
  %v6445 = vadd.f32 0.0, %v6444
  %v6446 = vpop.f32.mrf.mxu0
  %6447 = vmatprep.mubr.f32.mxu0 0.0
  %6448 = vmatmul.mubr.f32.gmra.mxu0 %v4937
  %v6449 = vpop.f32.mrf.mxu0
  %v6450 = vadd.f32 0.0, %v6449
  %v6451 = vpop.f32.mrf.mxu0
  %6452 = vmatprep.mubr.f32.mxu0 0.0
  %6453 = vmatmul.mubr.f32.gmra.mxu0 %v4940
  %v6454 = vpop.f32.mrf.mxu0
  %v6455 = vadd.f32 0.0, %v6454
  %v6456 = vpop.f32.mrf.mxu0
  %6457 = vmatprep.mubr.f32.mxu0 0.0
  %6458 = vmatmul.mubr.f32.gmra.mxu0 %v4943
  %v6459 = vpop.f32.mrf.mxu0
  %v6460 = vadd.f32 0.0, %v6459
  %v6461 = vpop.f32.mrf.mxu0
  %6462 = vmatprep.mubr.f32.mxu0 0.0
  %6463 = vmatmul.mubr.f32.gmra.mxu0 %v4946
  %v6464 = vpop.f32.mrf.mxu0
  %v6465 = vadd.f32 0.0, %v6464
  %v6466 = vpop.f32.mrf.mxu0
  %6467 = vmatprep.mubr.f32.mxu0 0.0
  %6468 = vmatmul.mubr.f32.gmra.mxu0 %v4949
  %v6469 = vpop.f32.mrf.mxu0
  %v6470 = vadd.f32 0.0, %v6469
  %v6471 = vpop.f32.mrf.mxu0
  %6472 = vmatprep.mubr.f32.mxu0 0.0
  %6473 = vmatmul.mubr.f32.gmra.mxu0 %v4952
  %v6474 = vpop.f32.mrf.mxu0
  %v6475 = vadd.f32 0.0, %v6474
  %v6476 = vpop.f32.mrf.mxu0
  %6477 = vmatprep.mubr.f32.mxu0 0.0
  %6478 = vmatmul.mubr.f32.gmra.mxu0 %v4955
  %v6479 = vpop.f32.mrf.mxu0
  %v6480 = vadd.f32 0.0, %v6479
  %v6481 = vpop.f32.mrf.mxu0
  %6482 = vmatprep.mubr.f32.mxu0 0.0
  %6483 = vmatmul.mubr.f32.gmra.mxu0 %v4958
  %v6484 = vpop.f32.mrf.mxu0
  %v6485 = vadd.f32 0.0, %v6484
  %v6486 = vpop.f32.mrf.mxu0
  %6487 = vmatprep.mubr.f32.mxu0 0.0
  %6488 = vmatmul.mubr.f32.gmra.mxu0 %v4961
  %v6489 = vpop.f32.mrf.mxu0
  %v6490 = vadd.f32 0.0, %v6489
  %v6491 = vpop.f32.mrf.mxu0
  %6492 = vmatprep.mubr.f32.mxu0 0.0
  %6493 = vmatmul.mubr.f32.gmra.mxu0 %v4964
  %v6494 = vpop.f32.mrf.mxu0
  %v6495 = vadd.f32 0.0, %v6494
  %v6496 = vpop.f32.mrf.mxu0
  %6497 = vmatprep.mubr.f32.mxu0 0.0
  %6498 = vmatmul.mubr.f32.gmra.mxu0 %v4967
  %v6499 = vpop.f32.mrf.mxu0
  %v6500 = vadd.f32 0.0, %v6499
  %v6501 = vpop.f32.mrf.mxu0
  %6502 = vmatprep.mubr.f32.mxu0 0.0
  %6503 = vmatmul.mubr.f32.gmra.mxu0 %v4970
  %v6504 = vpop.f32.mrf.mxu0
  %v6505 = vadd.f32 0.0, %v6504
  %v6506 = vpop.f32.mrf.mxu0
  %6507 = vmatprep.mubr.f32.mxu0 0.0
  %6508 = vmatmul.mubr.f32.gmra.mxu0 %v4973
  %v6509 = vpop.f32.mrf.mxu0
  %v6510 = vadd.f32 0.0, %v6509
  %v6511 = vpop.f32.mrf.mxu0
  %6512 = vmatprep.mubr.f32.mxu0 0.0
  %6513 = vmatmul.mubr.f32.gmra.mxu0 %v4976
  %v6514 = vpop.f32.mrf.mxu0
  %v6515 = vadd.f32 0.0, %v6514
  %v6516 = vpop.f32.mrf.mxu0
  %6517 = vmatprep.mubr.f32.mxu0 0.0
  %6518 = vmatmul.mubr.f32.gmra.mxu0 %v4979
  %v6519 = vpop.f32.mrf.mxu0
  %v6520 = vadd.f32 0.0, %v6519
  %v6521 = vpop.f32.mrf.mxu0
  %6522 = vmatprep.mubr.f32.mxu0 0.0
  %6523 = vmatmul.mubr.f32.gmra.mxu0 %v4982
  %v6524 = vpop.f32.mrf.mxu0
  %v6525 = vadd.f32 0.0, %v6524
  %v6526 = vpop.f32.mrf.mxu0
  %6527 = vmatprep.mubr.f32.mxu0 0.0
  %6528 = vmatmul.mubr.f32.gmra.mxu0 %v4985
  %v6529 = vpop.f32.mrf.mxu0
  %v6530 = vadd.f32 0.0, %v6529
  %v6531 = vpop.f32.mrf.mxu0
  %6532 = vmatprep.mubr.f32.mxu0 0.0
  %6533 = vmatmul.mubr.f32.gmra.mxu0 %v4988
  %v6534 = vpop.f32.mrf.mxu0
  %v6535 = vadd.f32 0.0, %v6534
  %v6536 = vpop.f32.mrf.mxu0
  %6537 = vmatprep.mubr.f32.mxu0 0.0
  %6538 = vmatmul.mubr.f32.gmra.mxu0 %v4991
  %v6539 = vpop.f32.mrf.mxu0
  %v6540 = vadd.f32 0.0, %v6539
  %v6541 = vpop.f32.mrf.mxu0
  %6542 = vmatprep.mubr.f32.mxu0 0.0
  %6543 = vmatmul.mubr.f32.gmra.mxu0 %v4994
  %v6544 = vpop.f32.mrf.mxu0
  %v6545 = vadd.f32 0.0, %v6544
  %v6546 = vpop.f32.mrf.mxu0
  %6547 = vmatprep.mubr.f32.mxu0 0.0
  %6548 = vmatmul.mubr.f32.gmra.mxu0 %v4997
  %v6549 = vpop.f32.mrf.mxu0
  %v6550 = vadd.f32 0.0, %v6549
  %v6551 = vpop.f32.mrf.mxu0
  %6552 = vmatprep.mubr.f32.mxu0 0.0
  %6553 = vmatmul.mubr.f32.gmra.mxu0 %v5000
  %v6554 = vpop.f32.mrf.mxu0
  %v6555 = vadd.f32 0.0, %v6554
  %v6556 = vpop.f32.mrf.mxu0
  %6557 = vmatprep.mubr.f32.mxu0 0.0
  %6558 = vmatmul.mubr.f32.gmra.mxu0 %v5003
  %v6559 = vpop.f32.mrf.mxu0
  %v6560 = vadd.f32 0.0, %v6559
  %v6561 = vpop.f32.mrf.mxu0
  %6562 = vmatprep.mubr.f32.mxu0 0.0
  %6563 = vmatmul.mubr.f32.gmra.mxu0 %v5006
  %v6564 = vpop.f32.mrf.mxu0
  %v6565 = vadd.f32 0.0, %v6564
  %v6566 = vpop.f32.mrf.mxu0
  %6567 = vmatprep.mubr.f32.mxu0 0.0
  %6568 = vmatmul.mubr.f32.gmra.mxu0 %v5009
  %v6569 = vpop.f32.mrf.mxu0
  %v6570 = vadd.f32 0.0, %v6569
  %v6571 = vpop.f32.mrf.mxu0
  %6572 = vmatprep.mubr.f32.mxu0 0.0
  %6573 = vmatmul.mubr.f32.gmra.mxu0 %v5012
  %v6574 = vpop.f32.mrf.mxu0
  %v6575 = vadd.f32 0.0, %v6574
  %v6576 = vpop.f32.mrf.mxu0
  %6577 = vmatprep.mubr.f32.mxu0 0.0
  %6578 = vmatmul.mubr.f32.gmra.mxu0 %v5015
  %v6579 = vpop.f32.mrf.mxu0
  %v6580 = vadd.f32 0.0, %v6579
  %v6581 = vpop.f32.mrf.mxu0
  %6582 = vmatprep.mubr.f32.mxu0 0.0
  %6583 = vmatmul.mubr.f32.gmra.mxu0 %v5018
  %v6584 = vpop.f32.mrf.mxu0
  %v6585 = vadd.f32 0.0, %v6584
  %v6586 = vpop.f32.mrf.mxu0
  %6587 = vmatprep.mubr.f32.mxu0 0.0
  %6588 = vmatmul.mubr.f32.gmra.mxu0 %v5021
  %v6589 = vpop.f32.mrf.mxu0
  %v6590 = vadd.f32 0.0, %v6589
  %v6591 = vpop.f32.mrf.mxu0
  %6592 = vmatprep.mubr.f32.mxu0 0.0
  %6593 = vmatmul.mubr.f32.gmra.mxu0 %v5024
  %v6594 = vpop.f32.mrf.mxu0
  %v6595 = vadd.f32 0.0, %v6594
  %v6596 = vpop.f32.mrf.mxu0
  %6597 = vmatprep.mubr.f32.mxu0 0.0
  %6598 = vmatmul.mubr.f32.gmra.mxu0 %v5027
  %v6599 = vpop.f32.mrf.mxu0
  %v6600 = vadd.f32 0.0, %v6599
  %v6601 = vpop.f32.mrf.mxu0
  %6602 = vmatprep.mubr.f32.mxu0 0.0
  %6603 = vmatmul.mubr.f32.gmra.mxu0 %v5030
  %v6604 = vpop.f32.mrf.mxu0
  %v6605 = vadd.f32 0.0, %v6604
  %v6606 = vpop.f32.mrf.mxu0
  %6607 = vmatprep.mubr.f32.mxu0 0.0
  %6608 = vmatmul.mubr.f32.gmra.mxu0 %v5033
  %v6609 = vpop.f32.mrf.mxu0
  %v6610 = vadd.f32 0.0, %v6609
  %v6611 = vpop.f32.mrf.mxu0
  %6612 = vmatprep.mubr.f32.mxu0 0.0
  %6613 = vmatmul.mubr.f32.gmra.mxu0 %v5036
  %v6614 = vpop.f32.mrf.mxu0
  %v6615 = vadd.f32 0.0, %v6614
  %v6616 = vpop.f32.mrf.mxu0
  %6617 = vmatprep.mubr.f32.mxu0 0.0
  %6618 = vmatmul.mubr.f32.gmra.mxu0 %v5039
  %v6619 = vpop.f32.mrf.mxu0
  %v6620 = vadd.f32 0.0, %v6619
  %v6621 = vpop.f32.mrf.mxu0
  %6622 = vmatprep.mubr.f32.mxu0 0.0
  %6623 = vmatmul.mubr.f32.gmra.mxu0 %v5042
  %v6624 = vpop.f32.mrf.mxu0
  %v6625 = vadd.f32 0.0, %v6624
  %v6626 = vpop.f32.mrf.mxu0
  %6627 = vmatprep.mubr.f32.mxu0 0.0
  %6628 = vmatmul.mubr.f32.gmra.mxu0 %v5045
  %v6629 = vpop.f32.mrf.mxu0
  %v6630 = vadd.f32 0.0, %v6629
  %v6631 = vpop.f32.mrf.mxu0
  %6632 = vmatprep.mubr.f32.mxu0 0.0
  %6633 = vmatmul.mubr.f32.gmra.mxu0 %v5048
  %v6634 = vpop.f32.mrf.mxu0
  %v6635 = vpop.f32.mrf.mxu0
  %6636 = vmatprep.mubr.f32.mxu0 0.0
  %6637 = vmatmul.mubr.f32.gmra.mxu0 %v5051
  %v6638 = vpop.f32.mrf.mxu0
  %v6639 = vpop.f32.mrf.mxu0
  %6640 = vmatprep.mubr.f32.mxu0 0.0
  %6641 = vmatmul.mubr.f32.gmra.mxu0 %v5054
  %v6642 = vpop.f32.mrf.mxu0
  %v6643 = vpop.f32.mrf.mxu0
  %6644 = vmatprep.mubr.f32.mxu0 0.0
  %6645 = vmatmul.mubr.f32.gmra.mxu0 %v5057
  %v6646 = vpop.f32.mrf.mxu0
  %v6647 = vadd.f32 0.0, %v6646
  %v6648 = vpop.f32.mrf.mxu0
  %6649 = vmatprep.mubr.f32.mxu0 0.0
  %6650 = vmatmul.mubr.f32.gmra.mxu0 %v5060
  %v6651 = vpop.f32.mrf.mxu0
  %v6652 = vadd.f32 0.0, %v6651
  %v6653 = vpop.f32.mrf.mxu0
  %6654 = vmatprep.mubr.f32.mxu0 0.0
  %6655 = vmatmul.mubr.f32.gmra.mxu0 %v5063
  %v6656 = vpop.f32.mrf.mxu0
  %v6657 = vadd.f32 0.0, %v6656
  %v6658 = vpop.f32.mrf.mxu0
  %6659 = vmatprep.mubr.f32.mxu0 0.0
  %6660 = vmatmul.mubr.f32.gmra.mxu0 %v5066
  %v6661 = vpop.f32.mrf.mxu0
  %v6662 = vadd.f32 0.0, %v6661
  %v6663 = vpop.f32.mrf.mxu0
  %6664 = vmatprep.mubr.f32.mxu0 0.0
  %6665 = vmatmul.mubr.f32.gmra.mxu0 %v5069
  %v6666 = vpop.f32.mrf.mxu0
  %v6667 = vadd.f32 0.0, %v6666
  %v6668 = vpop.f32.mrf.mxu0
  %6669 = vmatprep.mubr.f32.mxu0 0.0
  %6670 = vmatmul.mubr.f32.gmra.mxu0 %v5072
  %v6671 = vpop.f32.mrf.mxu0
  %v6672 = vadd.f32 0.0, %v6671
  %v6673 = vpop.f32.mrf.mxu0
  %6674 = vmatprep.mubr.f32.mxu0 0.0
  %6675 = vmatmul.mubr.f32.gmra.mxu0 %v5075
  %v6676 = vpop.f32.mrf.mxu0
  %v6677 = vadd.f32 0.0, %v6676
  %v6678 = vpop.f32.mrf.mxu0
  %6679 = vmatprep.mubr.f32.mxu0 0.0
  %6680 = vmatmul.mubr.f32.gmra.mxu0 %v5078
  %v6681 = vpop.f32.mrf.mxu0
  %v6682 = vadd.f32 0.0, %v6681
  %v6683 = vpop.f32.mrf.mxu0
  %6684 = vmatprep.mubr.f32.mxu0 0.0
  %6685 = vmatmul.mubr.f32.gmra.mxu0 %v5081
  %v6686 = vpop.f32.mrf.mxu0
  %v6687 = vadd.f32 0.0, %v6686
  %v6688 = vpop.f32.mrf.mxu0
  %6689 = vmatprep.mubr.f32.mxu0 0.0
  %6690 = vmatmul.mubr.f32.gmra.mxu0 %v5084
  %v6691 = vpop.f32.mrf.mxu0
  %v6692 = vadd.f32 0.0, %v6691
  %v6693 = vpop.f32.mrf.mxu0
  %6694 = vmatprep.mubr.f32.mxu0 0.0
  %6695 = vmatmul.mubr.f32.gmra.mxu0 %v5087
  %v6696 = vpop.f32.mrf.mxu0
  %v6697 = vadd.f32 0.0, %v6696
  %v6698 = vpop.f32.mrf.mxu0
  %6699 = vmatprep.mubr.f32.mxu0 0.0
  %6700 = vmatmul.mubr.f32.gmra.mxu0 %v5090
  %v6701 = vpop.f32.mrf.mxu0
  %v6702 = vadd.f32 0.0, %v6701
  %v6703 = vpop.f32.mrf.mxu0
  %6704 = vmatprep.mubr.f32.mxu0 0.0
  %6705 = vmatmul.mubr.f32.gmra.mxu0 %v5093
  %v6706 = vpop.f32.mrf.mxu0
  %v6707 = vadd.f32 0.0, %v6706
  %v6708 = vpop.f32.mrf.mxu0
  %6709 = vmatprep.mubr.f32.mxu0 0.0
  %6710 = vmatmul.mubr.f32.gmra.mxu0 %v5096
  %v6711 = vpop.f32.mrf.mxu0
  %v6712 = vadd.f32 0.0, %v6711
  %v6713 = vpop.f32.mrf.mxu0
  %6714 = vmatprep.mubr.f32.mxu0 0.0
  %6715 = vmatmul.mubr.f32.gmra.mxu0 %v5099
  %v6716 = vpop.f32.mrf.mxu0
  %v6717 = vadd.f32 0.0, %v6716
  %v6718 = vpop.f32.mrf.mxu0
  %6719 = vmatprep.mubr.f32.mxu0 0.0
  %6720 = vmatmul.mubr.f32.gmra.mxu0 %v5102
  %v6721 = vpop.f32.mrf.mxu0
  %v6722 = vadd.f32 0.0, %v6721
  %v6723 = vpop.f32.mrf.mxu0
  %6724 = vmatprep.mubr.f32.mxu0 0.0
  %6725 = vmatmul.mubr.f32.gmra.mxu0 %v5105
  %v6726 = vpop.f32.mrf.mxu0
  %v6727 = vadd.f32 0.0, %v6726
  %v6728 = vpop.f32.mrf.mxu0
  %6729 = vmatprep.mubr.f32.mxu0 0.0
  %6730 = vmatmul.mubr.f32.gmra.mxu0 %v5108
  %v6731 = vpop.f32.mrf.mxu0
  %v6732 = vadd.f32 0.0, %v6731
  %v6733 = vpop.f32.mrf.mxu0
  %6734 = vmatprep.mubr.f32.mxu0 0.0
  %6735 = vmatmul.mubr.f32.gmra.mxu0 %v5111
  %v6736 = vpop.f32.mrf.mxu0
  %v6737 = vadd.f32 0.0, %v6736
  %v6738 = vpop.f32.mrf.mxu0
  %6739 = vmatprep.mubr.f32.mxu0 0.0
  %6740 = vmatmul.mubr.f32.gmra.mxu0 %v5114
  %v6741 = vpop.f32.mrf.mxu0
  %v6742 = vadd.f32 0.0, %v6741
  %v6743 = vpop.f32.mrf.mxu0
  %6744 = vmatprep.mubr.f32.mxu0 0.0
  %6745 = vmatmul.mubr.f32.gmra.mxu0 %v5117
  %v6746 = vpop.f32.mrf.mxu0
  %v6747 = vadd.f32 0.0, %v6746
  %v6748 = vpop.f32.mrf.mxu0
  %6749 = vmatprep.mubr.f32.mxu0 0.0
  %6750 = vmatmul.mubr.f32.gmra.mxu0 %v5120
  %v6751 = vpop.f32.mrf.mxu0
  %v6752 = vadd.f32 0.0, %v6751
  %v6753 = vpop.f32.mrf.mxu0
  %6754 = vmatprep.mubr.f32.mxu0 0.0
  %6755 = vmatmul.mubr.f32.gmra.mxu0 %v5123
  %v6756 = vpop.f32.mrf.mxu0
  %v6757 = vadd.f32 0.0, %v6756
  %v6758 = vpop.f32.mrf.mxu0
  %6759 = vmatprep.mubr.f32.mxu0 0.0
  %6760 = vmatmul.mubr.f32.gmra.mxu0 %v5126
  %v6761 = vpop.f32.mrf.mxu0
  %v6762 = vadd.f32 0.0, %v6761
  %v6763 = vpop.f32.mrf.mxu0
  %6764 = vmatprep.mubr.f32.mxu0 0.0
  %6765 = vmatmul.mubr.f32.gmra.mxu0 %v5129
  %v6766 = vpop.f32.mrf.mxu0
  %v6767 = vadd.f32 0.0, %v6766
  %v6768 = vpop.f32.mrf.mxu0
  %6769 = vmatprep.mubr.f32.mxu0 0.0
  %6770 = vmatmul.mubr.f32.gmra.mxu0 %v5132
  %v6771 = vpop.f32.mrf.mxu0
  %v6772 = vadd.f32 0.0, %v6771
  %v6773 = vpop.f32.mrf.mxu0
  %6774 = vmatprep.mubr.f32.mxu0 0.0
  %6775 = vmatmul.mubr.f32.gmra.mxu0 %v5135
  %v6776 = vpop.f32.mrf.mxu0
  %v6777 = vadd.f32 0.0, %v6776
  %v6778 = vpop.f32.mrf.mxu0
  %6779 = vmatprep.mubr.f32.mxu0 0.0
  %6780 = vmatmul.mubr.f32.gmra.mxu0 %v5138
  %v6781 = vpop.f32.mrf.mxu0
  %v6782 = vadd.f32 0.0, %v6781
  %v6783 = vpop.f32.mrf.mxu0
  %6784 = vmatprep.mubr.f32.mxu0 0.0
  %6785 = vmatmul.mubr.f32.gmra.mxu0 %v5141
  %v6786 = vpop.f32.mrf.mxu0
  %v6787 = vadd.f32 0.0, %v6786
  %v6788 = vpop.f32.mrf.mxu0
  %6789 = vmatprep.mubr.f32.mxu0 0.0
  %6790 = vmatmul.mubr.f32.gmra.mxu0 %v5144
  %v6791 = vpop.f32.mrf.mxu0
  %v6792 = vadd.f32 0.0, %v6791
  %v6793 = vpop.f32.mrf.mxu0
  %6794 = vmatprep.mubr.f32.mxu0 0.0
  %6795 = vmatmul.mubr.f32.gmra.mxu0 %v5147
  %v6796 = vpop.f32.mrf.mxu0
  %v6797 = vadd.f32 0.0, %v6796
  %v6798 = vpop.f32.mrf.mxu0
  %6799 = vmatprep.mubr.f32.mxu0 0.0
  %6800 = vmatmul.mubr.f32.gmra.mxu0 %v5150
  %v6801 = vpop.f32.mrf.mxu0
  %v6802 = vadd.f32 0.0, %v6801
  %v6803 = vpop.f32.mrf.mxu0
  %6804 = vmatprep.mubr.f32.mxu0 0.0
  %6805 = vmatmul.mubr.f32.gmra.mxu0 %v5153
  %v6806 = vpop.f32.mrf.mxu0
  %v6807 = vadd.f32 0.0, %v6806
  %v6808 = vpop.f32.mrf.mxu0
  %6809 = vmatprep.mubr.f32.mxu0 0.0
  %6810 = vmatmul.mubr.f32.gmra.mxu0 %v5156
  %v6811 = vpop.f32.mrf.mxu0
  %v6812 = vadd.f32 0.0, %v6811
  %v6813 = vpop.f32.mrf.mxu0
  %6814 = vmatprep.mubr.f32.mxu0 0.0
  %6815 = vmatmul.mubr.f32.gmra.mxu0 %v5159
  %v6816 = vpop.f32.mrf.mxu0
  %v6817 = vadd.f32 0.0, %v6816
  %v6818 = vpop.f32.mrf.mxu0
  %6819 = vmatprep.mubr.f32.mxu0 0.0
  %6820 = vmatmul.mubr.f32.gmra.mxu0 %v5162
  %v6821 = vpop.f32.mrf.mxu0
  %v6822 = vadd.f32 0.0, %v6821
  %v6823 = vpop.f32.mrf.mxu0
  %6824 = vmatprep.mubr.f32.mxu0 0.0
  %6825 = vmatmul.mubr.f32.gmra.mxu0 %v5165
  %v6826 = vpop.f32.mrf.mxu0
  %v6827 = vadd.f32 0.0, %v6826
  %v6828 = vpop.f32.mrf.mxu0
  %6829 = vmatprep.mubr.f32.mxu0 0.0
  %6830 = vmatmul.mubr.f32.gmra.mxu0 %v5168
  %v6831 = vpop.f32.mrf.mxu0
  %v6832 = vadd.f32 0.0, %v6831
  %v6833 = vpop.f32.mrf.mxu0
  %6834 = vmatprep.mubr.f32.mxu0 0.0
  %6835 = vmatmul.mubr.f32.gmra.mxu0 %v5171
  %v6836 = vpop.f32.mrf.mxu0
  %v6837 = vadd.f32 0.0, %v6836
  %v6838 = vpop.f32.mrf.mxu0
  %6839 = vmatprep.mubr.f32.mxu0 0.0
  %6840 = vmatmul.mubr.f32.gmra.mxu0 %v5174
  %v6841 = vpop.f32.mrf.mxu0
  %v6842 = vadd.f32 0.0, %v6841
  %v6843 = vpop.f32.mrf.mxu0
  %6844 = vmatprep.mubr.f32.mxu0 0.0
  %6845 = vmatmul.mubr.f32.gmra.mxu0 %v5177
  %v6846 = vpop.f32.mrf.mxu0
  %v6847 = vadd.f32 0.0, %v6846
  %v6848 = vpop.f32.mrf.mxu0
  %6849 = vmatprep.mubr.f32.mxu0 0.0
  %6850 = vmatmul.mubr.f32.gmra.mxu0 %v5180
  %v6851 = vpop.f32.mrf.mxu0
  %v6852 = vadd.f32 0.0, %v6851
  %v6853 = vpop.f32.mrf.mxu0
  %6854 = vmatprep.mubr.f32.mxu0 0.0
  %6855 = vmatmul.mubr.f32.gmra.mxu0 %v5183
  %v6856 = vpop.f32.mrf.mxu0
  %v6857 = vadd.f32 0.0, %v6856
  %v6858 = vpop.f32.mrf.mxu0
  %6859 = vmatprep.mubr.f32.mxu0 0.0
  %6860 = vmatmul.mubr.f32.gmra.mxu0 %v5186
  %v6861 = vpop.f32.mrf.mxu0
  %v6862 = vadd.f32 0.0, %v6861
  %v6863 = vpop.f32.mrf.mxu0
  %6864 = vmatprep.mubr.f32.mxu0 0.0
  %6865 = vmatmul.mubr.f32.gmra.mxu0 %v5189
  %v6866 = vpop.f32.mrf.mxu0
  %v6867 = vadd.f32 0.0, %v6866
  %v6868 = vpop.f32.mrf.mxu0
  %6869 = vmatprep.mubr.f32.mxu0 0.0
  %6870 = vmatmul.mubr.f32.gmra.mxu0 %v5192
  %v6871 = vpop.f32.mrf.mxu0
  %v6872 = vadd.f32 0.0, %v6871
  %v6873 = vpop.f32.mrf.mxu0
  %6874 = vmatprep.mubr.f32.mxu0 0.0
  %6875 = vmatmul.mubr.f32.gmra.mxu0 %v5195
  %v6876 = vpop.f32.mrf.mxu0
  %v6877 = vadd.f32 0.0, %v6876
  %v6878 = vpop.f32.mrf.mxu0
  %6879 = vmatprep.mubr.f32.mxu0 0.0
  %6880 = vmatmul.mubr.f32.gmra.mxu0 %v5198
  %v6881 = vpop.f32.mrf.mxu0
  %v6882 = vadd.f32 0.0, %v6881
  %v6883 = vpop.f32.mrf.mxu0
  %6884 = vmatprep.mubr.f32.mxu0 0.0
  %6885 = vmatmul.mubr.f32.gmra.mxu0 %v5201
  %v6886 = vpop.f32.mrf.mxu0
  %v6887 = vpop.f32.mrf.mxu0
  %6888 = vmatprep.mubr.f32.mxu0 0.0
  %6889 = vmatmul.mubr.f32.gmra.mxu0 %v5204
  %v6890 = vpop.f32.mrf.mxu0
  %v6891 = vpop.f32.mrf.mxu0
  %6892 = vmatprep.mubr.f32.mxu0 0.0
  %6893 = vmatmul.mubr.f32.gmra.mxu0 %v5207
  %v6894 = vpop.f32.mrf.mxu0
  %v6895 = vpop.f32.mrf.mxu0
  %6896 = vdwg.mxu0
  %s6897 = scalar_lea.vmem %s4, 12
  %v6898 = vld [vmem:[%s6897] sm:$0xf]
  %v6900 = vsel %vm395, %v6898, 0
  %6902 = vmatprep.subr.mxu0 0.0
  %6903 = vmatpush1.msra.mxu0 0.0
  %6904 = vmatprep.subr.mxu0 0.0
  %6905 = vmatpush1.msra.mxu0 0.0
  %6906 = vmatprep.subr.mxu0 0.0
  %6907 = vmatpush1.msra.mxu0 0.0
  %6908 = vmatprep.subr.mxu0 0.0
  %6909 = vmatpush1.msra.mxu0 0.0
  %6910 = vmatprep.subr.mxu0 0.0
  %6911 = vmatpush1.msra.mxu0 0.0
  %6912 = vmatprep.subr.mxu0 0.0
  %6913 = vmatpush1.msra.mxu0 0.0
  %6914 = vmatprep.subr.mxu0 0.0
  %6915 = vmatpush1.msra.mxu0 0.0
  %6916 = vmatprep.subr.mxu0 0.0
  %6917 = vmatpush1.msra.mxu0 0.0
  %6918 = vmatprep.subr.mxu0 0.0
  %6919 = vmatpush1.msra.mxu0 0.0
  %6920 = vmatprep.subr.mxu0 0.0
  %6921 = vmatpush1.msra.mxu0 0.0
  %6922 = vmatprep.subr.mxu0 0.0
  %6923 = vmatpush1.msra.mxu0 0.0
  %6924 = vmatprep.subr.mxu0 0.0
  %6925 = vmatpush1.msra.mxu0 0.0
  %6926 = vmatprep.subr.mxu0 0.0
  %6927 = vmatpush1.msra.mxu0 0.0
  %6928 = vmatprep.subr.mxu0 0.0
  %6929 = vmatpush1.msra.mxu0 0.0
  %6930 = vmatprep.subr.mxu0 0.0
  %6931 = vmatpush1.msra.mxu0 0.0
  %6932 = vmatprep.subr.mxu0 0.0
  %6933 = vmatpush1.msra.mxu0 %v6900
  %6934 = vmatprep.subr.mxu0 0.0
  %6935 = vmatpush2.msra.mxu0 0.0
  %6936 = vmatprep.subr.mxu0 0.0
  %6937 = vmatpush2.msra.mxu0 0.0
  %6938 = vmatprep.subr.mxu0 0.0
  %6939 = vmatpush2.msra.mxu0 0.0
  %6940 = vmatprep.subr.mxu0 0.0
  %6941 = vmatpush2.msra.mxu0 0.0
  %6942 = vmatprep.subr.mxu0 0.0
  %6943 = vmatpush2.msra.mxu0 0.0
  %6944 = vmatprep.subr.mxu0 0.0
  %6945 = vmatpush2.msra.mxu0 0.0
  %6946 = vmatprep.subr.mxu0 0.0
  %6947 = vmatpush2.msra.mxu0 0.0
  %6948 = vmatprep.subr.mxu0 0.0
  %6949 = vmatpush2.msra.mxu0 0.0
  %6950 = vmatprep.subr.mxu0 0.0
  %6951 = vmatpush2.msra.mxu0 0.0
  %6952 = vmatprep.subr.mxu0 0.0
  %6953 = vmatpush2.msra.mxu0 0.0
  %6954 = vmatprep.subr.mxu0 0.0
  %6955 = vmatpush2.msra.mxu0 0.0
  %6956 = vmatprep.subr.mxu0 0.0
  %6957 = vmatpush2.msra.mxu0 0.0
  %6958 = vmatprep.subr.mxu0 0.0
  %6959 = vmatpush2.msra.mxu0 0.0
  %6960 = vmatprep.subr.mxu0 0.0
  %6961 = vmatpush2.msra.mxu0 0.0
  %6962 = vmatprep.subr.mxu0 0.0
  %6963 = vmatpush2.msra.mxu0 0.0
  %6964 = vmatprep.subr.mxu0 0.0
  %6965 = vmatpush2.msra.mxu0 0.0
  %6966 = vmatprep.mubr.f32.mxu0 0.0
  %6967 = vmatmul.mubr.f32.gmra.mxu0 %v4904
  %v6968 = vpop.f32.mrf.mxu0
  %v6969 = vadd.f32 0.0, %v6968
  %v6970 = vpop.f32.mrf.mxu0
  %6971 = vmatprep.mubr.f32.mxu0 0.0
  %6972 = vmatmul.mubr.f32.gmra.mxu0 %v4907
  %v6973 = vpop.f32.mrf.mxu0
  %v6974 = vadd.f32 0.0, %v6973
  %v6975 = vpop.f32.mrf.mxu0
  %6976 = vmatprep.mubr.f32.mxu0 0.0
  %6977 = vmatmul.mubr.f32.gmra.mxu0 %v4910
  %v6978 = vpop.f32.mrf.mxu0
  %v6979 = vpop.f32.mrf.mxu0
  %6980 = vmatprep.mubr.f32.mxu0 0.0
  %6981 = vmatmul.mubr.f32.gmra.mxu0 %v4913
  %v6982 = vpop.f32.mrf.mxu0
  %v6983 = vadd.f32 0.0, %v6982
  %v6984 = vpop.f32.mrf.mxu0
  %6985 = vmatprep.mubr.f32.mxu0 0.0
  %6986 = vmatmul.mubr.f32.gmra.mxu0 %v4916
  %v6987 = vpop.f32.mrf.mxu0
  %v6988 = vadd.f32 0.0, %v6987
  %v6989 = vpop.f32.mrf.mxu0
  %6990 = vmatprep.mubr.f32.mxu0 0.0
  %6991 = vmatmul.mubr.f32.gmra.mxu0 %v4919
  %v6992 = vpop.f32.mrf.mxu0
  %v6993 = vpop.f32.mrf.mxu0
  %6994 = vmatprep.mubr.f32.mxu0 0.0
  %6995 = vmatmul.mubr.f32.gmra.mxu0 %v4922
  %v6996 = vpop.f32.mrf.mxu0
  %v6997 = vadd.f32 0.0, %v6996
  %v6998 = vpop.f32.mrf.mxu0
  %6999 = vmatprep.mubr.f32.mxu0 0.0
  %7000 = vmatmul.mubr.f32.gmra.mxu0 %v4925
  %v7001 = vpop.f32.mrf.mxu0
  %v7002 = vadd.f32 0.0, %v7001
  %v7003 = vpop.f32.mrf.mxu0
  %7004 = vmatprep.mubr.f32.mxu0 0.0
  %7005 = vmatmul.mubr.f32.gmra.mxu0 %v4928
  %v7006 = vpop.f32.mrf.mxu0
  %v7007 = vpop.f32.mrf.mxu0
  %7008 = vmatprep.mubr.f32.mxu0 0.0
  %7009 = vmatmul.mubr.f32.gmra.mxu0 %v4931
  %v7010 = vpop.f32.mrf.mxu0
  %v7011 = vadd.f32 0.0, %v7010
  %v7012 = vpop.f32.mrf.mxu0
  %7013 = vmatprep.mubr.f32.mxu0 0.0
  %7014 = vmatmul.mubr.f32.gmra.mxu0 %v4934
  %v7015 = vpop.f32.mrf.mxu0
  %v7016 = vadd.f32 0.0, %v7015
  %v7017 = vpop.f32.mrf.mxu0
  %7018 = vmatprep.mubr.f32.mxu0 0.0
  %7019 = vmatmul.mubr.f32.gmra.mxu0 %v4937
  %v7020 = vpop.f32.mrf.mxu0
  %v7021 = vpop.f32.mrf.mxu0
  %7022 = vmatprep.mubr.f32.mxu0 0.0
  %7023 = vmatmul.mubr.f32.gmra.mxu0 %v4940
  %v7024 = vpop.f32.mrf.mxu0
  %v7025 = vadd.f32 0.0, %v7024
  %v7026 = vpop.f32.mrf.mxu0
  %7027 = vmatprep.mubr.f32.mxu0 0.0
  %7028 = vmatmul.mubr.f32.gmra.mxu0 %v4943
  %v7029 = vpop.f32.mrf.mxu0
  %v7030 = vadd.f32 0.0, %v7029
  %v7031 = vpop.f32.mrf.mxu0
  %7032 = vmatprep.mubr.f32.mxu0 0.0
  %7033 = vmatmul.mubr.f32.gmra.mxu0 %v4946
  %v7034 = vpop.f32.mrf.mxu0
  %v7035 = vpop.f32.mrf.mxu0
  %7036 = vmatprep.mubr.f32.mxu0 0.0
  %7037 = vmatmul.mubr.f32.gmra.mxu0 %v4949
  %v7038 = vpop.f32.mrf.mxu0
  %v7039 = vadd.f32 0.0, %v7038
  %v7040 = vpop.f32.mrf.mxu0
  %7041 = vmatprep.mubr.f32.mxu0 0.0
  %7042 = vmatmul.mubr.f32.gmra.mxu0 %v4952
  %v7043 = vpop.f32.mrf.mxu0
  %v7044 = vadd.f32 0.0, %v7043
  %v7045 = vpop.f32.mrf.mxu0
  %7046 = vmatprep.mubr.f32.mxu0 0.0
  %7047 = vmatmul.mubr.f32.gmra.mxu0 %v4955
  %v7048 = vpop.f32.mrf.mxu0
  %v7049 = vpop.f32.mrf.mxu0
  %7050 = vmatprep.mubr.f32.mxu0 0.0
  %7051 = vmatmul.mubr.f32.gmra.mxu0 %v4958
  %v7052 = vpop.f32.mrf.mxu0
  %v7053 = vadd.f32 0.0, %v7052
  %v7054 = vpop.f32.mrf.mxu0
  %7055 = vmatprep.mubr.f32.mxu0 0.0
  %7056 = vmatmul.mubr.f32.gmra.mxu0 %v4961
  %v7057 = vpop.f32.mrf.mxu0
  %v7058 = vadd.f32 0.0, %v7057
  %v7059 = vpop.f32.mrf.mxu0
  %7060 = vmatprep.mubr.f32.mxu0 0.0
  %7061 = vmatmul.mubr.f32.gmra.mxu0 %v4964
  %v7062 = vpop.f32.mrf.mxu0
  %v7063 = vpop.f32.mrf.mxu0
  %7064 = vmatprep.mubr.f32.mxu0 0.0
  %7065 = vmatmul.mubr.f32.gmra.mxu0 %v4967
  %v7066 = vpop.f32.mrf.mxu0
  %v7067 = vadd.f32 0.0, %v7066
  %v7068 = vpop.f32.mrf.mxu0
  %7069 = vmatprep.mubr.f32.mxu0 0.0
  %7070 = vmatmul.mubr.f32.gmra.mxu0 %v4970
  %v7071 = vpop.f32.mrf.mxu0
  %v7072 = vadd.f32 0.0, %v7071
  %v7073 = vpop.f32.mrf.mxu0
  %7074 = vmatprep.mubr.f32.mxu0 0.0
  %7075 = vmatmul.mubr.f32.gmra.mxu0 %v4973
  %v7076 = vpop.f32.mrf.mxu0
  %v7077 = vpop.f32.mrf.mxu0
  %7078 = vmatprep.mubr.f32.mxu0 0.0
  %7079 = vmatmul.mubr.f32.gmra.mxu0 %v4976
  %v7080 = vpop.f32.mrf.mxu0
  %v7081 = vadd.f32 0.0, %v7080
  %v7082 = vpop.f32.mrf.mxu0
  %7083 = vmatprep.mubr.f32.mxu0 0.0
  %7084 = vmatmul.mubr.f32.gmra.mxu0 %v4979
  %v7085 = vpop.f32.mrf.mxu0
  %v7086 = vadd.f32 0.0, %v7085
  %v7087 = vpop.f32.mrf.mxu0
  %7088 = vmatprep.mubr.f32.mxu0 0.0
  %7089 = vmatmul.mubr.f32.gmra.mxu0 %v4982
  %v7090 = vpop.f32.mrf.mxu0
  %v7091 = vpop.f32.mrf.mxu0
  %7092 = vmatprep.mubr.f32.mxu0 0.0
  %7093 = vmatmul.mubr.f32.gmra.mxu0 %v4985
  %v7094 = vpop.f32.mrf.mxu0
  %v7095 = vadd.f32 0.0, %v7094
  %v7096 = vpop.f32.mrf.mxu0
  %7097 = vmatprep.mubr.f32.mxu0 0.0
  %7098 = vmatmul.mubr.f32.gmra.mxu0 %v4988
  %v7099 = vpop.f32.mrf.mxu0
  %v7100 = vadd.f32 0.0, %v7099
  %v7101 = vpop.f32.mrf.mxu0
  %7102 = vmatprep.mubr.f32.mxu0 0.0
  %7103 = vmatmul.mubr.f32.gmra.mxu0 %v4991
  %v7104 = vpop.f32.mrf.mxu0
  %v7105 = vpop.f32.mrf.mxu0
  %7106 = vmatprep.mubr.f32.mxu0 0.0
  %7107 = vmatmul.mubr.f32.gmra.mxu0 %v4994
  %v7108 = vpop.f32.mrf.mxu0
  %v7109 = vadd.f32 0.0, %v7108
  %v7110 = vpop.f32.mrf.mxu0
  %7111 = vmatprep.mubr.f32.mxu0 0.0
  %7112 = vmatmul.mubr.f32.gmra.mxu0 %v4997
  %v7113 = vpop.f32.mrf.mxu0
  %v7114 = vadd.f32 0.0, %v7113
  %v7115 = vpop.f32.mrf.mxu0
  %7116 = vmatprep.mubr.f32.mxu0 0.0
  %7117 = vmatmul.mubr.f32.gmra.mxu0 %v5000
  %v7118 = vpop.f32.mrf.mxu0
  %v7119 = vpop.f32.mrf.mxu0
  %7120 = vmatprep.mubr.f32.mxu0 0.0
  %7121 = vmatmul.mubr.f32.gmra.mxu0 %v5003
  %v7122 = vpop.f32.mrf.mxu0
  %v7123 = vadd.f32 0.0, %v7122
  %v7124 = vpop.f32.mrf.mxu0
  %7125 = vmatprep.mubr.f32.mxu0 0.0
  %7126 = vmatmul.mubr.f32.gmra.mxu0 %v5006
  %v7127 = vpop.f32.mrf.mxu0
  %v7128 = vadd.f32 0.0, %v7127
  %v7129 = vpop.f32.mrf.mxu0
  %7130 = vmatprep.mubr.f32.mxu0 0.0
  %7131 = vmatmul.mubr.f32.gmra.mxu0 %v5009
  %v7132 = vpop.f32.mrf.mxu0
  %v7133 = vpop.f32.mrf.mxu0
  %7134 = vmatprep.mubr.f32.mxu0 0.0
  %7135 = vmatmul.mubr.f32.gmra.mxu0 %v5012
  %v7136 = vpop.f32.mrf.mxu0
  %v7137 = vadd.f32 0.0, %v7136
  %v7138 = vpop.f32.mrf.mxu0
  %7139 = vmatprep.mubr.f32.mxu0 0.0
  %7140 = vmatmul.mubr.f32.gmra.mxu0 %v5015
  %v7141 = vpop.f32.mrf.mxu0
  %v7142 = vadd.f32 0.0, %v7141
  %v7143 = vpop.f32.mrf.mxu0
  %7144 = vmatprep.mubr.f32.mxu0 0.0
  %7145 = vmatmul.mubr.f32.gmra.mxu0 %v5018
  %v7146 = vpop.f32.mrf.mxu0
  %v7147 = vpop.f32.mrf.mxu0
  %7148 = vmatprep.mubr.f32.mxu0 0.0
  %7149 = vmatmul.mubr.f32.gmra.mxu0 %v5021
  %v7150 = vpop.f32.mrf.mxu0
  %v7151 = vadd.f32 0.0, %v7150
  %v7152 = vpop.f32.mrf.mxu0
  %7153 = vmatprep.mubr.f32.mxu0 0.0
  %7154 = vmatmul.mubr.f32.gmra.mxu0 %v5024
  %v7155 = vpop.f32.mrf.mxu0
  %v7156 = vadd.f32 0.0, %v7155
  %v7157 = vpop.f32.mrf.mxu0
  %7158 = vmatprep.mubr.f32.mxu0 0.0
  %7159 = vmatmul.mubr.f32.gmra.mxu0 %v5027
  %v7160 = vpop.f32.mrf.mxu0
  %v7161 = vpop.f32.mrf.mxu0
  %7162 = vmatprep.mubr.f32.mxu0 0.0
  %7163 = vmatmul.mubr.f32.gmra.mxu0 %v5030
  %v7164 = vpop.f32.mrf.mxu0
  %v7165 = vadd.f32 0.0, %v7164
  %v7166 = vpop.f32.mrf.mxu0
  %7167 = vmatprep.mubr.f32.mxu0 0.0
  %7168 = vmatmul.mubr.f32.gmra.mxu0 %v5033
  %v7169 = vpop.f32.mrf.mxu0
  %v7170 = vadd.f32 0.0, %v7169
  %v7171 = vpop.f32.mrf.mxu0
  %7172 = vmatprep.mubr.f32.mxu0 0.0
  %7173 = vmatmul.mubr.f32.gmra.mxu0 %v5036
  %v7174 = vpop.f32.mrf.mxu0
  %v7175 = vpop.f32.mrf.mxu0
  %7176 = vmatprep.mubr.f32.mxu0 0.0
  %7177 = vmatmul.mubr.f32.gmra.mxu0 %v5039
  %v7178 = vpop.f32.mrf.mxu0
  %v7179 = vadd.f32 0.0, %v7178
  %v7180 = vpop.f32.mrf.mxu0
  %7181 = vmatprep.mubr.f32.mxu0 0.0
  %7182 = vmatmul.mubr.f32.gmra.mxu0 %v5042
  %v7183 = vpop.f32.mrf.mxu0
  %v7184 = vadd.f32 0.0, %v7183
  %v7185 = vpop.f32.mrf.mxu0
  %7186 = vmatprep.mubr.f32.mxu0 0.0
  %7187 = vmatmul.mubr.f32.gmra.mxu0 %v5045
  %v7188 = vpop.f32.mrf.mxu0
  %v7189 = vpop.f32.mrf.mxu0
  %7190 = vmatprep.mubr.f32.mxu0 0.0
  %7191 = vmatmul.mubr.f32.gmra.mxu0 %v5048
  %v7192 = vpop.f32.mrf.mxu0
  %v7193 = vpop.f32.mrf.mxu0
  %7194 = vmatprep.mubr.f32.mxu0 0.0
  %7195 = vmatmul.mubr.f32.gmra.mxu0 %v5051
  %v7196 = vpop.f32.mrf.mxu0
  %v7197 = vpop.f32.mrf.mxu0
  %7198 = vmatprep.mubr.f32.mxu0 0.0
  %7199 = vmatmul.mubr.f32.gmra.mxu0 %v5054
  %v7200 = vpop.f32.mrf.mxu0
  %v7201 = vpop.f32.mrf.mxu0
  %7202 = vmatprep.mubr.f32.mxu0 0.0
  %7203 = vmatmul.mubr.f32.gmra.mxu0 %v5057
  %v7204 = vpop.f32.mrf.mxu0
  %v7205 = vadd.f32 0.0, %v7204
  %v7206 = vpop.f32.mrf.mxu0
  %7207 = vmatprep.mubr.f32.mxu0 0.0
  %7208 = vmatmul.mubr.f32.gmra.mxu0 %v5060
  %v7209 = vpop.f32.mrf.mxu0
  %v7210 = vadd.f32 0.0, %v7209
  %v7211 = vpop.f32.mrf.mxu0
  %7212 = vmatprep.mubr.f32.mxu0 0.0
  %7213 = vmatmul.mubr.f32.gmra.mxu0 %v5063
  %v7214 = vpop.f32.mrf.mxu0
  %v7215 = vpop.f32.mrf.mxu0
  %7216 = vmatprep.mubr.f32.mxu0 0.0
  %7217 = vmatmul.mubr.f32.gmra.mxu0 %v5066
  %v7218 = vpop.f32.mrf.mxu0
  %v7219 = vadd.f32 0.0, %v7218
  %v7220 = vpop.f32.mrf.mxu0
  %7221 = vmatprep.mubr.f32.mxu0 0.0
  %7222 = vmatmul.mubr.f32.gmra.mxu0 %v5069
  %v7223 = vpop.f32.mrf.mxu0
  %v7224 = vadd.f32 0.0, %v7223
  %v7225 = vpop.f32.mrf.mxu0
  %7226 = vmatprep.mubr.f32.mxu0 0.0
  %7227 = vmatmul.mubr.f32.gmra.mxu0 %v5072
  %v7228 = vpop.f32.mrf.mxu0
  %v7229 = vpop.f32.mrf.mxu0
  %7230 = vmatprep.mubr.f32.mxu0 0.0
  %7231 = vmatmul.mubr.f32.gmra.mxu0 %v5075
  %v7232 = vpop.f32.mrf.mxu0
  %v7233 = vadd.f32 0.0, %v7232
  %v7234 = vpop.f32.mrf.mxu0
  %7235 = vmatprep.mubr.f32.mxu0 0.0
  %7236 = vmatmul.mubr.f32.gmra.mxu0 %v5078
  %v7237 = vpop.f32.mrf.mxu0
  %v7238 = vadd.f32 0.0, %v7237
  %v7239 = vpop.f32.mrf.mxu0
  %7240 = vmatprep.mubr.f32.mxu0 0.0
  %7241 = vmatmul.mubr.f32.gmra.mxu0 %v5081
  %v7242 = vpop.f32.mrf.mxu0
  %v7243 = vpop.f32.mrf.mxu0
  %7244 = vmatprep.mubr.f32.mxu0 0.0
  %7245 = vmatmul.mubr.f32.gmra.mxu0 %v5084
  %v7246 = vpop.f32.mrf.mxu0
  %v7247 = vadd.f32 0.0, %v7246
  %v7248 = vpop.f32.mrf.mxu0
  %7249 = vmatprep.mubr.f32.mxu0 0.0
  %7250 = vmatmul.mubr.f32.gmra.mxu0 %v5087
  %v7251 = vpop.f32.mrf.mxu0
  %v7252 = vadd.f32 0.0, %v7251
  %v7253 = vpop.f32.mrf.mxu0
  %7254 = vmatprep.mubr.f32.mxu0 0.0
  %7255 = vmatmul.mubr.f32.gmra.mxu0 %v5090
  %v7256 = vpop.f32.mrf.mxu0
  %v7257 = vpop.f32.mrf.mxu0
  %7258 = vmatprep.mubr.f32.mxu0 0.0
  %7259 = vmatmul.mubr.f32.gmra.mxu0 %v5093
  %v7260 = vpop.f32.mrf.mxu0
  %v7261 = vadd.f32 0.0, %v7260
  %v7262 = vpop.f32.mrf.mxu0
  %7263 = vmatprep.mubr.f32.mxu0 0.0
  %7264 = vmatmul.mubr.f32.gmra.mxu0 %v5096
  %v7265 = vpop.f32.mrf.mxu0
  %v7266 = vadd.f32 0.0, %v7265
  %v7267 = vpop.f32.mrf.mxu0
  %7268 = vmatprep.mubr.f32.mxu0 0.0
  %7269 = vmatmul.mubr.f32.gmra.mxu0 %v5099
  %v7270 = vpop.f32.mrf.mxu0
  %v7271 = vpop.f32.mrf.mxu0
  %7272 = vmatprep.mubr.f32.mxu0 0.0
  %7273 = vmatmul.mubr.f32.gmra.mxu0 %v5102
  %v7274 = vpop.f32.mrf.mxu0
  %v7275 = vadd.f32 0.0, %v7274
  %v7276 = vpop.f32.mrf.mxu0
  %7277 = vmatprep.mubr.f32.mxu0 0.0
  %7278 = vmatmul.mubr.f32.gmra.mxu0 %v5105
  %v7279 = vpop.f32.mrf.mxu0
  %v7280 = vadd.f32 0.0, %v7279
  %v7281 = vpop.f32.mrf.mxu0
  %7282 = vmatprep.mubr.f32.mxu0 0.0
  %7283 = vmatmul.mubr.f32.gmra.mxu0 %v5108
  %v7284 = vpop.f32.mrf.mxu0
  %v7285 = vpop.f32.mrf.mxu0
  %7286 = vmatprep.mubr.f32.mxu0 0.0
  %7287 = vmatmul.mubr.f32.gmra.mxu0 %v5111
  %v7288 = vpop.f32.mrf.mxu0
  %v7289 = vadd.f32 0.0, %v7288
  %v7290 = vpop.f32.mrf.mxu0
  %7291 = vmatprep.mubr.f32.mxu0 0.0
  %7292 = vmatmul.mubr.f32.gmra.mxu0 %v5114
  %v7293 = vpop.f32.mrf.mxu0
  %v7294 = vadd.f32 0.0, %v7293
  %v7295 = vpop.f32.mrf.mxu0
  %7296 = vmatprep.mubr.f32.mxu0 0.0
  %7297 = vmatmul.mubr.f32.gmra.mxu0 %v5117
  %v7298 = vpop.f32.mrf.mxu0
  %v7299 = vpop.f32.mrf.mxu0
  %7300 = vmatprep.mubr.f32.mxu0 0.0
  %7301 = vmatmul.mubr.f32.gmra.mxu0 %v5120
  %v7302 = vpop.f32.mrf.mxu0
  %v7303 = vadd.f32 0.0, %v7302
  %v7304 = vpop.f32.mrf.mxu0
  %7305 = vmatprep.mubr.f32.mxu0 0.0
  %7306 = vmatmul.mubr.f32.gmra.mxu0 %v5123
  %v7307 = vpop.f32.mrf.mxu0
  %v7308 = vadd.f32 0.0, %v7307
  %v7309 = vpop.f32.mrf.mxu0
  %7310 = vmatprep.mubr.f32.mxu0 0.0
  %7311 = vmatmul.mubr.f32.gmra.mxu0 %v5126
  %v7312 = vpop.f32.mrf.mxu0
  %v7313 = vpop.f32.mrf.mxu0
  %7314 = vmatprep.mubr.f32.mxu0 0.0
  %7315 = vmatmul.mubr.f32.gmra.mxu0 %v5129
  %v7316 = vpop.f32.mrf.mxu0
  %v7317 = vadd.f32 0.0, %v7316
  %v7318 = vpop.f32.mrf.mxu0
  %7319 = vmatprep.mubr.f32.mxu0 0.0
  %7320 = vmatmul.mubr.f32.gmra.mxu0 %v5132
  %v7321 = vpop.f32.mrf.mxu0
  %v7322 = vadd.f32 0.0, %v7321
  %v7323 = vpop.f32.mrf.mxu0
  %7324 = vmatprep.mubr.f32.mxu0 0.0
  %7325 = vmatmul.mubr.f32.gmra.mxu0 %v5135
  %v7326 = vpop.f32.mrf.mxu0
  %v7327 = vpop.f32.mrf.mxu0
  %7328 = vmatprep.mubr.f32.mxu0 0.0
  %7329 = vmatmul.mubr.f32.gmra.mxu0 %v5138
  %v7330 = vpop.f32.mrf.mxu0
  %v7331 = vadd.f32 0.0, %v7330
  %v7332 = vpop.f32.mrf.mxu0
  %7333 = vmatprep.mubr.f32.mxu0 0.0
  %7334 = vmatmul.mubr.f32.gmra.mxu0 %v5141
  %v7335 = vpop.f32.mrf.mxu0
  %v7336 = vadd.f32 0.0, %v7335
  %v7337 = vpop.f32.mrf.mxu0
  %7338 = vmatprep.mubr.f32.mxu0 0.0
  %7339 = vmatmul.mubr.f32.gmra.mxu0 %v5144
  %v7340 = vpop.f32.mrf.mxu0
  %v7341 = vpop.f32.mrf.mxu0
  %7342 = vmatprep.mubr.f32.mxu0 0.0
  %7343 = vmatmul.mubr.f32.gmra.mxu0 %v5147
  %v7344 = vpop.f32.mrf.mxu0
  %v7345 = vadd.f32 0.0, %v7344
  %v7346 = vpop.f32.mrf.mxu0
  %7347 = vmatprep.mubr.f32.mxu0 0.0
  %7348 = vmatmul.mubr.f32.gmra.mxu0 %v5150
  %v7349 = vpop.f32.mrf.mxu0
  %v7350 = vadd.f32 0.0, %v7349
  %v7351 = vpop.f32.mrf.mxu0
  %7352 = vmatprep.mubr.f32.mxu0 0.0
  %7353 = vmatmul.mubr.f32.gmra.mxu0 %v5153
  %v7354 = vpop.f32.mrf.mxu0
  %v7355 = vpop.f32.mrf.mxu0
  %7356 = vmatprep.mubr.f32.mxu0 0.0
  %7357 = vmatmul.mubr.f32.gmra.mxu0 %v5156
  %v7358 = vpop.f32.mrf.mxu0
  %v7359 = vadd.f32 0.0, %v7358
  %v7360 = vpop.f32.mrf.mxu0
  %7361 = vmatprep.mubr.f32.mxu0 0.0
  %7362 = vmatmul.mubr.f32.gmra.mxu0 %v5159
  %v7363 = vpop.f32.mrf.mxu0
  %v7364 = vadd.f32 0.0, %v7363
  %v7365 = vpop.f32.mrf.mxu0
  %7366 = vmatprep.mubr.f32.mxu0 0.0
  %7367 = vmatmul.mubr.f32.gmra.mxu0 %v5162
  %v7368 = vpop.f32.mrf.mxu0
  %v7369 = vpop.f32.mrf.mxu0
  %7370 = vmatprep.mubr.f32.mxu0 0.0
  %7371 = vmatmul.mubr.f32.gmra.mxu0 %v5165
  %v7372 = vpop.f32.mrf.mxu0
  %v7373 = vadd.f32 0.0, %v7372
  %v7374 = vpop.f32.mrf.mxu0
  %7375 = vmatprep.mubr.f32.mxu0 0.0
  %7376 = vmatmul.mubr.f32.gmra.mxu0 %v5168
  %v7377 = vpop.f32.mrf.mxu0
  %v7378 = vadd.f32 0.0, %v7377
  %v7379 = vpop.f32.mrf.mxu0
  %7380 = vmatprep.mubr.f32.mxu0 0.0
  %7381 = vmatmul.mubr.f32.gmra.mxu0 %v5171
  %v7382 = vpop.f32.mrf.mxu0
  %v7383 = vpop.f32.mrf.mxu0
  %7384 = vmatprep.mubr.f32.mxu0 0.0
  %7385 = vmatmul.mubr.f32.gmra.mxu0 %v5174
  %v7386 = vpop.f32.mrf.mxu0
  %v7387 = vadd.f32 0.0, %v7386
  %v7388 = vpop.f32.mrf.mxu0
  %7389 = vmatprep.mubr.f32.mxu0 0.0
  %7390 = vmatmul.mubr.f32.gmra.mxu0 %v5177
  %v7391 = vpop.f32.mrf.mxu0
  %v7392 = vadd.f32 0.0, %v7391
  %v7393 = vpop.f32.mrf.mxu0
  %7394 = vmatprep.mubr.f32.mxu0 0.0
  %7395 = vmatmul.mubr.f32.gmra.mxu0 %v5180
  %v7396 = vpop.f32.mrf.mxu0
  %v7397 = vpop.f32.mrf.mxu0
  %7398 = vmatprep.mubr.f32.mxu0 0.0
  %7399 = vmatmul.mubr.f32.gmra.mxu0 %v5183
  %v7400 = vpop.f32.mrf.mxu0
  %v7401 = vadd.f32 0.0, %v7400
  %v7402 = vpop.f32.mrf.mxu0
  %7403 = vmatprep.mubr.f32.mxu0 0.0
  %7404 = vmatmul.mubr.f32.gmra.mxu0 %v5186
  %v7405 = vpop.f32.mrf.mxu0
  %v7406 = vadd.f32 0.0, %v7405
  %v7407 = vpop.f32.mrf.mxu0
  %7408 = vmatprep.mubr.f32.mxu0 0.0
  %7409 = vmatmul.mubr.f32.gmra.mxu0 %v5189
  %v7410 = vpop.f32.mrf.mxu0
  %v7411 = vpop.f32.mrf.mxu0
  %7412 = vmatprep.mubr.f32.mxu0 0.0
  %7413 = vmatmul.mubr.f32.gmra.mxu0 %v5192
  %v7414 = vpop.f32.mrf.mxu0
  %v7415 = vadd.f32 0.0, %v7414
  %v7416 = vpop.f32.mrf.mxu0
  %7417 = vmatprep.mubr.f32.mxu0 0.0
  %7418 = vmatmul.mubr.f32.gmra.mxu0 %v5195
  %v7419 = vpop.f32.mrf.mxu0
  %v7420 = vadd.f32 0.0, %v7419
  %v7421 = vpop.f32.mrf.mxu0
  %7422 = vmatprep.mubr.f32.mxu0 0.0
  %7423 = vmatmul.mubr.f32.gmra.mxu0 %v5198
  %v7424 = vpop.f32.mrf.mxu0
  %v7425 = vpop.f32.mrf.mxu0
  %7426 = vmatprep.mubr.f32.mxu0 0.0
  %7427 = vmatmul.mubr.f32.gmra.mxu0 %v5201
  %v7428 = vpop.f32.mrf.mxu0
  %v7429 = vpop.f32.mrf.mxu0
  %7430 = vmatprep.mubr.f32.mxu0 0.0
  %7431 = vmatmul.mubr.f32.gmra.mxu0 %v5204
  %v7432 = vpop.f32.mrf.mxu0
  %v7433 = vpop.f32.mrf.mxu0
  %7434 = vmatprep.mubr.f32.mxu0 0.0
  %7435 = vmatmul.mubr.f32.gmra.mxu0 %v5207
  %v7436 = vpop.f32.mrf.mxu0
  %v7437 = vpop.f32.mrf.mxu0
  %7438 = vdwg.mxu0
  %v7439 = vld [vmem:[%s5] sm:$0x1]
  %vm7504 = vcmask 1040384
  %v7505 = vrot.slane %v5865, 7
  %v7506 = vrot.slane %v5870, 7
  %v7507 = vsel %vm7504, %v7505, %v7506
  %v7508 = vrot.slane %v5879, 7
  %v7509 = vrot.slane %v5884, 7
  %v7510 = vsel %vm7504, %v7508, %v7509
  %v7511 = vrot.slane %v5893, 7
  %v7512 = vrot.slane %v5898, 7
  %v7513 = vsel %vm7504, %v7511, %v7512
  %v7514 = vrot.slane %v5907, 7
  %v7515 = vrot.slane %v5912, 7
  %v7516 = vsel %vm7504, %v7514, %v7515
  %v7517 = vrot.slane %v5921, 7
  %v7518 = vrot.slane %v5926, 7
  %v7519 = vsel %vm7504, %v7517, %v7518
  %v7520 = vrot.slane %v5935, 7
  %v7521 = vrot.slane %v5940, 7
  %v7522 = vsel %vm7504, %v7520, %v7521
  %v7523 = vrot.slane %v5949, 7
  %v7524 = vrot.slane %v5954, 7
  %v7525 = vsel %vm7504, %v7523, %v7524
  %v7526 = vrot.slane %v5963, 7
  %v7527 = vrot.slane %v5968, 7
  %v7528 = vsel %vm7504, %v7526, %v7527
  %v7529 = vrot.slane %v5977, 7
  %v7530 = vrot.slane %v5982, 7
  %v7531 = vsel %vm7504, %v7529, %v7530
  %v7532 = vrot.slane %v5991, 7
  %v7533 = vrot.slane %v5996, 7
  %v7534 = vsel %vm7504, %v7532, %v7533
  %v7535 = vrot.slane %v6005, 7
  %v7536 = vrot.slane %v6010, 7
  %v7537 = vsel %vm7504, %v7535, %v7536
  %v7538 = vrot.slane %v6019, 7
  %v7539 = vrot.slane %v6024, 7
  %v7540 = vsel %vm7504, %v7538, %v7539
  %v7541 = vrot.slane %v6033, 7
  %v7542 = vrot.slane %v6038, 7
  %v7543 = vsel %vm7504, %v7541, %v7542
  %v7544 = vrot.slane %v6047, 7
  %v7545 = vrot.slane %v6052, 7
  %v7546 = vsel %vm7504, %v7544, %v7545
  %v7547 = vrot.slane %v6061, 7
  %v7548 = vrot.slane %v6066, 7
  %v7549 = vsel %vm7504, %v7547, %v7548
  %v7550 = vrot.slane %v6075, 7
  %v7551 = vrot.slane %v6080, 7
  %v7552 = vsel %vm7504, %v7550, %v7551
  %v7553 = vrot.slane %v6101, 7
  %v7554 = vrot.slane %v6106, 7
  %v7555 = vsel %vm7504, %v7553, %v7554
  %v7556 = vrot.slane %v6115, 7
  %v7557 = vrot.slane %v6120, 7
  %v7558 = vsel %vm7504, %v7556, %v7557
  %v7559 = vrot.slane %v6129, 7
  %v7560 = vrot.slane %v6134, 7
  %v7561 = vsel %vm7504, %v7559, %v7560
  %v7562 = vrot.slane %v6143, 7
  %v7563 = vrot.slane %v6148, 7
  %v7564 = vsel %vm7504, %v7562, %v7563
  %v7565 = vrot.slane %v6157, 7
  %v7566 = vrot.slane %v6162, 7
  %v7567 = vsel %vm7504, %v7565, %v7566
  %v7568 = vrot.slane %v6171, 7
  %v7569 = vrot.slane %v6176, 7
  %v7570 = vsel %vm7504, %v7568, %v7569
  %v7571 = vrot.slane %v6185, 7
  %v7572 = vrot.slane %v6190, 7
  %v7573 = vsel %vm7504, %v7571, %v7572
  %v7574 = vrot.slane %v6199, 7
  %v7575 = vrot.slane %v6204, 7
  %v7576 = vsel %vm7504, %v7574, %v7575
  %v7577 = vrot.slane %v6213, 7
  %v7578 = vrot.slane %v6218, 7
  %v7579 = vsel %vm7504, %v7577, %v7578
  %v7580 = vrot.slane %v6227, 7
  %v7581 = vrot.slane %v6232, 7
  %v7582 = vsel %vm7504, %v7580, %v7581
  %v7583 = vrot.slane %v6241, 7
  %v7584 = vrot.slane %v6246, 7
  %v7585 = vsel %vm7504, %v7583, %v7584
  %v7586 = vrot.slane %v6255, 7
  %v7587 = vrot.slane %v6260, 7
  %v7588 = vsel %vm7504, %v7586, %v7587
  %v7589 = vrot.slane %v6269, 7
  %v7590 = vrot.slane %v6274, 7
  %v7591 = vsel %vm7504, %v7589, %v7590
  %v7592 = vrot.slane %v6283, 7
  %v7593 = vrot.slane %v6288, 7
  %v7594 = vsel %vm7504, %v7592, %v7593
  %v7595 = vrot.slane %v6297, 7
  %v7596 = vrot.slane %v6302, 7
  %v7597 = vsel %vm7504, %v7595, %v7596
  %v7598 = vrot.slane %v6311, 7
  %v7599 = vrot.slane %v6316, 7
  %v7600 = vsel %vm7504, %v7598, %v7599
  %v7697 = vadd.f32 %v5291, %v7505
  %v7698 = vadd.f32 %v5296, %v7507
  %v7699 = vadd.f32 %v5301, %v7506
  %v7700 = vadd.f32 %v5306, %v7508
  %v7701 = vadd.f32 %v5311, %v7510
  %v7702 = vadd.f32 %v5316, %v7509
  %v7703 = vadd.f32 %v5321, %v7511
  %v7704 = vadd.f32 %v5326, %v7513
  %v7705 = vadd.f32 %v5331, %v7512
  %v7706 = vadd.f32 %v5336, %v7514
  %v7707 = vadd.f32 %v5341, %v7516
  %v7708 = vadd.f32 %v5346, %v7515
  %v7709 = vadd.f32 %v5351, %v7517
  %v7710 = vadd.f32 %v5356, %v7519
  %v7711 = vadd.f32 %v5361, %v7518
  %v7712 = vadd.f32 %v5366, %v7520
  %v7713 = vadd.f32 %v5371, %v7522
  %v7714 = vadd.f32 %v5376, %v7521
  %v7715 = vadd.f32 %v5381, %v7523
  %v7716 = vadd.f32 %v5386, %v7525
  %v7717 = vadd.f32 %v5391, %v7524
  %v7718 = vadd.f32 %v5396, %v7526
  %v7719 = vadd.f32 %v5401, %v7528
  %v7720 = vadd.f32 %v5406, %v7527
  %v7721 = vadd.f32 %v5411, %v7529
  %v7722 = vadd.f32 %v5416, %v7531
  %v7723 = vadd.f32 %v5421, %v7530
  %v7724 = vadd.f32 %v5426, %v7532
  %v7725 = vadd.f32 %v5431, %v7534
  %v7726 = vadd.f32 %v5436, %v7533
  %v7727 = vadd.f32 %v5441, %v7535
  %v7728 = vadd.f32 %v5446, %v7537
  %v7729 = vadd.f32 %v5451, %v7536
  %v7730 = vadd.f32 %v5456, %v7538
  %v7731 = vadd.f32 %v5461, %v7540
  %v7732 = vadd.f32 %v5466, %v7539
  %v7733 = vadd.f32 %v5471, %v7541
  %v7734 = vadd.f32 %v5476, %v7543
  %v7735 = vadd.f32 %v5481, %v7542
  %v7736 = vadd.f32 %v5486, %v7544
  %v7737 = vadd.f32 %v5491, %v7546
  %v7738 = vadd.f32 %v5496, %v7545
  %v7739 = vadd.f32 %v5501, %v7547
  %v7740 = vadd.f32 %v5506, %v7549
  %v7741 = vadd.f32 %v5511, %v7548
  %v7742 = vadd.f32 %v5516, %v7550
  %v7743 = vadd.f32 %v5521, %v7552
  %v7744 = vadd.f32 %v5526, %v7551
  %v7745 = vadd.f32 %v5543, %v7553
  %v7746 = vadd.f32 %v5548, %v7555
  %v7747 = vadd.f32 %v5553, %v7554
  %v7748 = vadd.f32 %v5558, %v7556
  %v7749 = vadd.f32 %v5563, %v7558
  %v7750 = vadd.f32 %v5568, %v7557
  %v7751 = vadd.f32 %v5573, %v7559
  %v7752 = vadd.f32 %v5578, %v7561
  %v7753 = vadd.f32 %v5583, %v7560
  %v7754 = vadd.f32 %v5588, %v7562
  %v7755 = vadd.f32 %v5593, %v7564
  %v7756 = vadd.f32 %v5598, %v7563
  %v7757 = vadd.f32 %v5603, %v7565
  %v7758 = vadd.f32 %v5608, %v7567
  %v7759 = vadd.f32 %v5613, %v7566
  %v7760 = vadd.f32 %v5618, %v7568
  %v7761 = vadd.f32 %v5623, %v7570
  %v7762 = vadd.f32 %v5628, %v7569
  %v7763 = vadd.f32 %v5633, %v7571
  %v7764 = vadd.f32 %v5638, %v7573
  %v7765 = vadd.f32 %v5643, %v7572
  %v7766 = vadd.f32 %v5648, %v7574
  %v7767 = vadd.f32 %v5653, %v7576
  %v7768 = vadd.f32 %v5658, %v7575
  %v7769 = vadd.f32 %v5663, %v7577
  %v7770 = vadd.f32 %v5668, %v7579
  %v7771 = vadd.f32 %v5673, %v7578
  %v7772 = vadd.f32 %v5678, %v7580
  %v7773 = vadd.f32 %v5683, %v7582
  %v7774 = vadd.f32 %v5688, %v7581
  %v7775 = vadd.f32 %v5693, %v7583
  %v7776 = vadd.f32 %v5698, %v7585
  %v7777 = vadd.f32 %v5703, %v7584
  %v7778 = vadd.f32 %v5708, %v7586
  %v7779 = vadd.f32 %v5713, %v7588
  %v7780 = vadd.f32 %v5718, %v7587
  %v7781 = vadd.f32 %v5723, %v7589
  %v7782 = vadd.f32 %v5728, %v7591
  %v7783 = vadd.f32 %v5733, %v7590
  %v7784 = vadd.f32 %v5738, %v7592
  %v7785 = vadd.f32 %v5743, %v7594
  %v7786 = vadd.f32 %v5748, %v7593
  %v7787 = vadd.f32 %v5753, %v7595
  %v7788 = vadd.f32 %v5758, %v7597
  %v7789 = vadd.f32 %v5763, %v7596
  %v7790 = vadd.f32 %v5768, %v7598
  %v7791 = vadd.f32 %v5773, %v7600
  %v7792 = vadd.f32 %v5778, %v7599
  %v7793 = vadd.f32 %v7697, %v6395
  %v7794 = vadd.f32 %v7698, %v6400
  %v7795 = vadd.f32 %v7699, %v6405
  %v7796 = vadd.f32 %v7700, %v6410
  %v7797 = vadd.f32 %v7701, %v6415
  %v7798 = vadd.f32 %v7702, %v6420
  %v7799 = vadd.f32 %v7703, %v6425
  %v7800 = vadd.f32 %v7704, %v6430
  %v7801 = vadd.f32 %v7705, %v6435
  %v7802 = vadd.f32 %v7706, %v6440
  %v7803 = vadd.f32 %v7707, %v6445
  %v7804 = vadd.f32 %v7708, %v6450
  %v7805 = vadd.f32 %v7709, %v6455
  %v7806 = vadd.f32 %v7710, %v6460
  %v7807 = vadd.f32 %v7711, %v6465
  %v7808 = vadd.f32 %v7712, %v6470
  %v7809 = vadd.f32 %v7713, %v6475
  %v7810 = vadd.f32 %v7714, %v6480
  %v7811 = vadd.f32 %v7715, %v6485
  %v7812 = vadd.f32 %v7716, %v6490
  %v7813 = vadd.f32 %v7717, %v6495
  %v7814 = vadd.f32 %v7718, %v6500
  %v7815 = vadd.f32 %v7719, %v6505
  %v7816 = vadd.f32 %v7720, %v6510
  %v7817 = vadd.f32 %v7721, %v6515
  %v7818 = vadd.f32 %v7722, %v6520
  %v7819 = vadd.f32 %v7723, %v6525
  %v7820 = vadd.f32 %v7724, %v6530
  %v7821 = vadd.f32 %v7725, %v6535
  %v7822 = vadd.f32 %v7726, %v6540
  %v7823 = vadd.f32 %v7727, %v6545
  %v7824 = vadd.f32 %v7728, %v6550
  %v7825 = vadd.f32 %v7729, %v6555
  %v7826 = vadd.f32 %v7730, %v6560
  %v7827 = vadd.f32 %v7731, %v6565
  %v7828 = vadd.f32 %v7732, %v6570
  %v7829 = vadd.f32 %v7733, %v6575
  %v7830 = vadd.f32 %v7734, %v6580
  %v7831 = vadd.f32 %v7735, %v6585
  %v7832 = vadd.f32 %v7736, %v6590
  %v7833 = vadd.f32 %v7737, %v6595
  %v7834 = vadd.f32 %v7738, %v6600
  %v7835 = vadd.f32 %v7739, %v6605
  %v7836 = vadd.f32 %v7740, %v6610
  %v7837 = vadd.f32 %v7741, %v6615
  %v7838 = vadd.f32 %v7742, %v6620
  %v7839 = vadd.f32 %v7743, %v6625
  %v7840 = vadd.f32 %v7744, %v6630
  %v7841 = vadd.f32 %v7745, %v6647
  %v7842 = vadd.f32 %v7746, %v6652
  %v7843 = vadd.f32 %v7747, %v6657
  %v7844 = vadd.f32 %v7748, %v6662
  %v7845 = vadd.f32 %v7749, %v6667
  %v7846 = vadd.f32 %v7750, %v6672
  %v7847 = vadd.f32 %v7751, %v6677
  %v7848 = vadd.f32 %v7752, %v6682
  %v7849 = vadd.f32 %v7753, %v6687
  %v7850 = vadd.f32 %v7754, %v6692
  %v7851 = vadd.f32 %v7755, %v6697
  %v7852 = vadd.f32 %v7756, %v6702
  %v7853 = vadd.f32 %v7757, %v6707
  %v7854 = vadd.f32 %v7758, %v6712
  %v7855 = vadd.f32 %v7759, %v6717
  %v7856 = vadd.f32 %v7760, %v6722
  %v7857 = vadd.f32 %v7761, %v6727
  %v7858 = vadd.f32 %v7762, %v6732
  %v7859 = vadd.f32 %v7763, %v6737
  %v7860 = vadd.f32 %v7764, %v6742
  %v7861 = vadd.f32 %v7765, %v6747
  %v7862 = vadd.f32 %v7766, %v6752
  %v7863 = vadd.f32 %v7767, %v6757
  %v7864 = vadd.f32 %v7768, %v6762
  %v7865 = vadd.f32 %v7769, %v6767
  %v7866 = vadd.f32 %v7770, %v6772
  %v7867 = vadd.f32 %v7771, %v6777
  %v7868 = vadd.f32 %v7772, %v6782
  %v7869 = vadd.f32 %v7773, %v6787
  %v7870 = vadd.f32 %v7774, %v6792
  %v7871 = vadd.f32 %v7775, %v6797
  %v7872 = vadd.f32 %v7776, %v6802
  %v7873 = vadd.f32 %v7777, %v6807
  %v7874 = vadd.f32 %v7778, %v6812
  %v7875 = vadd.f32 %v7779, %v6817
  %v7876 = vadd.f32 %v7780, %v6822
  %v7877 = vadd.f32 %v7781, %v6827
  %v7878 = vadd.f32 %v7782, %v6832
  %v7879 = vadd.f32 %v7783, %v6837
  %v7880 = vadd.f32 %v7784, %v6842
  %v7881 = vadd.f32 %v7785, %v6847
  %v7882 = vadd.f32 %v7786, %v6852
  %v7883 = vadd.f32 %v7787, %v6857
  %v7884 = vadd.f32 %v7788, %v6862
  %v7885 = vadd.f32 %v7789, %v6867
  %v7886 = vadd.f32 %v7790, %v6872
  %v7887 = vadd.f32 %v7791, %v6877
  %v7888 = vadd.f32 %v7792, %v6882
  %v7953 = vrot.slane %v6969, 7
  %v7954 = vrot.slane %v6974, 7
  %v7955 = vsel %vm7504, %v7953, %v7954
  %v7956 = vrot.slane %v6983, 7
  %v7957 = vrot.slane %v6988, 7
  %v7958 = vsel %vm7504, %v7956, %v7957
  %v7959 = vrot.slane %v6997, 7
  %v7960 = vrot.slane %v7002, 7
  %v7961 = vsel %vm7504, %v7959, %v7960
  %v7962 = vrot.slane %v7011, 7
  %v7963 = vrot.slane %v7016, 7
  %v7964 = vsel %vm7504, %v7962, %v7963
  %v7965 = vrot.slane %v7025, 7
  %v7966 = vrot.slane %v7030, 7
  %v7967 = vsel %vm7504, %v7965, %v7966
  %v7968 = vrot.slane %v7039, 7
  %v7969 = vrot.slane %v7044, 7
  %v7970 = vsel %vm7504, %v7968, %v7969
  %v7971 = vrot.slane %v7053, 7
  %v7972 = vrot.slane %v7058, 7
  %v7973 = vsel %vm7504, %v7971, %v7972
  %v7974 = vrot.slane %v7067, 7
  %v7975 = vrot.slane %v7072, 7
  %v7976 = vsel %vm7504, %v7974, %v7975
  %v7977 = vrot.slane %v7081, 7
  %v7978 = vrot.slane %v7086, 7
  %v7979 = vsel %vm7504, %v7977, %v7978
  %v7980 = vrot.slane %v7095, 7
  %v7981 = vrot.slane %v7100, 7
  %v7982 = vsel %vm7504, %v7980, %v7981
  %v7983 = vrot.slane %v7109, 7
  %v7984 = vrot.slane %v7114, 7
  %v7985 = vsel %vm7504, %v7983, %v7984
  %v7986 = vrot.slane %v7123, 7
  %v7987 = vrot.slane %v7128, 7
  %v7988 = vsel %vm7504, %v7986, %v7987
  %v7989 = vrot.slane %v7137, 7
  %v7990 = vrot.slane %v7142, 7
  %v7991 = vsel %vm7504, %v7989, %v7990
  %v7992 = vrot.slane %v7151, 7
  %v7993 = vrot.slane %v7156, 7
  %v7994 = vsel %vm7504, %v7992, %v7993
  %v7995 = vrot.slane %v7165, 7
  %v7996 = vrot.slane %v7170, 7
  %v7997 = vsel %vm7504, %v7995, %v7996
  %v7998 = vrot.slane %v7179, 7
  %v7999 = vrot.slane %v7184, 7
  %v8000 = vsel %vm7504, %v7998, %v7999
  %v8001 = vrot.slane %v7205, 7
  %v8002 = vrot.slane %v7210, 7
  %v8003 = vsel %vm7504, %v8001, %v8002
  %v8004 = vrot.slane %v7219, 7
  %v8005 = vrot.slane %v7224, 7
  %v8006 = vsel %vm7504, %v8004, %v8005
  %v8007 = vrot.slane %v7233, 7
  %v8008 = vrot.slane %v7238, 7
  %v8009 = vsel %vm7504, %v8007, %v8008
  %v8010 = vrot.slane %v7247, 7
  %v8011 = vrot.slane %v7252, 7
  %v8012 = vsel %vm7504, %v8010, %v8011
  %v8013 = vrot.slane %v7261, 7
  %v8014 = vrot.slane %v7266, 7
  %v8015 = vsel %vm7504, %v8013, %v8014
  %v8016 = vrot.slane %v7275, 7
  %v8017 = vrot.slane %v7280, 7
  %v8018 = vsel %vm7504, %v8016, %v8017
  %v8019 = vrot.slane %v7289, 7
  %v8020 = vrot.slane %v7294, 7
  %v8021 = vsel %vm7504, %v8019, %v8020
  %v8022 = vrot.slane %v7303, 7
  %v8023 = vrot.slane %v7308, 7
  %v8024 = vsel %vm7504, %v8022, %v8023
  %v8025 = vrot.slane %v7317, 7
  %v8026 = vrot.slane %v7322, 7
  %v8027 = vsel %vm7504, %v8025, %v8026
  %v8028 = vrot.slane %v7331, 7
  %v8029 = vrot.slane %v7336, 7
  %v8030 = vsel %vm7504, %v8028, %v8029
  %v8031 = vrot.slane %v7345, 7
  %v8032 = vrot.slane %v7350, 7
  %v8033 = vsel %vm7504, %v8031, %v8032
  %v8034 = vrot.slane %v7359, 7
  %v8035 = vrot.slane %v7364, 7
  %v8036 = vsel %vm7504, %v8034, %v8035
  %v8037 = vrot.slane %v7373, 7
  %v8038 = vrot.slane %v7378, 7
  %v8039 = vsel %vm7504, %v8037, %v8038
  %v8040 = vrot.slane %v7387, 7
  %v8041 = vrot.slane %v7392, 7
  %v8042 = vsel %vm7504, %v8040, %v8041
  %v8043 = vrot.slane %v7401, 7
  %v8044 = vrot.slane %v7406, 7
  %v8045 = vsel %vm7504, %v8043, %v8044
  %v8046 = vrot.slane %v7415, 7
  %v8047 = vrot.slane %v7420, 7
  %v8048 = vsel %vm7504, %v8046, %v8047
  %v8145 = vadd.f32 %v7793, %v7953
  %v8146 = vadd.f32 %v7794, %v7955
  %v8147 = vadd.f32 %v7795, %v7954
  %v8148 = vadd.f32 %v7796, %v7956
  %v8149 = vadd.f32 %v7797, %v7958
  %v8150 = vadd.f32 %v7798, %v7957
  %v8151 = vadd.f32 %v7799, %v7959
  %v8152 = vadd.f32 %v7800, %v7961
  %v8153 = vadd.f32 %v7801, %v7960
  %v8154 = vadd.f32 %v7802, %v7962
  %v8155 = vadd.f32 %v7803, %v7964
  %v8156 = vadd.f32 %v7804, %v7963
  %v8157 = vadd.f32 %v7805, %v7965
  %v8158 = vadd.f32 %v7806, %v7967
  %v8159 = vadd.f32 %v7807, %v7966
  %v8160 = vadd.f32 %v7808, %v7968
  %v8161 = vadd.f32 %v7809, %v7970
  %v8162 = vadd.f32 %v7810, %v7969
  %v8163 = vadd.f32 %v7811, %v7971
  %v8164 = vadd.f32 %v7812, %v7973
  %v8165 = vadd.f32 %v7813, %v7972
  %v8166 = vadd.f32 %v7814, %v7974
  %v8167 = vadd.f32 %v7815, %v7976
  %v8168 = vadd.f32 %v7816, %v7975
  %v8169 = vadd.f32 %v7817, %v7977
  %v8170 = vadd.f32 %v7818, %v7979
  %v8171 = vadd.f32 %v7819, %v7978
  %v8172 = vadd.f32 %v7820, %v7980
  %v8173 = vadd.f32 %v7821, %v7982
  %v8174 = vadd.f32 %v7822, %v7981
  %v8175 = vadd.f32 %v7823, %v7983
  %v8176 = vadd.f32 %v7824, %v7985
  %v8177 = vadd.f32 %v7825, %v7984
  %v8178 = vadd.f32 %v7826, %v7986
  %v8179 = vadd.f32 %v7827, %v7988
  %v8180 = vadd.f32 %v7828, %v7987
  %v8181 = vadd.f32 %v7829, %v7989
  %v8182 = vadd.f32 %v7830, %v7991
  %v8183 = vadd.f32 %v7831, %v7990
  %v8184 = vadd.f32 %v7832, %v7992
  %v8185 = vadd.f32 %v7833, %v7994
  %v8186 = vadd.f32 %v7834, %v7993
  %v8187 = vadd.f32 %v7835, %v7995
  %v8188 = vadd.f32 %v7836, %v7997
  %v8189 = vadd.f32 %v7837, %v7996
  %v8190 = vadd.f32 %v7838, %v7998
  %v8191 = vadd.f32 %v7839, %v8000
  %v8192 = vadd.f32 %v7840, %v7999
  %v8193 = vadd.f32 %v7841, %v8001
  %v8194 = vadd.f32 %v7842, %v8003
  %v8195 = vadd.f32 %v7843, %v8002
  %v8196 = vadd.f32 %v7844, %v8004
  %v8197 = vadd.f32 %v7845, %v8006
  %v8198 = vadd.f32 %v7846, %v8005
  %v8199 = vadd.f32 %v7847, %v8007
  %v8200 = vadd.f32 %v7848, %v8009
  %v8201 = vadd.f32 %v7849, %v8008
  %v8202 = vadd.f32 %v7850, %v8010
  %v8203 = vadd.f32 %v7851, %v8012
  %v8204 = vadd.f32 %v7852, %v8011
  %v8205 = vadd.f32 %v7853, %v8013
  %v8206 = vadd.f32 %v7854, %v8015
  %v8207 = vadd.f32 %v7855, %v8014
  %v8208 = vadd.f32 %v7856, %v8016
  %v8209 = vadd.f32 %v7857, %v8018
  %v8210 = vadd.f32 %v7858, %v8017
  %v8211 = vadd.f32 %v7859, %v8019
  %v8212 = vadd.f32 %v7860, %v8021
  %v8213 = vadd.f32 %v7861, %v8020
  %v8214 = vadd.f32 %v7862, %v8022
  %v8215 = vadd.f32 %v7863, %v8024
  %v8216 = vadd.f32 %v7864, %v8023
  %v8217 = vadd.f32 %v7865, %v8025
  %v8218 = vadd.f32 %v7866, %v8027
  %v8219 = vadd.f32 %v7867, %v8026
  %v8220 = vadd.f32 %v7868, %v8028
  %v8221 = vadd.f32 %v7869, %v8030
  %v8222 = vadd.f32 %v7870, %v8029
  %v8223 = vadd.f32 %v7871, %v8031
  %v8224 = vadd.f32 %v7872, %v8033
  %v8225 = vadd.f32 %v7873, %v8032
  %v8226 = vadd.f32 %v7874, %v8034
  %v8227 = vadd.f32 %v7875, %v8036
  %v8228 = vadd.f32 %v7876, %v8035
  %v8229 = vadd.f32 %v7877, %v8037
  %v8230 = vadd.f32 %v7878, %v8039
  %v8231 = vadd.f32 %v7879, %v8038
  %v8232 = vadd.f32 %v7880, %v8040
  %v8233 = vadd.f32 %v7881, %v8042
  %v8234 = vadd.f32 %v7882, %v8041
  %v8235 = vadd.f32 %v7883, %v8043
  %v8236 = vadd.f32 %v7884, %v8045
  %v8237 = vadd.f32 %v7885, %v8044
  %v8238 = vadd.f32 %v7886, %v8046
  %v8239 = vadd.f32 %v7887, %v8048
  %v8240 = vadd.f32 %v7888, %v8047
  %vm8337 = vcmask 1046528
  %v8338 = vrot.slane %v8145, 1
  %v8339 = vrot.slane %v8146, 1
  %v8340 = vsel %vm8337, %v8338, %v8339
  %v8341 = vrot.slane %v8147, 1
  %v8342 = vsel %vm8337, %v8339, %v8341
  %v8343 = vrot.slane %v8148, 1
  %v8344 = vrot.slane %v8149, 1
  %v8345 = vsel %vm8337, %v8343, %v8344
  %v8346 = vrot.slane %v8150, 1
  %v8347 = vsel %vm8337, %v8344, %v8346
  %v8348 = vrot.slane %v8151, 1
  %v8349 = vrot.slane %v8152, 1
  %v8350 = vsel %vm8337, %v8348, %v8349
  %v8351 = vrot.slane %v8153, 1
  %v8352 = vsel %vm8337, %v8349, %v8351
  %v8353 = vrot.slane %v8154, 1
  %v8354 = vrot.slane %v8155, 1
  %v8355 = vsel %vm8337, %v8353, %v8354
  %v8356 = vrot.slane %v8156, 1
  %v8357 = vsel %vm8337, %v8354, %v8356
  %v8358 = vrot.slane %v8157, 1
  %v8359 = vrot.slane %v8158, 1
  %v8360 = vsel %vm8337, %v8358, %v8359
  %v8361 = vrot.slane %v8159, 1
  %v8362 = vsel %vm8337, %v8359, %v8361
  %v8363 = vrot.slane %v8160, 1
  %v8364 = vrot.slane %v8161, 1
  %v8365 = vsel %vm8337, %v8363, %v8364
  %v8366 = vrot.slane %v8162, 1
  %v8367 = vsel %vm8337, %v8364, %v8366
  %v8368 = vrot.slane %v8163, 1
  %v8369 = vrot.slane %v8164, 1
  %v8370 = vsel %vm8337, %v8368, %v8369
  %v8371 = vrot.slane %v8165, 1
  %v8372 = vsel %vm8337, %v8369, %v8371
  %v8373 = vrot.slane %v8166, 1
  %v8374 = vrot.slane %v8167, 1
  %v8375 = vsel %vm8337, %v8373, %v8374
  %v8376 = vrot.slane %v8168, 1
  %v8377 = vsel %vm8337, %v8374, %v8376
  %v8378 = vrot.slane %v8169, 1
  %v8379 = vrot.slane %v8170, 1
  %v8380 = vsel %vm8337, %v8378, %v8379
  %v8381 = vrot.slane %v8171, 1
  %v8382 = vsel %vm8337, %v8379, %v8381
  %v8383 = vrot.slane %v8172, 1
  %v8384 = vrot.slane %v8173, 1
  %v8385 = vsel %vm8337, %v8383, %v8384
  %v8386 = vrot.slane %v8174, 1
  %v8387 = vsel %vm8337, %v8384, %v8386
  %v8388 = vrot.slane %v8175, 1
  %v8389 = vrot.slane %v8176, 1
  %v8390 = vsel %vm8337, %v8388, %v8389
  %v8391 = vrot.slane %v8177, 1
  %v8392 = vsel %vm8337, %v8389, %v8391
  %v8393 = vrot.slane %v8178, 1
  %v8394 = vrot.slane %v8179, 1
  %v8395 = vsel %vm8337, %v8393, %v8394
  %v8396 = vrot.slane %v8180, 1
  %v8397 = vsel %vm8337, %v8394, %v8396
  %v8398 = vrot.slane %v8181, 1
  %v8399 = vrot.slane %v8182, 1
  %v8400 = vsel %vm8337, %v8398, %v8399
  %v8401 = vrot.slane %v8183, 1
  %v8402 = vsel %vm8337, %v8399, %v8401
  %v8403 = vrot.slane %v8184, 1
  %v8404 = vrot.slane %v8185, 1
  %v8405 = vsel %vm8337, %v8403, %v8404
  %v8406 = vrot.slane %v8186, 1
  %v8407 = vsel %vm8337, %v8404, %v8406
  %v8408 = vrot.slane %v8187, 1
  %v8409 = vrot.slane %v8188, 1
  %v8410 = vsel %vm8337, %v8408, %v8409
  %v8411 = vrot.slane %v8189, 1
  %v8412 = vsel %vm8337, %v8409, %v8411
  %v8413 = vrot.slane %v8190, 1
  %v8414 = vrot.slane %v8191, 1
  %v8415 = vsel %vm8337, %v8413, %v8414
  %v8416 = vrot.slane %v8192, 1
  %v8417 = vsel %vm8337, %v8414, %v8416
  %v8418 = vrot.slane %v8193, 1
  %v8419 = vrot.slane %v8194, 1
  %v8420 = vsel %vm8337, %v8418, %v8419
  %v8421 = vrot.slane %v8195, 1
  %v8422 = vsel %vm8337, %v8419, %v8421
  %v8423 = vrot.slane %v8196, 1
  %v8424 = vrot.slane %v8197, 1
  %v8425 = vsel %vm8337, %v8423, %v8424
  %v8426 = vrot.slane %v8198, 1
  %v8427 = vsel %vm8337, %v8424, %v8426
  %v8428 = vrot.slane %v8199, 1
  %v8429 = vrot.slane %v8200, 1
  %v8430 = vsel %vm8337, %v8428, %v8429
  %v8431 = vrot.slane %v8201, 1
  %v8432 = vsel %vm8337, %v8429, %v8431
  %v8433 = vrot.slane %v8202, 1
  %v8434 = vrot.slane %v8203, 1
  %v8435 = vsel %vm8337, %v8433, %v8434
  %v8436 = vrot.slane %v8204, 1
  %v8437 = vsel %vm8337, %v8434, %v8436
  %v8438 = vrot.slane %v8205, 1
  %v8439 = vrot.slane %v8206, 1
  %v8440 = vsel %vm8337, %v8438, %v8439
  %v8441 = vrot.slane %v8207, 1
  %v8442 = vsel %vm8337, %v8439, %v8441
  %v8443 = vrot.slane %v8208, 1
  %v8444 = vrot.slane %v8209, 1
  %v8445 = vsel %vm8337, %v8443, %v8444
  %v8446 = vrot.slane %v8210, 1
  %v8447 = vsel %vm8337, %v8444, %v8446
  %v8448 = vrot.slane %v8211, 1
  %v8449 = vrot.slane %v8212, 1
  %v8450 = vsel %vm8337, %v8448, %v8449
  %v8451 = vrot.slane %v8213, 1
  %v8452 = vsel %vm8337, %v8449, %v8451
  %v8453 = vrot.slane %v8214, 1
  %v8454 = vrot.slane %v8215, 1
  %v8455 = vsel %vm8337, %v8453, %v8454
  %v8456 = vrot.slane %v8216, 1
  %v8457 = vsel %vm8337, %v8454, %v8456
  %v8458 = vrot.slane %v8217, 1
  %v8459 = vrot.slane %v8218, 1
  %v8460 = vsel %vm8337, %v8458, %v8459
  %v8461 = vrot.slane %v8219, 1
  %v8462 = vsel %vm8337, %v8459, %v8461
  %v8463 = vrot.slane %v8220, 1
  %v8464 = vrot.slane %v8221, 1
  %v8465 = vsel %vm8337, %v8463, %v8464
  %v8466 = vrot.slane %v8222, 1
  %v8467 = vsel %vm8337, %v8464, %v8466
  %v8468 = vrot.slane %v8223, 1
  %v8469 = vrot.slane %v8224, 1
  %v8470 = vsel %vm8337, %v8468, %v8469
  %v8471 = vrot.slane %v8225, 1
  %v8472 = vsel %vm8337, %v8469, %v8471
  %v8473 = vrot.slane %v8226, 1
  %v8474 = vrot.slane %v8227, 1
  %v8475 = vsel %vm8337, %v8473, %v8474
  %v8476 = vrot.slane %v8228, 1
  %v8477 = vsel %vm8337, %v8474, %v8476
  %v8478 = vrot.slane %v8229, 1
  %v8479 = vrot.slane %v8230, 1
  %v8480 = vsel %vm8337, %v8478, %v8479
  %v8481 = vrot.slane %v8231, 1
  %v8482 = vsel %vm8337, %v8479, %v8481
  %v8483 = vrot.slane %v8232, 1
  %v8484 = vrot.slane %v8233, 1
  %v8485 = vsel %vm8337, %v8483, %v8484
  %v8486 = vrot.slane %v8234, 1
  %v8487 = vsel %vm8337, %v8484, %v8486
  %v8488 = vrot.slane %v8235, 1
  %v8489 = vrot.slane %v8236, 1
  %v8490 = vsel %vm8337, %v8488, %v8489
  %v8491 = vrot.slane %v8237, 1
  %v8492 = vsel %vm8337, %v8489, %v8491
  %v8493 = vrot.slane %v8238, 1
  %v8494 = vrot.slane %v8239, 1
  %v8495 = vsel %vm8337, %v8493, %v8494
  %v8496 = vrot.slane %v8240, 1
  %v8497 = vsel %vm8337, %v8494, %v8496
  %v8563 = vlaneseq
  %v8564 = vshrl.u32 %v8563, 7
  %v8565 = vsub.s32 0, %v8564
  %v8566 = vrot.slane %v7439, %v8565
  %v8568 = vadd.f32 %v8340, %v8566
  %v8569 = vadd.f32 %v8342, %v8566
  %v8570 = vadd.f32 %v8345, %v8566
  %v8571 = vadd.f32 %v8347, %v8566
  %v8572 = vadd.f32 %v8350, %v8566
  %v8573 = vadd.f32 %v8352, %v8566
  %v8574 = vadd.f32 %v8355, %v8566
  %v8575 = vadd.f32 %v8357, %v8566
  %v8576 = vadd.f32 %v8360, %v8566
  %v8577 = vadd.f32 %v8362, %v8566
  %v8578 = vadd.f32 %v8365, %v8566
  %v8579 = vadd.f32 %v8367, %v8566
  %v8580 = vadd.f32 %v8370, %v8566
  %v8581 = vadd.f32 %v8372, %v8566
  %v8582 = vadd.f32 %v8375, %v8566
  %v8583 = vadd.f32 %v8377, %v8566
  %v8584 = vadd.f32 %v8380, %v8566
  %v8585 = vadd.f32 %v8382, %v8566
  %v8586 = vadd.f32 %v8385, %v8566
  %v8587 = vadd.f32 %v8387, %v8566
  %v8588 = vadd.f32 %v8390, %v8566
  %v8589 = vadd.f32 %v8392, %v8566
  %v8590 = vadd.f32 %v8395, %v8566
  %v8591 = vadd.f32 %v8397, %v8566
  %v8592 = vadd.f32 %v8400, %v8566
  %v8593 = vadd.f32 %v8402, %v8566
  %v8594 = vadd.f32 %v8405, %v8566
  %v8595 = vadd.f32 %v8407, %v8566
  %v8596 = vadd.f32 %v8410, %v8566
  %v8597 = vadd.f32 %v8412, %v8566
  %v8598 = vadd.f32 %v8415, %v8566
  %v8599 = vadd.f32 %v8417, %v8566
  %v8600 = vadd.f32 %v8420, %v8566
  %v8601 = vadd.f32 %v8422, %v8566
  %v8602 = vadd.f32 %v8425, %v8566
  %v8603 = vadd.f32 %v8427, %v8566
  %v8604 = vadd.f32 %v8430, %v8566
  %v8605 = vadd.f32 %v8432, %v8566
  %v8606 = vadd.f32 %v8435, %v8566
  %v8607 = vadd.f32 %v8437, %v8566
  %v8608 = vadd.f32 %v8440, %v8566
  %v8609 = vadd.f32 %v8442, %v8566
  %v8610 = vadd.f32 %v8445, %v8566
  %v8611 = vadd.f32 %v8447, %v8566
  %v8612 = vadd.f32 %v8450, %v8566
  %v8613 = vadd.f32 %v8452, %v8566
  %v8614 = vadd.f32 %v8455, %v8566
  %v8615 = vadd.f32 %v8457, %v8566
  %v8616 = vadd.f32 %v8460, %v8566
  %v8617 = vadd.f32 %v8462, %v8566
  %v8618 = vadd.f32 %v8465, %v8566
  %v8619 = vadd.f32 %v8467, %v8566
  %v8620 = vadd.f32 %v8470, %v8566
  %v8621 = vadd.f32 %v8472, %v8566
  %v8622 = vadd.f32 %v8475, %v8566
  %v8623 = vadd.f32 %v8477, %v8566
  %v8624 = vadd.f32 %v8480, %v8566
  %v8625 = vadd.f32 %v8482, %v8566
  %v8626 = vadd.f32 %v8485, %v8566
  %v8627 = vadd.f32 %v8487, %v8566
  %v8628 = vadd.f32 %v8490, %v8566
  %v8629 = vadd.f32 %v8492, %v8566
  %v8630 = vadd.f32 %v8495, %v8566
  %v8631 = vadd.f32 %v8497, %v8566
  %v8632 = vadd.f32 %v8568, %v35
  %v8633 = vadd.f32 %v8569, %v36
  %v8634 = vadd.f32 %v8570, %v37
  %v8635 = vadd.f32 %v8571, %v38
  %v8636 = vadd.f32 %v8572, %v39
  %v8637 = vadd.f32 %v8573, %v40
  %v8638 = vadd.f32 %v8574, %v41
  %v8639 = vadd.f32 %v8575, %v42
  %v8640 = vadd.f32 %v8576, %v43
  %v8641 = vadd.f32 %v8577, %v44
  %v8642 = vadd.f32 %v8578, %v45
  %v8643 = vadd.f32 %v8579, %v46
  %v8644 = vadd.f32 %v8580, %v47
  %v8645 = vadd.f32 %v8581, %v48
  %v8646 = vadd.f32 %v8582, %v49
  %v8647 = vadd.f32 %v8583, %v50
  %v8648 = vadd.f32 %v8584, %v51
  %v8649 = vadd.f32 %v8585, %v52
  %v8650 = vadd.f32 %v8586, %v53
  %v8651 = vadd.f32 %v8587, %v54
  %v8652 = vadd.f32 %v8588, %v55
  %v8653 = vadd.f32 %v8589, %v56
  %v8654 = vadd.f32 %v8590, %v57
  %v8655 = vadd.f32 %v8591, %v58
  %v8656 = vadd.f32 %v8592, %v59
  %v8657 = vadd.f32 %v8593, %v60
  %v8658 = vadd.f32 %v8594, %v61
  %v8659 = vadd.f32 %v8595, %v62
  %v8660 = vadd.f32 %v8596, %v63
  %v8661 = vadd.f32 %v8597, %v64
  %v8662 = vadd.f32 %v8598, %v65
  %v8663 = vadd.f32 %v8599, %v66
  %v8664 = vadd.f32 %v8600, %v67
  %v8665 = vadd.f32 %v8601, %v68
  %v8666 = vadd.f32 %v8602, %v69
  %v8667 = vadd.f32 %v8603, %v70
  %v8668 = vadd.f32 %v8604, %v71
  %v8669 = vadd.f32 %v8605, %v72
  %v8670 = vadd.f32 %v8606, %v73
  %v8671 = vadd.f32 %v8607, %v74
  %v8672 = vadd.f32 %v8608, %v75
  %v8673 = vadd.f32 %v8609, %v76
  %v8674 = vadd.f32 %v8610, %v77
  %v8675 = vadd.f32 %v8611, %v78
  %v8676 = vadd.f32 %v8612, %v79
  %v8677 = vadd.f32 %v8613, %v80
  %v8678 = vadd.f32 %v8614, %v81
  %v8679 = vadd.f32 %v8615, %v82
  %v8680 = vadd.f32 %v8616, %v83
  %v8681 = vadd.f32 %v8617, %v84
  %v8682 = vadd.f32 %v8618, %v85
  %v8683 = vadd.f32 %v8619, %v86
  %v8684 = vadd.f32 %v8620, %v87
  %v8685 = vadd.f32 %v8621, %v88
  %v8686 = vadd.f32 %v8622, %v89
  %v8687 = vadd.f32 %v8623, %v90
  %v8688 = vadd.f32 %v8624, %v91
  %v8689 = vadd.f32 %v8625, %v92
  %v8690 = vadd.f32 %v8626, %v93
  %v8691 = vadd.f32 %v8627, %v94
  %v8692 = vadd.f32 %v8628, %v95
  %v8693 = vadd.f32 %v8629, %v96
  %v8694 = vadd.f32 %v8630, %v97
  %v8695 = vadd.f32 %v8631, %v98
  %v8696 = vsel %vm99, %v8632, 0.0
  %v8697 = vsel %vm99, %v8633, 0.0
  %v8698 = vadd.f32 %v8696, %v8697
  %v8699 = vsel %vm99, %v8634, 0.0
  %v8700 = vadd.f32 %v8698, %v8699
  %v8701 = vsel %vm99, %v8635, 0.0
  %v8702 = vadd.f32 %v8700, %v8701
  %v8703 = vsel %vm99, %v8636, 0.0
  %v8704 = vadd.f32 %v8702, %v8703
  %v8705 = vsel %vm99, %v8637, 0.0
  %v8706 = vadd.f32 %v8704, %v8705
  %v8707 = vsel %vm99, %v8638, 0.0
  %v8708 = vadd.f32 %v8706, %v8707
  %v8709 = vsel %vm99, %v8639, 0.0
  %v8710 = vadd.f32 %v8708, %v8709
  %v8711 = vsel %vm99, %v8640, 0.0
  %v8712 = vadd.f32 %v8710, %v8711
  %v8713 = vsel %vm99, %v8641, 0.0
  %v8714 = vadd.f32 %v8712, %v8713
  %v8715 = vsel %vm99, %v8642, 0.0
  %v8716 = vadd.f32 %v8714, %v8715
  %v8717 = vsel %vm99, %v8643, 0.0
  %v8718 = vadd.f32 %v8716, %v8717
  %v8719 = vsel %vm99, %v8644, 0.0
  %v8720 = vadd.f32 %v8718, %v8719
  %v8721 = vsel %vm99, %v8645, 0.0
  %v8722 = vadd.f32 %v8720, %v8721
  %v8723 = vsel %vm99, %v8646, 0.0
  %v8724 = vadd.f32 %v8722, %v8723
  %v8725 = vsel %vm99, %v8647, 0.0
  %v8726 = vadd.f32 %v8724, %v8725
  %v8727 = vsel %vm99, %v8648, 0.0
  %v8728 = vadd.f32 %v8726, %v8727
  %v8729 = vsel %vm99, %v8649, 0.0
  %v8730 = vadd.f32 %v8728, %v8729
  %v8731 = vsel %vm99, %v8650, 0.0
  %v8732 = vadd.f32 %v8730, %v8731
  %v8733 = vsel %vm99, %v8651, 0.0
  %v8734 = vadd.f32 %v8732, %v8733
  %v8735 = vsel %vm99, %v8652, 0.0
  %v8736 = vadd.f32 %v8734, %v8735
  %v8737 = vsel %vm99, %v8653, 0.0
  %v8738 = vadd.f32 %v8736, %v8737
  %v8739 = vsel %vm99, %v8654, 0.0
  %v8740 = vadd.f32 %v8738, %v8739
  %v8741 = vsel %vm99, %v8655, 0.0
  %v8742 = vadd.f32 %v8740, %v8741
  %v8743 = vsel %vm99, %v8656, 0.0
  %v8744 = vadd.f32 %v8742, %v8743
  %v8745 = vsel %vm99, %v8657, 0.0
  %v8746 = vadd.f32 %v8744, %v8745
  %v8747 = vsel %vm99, %v8658, 0.0
  %v8748 = vadd.f32 %v8746, %v8747
  %v8749 = vsel %vm99, %v8659, 0.0
  %v8750 = vadd.f32 %v8748, %v8749
  %v8751 = vsel %vm99, %v8660, 0.0
  %v8752 = vadd.f32 %v8750, %v8751
  %v8753 = vsel %vm99, %v8661, 0.0
  %v8754 = vadd.f32 %v8752, %v8753
  %v8755 = vsel %vm99, %v8662, 0.0
  %v8756 = vadd.f32 %v8754, %v8755
  %v8757 = vsel %vm99, %v8663, 0.0
  %v8758 = vadd.f32 %v8756, %v8757
  %v8759 = vsel %vm99, %v8664, 0.0
  %v8760 = vadd.f32 %v8758, %v8759
  %v8761 = vsel %vm99, %v8665, 0.0
  %v8762 = vadd.f32 %v8760, %v8761
  %v8763 = vsel %vm99, %v8666, 0.0
  %v8764 = vadd.f32 %v8762, %v8763
  %v8765 = vsel %vm99, %v8667, 0.0
  %v8766 = vadd.f32 %v8764, %v8765
  %v8767 = vsel %vm99, %v8668, 0.0
  %v8768 = vadd.f32 %v8766, %v8767
  %v8769 = vsel %vm99, %v8669, 0.0
  %v8770 = vadd.f32 %v8768, %v8769
  %v8771 = vsel %vm99, %v8670, 0.0
  %v8772 = vadd.f32 %v8770, %v8771
  %v8773 = vsel %vm99, %v8671, 0.0
  %v8774 = vadd.f32 %v8772, %v8773
  %v8775 = vsel %vm99, %v8672, 0.0
  %v8776 = vadd.f32 %v8774, %v8775
  %v8777 = vsel %vm99, %v8673, 0.0
  %v8778 = vadd.f32 %v8776, %v8777
  %v8779 = vsel %vm99, %v8674, 0.0
  %v8780 = vadd.f32 %v8778, %v8779
  %v8781 = vsel %vm99, %v8675, 0.0
  %v8782 = vadd.f32 %v8780, %v8781
  %v8783 = vsel %vm99, %v8676, 0.0
  %v8784 = vadd.f32 %v8782, %v8783
  %v8785 = vsel %vm99, %v8677, 0.0
  %v8786 = vadd.f32 %v8784, %v8785
  %v8787 = vsel %vm99, %v8678, 0.0
  %v8788 = vadd.f32 %v8786, %v8787
  %v8789 = vsel %vm99, %v8679, 0.0
  %v8790 = vadd.f32 %v8788, %v8789
  %v8791 = vsel %vm99, %v8680, 0.0
  %v8792 = vadd.f32 %v8790, %v8791
  %v8793 = vsel %vm99, %v8681, 0.0
  %v8794 = vadd.f32 %v8792, %v8793
  %v8795 = vsel %vm99, %v8682, 0.0
  %v8796 = vadd.f32 %v8794, %v8795
  %v8797 = vsel %vm99, %v8683, 0.0
  %v8798 = vadd.f32 %v8796, %v8797
  %v8799 = vsel %vm99, %v8684, 0.0
  %v8800 = vadd.f32 %v8798, %v8799
  %v8801 = vsel %vm99, %v8685, 0.0
  %v8802 = vadd.f32 %v8800, %v8801
  %v8803 = vsel %vm99, %v8686, 0.0
  %v8804 = vadd.f32 %v8802, %v8803
  %v8805 = vsel %vm99, %v8687, 0.0
  %v8806 = vadd.f32 %v8804, %v8805
  %v8807 = vsel %vm99, %v8688, 0.0
  %v8808 = vadd.f32 %v8806, %v8807
  %v8809 = vsel %vm99, %v8689, 0.0
  %v8810 = vadd.f32 %v8808, %v8809
  %v8811 = vsel %vm99, %v8690, 0.0
  %v8812 = vadd.f32 %v8810, %v8811
  %v8813 = vsel %vm99, %v8691, 0.0
  %v8814 = vadd.f32 %v8812, %v8813
  %v8815 = vsel %vm99, %v8692, 0.0
  %v8816 = vadd.f32 %v8814, %v8815
  %v8817 = vsel %vm99, %v8693, 0.0
  %v8818 = vadd.f32 %v8816, %v8817
  %v8819 = vsel %vm99, %v8694, 0.0
  %v8820 = vadd.f32 %v8818, %v8819
  %v8821 = vsel %vm99, %v8695, 0.0
  %v8822 = vadd.f32 %v8820, %v8821
  %v8823 = vrot.slane %v8822, 4
  %v8824 = vadd.f32 %v8822, %v8823
  %v8825 = vrot.slane %v8824, 2
  %v8826 = vadd.f32 %v8824, %v8825
  %v8827 = vrot.slane %v8826, 1
  %v8828 = vadd.f32 %v8826, %v8827
  %v8829 = vrcp.pop 512.0
  %v8830 = vmul.f32 %v8828, %v8829
  %v8831 = vsub.f32 %v8632, %v8830
  %v8832 = vsub.f32 %v8633, %v8830
  %v8833 = vsub.f32 %v8634, %v8830
  %v8834 = vsub.f32 %v8635, %v8830
  %v8835 = vsub.f32 %v8636, %v8830
  %v8836 = vsub.f32 %v8637, %v8830
  %v8837 = vsub.f32 %v8638, %v8830
  %v8838 = vsub.f32 %v8639, %v8830
  %v8839 = vsub.f32 %v8640, %v8830
  %v8840 = vsub.f32 %v8641, %v8830
  %v8841 = vsub.f32 %v8642, %v8830
  %v8842 = vsub.f32 %v8643, %v8830
  %v8843 = vsub.f32 %v8644, %v8830
  %v8844 = vsub.f32 %v8645, %v8830
  %v8845 = vsub.f32 %v8646, %v8830
  %v8846 = vsub.f32 %v8647, %v8830
  %v8847 = vsub.f32 %v8648, %v8830
  %v8848 = vsub.f32 %v8649, %v8830
  %v8849 = vsub.f32 %v8650, %v8830
  %v8850 = vsub.f32 %v8651, %v8830
  %v8851 = vsub.f32 %v8652, %v8830
  %v8852 = vsub.f32 %v8653, %v8830
  %v8853 = vsub.f32 %v8654, %v8830
  %v8854 = vsub.f32 %v8655, %v8830
  %v8855 = vsub.f32 %v8656, %v8830
  %v8856 = vsub.f32 %v8657, %v8830
  %v8857 = vsub.f32 %v8658, %v8830
  %v8858 = vsub.f32 %v8659, %v8830
  %v8859 = vsub.f32 %v8660, %v8830
  %v8860 = vsub.f32 %v8661, %v8830
  %v8861 = vsub.f32 %v8662, %v8830
  %v8862 = vsub.f32 %v8663, %v8830
  %v8863 = vsub.f32 %v8664, %v8830
  %v8864 = vsub.f32 %v8665, %v8830
  %v8865 = vsub.f32 %v8666, %v8830
  %v8866 = vsub.f32 %v8667, %v8830
  %v8867 = vsub.f32 %v8668, %v8830
  %v8868 = vsub.f32 %v8669, %v8830
  %v8869 = vsub.f32 %v8670, %v8830
  %v8870 = vsub.f32 %v8671, %v8830
  %v8871 = vsub.f32 %v8672, %v8830
  %v8872 = vsub.f32 %v8673, %v8830
  %v8873 = vsub.f32 %v8674, %v8830
  %v8874 = vsub.f32 %v8675, %v8830
  %v8875 = vsub.f32 %v8676, %v8830
  %v8876 = vsub.f32 %v8677, %v8830
  %v8877 = vsub.f32 %v8678, %v8830
  %v8878 = vsub.f32 %v8679, %v8830
  %v8879 = vsub.f32 %v8680, %v8830
  %v8880 = vsub.f32 %v8681, %v8830
  %v8881 = vsub.f32 %v8682, %v8830
  %v8882 = vsub.f32 %v8683, %v8830
  %v8883 = vsub.f32 %v8684, %v8830
  %v8884 = vsub.f32 %v8685, %v8830
  %v8885 = vsub.f32 %v8686, %v8830
  %v8886 = vsub.f32 %v8687, %v8830
  %v8887 = vsub.f32 %v8688, %v8830
  %v8888 = vsub.f32 %v8689, %v8830
  %v8889 = vsub.f32 %v8690, %v8830
  %v8890 = vsub.f32 %v8691, %v8830
  %v8891 = vsub.f32 %v8692, %v8830
  %v8892 = vsub.f32 %v8693, %v8830
  %v8893 = vsub.f32 %v8694, %v8830
  %v8894 = vsub.f32 %v8695, %v8830
  %v8895 = vmul.f32 %v8831, %v8831
  %v8896 = vmul.f32 %v8832, %v8832
  %v8897 = vmul.f32 %v8833, %v8833
  %v8898 = vmul.f32 %v8834, %v8834
  %v8899 = vmul.f32 %v8835, %v8835
  %v8900 = vmul.f32 %v8836, %v8836
  %v8901 = vmul.f32 %v8837, %v8837
  %v8902 = vmul.f32 %v8838, %v8838
  %v8903 = vmul.f32 %v8839, %v8839
  %v8904 = vmul.f32 %v8840, %v8840
  %v8905 = vmul.f32 %v8841, %v8841
  %v8906 = vmul.f32 %v8842, %v8842
  %v8907 = vmul.f32 %v8843, %v8843
  %v8908 = vmul.f32 %v8844, %v8844
  %v8909 = vmul.f32 %v8845, %v8845
  %v8910 = vmul.f32 %v8846, %v8846
  %v8911 = vmul.f32 %v8847, %v8847
  %v8912 = vmul.f32 %v8848, %v8848
  %v8913 = vmul.f32 %v8849, %v8849
  %v8914 = vmul.f32 %v8850, %v8850
  %v8915 = vmul.f32 %v8851, %v8851
  %v8916 = vmul.f32 %v8852, %v8852
  %v8917 = vmul.f32 %v8853, %v8853
  %v8918 = vmul.f32 %v8854, %v8854
  %v8919 = vmul.f32 %v8855, %v8855
  %v8920 = vmul.f32 %v8856, %v8856
  %v8921 = vmul.f32 %v8857, %v8857
  %v8922 = vmul.f32 %v8858, %v8858
  %v8923 = vmul.f32 %v8859, %v8859
  %v8924 = vmul.f32 %v8860, %v8860
  %v8925 = vmul.f32 %v8861, %v8861
  %v8926 = vmul.f32 %v8862, %v8862
  %v8927 = vmul.f32 %v8863, %v8863
  %v8928 = vmul.f32 %v8864, %v8864
  %v8929 = vmul.f32 %v8865, %v8865
  %v8930 = vmul.f32 %v8866, %v8866
  %v8931 = vmul.f32 %v8867, %v8867
  %v8932 = vmul.f32 %v8868, %v8868
  %v8933 = vmul.f32 %v8869, %v8869
  %v8934 = vmul.f32 %v8870, %v8870
  %v8935 = vmul.f32 %v8871, %v8871
  %v8936 = vmul.f32 %v8872, %v8872
  %v8937 = vmul.f32 %v8873, %v8873
  %v8938 = vmul.f32 %v8874, %v8874
  %v8939 = vmul.f32 %v8875, %v8875
  %v8940 = vmul.f32 %v8876, %v8876
  %v8941 = vmul.f32 %v8877, %v8877
  %v8942 = vmul.f32 %v8878, %v8878
  %v8943 = vmul.f32 %v8879, %v8879
  %v8944 = vmul.f32 %v8880, %v8880
  %v8945 = vmul.f32 %v8881, %v8881
  %v8946 = vmul.f32 %v8882, %v8882
  %v8947 = vmul.f32 %v8883, %v8883
  %v8948 = vmul.f32 %v8884, %v8884
  %v8949 = vmul.f32 %v8885, %v8885
  %v8950 = vmul.f32 %v8886, %v8886
  %v8951 = vmul.f32 %v8887, %v8887
  %v8952 = vmul.f32 %v8888, %v8888
  %v8953 = vmul.f32 %v8889, %v8889
  %v8954 = vmul.f32 %v8890, %v8890
  %v8955 = vmul.f32 %v8891, %v8891
  %v8956 = vmul.f32 %v8892, %v8892
  %v8957 = vmul.f32 %v8893, %v8893
  %v8958 = vmul.f32 %v8894, %v8894
  %v8959 = vsel %vm99, %v8895, 0.0
  %v8960 = vsel %vm99, %v8896, 0.0
  %v8961 = vadd.f32 %v8959, %v8960
  %v8962 = vsel %vm99, %v8897, 0.0
  %v8963 = vadd.f32 %v8961, %v8962
  %v8964 = vsel %vm99, %v8898, 0.0
  %v8965 = vadd.f32 %v8963, %v8964
  %v8966 = vsel %vm99, %v8899, 0.0
  %v8967 = vadd.f32 %v8965, %v8966
  %v8968 = vsel %vm99, %v8900, 0.0
  %v8969 = vadd.f32 %v8967, %v8968
  %v8970 = vsel %vm99, %v8901, 0.0
  %v8971 = vadd.f32 %v8969, %v8970
  %v8972 = vsel %vm99, %v8902, 0.0
  %v8973 = vadd.f32 %v8971, %v8972
  %v8974 = vsel %vm99, %v8903, 0.0
  %v8975 = vadd.f32 %v8973, %v8974
  %v8976 = vsel %vm99, %v8904, 0.0
  %v8977 = vadd.f32 %v8975, %v8976
  %v8978 = vsel %vm99, %v8905, 0.0
  %v8979 = vadd.f32 %v8977, %v8978
  %v8980 = vsel %vm99, %v8906, 0.0
  %v8981 = vadd.f32 %v8979, %v8980
  %v8982 = vsel %vm99, %v8907, 0.0
  %v8983 = vadd.f32 %v8981, %v8982
  %v8984 = vsel %vm99, %v8908, 0.0
  %v8985 = vadd.f32 %v8983, %v8984
  %v8986 = vsel %vm99, %v8909, 0.0
  %v8987 = vadd.f32 %v8985, %v8986
  %v8988 = vsel %vm99, %v8910, 0.0
  %v8989 = vadd.f32 %v8987, %v8988
  %v8990 = vsel %vm99, %v8911, 0.0
  %v8991 = vadd.f32 %v8989, %v8990
  %v8992 = vsel %vm99, %v8912, 0.0
  %v8993 = vadd.f32 %v8991, %v8992
  %v8994 = vsel %vm99, %v8913, 0.0
  %v8995 = vadd.f32 %v8993, %v8994
  %v8996 = vsel %vm99, %v8914, 0.0
  %v8997 = vadd.f32 %v8995, %v8996
  %v8998 = vsel %vm99, %v8915, 0.0
  %v8999 = vadd.f32 %v8997, %v8998
  %v9000 = vsel %vm99, %v8916, 0.0
  %v9001 = vadd.f32 %v8999, %v9000
  %v9002 = vsel %vm99, %v8917, 0.0
  %v9003 = vadd.f32 %v9001, %v9002
  %v9004 = vsel %vm99, %v8918, 0.0
  %v9005 = vadd.f32 %v9003, %v9004
  %v9006 = vsel %vm99, %v8919, 0.0
  %v9007 = vadd.f32 %v9005, %v9006
  %v9008 = vsel %vm99, %v8920, 0.0
  %v9009 = vadd.f32 %v9007, %v9008
  %v9010 = vsel %vm99, %v8921, 0.0
  %v9011 = vadd.f32 %v9009, %v9010
  %v9012 = vsel %vm99, %v8922, 0.0
  %v9013 = vadd.f32 %v9011, %v9012
  %v9014 = vsel %vm99, %v8923, 0.0
  %v9015 = vadd.f32 %v9013, %v9014
  %v9016 = vsel %vm99, %v8924, 0.0
  %v9017 = vadd.f32 %v9015, %v9016
  %v9018 = vsel %vm99, %v8925, 0.0
  %v9019 = vadd.f32 %v9017, %v9018
  %v9020 = vsel %vm99, %v8926, 0.0
  %v9021 = vadd.f32 %v9019, %v9020
  %v9022 = vsel %vm99, %v8927, 0.0
  %v9023 = vadd.f32 %v9021, %v9022
  %v9024 = vsel %vm99, %v8928, 0.0
  %v9025 = vadd.f32 %v9023, %v9024
  %v9026 = vsel %vm99, %v8929, 0.0
  %v9027 = vadd.f32 %v9025, %v9026
  %v9028 = vsel %vm99, %v8930, 0.0
  %v9029 = vadd.f32 %v9027, %v9028
  %v9030 = vsel %vm99, %v8931, 0.0
  %v9031 = vadd.f32 %v9029, %v9030
  %v9032 = vsel %vm99, %v8932, 0.0
  %v9033 = vadd.f32 %v9031, %v9032
  %v9034 = vsel %vm99, %v8933, 0.0
  %v9035 = vadd.f32 %v9033, %v9034
  %v9036 = vsel %vm99, %v8934, 0.0
  %v9037 = vadd.f32 %v9035, %v9036
  %v9038 = vsel %vm99, %v8935, 0.0
  %v9039 = vadd.f32 %v9037, %v9038
  %v9040 = vsel %vm99, %v8936, 0.0
  %v9041 = vadd.f32 %v9039, %v9040
  %v9042 = vsel %vm99, %v8937, 0.0
  %v9043 = vadd.f32 %v9041, %v9042
  %v9044 = vsel %vm99, %v8938, 0.0
  %v9045 = vadd.f32 %v9043, %v9044
  %v9046 = vsel %vm99, %v8939, 0.0
  %v9047 = vadd.f32 %v9045, %v9046
  %v9048 = vsel %vm99, %v8940, 0.0
  %v9049 = vadd.f32 %v9047, %v9048
  %v9050 = vsel %vm99, %v8941, 0.0
  %v9051 = vadd.f32 %v9049, %v9050
  %v9052 = vsel %vm99, %v8942, 0.0
  %v9053 = vadd.f32 %v9051, %v9052
  %v9054 = vsel %vm99, %v8943, 0.0
  %v9055 = vadd.f32 %v9053, %v9054
  %v9056 = vsel %vm99, %v8944, 0.0
  %v9057 = vadd.f32 %v9055, %v9056
  %v9058 = vsel %vm99, %v8945, 0.0
  %v9059 = vadd.f32 %v9057, %v9058
  %v9060 = vsel %vm99, %v8946, 0.0
  %v9061 = vadd.f32 %v9059, %v9060
  %v9062 = vsel %vm99, %v8947, 0.0
  %v9063 = vadd.f32 %v9061, %v9062
  %v9064 = vsel %vm99, %v8948, 0.0
  %v9065 = vadd.f32 %v9063, %v9064
  %v9066 = vsel %vm99, %v8949, 0.0
  %v9067 = vadd.f32 %v9065, %v9066
  %v9068 = vsel %vm99, %v8950, 0.0
  %v9069 = vadd.f32 %v9067, %v9068
  %v9070 = vsel %vm99, %v8951, 0.0
  %v9071 = vadd.f32 %v9069, %v9070
  %v9072 = vsel %vm99, %v8952, 0.0
  %v9073 = vadd.f32 %v9071, %v9072
  %v9074 = vsel %vm99, %v8953, 0.0
  %v9075 = vadd.f32 %v9073, %v9074
  %v9076 = vsel %vm99, %v8954, 0.0
  %v9077 = vadd.f32 %v9075, %v9076
  %v9078 = vsel %vm99, %v8955, 0.0
  %v9079 = vadd.f32 %v9077, %v9078
  %v9080 = vsel %vm99, %v8956, 0.0
  %v9081 = vadd.f32 %v9079, %v9080
  %v9082 = vsel %vm99, %v8957, 0.0
  %v9083 = vadd.f32 %v9081, %v9082
  %v9084 = vsel %vm99, %v8958, 0.0
  %v9085 = vadd.f32 %v9083, %v9084
  %v9086 = vrot.slane %v9085, 4
  %v9087 = vadd.f32 %v9085, %v9086
  %v9088 = vrot.slane %v9087, 2
  %v9089 = vadd.f32 %v9087, %v9088
  %v9090 = vrot.slane %v9089, 1
  %v9091 = vadd.f32 %v9089, %v9090
  %v9092 = vmul.f32 %v9091, %v8829
  %v9093 = vld [vmem:[%s8] sm:$0x1]
  %v9094 = vadd.f32 %v9092, 1e-05
  %v9095 = vrsqrt.pop %v9094
  %v9096 = vmul.f32 %v9093, %v9095
  %v9098 = vlaneseq
  %v9099 = vshrl.u32 %v9098, 7
  %v9100 = vsub.s32 0, %v9099
  %v9101 = vrot.slane %v9096, %v9100
  %v9103 = vmul.f32 %v8831, %v9101
  %v9104 = vmul.f32 %v8832, %v9101
  %v9105 = vmul.f32 %v8833, %v9101
  %v9106 = vmul.f32 %v8834, %v9101
  %v9107 = vmul.f32 %v8835, %v9101
  %v9108 = vmul.f32 %v8836, %v9101
  %v9109 = vmul.f32 %v8837, %v9101
  %v9110 = vmul.f32 %v8838, %v9101
  %v9111 = vmul.f32 %v8839, %v9101
  %v9112 = vmul.f32 %v8840, %v9101
  %v9113 = vmul.f32 %v8841, %v9101
  %v9114 = vmul.f32 %v8842, %v9101
  %v9115 = vmul.f32 %v8843, %v9101
  %v9116 = vmul.f32 %v8844, %v9101
  %v9117 = vmul.f32 %v8845, %v9101
  %v9118 = vmul.f32 %v8846, %v9101
  %v9119 = vmul.f32 %v8847, %v9101
  %v9120 = vmul.f32 %v8848, %v9101
  %v9121 = vmul.f32 %v8849, %v9101
  %v9122 = vmul.f32 %v8850, %v9101
  %v9123 = vmul.f32 %v8851, %v9101
  %v9124 = vmul.f32 %v8852, %v9101
  %v9125 = vmul.f32 %v8853, %v9101
  %v9126 = vmul.f32 %v8854, %v9101
  %v9127 = vmul.f32 %v8855, %v9101
  %v9128 = vmul.f32 %v8856, %v9101
  %v9129 = vmul.f32 %v8857, %v9101
  %v9130 = vmul.f32 %v8858, %v9101
  %v9131 = vmul.f32 %v8859, %v9101
  %v9132 = vmul.f32 %v8860, %v9101
  %v9133 = vmul.f32 %v8861, %v9101
  %v9134 = vmul.f32 %v8862, %v9101
  %v9135 = vmul.f32 %v8863, %v9101
  %v9136 = vmul.f32 %v8864, %v9101
  %v9137 = vmul.f32 %v8865, %v9101
  %v9138 = vmul.f32 %v8866, %v9101
  %v9139 = vmul.f32 %v8867, %v9101
  %v9140 = vmul.f32 %v8868, %v9101
  %v9141 = vmul.f32 %v8869, %v9101
  %v9142 = vmul.f32 %v8870, %v9101
  %v9143 = vmul.f32 %v8871, %v9101
  %v9144 = vmul.f32 %v8872, %v9101
  %v9145 = vmul.f32 %v8873, %v9101
  %v9146 = vmul.f32 %v8874, %v9101
  %v9147 = vmul.f32 %v8875, %v9101
  %v9148 = vmul.f32 %v8876, %v9101
  %v9149 = vmul.f32 %v8877, %v9101
  %v9150 = vmul.f32 %v8878, %v9101
  %v9151 = vmul.f32 %v8879, %v9101
  %v9152 = vmul.f32 %v8880, %v9101
  %v9153 = vmul.f32 %v8881, %v9101
  %v9154 = vmul.f32 %v8882, %v9101
  %v9155 = vmul.f32 %v8883, %v9101
  %v9156 = vmul.f32 %v8884, %v9101
  %v9157 = vmul.f32 %v8885, %v9101
  %v9158 = vmul.f32 %v8886, %v9101
  %v9159 = vmul.f32 %v8887, %v9101
  %v9160 = vmul.f32 %v8888, %v9101
  %v9161 = vmul.f32 %v8889, %v9101
  %v9162 = vmul.f32 %v8890, %v9101
  %v9163 = vmul.f32 %v8891, %v9101
  %v9164 = vmul.f32 %v8892, %v9101
  %v9165 = vmul.f32 %v8893, %v9101
  %v9166 = vmul.f32 %v8894, %v9101
  %v9167 = vld [vmem:[%s9] sm:$0x1]
  %v9169 = vlaneseq
  %v9170 = vshrl.u32 %v9169, 7
  %v9171 = vsub.s32 0, %v9170
  %v9172 = vrot.slane %v9167, %v9171
  %v9174 = vadd.f32 %v9103, %v9172
  %v9175 = vadd.f32 %v9104, %v9172
  %v9176 = vadd.f32 %v9105, %v9172
  %v9177 = vadd.f32 %v9106, %v9172
  %v9178 = vadd.f32 %v9107, %v9172
  %v9179 = vadd.f32 %v9108, %v9172
  %v9180 = vadd.f32 %v9109, %v9172
  %v9181 = vadd.f32 %v9110, %v9172
  %v9182 = vadd.f32 %v9111, %v9172
  %v9183 = vadd.f32 %v9112, %v9172
  %v9184 = vadd.f32 %v9113, %v9172
  %v9185 = vadd.f32 %v9114, %v9172
  %v9186 = vadd.f32 %v9115, %v9172
  %v9187 = vadd.f32 %v9116, %v9172
  %v9188 = vadd.f32 %v9117, %v9172
  %v9189 = vadd.f32 %v9118, %v9172
  %v9190 = vadd.f32 %v9119, %v9172
  %v9191 = vadd.f32 %v9120, %v9172
  %v9192 = vadd.f32 %v9121, %v9172
  %v9193 = vadd.f32 %v9122, %v9172
  %v9194 = vadd.f32 %v9123, %v9172
  %v9195 = vadd.f32 %v9124, %v9172
  %v9196 = vadd.f32 %v9125, %v9172
  %v9197 = vadd.f32 %v9126, %v9172
  %v9198 = vadd.f32 %v9127, %v9172
  %v9199 = vadd.f32 %v9128, %v9172
  %v9200 = vadd.f32 %v9129, %v9172
  %v9201 = vadd.f32 %v9130, %v9172
  %v9202 = vadd.f32 %v9131, %v9172
  %v9203 = vadd.f32 %v9132, %v9172
  %v9204 = vadd.f32 %v9133, %v9172
  %v9205 = vadd.f32 %v9134, %v9172
  %v9206 = vadd.f32 %v9135, %v9172
  %v9207 = vadd.f32 %v9136, %v9172
  %v9208 = vadd.f32 %v9137, %v9172
  %v9209 = vadd.f32 %v9138, %v9172
  %v9210 = vadd.f32 %v9139, %v9172
  %v9211 = vadd.f32 %v9140, %v9172
  %v9212 = vadd.f32 %v9141, %v9172
  %v9213 = vadd.f32 %v9142, %v9172
  %v9214 = vadd.f32 %v9143, %v9172
  %v9215 = vadd.f32 %v9144, %v9172
  %v9216 = vadd.f32 %v9145, %v9172
  %v9217 = vadd.f32 %v9146, %v9172
  %v9218 = vadd.f32 %v9147, %v9172
  %v9219 = vadd.f32 %v9148, %v9172
  %v9220 = vadd.f32 %v9149, %v9172
  %v9221 = vadd.f32 %v9150, %v9172
  %v9222 = vadd.f32 %v9151, %v9172
  %v9223 = vadd.f32 %v9152, %v9172
  %v9224 = vadd.f32 %v9153, %v9172
  %v9225 = vadd.f32 %v9154, %v9172
  %v9226 = vadd.f32 %v9155, %v9172
  %v9227 = vadd.f32 %v9156, %v9172
  %v9228 = vadd.f32 %v9157, %v9172
  %v9229 = vadd.f32 %v9158, %v9172
  %v9230 = vadd.f32 %v9159, %v9172
  %v9231 = vadd.f32 %v9160, %v9172
  %v9232 = vadd.f32 %v9161, %v9172
  %v9233 = vadd.f32 %v9162, %v9172
  %v9234 = vadd.f32 %v9163, %v9172
  %v9235 = vadd.f32 %v9164, %v9172
  %v9236 = vadd.f32 %v9165, %v9172
  %v9237 = vadd.f32 %v9166, %v9172
  %vm9238 = vcmp.ge.f32.partialorder %v9174, 0.0
  %vm9239 = vcmp.ge.f32.partialorder %v9175, 0.0
  %vm9240 = vcmp.ge.f32.partialorder %v9176, 0.0
  %vm9241 = vcmp.ge.f32.partialorder %v9177, 0.0
  %vm9242 = vcmp.ge.f32.partialorder %v9178, 0.0
  %vm9243 = vcmp.ge.f32.partialorder %v9179, 0.0
  %vm9244 = vcmp.ge.f32.partialorder %v9180, 0.0
  %vm9245 = vcmp.ge.f32.partialorder %v9181, 0.0
  %vm9246 = vcmp.ge.f32.partialorder %v9182, 0.0
  %vm9247 = vcmp.ge.f32.partialorder %v9183, 0.0
  %vm9248 = vcmp.ge.f32.partialorder %v9184, 0.0
  %vm9249 = vcmp.ge.f32.partialorder %v9185, 0.0
  %vm9250 = vcmp.ge.f32.partialorder %v9186, 0.0
  %vm9251 = vcmp.ge.f32.partialorder %v9187, 0.0
  %vm9252 = vcmp.ge.f32.partialorder %v9188, 0.0
  %vm9253 = vcmp.ge.f32.partialorder %v9189, 0.0
  %vm9254 = vcmp.ge.f32.partialorder %v9190, 0.0
  %vm9255 = vcmp.ge.f32.partialorder %v9191, 0.0
  %vm9256 = vcmp.ge.f32.partialorder %v9192, 0.0
  %vm9257 = vcmp.ge.f32.partialorder %v9193, 0.0
  %vm9258 = vcmp.ge.f32.partialorder %v9194, 0.0
  %vm9259 = vcmp.ge.f32.partialorder %v9195, 0.0
  %vm9260 = vcmp.ge.f32.partialorder %v9196, 0.0
  %vm9261 = vcmp.ge.f32.partialorder %v9197, 0.0
  %vm9262 = vcmp.ge.f32.partialorder %v9198, 0.0
  %vm9263 = vcmp.ge.f32.partialorder %v9199, 0.0
  %vm9264 = vcmp.ge.f32.partialorder %v9200, 0.0
  %vm9265 = vcmp.ge.f32.partialorder %v9201, 0.0
  %vm9266 = vcmp.ge.f32.partialorder %v9202, 0.0
  %vm9267 = vcmp.ge.f32.partialorder %v9203, 0.0
  %vm9268 = vcmp.ge.f32.partialorder %v9204, 0.0
  %vm9269 = vcmp.ge.f32.partialorder %v9205, 0.0
  %vm9270 = vcmp.ge.f32.partialorder %v9206, 0.0
  %vm9271 = vcmp.ge.f32.partialorder %v9207, 0.0
  %vm9272 = vcmp.ge.f32.partialorder %v9208, 0.0
  %vm9273 = vcmp.ge.f32.partialorder %v9209, 0.0
  %vm9274 = vcmp.ge.f32.partialorder %v9210, 0.0
  %vm9275 = vcmp.ge.f32.partialorder %v9211, 0.0
  %vm9276 = vcmp.ge.f32.partialorder %v9212, 0.0
  %vm9277 = vcmp.ge.f32.partialorder %v9213, 0.0
  %vm9278 = vcmp.ge.f32.partialorder %v9214, 0.0
  %vm9279 = vcmp.ge.f32.partialorder %v9215, 0.0
  %vm9280 = vcmp.ge.f32.partialorder %v9216, 0.0
  %vm9281 = vcmp.ge.f32.partialorder %v9217, 0.0
  %vm9282 = vcmp.ge.f32.partialorder %v9218, 0.0
  %vm9283 = vcmp.ge.f32.partialorder %v9219, 0.0
  %vm9284 = vcmp.ge.f32.partialorder %v9220, 0.0
  %vm9285 = vcmp.ge.f32.partialorder %v9221, 0.0
  %vm9286 = vcmp.ge.f32.partialorder %v9222, 0.0
  %vm9287 = vcmp.ge.f32.partialorder %v9223, 0.0
  %vm9288 = vcmp.ge.f32.partialorder %v9224, 0.0
  %vm9289 = vcmp.ge.f32.partialorder %v9225, 0.0
  %vm9290 = vcmp.ge.f32.partialorder %v9226, 0.0
  %vm9291 = vcmp.ge.f32.partialorder %v9227, 0.0
  %vm9292 = vcmp.ge.f32.partialorder %v9228, 0.0
  %vm9293 = vcmp.ge.f32.partialorder %v9229, 0.0
  %vm9294 = vcmp.ge.f32.partialorder %v9230, 0.0
  %vm9295 = vcmp.ge.f32.partialorder %v9231, 0.0
  %vm9296 = vcmp.ge.f32.partialorder %v9232, 0.0
  %vm9297 = vcmp.ge.f32.partialorder %v9233, 0.0
  %vm9298 = vcmp.ge.f32.partialorder %v9234, 0.0
  %vm9299 = vcmp.ge.f32.partialorder %v9235, 0.0
  %vm9300 = vcmp.ge.f32.partialorder %v9236, 0.0
  %vm9301 = vcmp.ge.f32.partialorder %v9237, 0.0
  %v9302 = vmul.f32 %v9174, 0.01
  %v9303 = vmul.f32 %v9175, 0.01
  %v9304 = vmul.f32 %v9176, 0.01
  %v9305 = vmul.f32 %v9177, 0.01
  %v9306 = vmul.f32 %v9178, 0.01
  %v9307 = vmul.f32 %v9179, 0.01
  %v9308 = vmul.f32 %v9180, 0.01
  %v9309 = vmul.f32 %v9181, 0.01
  %v9310 = vmul.f32 %v9182, 0.01
  %v9311 = vmul.f32 %v9183, 0.01
  %v9312 = vmul.f32 %v9184, 0.01
  %v9313 = vmul.f32 %v9185, 0.01
  %v9314 = vmul.f32 %v9186, 0.01
  %v9315 = vmul.f32 %v9187, 0.01
  %v9316 = vmul.f32 %v9188, 0.01
  %v9317 = vmul.f32 %v9189, 0.01
  %v9318 = vmul.f32 %v9190, 0.01
  %v9319 = vmul.f32 %v9191, 0.01
  %v9320 = vmul.f32 %v9192, 0.01
  %v9321 = vmul.f32 %v9193, 0.01
  %v9322 = vmul.f32 %v9194, 0.01
  %v9323 = vmul.f32 %v9195, 0.01
  %v9324 = vmul.f32 %v9196, 0.01
  %v9325 = vmul.f32 %v9197, 0.01
  %v9326 = vmul.f32 %v9198, 0.01
  %v9327 = vmul.f32 %v9199, 0.01
  %v9328 = vmul.f32 %v9200, 0.01
  %v9329 = vmul.f32 %v9201, 0.01
  %v9330 = vmul.f32 %v9202, 0.01
  %v9331 = vmul.f32 %v9203, 0.01
  %v9332 = vmul.f32 %v9204, 0.01
  %v9333 = vmul.f32 %v9205, 0.01
  %v9334 = vmul.f32 %v9206, 0.01
  %v9335 = vmul.f32 %v9207, 0.01
  %v9336 = vmul.f32 %v9208, 0.01
  %v9337 = vmul.f32 %v9209, 0.01
  %v9338 = vmul.f32 %v9210, 0.01
  %v9339 = vmul.f32 %v9211, 0.01
  %v9340 = vmul.f32 %v9212, 0.01
  %v9341 = vmul.f32 %v9213, 0.01
  %v9342 = vmul.f32 %v9214, 0.01
  %v9343 = vmul.f32 %v9215, 0.01
  %v9344 = vmul.f32 %v9216, 0.01
  %v9345 = vmul.f32 %v9217, 0.01
  %v9346 = vmul.f32 %v9218, 0.01
  %v9347 = vmul.f32 %v9219, 0.01
  %v9348 = vmul.f32 %v9220, 0.01
  %v9349 = vmul.f32 %v9221, 0.01
  %v9350 = vmul.f32 %v9222, 0.01
  %v9351 = vmul.f32 %v9223, 0.01
  %v9352 = vmul.f32 %v9224, 0.01
  %v9353 = vmul.f32 %v9225, 0.01
  %v9354 = vmul.f32 %v9226, 0.01
  %v9355 = vmul.f32 %v9227, 0.01
  %v9356 = vmul.f32 %v9228, 0.01
  %v9357 = vmul.f32 %v9229, 0.01
  %v9358 = vmul.f32 %v9230, 0.01
  %v9359 = vmul.f32 %v9231, 0.01
  %v9360 = vmul.f32 %v9232, 0.01
  %v9361 = vmul.f32 %v9233, 0.01
  %v9362 = vmul.f32 %v9234, 0.01
  %v9363 = vmul.f32 %v9235, 0.01
  %v9364 = vmul.f32 %v9236, 0.01
  %v9365 = vmul.f32 %v9237, 0.01
  %v9366 = vsel %vm9238, %v9174, %v9302
  %v9367 = vsel %vm9239, %v9175, %v9303
  %v9368 = vsel %vm9240, %v9176, %v9304
  %v9369 = vsel %vm9241, %v9177, %v9305
  %v9370 = vsel %vm9242, %v9178, %v9306
  %v9371 = vsel %vm9243, %v9179, %v9307
  %v9372 = vsel %vm9244, %v9180, %v9308
  %v9373 = vsel %vm9245, %v9181, %v9309
  %v9374 = vsel %vm9246, %v9182, %v9310
  %v9375 = vsel %vm9247, %v9183, %v9311
  %v9376 = vsel %vm9248, %v9184, %v9312
  %v9377 = vsel %vm9249, %v9185, %v9313
  %v9378 = vsel %vm9250, %v9186, %v9314
  %v9379 = vsel %vm9251, %v9187, %v9315
  %v9380 = vsel %vm9252, %v9188, %v9316
  %v9381 = vsel %vm9253, %v9189, %v9317
  %v9382 = vsel %vm9254, %v9190, %v9318
  %v9383 = vsel %vm9255, %v9191, %v9319
  %v9384 = vsel %vm9256, %v9192, %v9320
  %v9385 = vsel %vm9257, %v9193, %v9321
  %v9386 = vsel %vm9258, %v9194, %v9322
  %v9387 = vsel %vm9259, %v9195, %v9323
  %v9388 = vsel %vm9260, %v9196, %v9324
  %v9389 = vsel %vm9261, %v9197, %v9325
  %v9390 = vsel %vm9262, %v9198, %v9326
  %v9391 = vsel %vm9263, %v9199, %v9327
  %v9392 = vsel %vm9264, %v9200, %v9328
  %v9393 = vsel %vm9265, %v9201, %v9329
  %v9394 = vsel %vm9266, %v9202, %v9330
  %v9395 = vsel %vm9267, %v9203, %v9331
  %v9396 = vsel %vm9268, %v9204, %v9332
  %v9397 = vsel %vm9269, %v9205, %v9333
  %v9398 = vsel %vm9270, %v9206, %v9334
  %v9399 = vsel %vm9271, %v9207, %v9335
  %v9400 = vsel %vm9272, %v9208, %v9336
  %v9401 = vsel %vm9273, %v9209, %v9337
  %v9402 = vsel %vm9274, %v9210, %v9338
  %v9403 = vsel %vm9275, %v9211, %v9339
  %v9404 = vsel %vm9276, %v9212, %v9340
  %v9405 = vsel %vm9277, %v9213, %v9341
  %v9406 = vsel %vm9278, %v9214, %v9342
  %v9407 = vsel %vm9279, %v9215, %v9343
  %v9408 = vsel %vm9280, %v9216, %v9344
  %v9409 = vsel %vm9281, %v9217, %v9345
  %v9410 = vsel %vm9282, %v9218, %v9346
  %v9411 = vsel %vm9283, %v9219, %v9347
  %v9412 = vsel %vm9284, %v9220, %v9348
  %v9413 = vsel %vm9285, %v9221, %v9349
  %v9414 = vsel %vm9286, %v9222, %v9350
  %v9415 = vsel %vm9287, %v9223, %v9351
  %v9416 = vsel %vm9288, %v9224, %v9352
  %v9417 = vsel %vm9289, %v9225, %v9353
  %v9418 = vsel %vm9290, %v9226, %v9354
  %v9419 = vsel %vm9291, %v9227, %v9355
  %v9420 = vsel %vm9292, %v9228, %v9356
  %v9421 = vsel %vm9293, %v9229, %v9357
  %v9422 = vsel %vm9294, %v9230, %v9358
  %v9423 = vsel %vm9295, %v9231, %v9359
  %v9424 = vsel %vm9296, %v9232, %v9360
  %v9425 = vsel %vm9297, %v9233, %v9361
  %v9426 = vsel %vm9298, %v9234, %v9362
  %v9427 = vsel %vm9299, %v9235, %v9363
  %v9428 = vsel %vm9300, %v9236, %v9364
  %v9429 = vsel %vm9301, %v9237, %v9365
  %9430 = vst.msk [vmem:[%s10] sm:$0xff] %vm99, %v9366
  %9431 = vst.msk [vmem:[%s10 + $0x8] sm:$0xff] %vm99, %v9367
  %9432 = vst.msk [vmem:[%s10 + $0x10] sm:$0xff] %vm99, %v9368
  %9433 = vst.msk [vmem:[%s10 + $0x18] sm:$0xff] %vm99, %v9369
  %9434 = vst.msk [vmem:[%s10 + $0x20] sm:$0xff] %vm99, %v9370
  %9435 = vst.msk [vmem:[%s10 + $0x28] sm:$0xff] %vm99, %v9371
  %9436 = vst.msk [vmem:[%s10 + $0x30] sm:$0xff] %vm99, %v9372
  %9437 = vst.msk [vmem:[%s10 + $0x38] sm:$0xff] %vm99, %v9373
  %9438 = vst.msk [vmem:[%s10 + $0x40] sm:$0xff] %vm99, %v9374
  %9439 = vst.msk [vmem:[%s10 + $0x48] sm:$0xff] %vm99, %v9375
  %9440 = vst.msk [vmem:[%s10 + $0x50] sm:$0xff] %vm99, %v9376
  %9441 = vst.msk [vmem:[%s10 + $0x58] sm:$0xff] %vm99, %v9377
  %9442 = vst.msk [vmem:[%s10 + $0x60] sm:$0xff] %vm99, %v9378
  %9443 = vst.msk [vmem:[%s10 + $0x68] sm:$0xff] %vm99, %v9379
  %9444 = vst.msk [vmem:[%s10 + $0x70] sm:$0xff] %vm99, %v9380
  %9445 = vst.msk [vmem:[%s10 + $0x78] sm:$0xff] %vm99, %v9381
  %9446 = vst.msk [vmem:[%s10 + $0x80] sm:$0xff] %vm99, %v9382
  %9447 = vst.msk [vmem:[%s10 + $0x88] sm:$0xff] %vm99, %v9383
  %9448 = vst.msk [vmem:[%s10 + $0x90] sm:$0xff] %vm99, %v9384
  %9449 = vst.msk [vmem:[%s10 + $0x98] sm:$0xff] %vm99, %v9385
  %9450 = vst.msk [vmem:[%s10 + $0xa0] sm:$0xff] %vm99, %v9386
  %9451 = vst.msk [vmem:[%s10 + $0xa8] sm:$0xff] %vm99, %v9387
  %9452 = vst.msk [vmem:[%s10 + $0xb0] sm:$0xff] %vm99, %v9388
  %9453 = vst.msk [vmem:[%s10 + $0xb8] sm:$0xff] %vm99, %v9389
  %9454 = vst.msk [vmem:[%s10 + $0xc0] sm:$0xff] %vm99, %v9390
  %9455 = vst.msk [vmem:[%s10 + $0xc8] sm:$0xff] %vm99, %v9391
  %9456 = vst.msk [vmem:[%s10 + $0xd0] sm:$0xff] %vm99, %v9392
  %9457 = vst.msk [vmem:[%s10 + $0xd8] sm:$0xff] %vm99, %v9393
  %9458 = vst.msk [vmem:[%s10 + $0xe0] sm:$0xff] %vm99, %v9394
  %9459 = vst.msk [vmem:[%s10 + $0xe8] sm:$0xff] %vm99, %v9395
  %9460 = vst.msk [vmem:[%s10 + $0xf0] sm:$0xff] %vm99, %v9396
  %9461 = vst.msk [vmem:[%s10 + $0xf8] sm:$0xff] %vm99, %v9397
  %9462 = vst.msk [vmem:[%s10 + $0x100] sm:$0xff] %vm99, %v9398
  %9463 = vst.msk [vmem:[%s10 + $0x108] sm:$0xff] %vm99, %v9399
  %9464 = vst.msk [vmem:[%s10 + $0x110] sm:$0xff] %vm99, %v9400
  %9465 = vst.msk [vmem:[%s10 + $0x118] sm:$0xff] %vm99, %v9401
  %9466 = vst.msk [vmem:[%s10 + $0x120] sm:$0xff] %vm99, %v9402
  %9467 = vst.msk [vmem:[%s10 + $0x128] sm:$0xff] %vm99, %v9403
  %9468 = vst.msk [vmem:[%s10 + $0x130] sm:$0xff] %vm99, %v9404
  %9469 = vst.msk [vmem:[%s10 + $0x138] sm:$0xff] %vm99, %v9405
  %9470 = vst.msk [vmem:[%s10 + $0x140] sm:$0xff] %vm99, %v9406
  %9471 = vst.msk [vmem:[%s10 + $0x148] sm:$0xff] %vm99, %v9407
  %9472 = vst.msk [vmem:[%s10 + $0x150] sm:$0xff] %vm99, %v9408
  %9473 = vst.msk [vmem:[%s10 + $0x158] sm:$0xff] %vm99, %v9409
  %9474 = vst.msk [vmem:[%s10 + $0x160] sm:$0xff] %vm99, %v9410
  %9475 = vst.msk [vmem:[%s10 + $0x168] sm:$0xff] %vm99, %v9411
  %9476 = vst.msk [vmem:[%s10 + $0x170] sm:$0xff] %vm99, %v9412
  %9477 = vst.msk [vmem:[%s10 + $0x178] sm:$0xff] %vm99, %v9413
  %9478 = vst.msk [vmem:[%s10 + $0x180] sm:$0xff] %vm99, %v9414
  %9479 = vst.msk [vmem:[%s10 + $0x188] sm:$0xff] %vm99, %v9415
  %9480 = vst.msk [vmem:[%s10 + $0x190] sm:$0xff] %vm99, %v9416
  %9481 = vst.msk [vmem:[%s10 + $0x198] sm:$0xff] %vm99, %v9417
  %9482 = vst.msk [vmem:[%s10 + $0x1a0] sm:$0xff] %vm99, %v9418
  %9483 = vst.msk [vmem:[%s10 + $0x1a8] sm:$0xff] %vm99, %v9419
  %9484 = vst.msk [vmem:[%s10 + $0x1b0] sm:$0xff] %vm99, %v9420
  %9485 = vst.msk [vmem:[%s10 + $0x1b8] sm:$0xff] %vm99, %v9421
  %9486 = vst.msk [vmem:[%s10 + $0x1c0] sm:$0xff] %vm99, %v9422
  %9487 = vst.msk [vmem:[%s10 + $0x1c8] sm:$0xff] %vm99, %v9423
  %9488 = vst.msk [vmem:[%s10 + $0x1d0] sm:$0xff] %vm99, %v9424
  %9489 = vst.msk [vmem:[%s10 + $0x1d8] sm:$0xff] %vm99, %v9425
  %9490 = vst.msk [vmem:[%s10 + $0x1e0] sm:$0xff] %vm99, %v9426
  %9491 = vst.msk [vmem:[%s10 + $0x1e8] sm:$0xff] %vm99, %v9427
  %9492 = vst.msk [vmem:[%s10 + $0x1f0] sm:$0xff] %vm99, %v9428
  %9493 = vst.msk [vmem:[%s10 + $0x1f8] sm:$0xff] %vm99, %v9429
  // Predicated region
  $region42: #{deconv_forward.1} parent=0 // pred_check
    _
  $region43: #{deconv_forward.1} parent=0 // pred_check_branch
    %9495 = sbr.rel (0) target = $region45
  $region44: #{deconv_forward.1} parent=0 // pred_region
    _
  $region45: #{deconv_forward.1} parent=0 // pred_fallthru
    _
  // Predicated region
  $region46: #{deconv_forward.1} parent=0 // pred_check
    _
  $region47: #{deconv_forward.1} parent=0 // pred_check_branch
    %9497 = sbr.rel (0) target = $region49
  $region48: #{deconv_forward.1} parent=0 // pred_region
    _
  $region49: #{deconv_forward.1} parent=0 // pred_fallthru
    _

</llo_original>
